<compile_context>
chip_gen: v6e
topology: v6e:2x2x1
jax: 0.10.0
libtpu: 0.0.40
codegen_flags: <defaults>
</compile_context>

<pallas_src>
import functools

import jax
import jax.numpy as jnp
from jax.experimental import pallas as pl
from jax.experimental.pallas import tpu as pltpu


def pointnet_pool_kernel(x_ref, w1_ref, b1_ref, w2_ref, b2_ref, w3_ref, b3_ref,
                         out_ref, acc_ref):
    c = pl.program_id(1)          # point chunk (reduction axis)

    # ---- init running-max accumulator at the first chunk of each batch ----
    @pl.when(c == 0)
    def _init():
        acc_ref[...] = jnp.full(acc_ref.shape, -jnp.inf, dtype=acc_ref.dtype)

    # ---- per-point MLP (Conv1d k=1 stack), channel-major (C, chunk) tiles ----
    x_cw = x_ref[0]                                                   # (3, chunk) bf16
    # TODO(synk): conv1 (K=3) could run on the VPU as 3 broadcast FMAs instead of a
    # padded-K MXU pass; minor win, left on the MXU for simplicity.
    h1 = jnp.dot(w1_ref[...], x_cw,
                 preferred_element_type=jnp.float32) + b1_ref[...]
    h1 = jnp.maximum(h1, 0.0).astype(jnp.bfloat16)                    # relu1(conv1)
    h2 = jnp.dot(w2_ref[...], h1,
                 preferred_element_type=jnp.float32) + b2_ref[...]
    h2 = jnp.maximum(h2, 0.0).astype(jnp.bfloat16)                    # relu2(conv2)
    h3 = jnp.dot(w3_ref[...], h2,
                 preferred_element_type=jnp.float32) + b3_ref[...]    # conv3 (l3, chunk) f32

    # ---- fused max pooling over points: element-wise running max (bf16 acc) ----
    # Padded point columns are edge-replicated real points, so no mask is needed.
    acc_ref[...] = jnp.maximum(acc_ref[...], h3.astype(acc_ref.dtype))

    # ---- write pooled features (lane-dense row) once per batch element ----
    @pl.when(c == pl.num_programs(1) - 1)
    def _finalize():
        out_ref[...] = jnp.max(acc_ref[...], axis=1)[None, None, :]   # (1, 1, l3)


def pointnet_onexy_forward(x_ncw, y, params, *, point_chunk=512):
    """x_ncw: (B, 3, N) PyTorch-style NCW input; y: (B, 2) (T, P) extras."""
    B, C, N = x_ncw.shape
    assert C == 3
    (w1, b1, w2, b2, w3, b3, wf1a, wf1b, bf1, wf2, bf2, wf3, bf3) = params
    l1, l2, l3 = w1.shape[0], w2.shape[0], w3.shape[0]

    chunk = point_chunk
    num_chunks = pl.cdiv(N, chunk)
    n_pad = num_chunks * chunk

    # Stream NCW directly (no host transpose); edge-pad the points axis so padded
    # columns are duplicated real points (cannot change the max -> no in-kernel mask).
    if n_pad != N:
        x_ncw = jnp.pad(x_ncw, ((0, 0), (0, 0), (0, n_pad - N)), mode="edge")
    x_b = x_ncw.astype(jnp.bfloat16)

    # bf16 matmul operands (f32 accumulation in-kernel); biases stay f32 columns.
    w1b, w2b, w3b = (w.astype(jnp.bfloat16) for w in (w1, w2, w3))

    def resident(arr):   # full-array block, constant index -> DMA'd once, stays in VMEM
        nd = arr.ndim
        return pl.BlockSpec(arr.shape, lambda bi, ci, _nd=nd: (0,) * _nd)

    flops = 2 * (3 * l1 + l1 * l2 + l2 * l3) * B * n_pad
    bytes_accessed = (int(x_b.size) * 2
                      + sum(int(a.size) * 2 for a in (w1b, w2b, w3b))
                      + sum(int(a.size) * 4 for a in (b1, b2, b3))
                      + B * l3 * 2)

    pooled = pl.pallas_call(
        pointnet_pool_kernel,
        out_shape=jax.ShapeDtypeStruct((B, 1, l3), jnp.bfloat16),
        grid_spec=pltpu.PrefetchScalarGridSpec(
            num_scalar_prefetch=0,
            grid=(B, num_chunks),
            in_specs=[
                pl.BlockSpec((1, 3, chunk), lambda bi, ci: (bi, 0, ci)),   # x point tile
                resident(w1b), resident(b1),
                resident(w2b), resident(b2),
                resident(w3b), resident(b3),
            ],
            out_specs=pl.BlockSpec((1, 1, l3), lambda bi, ci: (bi, 0, 0)),
            scratch_shapes=[pltpu.VMEM((l3, chunk), jnp.bfloat16)],
        ),
        compiler_params=pltpu.CompilerParams(
            dimension_semantics=("parallel", "arbitrary")),
        cost_estimate=pl.CostEstimate(flops=flops, transcendentals=0,
                                      bytes_accessed=bytes_accessed),
    )(x_b, w1b, b1, w2b, b2, w3b, b3)

    pooled = pooled.reshape(B, l3)                       # (B, l3) bf16 global features

    # ---- FC head hoisted out of the kernel: batched (B, .) matmuls fill the MXU ----
    def mm(a, w):   # a: (B, in) activations, w: (out, in) torch-layout weight
        return jnp.dot(a.astype(jnp.bfloat16), w.T.astype(jnp.bfloat16),
                       preferred_element_type=jnp.float32)

    # fc1 applied to cat([pooled, y]) == pooled @ wf1a.T + y @ wf1b.T + bias
    f = jax.nn.relu(mm(pooled, wf1a) + y @ wf1b.T + bf1[:, 0])        # relu3(fc1)
    # TODO(synk): stochastic dropout (p>0, training mode) not implemented; default p=0.
    g = jax.nn.relu(mm(f, wf2) + bf2[:, 0])                           # relu4(fc2)
    return mm(g, wf3) + bf3[:, 0]                                     # fc3


def make_params(key, l1, l2, l3, l4, l5, out_dim):
    """Deterministic synthetic parameters in PyTorch orientation:
    weights (out, in); biases stored as columns (out, 1)."""
    ks = jax.random.split(key, 12)

    def w(k, fan_out, fan_in):
        return (jax.random.normal(k, (fan_out, fan_in), jnp.float32)
                * (1.0 / float(fan_in) ** 0.5))

    def b(k, fan_out):
        return jax.random.normal(k, (fan_out, 1), jnp.float32) * 0.01

    w1, b1 = w(ks[0], l1, 3), b(ks[1], l1)
    w2, b2 = w(ks[2], l2, l1), b(ks[3], l2)
    w3, b3 = w(ks[4], l3, l2), b(ks[5], l3)
    wfc1 = w(ks[6], l4, l3 + 2)              # fc1 weight for cat([pooled(l3), y(2)])
    wf1a, wf1b = wfc1[:, :l3], wfc1[:, l3:]
    bf1 = b(ks[7], l4)
    wf2, bf2 = w(ks[8], l5, l4), b(ks[9], l5)
    wf3, bf3 = w(ks[10], out_dim, l5), b(ks[11], out_dim)
    return (w1, b1, w2, b2, w3, b3, wf1a, wf1b, bf1, wf2, bf2, wf3, bf3)


def reference_forward(x_ncw, y, params):
    """Pure-JAX reference of the PyTorch default forward path, using the same
    bf16-operand / f32-accumulate matmul precision as the kernel."""
    (w1, b1, w2, b2, w3, b3, wf1a, wf1b, bf1, wf2, bf2, wf3, bf3) = params

    def mm(a, w):   # a: (..., in) activations, w: (out, in) torch-layout weight
        return jnp.dot(a.astype(jnp.bfloat16), w.T.astype(jnp.bfloat16),
                       preferred_element_type=jnp.float32)

    x = jnp.transpose(x_ncw, (0, 2, 1))                      # (B, N, 3)
    h = jax.nn.relu(mm(x, w1) + b1[:, 0])
    h = jax.nn.relu(mm(h, w2) + b2[:, 0])
    h = mm(h, w3) + b3[:, 0]                                 # (B, N, l3)
    pooled = jnp.max(h, axis=1)                              # torch.max(x, 2)
    f = jax.nn.relu(mm(pooled, wf1a) + y @ wf1b.T + bf1[:, 0])
    g = jax.nn.relu(mm(f, wf2) + bf2[:, 0])
    return mm(g, wf3) + bf3[:, 0]


if __name__ == "__main__":
    # Small shapes consistent with the module defaults (l-sizes are the module's
    # constructor defaults); N=600 with chunk=256 exercises multi-chunk pooling
    # plus the edge-padding path (600 -> 768 points).
    B, N = 2, 600
    l1, l2, l3, l4, l5 = 64, 128, 1024, 512, 512
    out_dim = 323  # liquid == 'Ar'

    key = jax.random.PRNGKey(0)
    kx, ky, kp = jax.random.split(key, 3)
    x = jax.random.normal(kx, (B, 3, N), jnp.float32)   # PyTorch-style NCW input
    y = jax.random.normal(ky, (B, 2), jnp.float32)      # (T, P) extras for addTP
    params = make_params(kp, l1, l2, l3, l4, l5, out_dim)

    out = pointnet_onexy_forward(x, y, params, point_chunk=256)
    out = jax.block_until_ready(out)

    ref = reference_forward(x, y, params)
    assert out.shape == (B, out_dim)
    max_err = float(jnp.max(jnp.abs(out - ref)))
    # bf16 operands / f32 accumulation: allow bf16-level noise between the two
    # (mathematically identical) association orders.
    assert jnp.allclose(out, ref, atol=2e-2, rtol=2e-2), f"max abs err {max_err}"

    print("KERNEL_OK")
</pallas_src>

<mosaic_0001>
module attributes {stable_mosaic.version = 11 : i64} {
  func.func @pointnet_pool_kernel(%arg0: i32, %arg1: i32, %arg2: memref<1x3x256xbf16, #tpu.memory_space<vmem>>, %arg3: memref<64x3xbf16, #tpu.memory_space<vmem>>, %arg4: memref<64x1xf32, #tpu.memory_space<vmem>>, %arg5: memref<128x64xbf16, #tpu.memory_space<vmem>>, %arg6: memref<128x1xf32, #tpu.memory_space<vmem>>, %arg7: memref<1024x128xbf16, #tpu.memory_space<vmem>>, %arg8: memref<1024x1xf32, #tpu.memory_space<vmem>>, %arg9: memref<1x1x1024xbf16, #tpu.memory_space<vmem>>, %arg10: memref<1024x256xbf16, #tpu.memory_space<vmem>>) attributes {dimension_semantics = [#tpu.dimension_semantics<parallel>, #tpu.dimension_semantics<arbitrary>], iteration_bounds = array<i64: 2, 3>, scalar_prefetch = 0 : i64, scratch_operands = 1 : i64, tpu.core_type = #tpu.core_type<tc>, window_params = [{transform_indices = @transform_0, window_bounds = array<i64: 1, 3, 256>}, {pipeline_mode = #tpu.pipeline_mode<synchronous>, transform_indices = @transform_1, window_bounds = array<i64: 64, 3>}, {pipeline_mode = #tpu.pipeline_mode<synchronous>, transform_indices = @transform_2, window_bounds = array<i64: 64, 1>}, {pipeline_mode = #tpu.pipeline_mode<synchronous>, transform_indices = @transform_3, window_bounds = array<i64: 128, 64>}, {pipeline_mode = #tpu.pipeline_mode<synchronous>, transform_indices = @transform_4, window_bounds = array<i64: 128, 1>}, {pipeline_mode = #tpu.pipeline_mode<synchronous>, transform_indices = @transform_5, window_bounds = array<i64: 1024, 128>}, {pipeline_mode = #tpu.pipeline_mode<synchronous>, transform_indices = @transform_6, window_bounds = array<i64: 1024, 1>}, {transform_indices = @transform_7, window_bounds = array<i64: 1, 1, 1024>}]} {
    %c0_i32 = arith.constant 0 : i32
    %0 = arith.cmpi eq, %arg1, %c0_i32 : i32
    %1 = arith.extui %0 : i1 to i32
    %c0_i32_0 = arith.constant 0 : i32
    %2 = arith.cmpi ne, %1, %c0_i32_0 : i32
    scf.if %2 {
      %cst_24 = arith.constant 0xFF80 : bf16
      %33 = vector.broadcast %cst_24 : bf16 to vector<1024x256xbf16>
      %c0_25 = arith.constant 0 : index
      %c0_26 = arith.constant 0 : index
      %34 = vector.load %arg10[%c0_25, %c0_26] : memref<1024x256xbf16, #tpu.memory_space<vmem>>, vector<1024x256xbf16>
      tpu.vector_store %arg10[%c0_25, %c0_26], %33 {strides = array<i32>} : memref<1024x256xbf16, #tpu.memory_space<vmem>>, vector<1024x256xbf16>,
    } else {
    }
    %c0 = arith.constant 0 : index
    %c0_1 = arith.constant 0 : index
    %c0_2 = arith.constant 0 : index
    %3 = vector.load %arg2[%c0, %c0_1, %c0_2] : memref<1x3x256xbf16, #tpu.memory_space<vmem>>, vector<1x3x256xbf16>
    %4 = vector.shape_cast %3 : vector<1x3x256xbf16> to vector<3x256xbf16>
    %c0_3 = arith.constant 0 : index
    %c0_4 = arith.constant 0 : index
    %5 = vector.load %arg3[%c0_3, %c0_4] : memref<64x3xbf16, #tpu.memory_space<vmem>>, vector<64x3xbf16>
    %cst = arith.constant dense<0.000000e+00> : vector<64x256xf32>
    %6 = tpu.matmul %5, %4, %cst {dimension_numbers = #tpu.dot_dimension_numbers<[1], [0], [0], [1], [0, 0, 1, 1], [], []>} : vector<64x3xbf16>, vector<3x256xbf16>, vector<64x256xf32> -> vector<64x256xf32>
    %c0_5 = arith.constant 0 : index
    %c0_6 = arith.constant 0 : index
    %7 = vector.load %arg4[%c0_5, %c0_6] : memref<64x1xf32, #tpu.memory_space<vmem>>, vector<64x1xf32>
    %8 = vector.broadcast %7 : vector<64x1xf32> to vector<64x256xf32>
    %9 = arith.addf %6, %8 : vector<64x256xf32>
    %cst_7 = arith.constant 0.000000e+00 : f32
    %10 = vector.broadcast %cst_7 : f32 to vector<64x256xf32>
    %11 = arith.maximumf %9, %10 : vector<64x256xf32>
    %12 = arith.truncf %11 : vector<64x256xf32> to vector<64x256xbf16>
    %c0_8 = arith.constant 0 : index
    %c0_9 = arith.constant 0 : index
    %13 = vector.load %arg5[%c0_8, %c0_9] : memref<128x64xbf16, #tpu.memory_space<vmem>>, vector<128x64xbf16>
    %cst_10 = arith.constant dense<0.000000e+00> : vector<128x256xf32>
    %14 = tpu.matmul %13, %12, %cst_10 {dimension_numbers = #tpu.dot_dimension_numbers<[1], [0], [0], [1], [0, 0, 1, 1], [], []>} : vector<128x64xbf16>, vector<64x256xbf16>, vector<128x256xf32> -> vector<128x256xf32>
    %c0_11 = arith.constant 0 : index
    %c0_12 = arith.constant 0 : index
    %15 = vector.load %arg6[%c0_11, %c0_12] : memref<128x1xf32, #tpu.memory_space<vmem>>, vector<128x1xf32>
    %16 = vector.broadcast %15 : vector<128x1xf32> to vector<128x256xf32>
    %17 = arith.addf %14, %16 : vector<128x256xf32>
    %cst_13 = arith.constant 0.000000e+00 : f32
    %18 = vector.broadcast %cst_13 : f32 to vector<128x256xf32>
    %19 = arith.maximumf %17, %18 : vector<128x256xf32>
    %20 = arith.truncf %19 : vector<128x256xf32> to vector<128x256xbf16>
    %c0_14 = arith.constant 0 : index
    %c0_15 = arith.constant 0 : index
    %21 = vector.load %arg7[%c0_14, %c0_15] : memref<1024x128xbf16, #tpu.memory_space<vmem>>, vector<1024x128xbf16>
    %cst_16 = arith.constant dense<0.000000e+00> : vector<1024x256xf32>
    %22 = tpu.matmul %21, %20, %cst_16 {dimension_numbers = #tpu.dot_dimension_numbers<[1], [0], [0], [1], [0, 0, 1, 1], [], []>} : vector<1024x128xbf16>, vector<128x256xbf16>, vector<1024x256xf32> -> vector<1024x256xf32>
    %c0_17 = arith.constant 0 : index
    %c0_18 = arith.constant 0 : index
    %23 = vector.load %arg8[%c0_17, %c0_18] : memref<1024x1xf32, #tpu.memory_space<vmem>>, vector<1024x1xf32>
    %24 = vector.broadcast %23 : vector<1024x1xf32> to vector<1024x256xf32>
    %25 = arith.addf %22, %24 : vector<1024x256xf32>
    %c0_19 = arith.constant 0 : index
    %c0_20 = arith.constant 0 : index
    %26 = vector.load %arg10[%c0_19, %c0_20] : memref<1024x256xbf16, #tpu.memory_space<vmem>>, vector<1024x256xbf16>
    %27 = arith.truncf %25 : vector<1024x256xf32> to vector<1024x256xbf16>
    %28 = arith.maximumf %26, %27 : vector<1024x256xbf16>
    %c0_21 = arith.constant 0 : index
    %c0_22 = arith.constant 0 : index
    %29 = vector.load %arg10[%c0_21, %c0_22] : memref<1024x256xbf16, #tpu.memory_space<vmem>>, vector<1024x256xbf16>
    tpu.vector_store %arg10[%c0_21, %c0_22], %28 {strides = array<i32>} : memref<1024x256xbf16, #tpu.memory_space<vmem>>, vector<1024x256xbf16>,
    %c2_i32 = arith.constant 2 : i32
    %30 = arith.cmpi eq, %arg1, %c2_i32 : i32
    %31 = arith.extui %30 : i1 to i32
    %c0_i32_23 = arith.constant 0 : i32
    %32 = arith.cmpi ne, %31, %c0_i32_23 : i32
    scf.if %32 {
      %c0_24 = arith.constant 0 : index
      %c0_25 = arith.constant 0 : index
      %33 = vector.load %arg10[%c0_24, %c0_25] : memref<1024x256xbf16, #tpu.memory_space<vmem>>, vector<1024x256xbf16>
      %cst_26 = arith.constant dense<0xFF80> : vector<1024xbf16>
      %34 = vector.multi_reduction <maximumf>, %33, %cst_26 [1] : vector<1024x256xbf16> to vector<1024xbf16>
      %35 = vector.shape_cast %34 : vector<1024xbf16> to vector<1x1x1024xbf16>
      %c0_27 = arith.constant 0 : index
      %c0_28 = arith.constant 0 : index
      %c0_29 = arith.constant 0 : index
      %36 = vector.load %arg9[%c0_27, %c0_28, %c0_29] : memref<1x1x1024xbf16, #tpu.memory_space<vmem>>, vector<1x1x1024xbf16>
      tpu.vector_store %arg9[%c0_27, %c0_28, %c0_29], %35 {strides = array<i32>} : memref<1x1x1024xbf16, #tpu.memory_space<vmem>>, vector<1x1x1024xbf16>,
    } else {
    }
    return
  }
  func.func @transform_0(%arg0: i32, %arg1: i32) -> (i32, i32, i32) {
    %c0_i32 = arith.constant 0 : i32
    %c0_i32_0 = arith.constant 0 : i32
    return %arg0, %c0_i32, %arg1 : i32, i32, i32
  }
  func.func @transform_1(%arg0: i32, %arg1: i32) -> (i32, i32) {
    %c0_i32 = arith.constant 0 : i32
    %c0_i32_0 = arith.constant 0 : i32
    %c0_i32_1 = arith.constant 0 : i32
    return %c0_i32, %c0_i32_0 : i32, i32
  }
  func.func @transform_2(%arg0: i32, %arg1: i32) -> (i32, i32) {
    %c0_i32 = arith.constant 0 : i32
    %c0_i32_0 = arith.constant 0 : i32
    %c0_i32_1 = arith.constant 0 : i32
    return %c0_i32, %c0_i32_0 : i32, i32
  }
  func.func @transform_3(%arg0: i32, %arg1: i32) -> (i32, i32) {
    %c0_i32 = arith.constant 0 : i32
    %c0_i32_0 = arith.constant 0 : i32
    %c0_i32_1 = arith.constant 0 : i32
    return %c0_i32, %c0_i32_0 : i32, i32
  }
  func.func @transform_4(%arg0: i32, %arg1: i32) -> (i32, i32) {
    %c0_i32 = arith.constant 0 : i32
    %c0_i32_0 = arith.constant 0 : i32
    %c0_i32_1 = arith.constant 0 : i32
    return %c0_i32, %c0_i32_0 : i32, i32
  }
  func.func @transform_5(%arg0: i32, %arg1: i32) -> (i32, i32) {
    %c0_i32 = arith.constant 0 : i32
    %c0_i32_0 = arith.constant 0 : i32
    %c0_i32_1 = arith.constant 0 : i32
    return %c0_i32, %c0_i32_0 : i32, i32
  }
  func.func @transform_6(%arg0: i32, %arg1: i32) -> (i32, i32) {
    %c0_i32 = arith.constant 0 : i32
    %c0_i32_0 = arith.constant 0 : i32
    %c0_i32_1 = arith.constant 0 : i32
    return %c0_i32, %c0_i32_0 : i32, i32
  }
  func.func @transform_7(%arg0: i32, %arg1: i32) -> (i32, i32, i32) {
    %c0_i32 = arith.constant 0 : i32
    %c0_i32_0 = arith.constant 0 : i32
    %c0_i32_1 = arith.constant 0 : i32
    return %arg0, %c0_i32, %c0_i32_0 : i32, i32, i32
  }
}

</mosaic_0001>

<llo_original>
// kernel: tpu_custom_call.1
$region0: #{tpu_custom_call.1}
  #allocation0 [shape = 'u32[]', space=smem, size = 0x4, offset = 0x4, fixed_abs, tag = 'smem constant byte address 0x4 - core index']
  #allocation1 [shape = 'u32[144,128]{1,0:T(1,128)}', space=vmem, size = 0x12000, scoped, tag = 'internal scratch']
  #allocation2 [shape = 'bf16[1024,256]{1,0:T(8,128)(2,1)}', space=vmem, size = 0x80000, scoped, tag = 'scratch operand']
  %s0 = inlined_call_operand.vmem [shape: bf16[2,3,768], index: 0, kind: input, shape index: {}]
  %s1 = inlined_call_operand.vmem [shape: bf16[64,3], index: 1, kind: input, shape index: {}]
  %s2 = inlined_call_operand.vmem [shape: f32[64,1], index: 2, kind: input, shape index: {}]
  %s3 = inlined_call_operand.vmem [shape: bf16[128,64], index: 3, kind: input, shape index: {}]
  %s4 = inlined_call_operand.vmem [shape: f32[128,1], index: 4, kind: input, shape index: {}]
  %s5 = inlined_call_operand.vmem [shape: bf16[1024,128], index: 5, kind: input, shape index: {}]
  %s6 = inlined_call_operand.vmem [shape: f32[1024,1], index: 6, kind: input, shape index: {}]
  %s7 = inlined_call_operand.vmem [shape: bf16[2,1,1024], index: 7, kind: output, shape index: {}]
  %s8 = sld [smem:[#allocation0]]
  $region69: #{tpu_custom_call.1} parent=0
    _
  %s10 = ssub.s32 1, %s8
  %s11 = scalar_select 0, %s10, %s8
  loop: start=0, step=1, limit=8
  $region2: #{tpu_custom_call.1} parent=0 // loop_pre_header
    _
  $region3: #{tpu_custom_call.1} parent=0 // loop_header
    %s13 = sphi 0, %s17
    %p14 = scmp.ge.s32.totalorder %s13, 8
    %s20 = sphi 0, %s32
    %s21 = sphi 0, %s28
    %s22 = sphi 0, %s20
    %s23 = sphi 0, %s21
    %s24 = sphi 0, %s22
    %s25 = sphi 0, %s23
    %s37 = sphi 0, %s39
    %s40 = sphi 0, %s37
    %s41 = sphi 0, %s40
    %s57 = sphi 0, %s41
    %s61 = sphi 0, %s61
    %s63 = sphi 0, %s61
    %s64 = sphi 0, %s63
    %s78 = sphi 0, %s64
    %s82 = sphi 0, %s82
    %s84 = sphi 0, %s82
    %s85 = sphi 0, %s84
    %s99 = sphi 0, %s85
    %s103 = sphi 0, %s103
    %s105 = sphi 0, %s103
    %s106 = sphi 0, %s105
    %s120 = sphi 0, %s106
    %s124 = sphi 0, %s124
    %s126 = sphi 0, %s124
    %s127 = sphi 0, %s126
    %s141 = sphi 0, %s127
    %s145 = sphi 0, %s145
    %s147 = sphi 0, %s145
    %s148 = sphi 0, %s147
    %s162 = sphi 0, %s148
    %s166 = sphi 0, %s166
    %s168 = sphi 0, %s166
    %s169 = sphi 0, %s168
    %s183 = sphi 0, %s169
    %s189 = sphi 0, %s191
    %s192 = sphi 0, %s189
    %s193 = sphi 0, %s192
    %s209 = sphi 0, %s193
  $region4: #{tpu_custom_call.1} parent=0 // loop_header_branch
    %16 = sbr.rel (%p14) target = $region8
  $region5: #{tpu_custom_call.1} parent=0 // loop_body
    %s18 = ssub.s32 %s13, 1
    %s19 = ssub.s32 %s13, 2
    %s26 = sadd.s32 1, %s21
    %p27 = scmp.ge.s32.totalorder %s26, 3
    %s28 = scalar_select %p27, 0, %s26
    %s29 = sadd.s32 1, %s20
    %s30 = scalar_select %p27, %s29, %s20
    %p31 = scmp.ge.s32.totalorder %s30, 2
    %s32 = scalar_select %p31, 0, %s30
    %s33 = ssub.s32 %s20, %s32
    %s34 = ssub.s32 %s21, %s28
    %s35 = sor.u32 %s33, %s34
    %p36 = scmp.eq.s32.totalorder %s35, 0
    %s38 = sadd.s32 %s37, 1
    %s39 = scalar_select %p36, %s37, %s38
    %p42 = pneg %p36
    %p43 = scmp.eq.s32.totalorder %s13, 5
    %p44 = por %p42, %p43
    %p45 = scmp.ne.s32.totalorder %s37, %s40
    %p46 = scmp.eq.s32.totalorder %s13, 0
    %p47 = por %p45, %p46
    %p48 = scmp.ne.s32.totalorder %s37, %s40
    %p49 = scmp.eq.s32.totalorder %s18, 5
    %p50 = por %p48, %p49
    %p51 = scmp.ne.s32.totalorder %s40, %s41
    %p52 = scmp.eq.s32.totalorder %s18, 0
    %p53 = por %p51, %p52
    %p54 = scmp.ne.s32.totalorder %s40, %s41
    %p55 = scmp.eq.s32.totalorder %s19, 5
    %p56 = por %p54, %p55
    %p58 = scmp.ne.s32.totalorder %s41, %s57
    %p59 = scmp.eq.s32.totalorder %s19, 0
    %p60 = por %p58, %p59
    %s62 = sadd.s32 %s61, 1
    %p65 = scmp.eq.s32.totalorder %s13, 5
    %p66 = scmp.ne.s32.totalorder %s61, %s63
    %p67 = scmp.eq.s32.totalorder %s13, 0
    %p68 = por %p66, %p67
    %p69 = scmp.ne.s32.totalorder %s61, %s63
    %p70 = scmp.eq.s32.totalorder %s18, 5
    %p71 = por %p69, %p70
    %p72 = scmp.ne.s32.totalorder %s63, %s64
    %p73 = scmp.eq.s32.totalorder %s18, 0
    %p74 = por %p72, %p73
    %p75 = scmp.ne.s32.totalorder %s63, %s64
    %p76 = scmp.eq.s32.totalorder %s19, 5
    %p77 = por %p75, %p76
    %p79 = scmp.ne.s32.totalorder %s64, %s78
    %p80 = scmp.eq.s32.totalorder %s19, 0
    %p81 = por %p79, %p80
    %s83 = sadd.s32 %s82, 1
    %p86 = scmp.eq.s32.totalorder %s13, 5
    %p87 = scmp.ne.s32.totalorder %s82, %s84
    %p88 = scmp.eq.s32.totalorder %s13, 0
    %p89 = por %p87, %p88
    %p90 = scmp.ne.s32.totalorder %s82, %s84
    %p91 = scmp.eq.s32.totalorder %s18, 5
    %p92 = por %p90, %p91
    %p93 = scmp.ne.s32.totalorder %s84, %s85
    %p94 = scmp.eq.s32.totalorder %s18, 0
    %p95 = por %p93, %p94
    %p96 = scmp.ne.s32.totalorder %s84, %s85
    %p97 = scmp.eq.s32.totalorder %s19, 5
    %p98 = por %p96, %p97
    %p100 = scmp.ne.s32.totalorder %s85, %s99
    %p101 = scmp.eq.s32.totalorder %s19, 0
    %p102 = por %p100, %p101
    %s104 = sadd.s32 %s103, 1
    %p107 = scmp.eq.s32.totalorder %s13, 5
    %p108 = scmp.ne.s32.totalorder %s103, %s105
    %p109 = scmp.eq.s32.totalorder %s13, 0
    %p110 = por %p108, %p109
    %p111 = scmp.ne.s32.totalorder %s103, %s105
    %p112 = scmp.eq.s32.totalorder %s18, 5
    %p113 = por %p111, %p112
    %p114 = scmp.ne.s32.totalorder %s105, %s106
    %p115 = scmp.eq.s32.totalorder %s18, 0
    %p116 = por %p114, %p115
    %p117 = scmp.ne.s32.totalorder %s105, %s106
    %p118 = scmp.eq.s32.totalorder %s19, 5
    %p119 = por %p117, %p118
    %p121 = scmp.ne.s32.totalorder %s106, %s120
    %p122 = scmp.eq.s32.totalorder %s19, 0
    %p123 = por %p121, %p122
    %s125 = sadd.s32 %s124, 1
    %p128 = scmp.eq.s32.totalorder %s13, 5
    %p129 = scmp.ne.s32.totalorder %s124, %s126
    %p130 = scmp.eq.s32.totalorder %s13, 0
    %p131 = por %p129, %p130
    %p132 = scmp.ne.s32.totalorder %s124, %s126
    %p133 = scmp.eq.s32.totalorder %s18, 5
    %p134 = por %p132, %p133
    %p135 = scmp.ne.s32.totalorder %s126, %s127
    %p136 = scmp.eq.s32.totalorder %s18, 0
    %p137 = por %p135, %p136
    %p138 = scmp.ne.s32.totalorder %s126, %s127
    %p139 = scmp.eq.s32.totalorder %s19, 5
    %p140 = por %p138, %p139
    %p142 = scmp.ne.s32.totalorder %s127, %s141
    %p143 = scmp.eq.s32.totalorder %s19, 0
    %p144 = por %p142, %p143
    %s146 = sadd.s32 %s145, 1
    %p149 = scmp.eq.s32.totalorder %s13, 5
    %p150 = scmp.ne.s32.totalorder %s145, %s147
    %p151 = scmp.eq.s32.totalorder %s13, 0
    %p152 = por %p150, %p151
    %p153 = scmp.ne.s32.totalorder %s145, %s147
    %p154 = scmp.eq.s32.totalorder %s18, 5
    %p155 = por %p153, %p154
    %p156 = scmp.ne.s32.totalorder %s147, %s148
    %p157 = scmp.eq.s32.totalorder %s18, 0
    %p158 = por %p156, %p157
    %p159 = scmp.ne.s32.totalorder %s147, %s148
    %p160 = scmp.eq.s32.totalorder %s19, 5
    %p161 = por %p159, %p160
    %p163 = scmp.ne.s32.totalorder %s148, %s162
    %p164 = scmp.eq.s32.totalorder %s19, 0
    %p165 = por %p163, %p164
    %s167 = sadd.s32 %s166, 1
    %p170 = scmp.eq.s32.totalorder %s13, 5
    %p171 = scmp.ne.s32.totalorder %s166, %s168
    %p172 = scmp.eq.s32.totalorder %s13, 0
    %p173 = por %p171, %p172
    %p174 = scmp.ne.s32.totalorder %s166, %s168
    %p175 = scmp.eq.s32.totalorder %s18, 5
    %p176 = por %p174, %p175
    %p177 = scmp.ne.s32.totalorder %s168, %s169
    %p178 = scmp.eq.s32.totalorder %s18, 0
    %p179 = por %p177, %p178
    %p180 = scmp.ne.s32.totalorder %s168, %s169
    %p181 = scmp.eq.s32.totalorder %s19, 5
    %p182 = por %p180, %p181
    %p184 = scmp.ne.s32.totalorder %s169, %s183
    %p185 = scmp.eq.s32.totalorder %s19, 0
    %p186 = por %p184, %p185
    %s187 = ssub.s32 %s20, %s32
    %p188 = scmp.eq.s32.totalorder %s187, 0
    %s190 = sadd.s32 %s189, 1
    %s191 = scalar_select %p188, %s189, %s190
    %p194 = pneg %p188
    %p195 = scmp.eq.s32.totalorder %s13, 5
    %p196 = por %p194, %p195
    %p197 = scmp.ne.s32.totalorder %s189, %s192
    %p198 = scmp.eq.s32.totalorder %s13, 0
    %p199 = por %p197, %p198
    %p200 = scmp.ne.s32.totalorder %s189, %s192
    %p201 = scmp.eq.s32.totalorder %s18, 5
    %p202 = por %p200, %p201
    %p203 = scmp.ne.s32.totalorder %s192, %s193
    %p204 = scmp.eq.s32.totalorder %s18, 0
    %p205 = por %p203, %p204
    %p206 = scmp.ne.s32.totalorder %s192, %s193
    %p207 = scmp.eq.s32.totalorder %s19, 5
    %p208 = por %p206, %p207
    %p210 = scmp.ne.s32.totalorder %s193, %s209
    %p211 = scmp.eq.s32.totalorder %s19, 0
    %p212 = por %p210, %p211
    %p213 = scmp.le.s32.totalorder 1, %s13
    %p214 = scmp.lt.s32.totalorder %s13, 7
    %p215 = pnand %p213, %p214
    %p216 = pneg %p215
    // Predicated region
    $region9: #{tpu_custom_call.1} parent=5 // pred_check
      _
    $region10: #{tpu_custom_call.1} parent=5 // pred_check_branch
      %218 = sbr.rel (%p215) target = $region12
    $region11: #{tpu_custom_call.1} parent=5 // pred_region
      %s219 = ssub.s32 %s13, 1
      // Predicated region
      $region13: #{tpu_custom_call.1} parent=11 // pred_check
        %p220 = pneg %p74
      $region14: #{tpu_custom_call.1} parent=11 // pred_check_branch
        %222 = sbr.rel (%p220) target = $region16
      $region15: #{tpu_custom_call.1} parent=11 // pred_region
        _
      $region16: #{tpu_custom_call.1} parent=11 // pred_fallthru
        _
      // Predicated region
      $region17: #{tpu_custom_call.1} parent=11 // pred_check
        %p223 = pneg %p95
      $region18: #{tpu_custom_call.1} parent=11 // pred_check_branch
        %225 = sbr.rel (%p223) target = $region20
      $region19: #{tpu_custom_call.1} parent=11 // pred_region
        _
      $region20: #{tpu_custom_call.1} parent=11 // pred_fallthru
        _
      // Predicated region
      $region21: #{tpu_custom_call.1} parent=11 // pred_check
        %p226 = pneg %p116
      $region22: #{tpu_custom_call.1} parent=11 // pred_check_branch
        %228 = sbr.rel (%p226) target = $region24
      $region23: #{tpu_custom_call.1} parent=11 // pred_region
        _
      $region24: #{tpu_custom_call.1} parent=11 // pred_fallthru
        _
      // Predicated region
      $region25: #{tpu_custom_call.1} parent=11 // pred_check
        %p229 = pneg %p137
      $region26: #{tpu_custom_call.1} parent=11 // pred_check_branch
        %231 = sbr.rel (%p229) target = $region28
      $region27: #{tpu_custom_call.1} parent=11 // pred_region
        _
      $region28: #{tpu_custom_call.1} parent=11 // pred_fallthru
        _
      // Predicated region
      $region29: #{tpu_custom_call.1} parent=11 // pred_check
        %p232 = pneg %p158
      $region30: #{tpu_custom_call.1} parent=11 // pred_check_branch
        %234 = sbr.rel (%p232) target = $region32
      $region31: #{tpu_custom_call.1} parent=11 // pred_region
        _
      $region32: #{tpu_custom_call.1} parent=11 // pred_fallthru
        _
      // Predicated region
      $region33: #{tpu_custom_call.1} parent=11 // pred_check
        %p235 = pneg %p179
      $region34: #{tpu_custom_call.1} parent=11 // pred_check_branch
        %237 = sbr.rel (%p235) target = $region36
      $region35: #{tpu_custom_call.1} parent=11 // pred_region
        _
      $region36: #{tpu_custom_call.1} parent=11 // pred_fallthru
        _
    $region12: #{tpu_custom_call.1} parent=5 // pred_fallthru
      _
    %p238 = scmp.lt.s32.totalorder %s13, 6
    // Predicated region
    $region37: #{tpu_custom_call.1} parent=5 // pred_check
      %p239 = pneg %p238
    $region38: #{tpu_custom_call.1} parent=5 // pred_check_branch
      %241 = sbr.rel (%p239) target = $region40
    $region39: #{tpu_custom_call.1} parent=5 // pred_region
      // Predicated region
      $region41: #{tpu_custom_call.1} parent=39 // pred_check
        %p242 = pneg %p47
      $region42: #{tpu_custom_call.1} parent=39 // pred_check_branch
        %244 = sbr.rel (%p242) target = $region44
      $region43: #{tpu_custom_call.1} parent=39 // pred_region
        %s245 = smul.u32 2, %s21
        %p246 = scmp.lt.s32.totalorder %s20, 1
        %s247 = scalar_select %p246, %s20, 1
        %p248 = scmp.lt.s32.totalorder %s245, 5
        %s249 = scalar_select %p248, %s245, 5
        %s250 = smul.addr %s247, 6
        %s251 = sadd.s32 %s249, %s250
        %s252 = smul.addr %s251, 2
        %s253 = scalar_lea.vmem %s0, %s252
        %s254 = smul.u32 2, %s21
      $region44: #{tpu_custom_call.1} parent=39 // pred_fallthru
        _
    $region40: #{tpu_custom_call.1} parent=5 // pred_fallthru
      _
    %p255 = scmp.le.s32.totalorder 1, %s13
    %p256 = scmp.lt.s32.totalorder %s13, 7
    %p257 = pnand %p255, %p256
    %p258 = pneg %p257
    // Predicated region
    $region45: #{tpu_custom_call.1} parent=5 // pred_check
      _
    $region46: #{tpu_custom_call.1} parent=5 // pred_check_branch
      %260 = sbr.rel (%p257) target = $region48
    $region47: #{tpu_custom_call.1} parent=5 // pred_region
      %s261 = ssub.s32 %s13, 1
      %s262 = smul.u32 2, %s23
      %p263 = scmp.lt.s32.totalorder %s22, 1
      %s264 = scalar_select %p263, %s22, 1
      %p265 = scmp.lt.s32.totalorder %s262, 5
      %s266 = scalar_select %p265, %s262, 5
      %s267 = smul.addr %s264, 6
      %s268 = sadd.s32 %s266, %s267
      %s269 = smul.addr %s268, 2
      %s270 = scalar_lea.vmem %s0, %s269
      %p271 = pneg %p53
      %p272 = pneg %p50
      %p273 = pneg %p74
      %p274 = pneg %p71
      %p275 = pneg %p95
      %p276 = pneg %p92
      %p277 = pneg %p116
      %p278 = pneg %p113
      %p279 = pneg %p137
      %p280 = pneg %p134
      %p281 = pneg %p158
      %p282 = pneg %p155
      %p283 = pneg %p179
      %p284 = pneg %p176
      %p285 = pneg %p205
      %p286 = pneg %p202
      %p287 = scmp.lt.s32.totalorder %s22, 1
      %s288 = scalar_select %p287, %s22, 1
      %s289 = smul.addr %s288, 8
      %s290 = scalar_lea.vmem %s7, %s289
      %s291 = smul.u32 2, %s23
      %p292 = scmp.lt.s32.totalorder %s22, 1
      %s293 = scalar_select %p292, %s22, 1
      %p294 = scmp.lt.s32.totalorder %s291, 5
      %s295 = scalar_select %p294, %s291, 5
      %s296 = smul.addr %s293, 6
      %s297 = sadd.s32 %s295, %s296
      %s298 = smul.addr %s297, 2
      %s299 = scalar_lea.vmem %s0, %s298
      %s300 = smul.u32 2, %s23
      %p301 = scmp.lt.s32.totalorder %s22, 1
      %s302 = scalar_select %p301, %s22, 1
      %s303 = smul.addr %s302, 8
      %s304 = scalar_lea.vmem %s7, %s303
      %p307 = scmp.eq.s32.totalorder %s23, 0
      // Predicated region
      $region49: #{tpu_custom_call.1} parent=47 // pred_check
        %p308 = pneg %p307
      $region50: #{tpu_custom_call.1} parent=47 // pred_check_branch
        %310 = sbr.rel (%p308) target = $region52
      $region51: #{tpu_custom_call.1} parent=47 // pred_region
        %311 = vst [vmem:[#allocation2] sm:$0xff] 4286644096
        %312 = vst [vmem:[#allocation2 + $0x8] sm:$0xff] 4286644096
        %313 = vst [vmem:[#allocation2 + $0x10] sm:$0xff] 4286644096
        %314 = vst [vmem:[#allocation2 + $0x18] sm:$0xff] 4286644096
        %315 = vst [vmem:[#allocation2 + $0x20] sm:$0xff] 4286644096
        %316 = vst [vmem:[#allocation2 + $0x28] sm:$0xff] 4286644096
        %317 = vst [vmem:[#allocation2 + $0x30] sm:$0xff] 4286644096
        %318 = vst [vmem:[#allocation2 + $0x38] sm:$0xff] 4286644096
        %319 = vst [vmem:[#allocation2 + $0x40] sm:$0xff] 4286644096
        %320 = vst [vmem:[#allocation2 + $0x48] sm:$0xff] 4286644096
        %321 = vst [vmem:[#allocation2 + $0x50] sm:$0xff] 4286644096
        %322 = vst [vmem:[#allocation2 + $0x58] sm:$0xff] 4286644096
        %323 = vst [vmem:[#allocation2 + $0x60] sm:$0xff] 4286644096
        %324 = vst [vmem:[#allocation2 + $0x68] sm:$0xff] 4286644096
        %325 = vst [vmem:[#allocation2 + $0x70] sm:$0xff] 4286644096
        %326 = vst [vmem:[#allocation2 + $0x78] sm:$0xff] 4286644096
        %327 = vst [vmem:[#allocation2 + $0x80] sm:$0xff] 4286644096
        %328 = vst [vmem:[#allocation2 + $0x88] sm:$0xff] 4286644096
        %329 = vst [vmem:[#allocation2 + $0x90] sm:$0xff] 4286644096
        %330 = vst [vmem:[#allocation2 + $0x98] sm:$0xff] 4286644096
        %331 = vst [vmem:[#allocation2 + $0xa0] sm:$0xff] 4286644096
        %332 = vst [vmem:[#allocation2 + $0xa8] sm:$0xff] 4286644096
        %333 = vst [vmem:[#allocation2 + $0xb0] sm:$0xff] 4286644096
        %334 = vst [vmem:[#allocation2 + $0xb8] sm:$0xff] 4286644096
        %335 = vst [vmem:[#allocation2 + $0xc0] sm:$0xff] 4286644096
        %336 = vst [vmem:[#allocation2 + $0xc8] sm:$0xff] 4286644096
        %337 = vst [vmem:[#allocation2 + $0xd0] sm:$0xff] 4286644096
        %338 = vst [vmem:[#allocation2 + $0xd8] sm:$0xff] 4286644096
        %339 = vst [vmem:[#allocation2 + $0xe0] sm:$0xff] 4286644096
        %340 = vst [vmem:[#allocation2 + $0xe8] sm:$0xff] 4286644096
        %341 = vst [vmem:[#allocation2 + $0xf0] sm:$0xff] 4286644096
        %342 = vst [vmem:[#allocation2 + $0xf8] sm:$0xff] 4286644096
        %343 = vst [vmem:[#allocation2 + $0x100] sm:$0xff] 4286644096
        %344 = vst [vmem:[#allocation2 + $0x108] sm:$0xff] 4286644096
        %345 = vst [vmem:[#allocation2 + $0x110] sm:$0xff] 4286644096
        %346 = vst [vmem:[#allocation2 + $0x118] sm:$0xff] 4286644096
        %347 = vst [vmem:[#allocation2 + $0x120] sm:$0xff] 4286644096
        %348 = vst [vmem:[#allocation2 + $0x128] sm:$0xff] 4286644096
        %349 = vst [vmem:[#allocation2 + $0x130] sm:$0xff] 4286644096
        %350 = vst [vmem:[#allocation2 + $0x138] sm:$0xff] 4286644096
        %351 = vst [vmem:[#allocation2 + $0x140] sm:$0xff] 4286644096
        %352 = vst [vmem:[#allocation2 + $0x148] sm:$0xff] 4286644096
        %353 = vst [vmem:[#allocation2 + $0x150] sm:$0xff] 4286644096
        %354 = vst [vmem:[#allocation2 + $0x158] sm:$0xff] 4286644096
        %355 = vst [vmem:[#allocation2 + $0x160] sm:$0xff] 4286644096
        %356 = vst [vmem:[#allocation2 + $0x168] sm:$0xff] 4286644096
        %357 = vst [vmem:[#allocation2 + $0x170] sm:$0xff] 4286644096
        %358 = vst [vmem:[#allocation2 + $0x178] sm:$0xff] 4286644096
        %359 = vst [vmem:[#allocation2 + $0x180] sm:$0xff] 4286644096
        %360 = vst [vmem:[#allocation2 + $0x188] sm:$0xff] 4286644096
        %361 = vst [vmem:[#allocation2 + $0x190] sm:$0xff] 4286644096
        %362 = vst [vmem:[#allocation2 + $0x198] sm:$0xff] 4286644096
        %363 = vst [vmem:[#allocation2 + $0x1a0] sm:$0xff] 4286644096
        %364 = vst [vmem:[#allocation2 + $0x1a8] sm:$0xff] 4286644096
        %365 = vst [vmem:[#allocation2 + $0x1b0] sm:$0xff] 4286644096
        %366 = vst [vmem:[#allocation2 + $0x1b8] sm:$0xff] 4286644096
        %367 = vst [vmem:[#allocation2 + $0x1c0] sm:$0xff] 4286644096
        %368 = vst [vmem:[#allocation2 + $0x1c8] sm:$0xff] 4286644096
        %369 = vst [vmem:[#allocation2 + $0x1d0] sm:$0xff] 4286644096
        %370 = vst [vmem:[#allocation2 + $0x1d8] sm:$0xff] 4286644096
        %371 = vst [vmem:[#allocation2 + $0x1e0] sm:$0xff] 4286644096
        %372 = vst [vmem:[#allocation2 + $0x1e8] sm:$0xff] 4286644096
        %373 = vst [vmem:[#allocation2 + $0x1f0] sm:$0xff] 4286644096
        %374 = vst [vmem:[#allocation2 + $0x1f8] sm:$0xff] 4286644096
        %375 = vst [vmem:[#allocation2 + $0x200] sm:$0xff] 4286644096
        %376 = vst [vmem:[#allocation2 + $0x208] sm:$0xff] 4286644096
        %377 = vst [vmem:[#allocation2 + $0x210] sm:$0xff] 4286644096
        %378 = vst [vmem:[#allocation2 + $0x218] sm:$0xff] 4286644096
        %379 = vst [vmem:[#allocation2 + $0x220] sm:$0xff] 4286644096
        %380 = vst [vmem:[#allocation2 + $0x228] sm:$0xff] 4286644096
        %381 = vst [vmem:[#allocation2 + $0x230] sm:$0xff] 4286644096
        %382 = vst [vmem:[#allocation2 + $0x238] sm:$0xff] 4286644096
        %383 = vst [vmem:[#allocation2 + $0x240] sm:$0xff] 4286644096
        %384 = vst [vmem:[#allocation2 + $0x248] sm:$0xff] 4286644096
        %385 = vst [vmem:[#allocation2 + $0x250] sm:$0xff] 4286644096
        %386 = vst [vmem:[#allocation2 + $0x258] sm:$0xff] 4286644096
        %387 = vst [vmem:[#allocation2 + $0x260] sm:$0xff] 4286644096
        %388 = vst [vmem:[#allocation2 + $0x268] sm:$0xff] 4286644096
        %389 = vst [vmem:[#allocation2 + $0x270] sm:$0xff] 4286644096
        %390 = vst [vmem:[#allocation2 + $0x278] sm:$0xff] 4286644096
        %391 = vst [vmem:[#allocation2 + $0x280] sm:$0xff] 4286644096
        %392 = vst [vmem:[#allocation2 + $0x288] sm:$0xff] 4286644096
        %393 = vst [vmem:[#allocation2 + $0x290] sm:$0xff] 4286644096
        %394 = vst [vmem:[#allocation2 + $0x298] sm:$0xff] 4286644096
        %395 = vst [vmem:[#allocation2 + $0x2a0] sm:$0xff] 4286644096
        %396 = vst [vmem:[#allocation2 + $0x2a8] sm:$0xff] 4286644096
        %397 = vst [vmem:[#allocation2 + $0x2b0] sm:$0xff] 4286644096
        %398 = vst [vmem:[#allocation2 + $0x2b8] sm:$0xff] 4286644096
        %399 = vst [vmem:[#allocation2 + $0x2c0] sm:$0xff] 4286644096
        %400 = vst [vmem:[#allocation2 + $0x2c8] sm:$0xff] 4286644096
        %401 = vst [vmem:[#allocation2 + $0x2d0] sm:$0xff] 4286644096
        %402 = vst [vmem:[#allocation2 + $0x2d8] sm:$0xff] 4286644096
        %403 = vst [vmem:[#allocation2 + $0x2e0] sm:$0xff] 4286644096
        %404 = vst [vmem:[#allocation2 + $0x2e8] sm:$0xff] 4286644096
        %405 = vst [vmem:[#allocation2 + $0x2f0] sm:$0xff] 4286644096
        %406 = vst [vmem:[#allocation2 + $0x2f8] sm:$0xff] 4286644096
        %407 = vst [vmem:[#allocation2 + $0x300] sm:$0xff] 4286644096
        %408 = vst [vmem:[#allocation2 + $0x308] sm:$0xff] 4286644096
        %409 = vst [vmem:[#allocation2 + $0x310] sm:$0xff] 4286644096
        %410 = vst [vmem:[#allocation2 + $0x318] sm:$0xff] 4286644096
        %411 = vst [vmem:[#allocation2 + $0x320] sm:$0xff] 4286644096
        %412 = vst [vmem:[#allocation2 + $0x328] sm:$0xff] 4286644096
        %413 = vst [vmem:[#allocation2 + $0x330] sm:$0xff] 4286644096
        %414 = vst [vmem:[#allocation2 + $0x338] sm:$0xff] 4286644096
        %415 = vst [vmem:[#allocation2 + $0x340] sm:$0xff] 4286644096
        %416 = vst [vmem:[#allocation2 + $0x348] sm:$0xff] 4286644096
        %417 = vst [vmem:[#allocation2 + $0x350] sm:$0xff] 4286644096
        %418 = vst [vmem:[#allocation2 + $0x358] sm:$0xff] 4286644096
        %419 = vst [vmem:[#allocation2 + $0x360] sm:$0xff] 4286644096
        %420 = vst [vmem:[#allocation2 + $0x368] sm:$0xff] 4286644096
        %421 = vst [vmem:[#allocation2 + $0x370] sm:$0xff] 4286644096
        %422 = vst [vmem:[#allocation2 + $0x378] sm:$0xff] 4286644096
        %423 = vst [vmem:[#allocation2 + $0x380] sm:$0xff] 4286644096
        %424 = vst [vmem:[#allocation2 + $0x388] sm:$0xff] 4286644096
        %425 = vst [vmem:[#allocation2 + $0x390] sm:$0xff] 4286644096
        %426 = vst [vmem:[#allocation2 + $0x398] sm:$0xff] 4286644096
        %427 = vst [vmem:[#allocation2 + $0x3a0] sm:$0xff] 4286644096
        %428 = vst [vmem:[#allocation2 + $0x3a8] sm:$0xff] 4286644096
        %429 = vst [vmem:[#allocation2 + $0x3b0] sm:$0xff] 4286644096
        %430 = vst [vmem:[#allocation2 + $0x3b8] sm:$0xff] 4286644096
        %431 = vst [vmem:[#allocation2 + $0x3c0] sm:$0xff] 4286644096
        %432 = vst [vmem:[#allocation2 + $0x3c8] sm:$0xff] 4286644096
        %433 = vst [vmem:[#allocation2 + $0x3d0] sm:$0xff] 4286644096
        %434 = vst [vmem:[#allocation2 + $0x3d8] sm:$0xff] 4286644096
        %435 = vst [vmem:[#allocation2 + $0x3e0] sm:$0xff] 4286644096
        %436 = vst [vmem:[#allocation2 + $0x3e8] sm:$0xff] 4286644096
        %437 = vst [vmem:[#allocation2 + $0x3f0] sm:$0xff] 4286644096
        %438 = vst [vmem:[#allocation2 + $0x3f8] sm:$0xff] 4286644096
      $region52: #{tpu_custom_call.1} parent=47 // pred_fallthru
        _
      %v439 = vld [vmem:[%s299] sm:$0xf]
      %v440 = vld [vmem:[%s1] sm:$0xf]
      %v441 = vld [vmem:[%s1 + $0x4] sm:$0xf]
      %v442 = vld [vmem:[%s1 + $0x8] sm:$0xf]
      %v443 = vld [vmem:[%s1 + $0xc] sm:$0xf]
      %v444 = vld [vmem:[%s1 + $0x10] sm:$0xf]
      %v445 = vld [vmem:[%s1 + $0x14] sm:$0xf]
      %v446 = vld [vmem:[%s1 + $0x18] sm:$0xf]
      %v447 = vld [vmem:[%s1 + $0x1c] sm:$0xf]
      %v448 = vld [vmem:[%s2] sm:$0xff]
      %v449 = vld [vmem:[%s2 + $0x8] sm:$0xff]
      %v450 = vld [vmem:[%s2 + $0x10] sm:$0xff]
      %v451 = vld [vmem:[%s2 + $0x18] sm:$0xff]
      %v452 = vld [vmem:[%s2 + $0x20] sm:$0xff]
      %v453 = vld [vmem:[%s2 + $0x28] sm:$0xff]
      %v454 = vld [vmem:[%s2 + $0x30] sm:$0xff]
      %v455 = vld [vmem:[%s2 + $0x38] sm:$0xff]
      %457 = vset.pattern.permute.xlu0 0
      %458 = vperm.xlu0 %457, %v448
      %v459 = vpop.permute.xlu0 %458
      %462 = vset.pattern.permute.xlu0 0
      %463 = vperm.xlu0 %462, %v449
      %v464 = vpop.permute.xlu0 %463
      %467 = vset.pattern.permute.xlu0 0
      %468 = vperm.xlu0 %467, %v450
      %v469 = vpop.permute.xlu0 %468
      %472 = vset.pattern.permute.xlu0 0
      %473 = vperm.xlu0 %472, %v451
      %v474 = vpop.permute.xlu0 %473
      %477 = vset.pattern.permute.xlu0 0
      %478 = vperm.xlu0 %477, %v452
      %v479 = vpop.permute.xlu0 %478
      %482 = vset.pattern.permute.xlu0 0
      %483 = vperm.xlu0 %482, %v453
      %v484 = vpop.permute.xlu0 %483
      %487 = vset.pattern.permute.xlu0 0
      %488 = vperm.xlu0 %487, %v454
      %v489 = vpop.permute.xlu0 %488
      %492 = vset.pattern.permute.xlu0 0
      %493 = vperm.xlu0 %492, %v455
      %v494 = vpop.permute.xlu0 %493
      %v504 = vunpack.c.l.b16 %v440
      %v505 = vunpack.c.l.b16 %v441
      %v506 = vunpack.c.l.b16 %v442
      %v507 = vunpack.c.l.b16 %v443
      %v508 = vunpack.c.l.b16 %v444
      %v509 = vunpack.c.l.b16 %v445
      %v510 = vunpack.c.l.b16 %v446
      %v511 = vunpack.c.l.b16 %v447
      %v512 = vpack.c.b16 %v505, %v504
      %v513 = vpack.c.b16 %v507, %v506
      %v514 = vpack.c.b16 %v509, %v508
      %v515 = vpack.c.b16 %v511, %v510
      %v518 = vunpack.c.l.s4 1983009808
      %v519 = vunpack.c.0.s8 %v518
      %v520 = vlaneseq
      %v521 = vshrl.u32 %v520, 7
      %v522 = vsub.s32 %v519, %v521
      %v523 = vrot.slane %v439, %v522
      %v524 = vcombine.high %v523, %v523
      %vm525 = vcmask 23552
      %v527 = vsel %vm525, %v512, 0
      %v530 = vsel %vm525, %v513, 0
      %v533 = vsel %vm525, %v514, 0
      %v536 = vsel %vm525, %v515, 0
      %vm538 = vcmask 1040384
      %vm539 = vcmask 1041408
      %v540 = vsel %vm538, 4294967295, 65535
      %v541 = vsel %vm539, %v540, 0
      %v543 = vand.u32 %v523, %v541
      %v546 = vand.u32 %v524, %v541
      %548 = vmatprep.subr.bf16.mxu0 0
      %549 = vmatpush1.bf16.msra.mxu0 0
      %550 = vmatprep.subr.bf16.mxu0 0
      %551 = vmatpush1.bf16.msra.mxu0 0
      %552 = vmatprep.subr.bf16.mxu0 0
      %553 = vmatpush1.bf16.msra.mxu0 0
      %554 = vmatprep.subr.bf16.mxu0 0
      %555 = vmatpush1.bf16.msra.mxu0 0
      %556 = vmatprep.subr.bf16.mxu0 0
      %557 = vmatpush1.bf16.msra.mxu0 0
      %558 = vmatprep.subr.bf16.mxu0 0
      %559 = vmatpush1.bf16.msra.mxu0 0
      %560 = vmatprep.subr.bf16.mxu0 0
      %561 = vmatpush1.bf16.msra.mxu0 0
      %562 = vmatprep.subr.bf16.mxu0 %v546
      %563 = vmatpush1.bf16.msra.mxu0 %v543
      %564 = vmatprep.subr.bf16.mxu0 0
      %565 = vmatpush2.bf16.msra.mxu0 0
      %566 = vmatprep.subr.bf16.mxu0 0
      %567 = vmatpush2.bf16.msra.mxu0 0
      %568 = vmatprep.subr.bf16.mxu0 0
      %569 = vmatpush2.bf16.msra.mxu0 0
      %570 = vmatprep.subr.bf16.mxu0 0
      %571 = vmatpush2.bf16.msra.mxu0 0
      %572 = vmatprep.subr.bf16.mxu0 0
      %573 = vmatpush2.bf16.msra.mxu0 0
      %574 = vmatprep.subr.bf16.mxu0 0
      %575 = vmatpush2.bf16.msra.mxu0 0
      %576 = vmatprep.subr.bf16.mxu0 0
      %577 = vmatpush2.bf16.msra.mxu0 0
      %578 = vmatprep.subr.bf16.mxu0 0
      %579 = vmatpush2.bf16.msra.mxu0 0
      %580 = vmatprep.mubr.bf16.mxu0 0
      %581 = vmatmul.mubr.bf16.gmra.mxu0 %v527
      %v582 = vpop.f32.mrf.mxu0
      %v583 = vadd.f32 %v459, %v582
      %v584 = vpop.f32.mrf.mxu0
      %v585 = vadd.f32 %v459, %v584
      %v586 = vpop.f32.mrf.mxu0
      %v587 = vadd.f32 %v464, %v586
      %v588 = vpop.f32.mrf.mxu0
      %v589 = vadd.f32 %v464, %v588
      %590 = vmatprep.mubr.bf16.mxu0 0
      %591 = vmatmul.mubr.bf16.gmra.mxu0 %v530
      %v592 = vpop.f32.mrf.mxu0
      %v593 = vadd.f32 %v469, %v592
      %v594 = vpop.f32.mrf.mxu0
      %v595 = vadd.f32 %v469, %v594
      %v596 = vpop.f32.mrf.mxu0
      %v597 = vadd.f32 %v474, %v596
      %v598 = vpop.f32.mrf.mxu0
      %v599 = vadd.f32 %v474, %v598
      %600 = vmatprep.mubr.bf16.mxu0 0
      %601 = vmatmul.mubr.bf16.gmra.mxu0 %v533
      %v602 = vpop.f32.mrf.mxu0
      %v603 = vadd.f32 %v479, %v602
      %v604 = vpop.f32.mrf.mxu0
      %v605 = vadd.f32 %v479, %v604
      %v606 = vpop.f32.mrf.mxu0
      %v607 = vadd.f32 %v484, %v606
      %v608 = vpop.f32.mrf.mxu0
      %v609 = vadd.f32 %v484, %v608
      %610 = vmatprep.mubr.bf16.mxu0 0
      %611 = vmatmul.mubr.bf16.gmra.mxu0 %v536
      %v612 = vpop.f32.mrf.mxu0
      %v613 = vadd.f32 %v489, %v612
      %v614 = vpop.f32.mrf.mxu0
      %v615 = vadd.f32 %v489, %v614
      %v616 = vpop.f32.mrf.mxu0
      %v617 = vadd.f32 %v494, %v616
      %v618 = vpop.f32.mrf.mxu0
      %v619 = vadd.f32 %v494, %v618
      %620 = vdwg.mxu0
      %v621 = vmax.f32 %v583, 0.0
      %v622 = vmax.f32 %v585, 0.0
      %v623 = vmax.f32 %v587, 0.0
      %v624 = vmax.f32 %v589, 0.0
      %v625 = vmax.f32 %v593, 0.0
      %v626 = vmax.f32 %v595, 0.0
      %v627 = vmax.f32 %v597, 0.0
      %v628 = vmax.f32 %v599, 0.0
      %v629 = vmax.f32 %v603, 0.0
      %v630 = vmax.f32 %v605, 0.0
      %v631 = vmax.f32 %v607, 0.0
      %v632 = vmax.f32 %v609, 0.0
      %v633 = vmax.f32 %v613, 0.0
      %v634 = vmax.f32 %v615, 0.0
      %v635 = vmax.f32 %v617, 0.0
      %v636 = vmax.f32 %v619, 0.0
      %v637 = vpack.c.bf16 %v623, %v621
      %v638 = vpack.c.bf16 %v624, %v622
      %v639 = vpack.c.bf16 %v627, %v625
      %v640 = vpack.c.bf16 %v628, %v626
      %v641 = vpack.c.bf16 %v631, %v629
      %v642 = vpack.c.bf16 %v632, %v630
      %v643 = vpack.c.bf16 %v635, %v633
      %v644 = vpack.c.bf16 %v636, %v634
      %v645 = vld [vmem:[%s3] sm:$0xf]
      %v646 = vld [vmem:[%s3 + $0x4] sm:$0xf]
      %v647 = vld [vmem:[%s3 + $0x8] sm:$0xf]
      %v648 = vld [vmem:[%s3 + $0xc] sm:$0xf]
      %v649 = vld [vmem:[%s3 + $0x10] sm:$0xf]
      %v650 = vld [vmem:[%s3 + $0x14] sm:$0xf]
      %v651 = vld [vmem:[%s3 + $0x18] sm:$0xf]
      %v652 = vld [vmem:[%s3 + $0x1c] sm:$0xf]
      %v653 = vld [vmem:[%s3 + $0x20] sm:$0xf]
      %v654 = vld [vmem:[%s3 + $0x24] sm:$0xf]
      %v655 = vld [vmem:[%s3 + $0x28] sm:$0xf]
      %v656 = vld [vmem:[%s3 + $0x2c] sm:$0xf]
      %v657 = vld [vmem:[%s3 + $0x30] sm:$0xf]
      %v658 = vld [vmem:[%s3 + $0x34] sm:$0xf]
      %v659 = vld [vmem:[%s3 + $0x38] sm:$0xf]
      %v660 = vld [vmem:[%s3 + $0x3c] sm:$0xf]
      %v661 = vld [vmem:[%s4] sm:$0xff]
      %v662 = vld [vmem:[%s4 + $0x8] sm:$0xff]
      %v663 = vld [vmem:[%s4 + $0x10] sm:$0xff]
      %v664 = vld [vmem:[%s4 + $0x18] sm:$0xff]
      %v665 = vld [vmem:[%s4 + $0x20] sm:$0xff]
      %v666 = vld [vmem:[%s4 + $0x28] sm:$0xff]
      %v667 = vld [vmem:[%s4 + $0x30] sm:$0xff]
      %v668 = vld [vmem:[%s4 + $0x38] sm:$0xff]
      %v669 = vld [vmem:[%s4 + $0x40] sm:$0xff]
      %v670 = vld [vmem:[%s4 + $0x48] sm:$0xff]
      %v671 = vld [vmem:[%s4 + $0x50] sm:$0xff]
      %v672 = vld [vmem:[%s4 + $0x58] sm:$0xff]
      %v673 = vld [vmem:[%s4 + $0x60] sm:$0xff]
      %v674 = vld [vmem:[%s4 + $0x68] sm:$0xff]
      %v675 = vld [vmem:[%s4 + $0x70] sm:$0xff]
      %v676 = vld [vmem:[%s4 + $0x78] sm:$0xff]
      %678 = vset.pattern.permute.xlu0 0
      %679 = vperm.xlu0 %678, %v661
      %v680 = vpop.permute.xlu0 %679
      %683 = vset.pattern.permute.xlu0 0
      %684 = vperm.xlu0 %683, %v662
      %v685 = vpop.permute.xlu0 %684
      %688 = vset.pattern.permute.xlu0 0
      %689 = vperm.xlu0 %688, %v663
      %v690 = vpop.permute.xlu0 %689
      %693 = vset.pattern.permute.xlu0 0
      %694 = vperm.xlu0 %693, %v664
      %v695 = vpop.permute.xlu0 %694
      %698 = vset.pattern.permute.xlu0 0
      %699 = vperm.xlu0 %698, %v665
      %v700 = vpop.permute.xlu0 %699
      %703 = vset.pattern.permute.xlu0 0
      %704 = vperm.xlu0 %703, %v666
      %v705 = vpop.permute.xlu0 %704
      %708 = vset.pattern.permute.xlu0 0
      %709 = vperm.xlu0 %708, %v667
      %v710 = vpop.permute.xlu0 %709
      %713 = vset.pattern.permute.xlu0 0
      %714 = vperm.xlu0 %713, %v668
      %v715 = vpop.permute.xlu0 %714
      %718 = vset.pattern.permute.xlu0 0
      %719 = vperm.xlu0 %718, %v669
      %v720 = vpop.permute.xlu0 %719
      %723 = vset.pattern.permute.xlu0 0
      %724 = vperm.xlu0 %723, %v670
      %v725 = vpop.permute.xlu0 %724
      %728 = vset.pattern.permute.xlu0 0
      %729 = vperm.xlu0 %728, %v671
      %v730 = vpop.permute.xlu0 %729
      %733 = vset.pattern.permute.xlu0 0
      %734 = vperm.xlu0 %733, %v672
      %v735 = vpop.permute.xlu0 %734
      %738 = vset.pattern.permute.xlu0 0
      %739 = vperm.xlu0 %738, %v673
      %v740 = vpop.permute.xlu0 %739
      %743 = vset.pattern.permute.xlu0 0
      %744 = vperm.xlu0 %743, %v674
      %v745 = vpop.permute.xlu0 %744
      %748 = vset.pattern.permute.xlu0 0
      %749 = vperm.xlu0 %748, %v675
      %v750 = vpop.permute.xlu0 %749
      %753 = vset.pattern.permute.xlu0 0
      %754 = vperm.xlu0 %753, %v676
      %v755 = vpop.permute.xlu0 %754
      %v773 = vunpack.c.l.b16 %v645
      %v774 = vunpack.c.l.b16 %v646
      %v775 = vunpack.c.l.b16 %v647
      %v776 = vunpack.c.l.b16 %v648
      %v777 = vunpack.c.l.b16 %v649
      %v778 = vunpack.c.l.b16 %v650
      %v779 = vunpack.c.l.b16 %v651
      %v780 = vunpack.c.l.b16 %v652
      %v781 = vunpack.c.l.b16 %v653
      %v782 = vunpack.c.l.b16 %v654
      %v783 = vunpack.c.l.b16 %v655
      %v784 = vunpack.c.l.b16 %v656
      %v785 = vunpack.c.l.b16 %v657
      %v786 = vunpack.c.l.b16 %v658
      %v787 = vunpack.c.l.b16 %v659
      %v788 = vunpack.c.l.b16 %v660
      %v789 = vpack.c.b16 %v774, %v773
      %v790 = vpack.c.b16 %v776, %v775
      %v791 = vpack.c.b16 %v778, %v777
      %v792 = vpack.c.b16 %v780, %v779
      %v793 = vpack.c.b16 %v782, %v781
      %v794 = vpack.c.b16 %v784, %v783
      %v795 = vpack.c.b16 %v786, %v785
      %v796 = vpack.c.b16 %v788, %v787
      %vm797 = vcmask 523264
      %v799 = vsel %vm797, %v789, 0
      %v802 = vsel %vm797, %v790, 0
      %v805 = vsel %vm797, %v791, 0
      %v808 = vsel %vm797, %v792, 0
      %v811 = vsel %vm797, %v793, 0
      %v814 = vsel %vm797, %v794, 0
      %v817 = vsel %vm797, %v795, 0
      %v820 = vsel %vm797, %v796, 0
      %822 = vmatprep.subr.bf16.mxu0 0
      %823 = vmatpush1.bf16.msra.mxu0 0
      %824 = vmatprep.subr.bf16.mxu0 0
      %825 = vmatpush1.bf16.msra.mxu0 0
      %826 = vmatprep.subr.bf16.mxu0 0
      %827 = vmatpush1.bf16.msra.mxu0 0
      %828 = vmatprep.subr.bf16.mxu0 0
      %829 = vmatpush1.bf16.msra.mxu0 0
      %830 = vmatprep.subr.bf16.mxu0 %v644
      %831 = vmatpush1.bf16.msra.mxu0 %v643
      %832 = vmatprep.subr.bf16.mxu0 %v642
      %833 = vmatpush1.bf16.msra.mxu0 %v641
      %834 = vmatprep.subr.bf16.mxu0 %v640
      %835 = vmatpush1.bf16.msra.mxu0 %v639
      %836 = vmatprep.subr.bf16.mxu0 %v638
      %837 = vmatpush1.bf16.msra.mxu0 %v637
      %838 = vmatprep.subr.bf16.mxu0 0
      %839 = vmatpush2.bf16.msra.mxu0 0
      %840 = vmatprep.subr.bf16.mxu0 0
      %841 = vmatpush2.bf16.msra.mxu0 0
      %842 = vmatprep.subr.bf16.mxu0 0
      %843 = vmatpush2.bf16.msra.mxu0 0
      %844 = vmatprep.subr.bf16.mxu0 0
      %845 = vmatpush2.bf16.msra.mxu0 0
      %846 = vmatprep.subr.bf16.mxu0 0
      %847 = vmatpush2.bf16.msra.mxu0 0
      %848 = vmatprep.subr.bf16.mxu0 0
      %849 = vmatpush2.bf16.msra.mxu0 0
      %850 = vmatprep.subr.bf16.mxu0 0
      %851 = vmatpush2.bf16.msra.mxu0 0
      %852 = vmatprep.subr.bf16.mxu0 0
      %853 = vmatpush2.bf16.msra.mxu0 0
      %854 = vmatprep.mubr.bf16.mxu0 0
      %855 = vmatmul.mubr.bf16.gmra.mxu0 %v799
      %v856 = vpop.f32.mrf.mxu0
      %v857 = vadd.f32 %v680, %v856
      %v858 = vpop.f32.mrf.mxu0
      %v859 = vadd.f32 %v680, %v858
      %v860 = vpop.f32.mrf.mxu0
      %v861 = vadd.f32 %v685, %v860
      %v862 = vpop.f32.mrf.mxu0
      %v863 = vadd.f32 %v685, %v862
      %864 = vmatprep.mubr.bf16.mxu0 0
      %865 = vmatmul.mubr.bf16.gmra.mxu0 %v802
      %v866 = vpop.f32.mrf.mxu0
      %v867 = vadd.f32 %v690, %v866
      %v868 = vpop.f32.mrf.mxu0
      %v869 = vadd.f32 %v690, %v868
      %v870 = vpop.f32.mrf.mxu0
      %v871 = vadd.f32 %v695, %v870
      %v872 = vpop.f32.mrf.mxu0
      %v873 = vadd.f32 %v695, %v872
      %874 = vmatprep.mubr.bf16.mxu0 0
      %875 = vmatmul.mubr.bf16.gmra.mxu0 %v805
      %v876 = vpop.f32.mrf.mxu0
      %v877 = vadd.f32 %v700, %v876
      %v878 = vpop.f32.mrf.mxu0
      %v879 = vadd.f32 %v700, %v878
      %v880 = vpop.f32.mrf.mxu0
      %v881 = vadd.f32 %v705, %v880
      %v882 = vpop.f32.mrf.mxu0
      %v883 = vadd.f32 %v705, %v882
      %884 = vmatprep.mubr.bf16.mxu0 0
      %885 = vmatmul.mubr.bf16.gmra.mxu0 %v808
      %v886 = vpop.f32.mrf.mxu0
      %v887 = vadd.f32 %v710, %v886
      %v888 = vpop.f32.mrf.mxu0
      %v889 = vadd.f32 %v710, %v888
      %v890 = vpop.f32.mrf.mxu0
      %v891 = vadd.f32 %v715, %v890
      %v892 = vpop.f32.mrf.mxu0
      %v893 = vadd.f32 %v715, %v892
      %894 = vmatprep.mubr.bf16.mxu0 0
      %895 = vmatmul.mubr.bf16.gmra.mxu0 %v811
      %v896 = vpop.f32.mrf.mxu0
      %v897 = vadd.f32 %v720, %v896
      %v898 = vpop.f32.mrf.mxu0
      %v899 = vadd.f32 %v720, %v898
      %v900 = vpop.f32.mrf.mxu0
      %v901 = vadd.f32 %v725, %v900
      %v902 = vpop.f32.mrf.mxu0
      %v903 = vadd.f32 %v725, %v902
      %904 = vmatprep.mubr.bf16.mxu0 0
      %905 = vmatmul.mubr.bf16.gmra.mxu0 %v814
      %v906 = vpop.f32.mrf.mxu0
      %v907 = vadd.f32 %v730, %v906
      %v908 = vpop.f32.mrf.mxu0
      %v909 = vadd.f32 %v730, %v908
      %v910 = vpop.f32.mrf.mxu0
      %v911 = vadd.f32 %v735, %v910
      %v912 = vpop.f32.mrf.mxu0
      %v913 = vadd.f32 %v735, %v912
      %914 = vmatprep.mubr.bf16.mxu0 0
      %915 = vmatmul.mubr.bf16.gmra.mxu0 %v817
      %v916 = vpop.f32.mrf.mxu0
      %v917 = vadd.f32 %v740, %v916
      %v918 = vpop.f32.mrf.mxu0
      %v919 = vadd.f32 %v740, %v918
      %v920 = vpop.f32.mrf.mxu0
      %v921 = vadd.f32 %v745, %v920
      %v922 = vpop.f32.mrf.mxu0
      %v923 = vadd.f32 %v745, %v922
      %924 = vmatprep.mubr.bf16.mxu0 0
      %925 = vmatmul.mubr.bf16.gmra.mxu0 %v820
      %v926 = vpop.f32.mrf.mxu0
      %v927 = vadd.f32 %v750, %v926
      %v928 = vpop.f32.mrf.mxu0
      %v929 = vadd.f32 %v750, %v928
      %v930 = vpop.f32.mrf.mxu0
      %v931 = vadd.f32 %v755, %v930
      %v932 = vpop.f32.mrf.mxu0
      %v933 = vadd.f32 %v755, %v932
      %934 = vdwg.mxu0
      %v935 = vmax.f32 %v857, 0.0
      %v936 = vmax.f32 %v859, 0.0
      %v937 = vmax.f32 %v861, 0.0
      %v938 = vmax.f32 %v863, 0.0
      %v939 = vmax.f32 %v867, 0.0
      %v940 = vmax.f32 %v869, 0.0
      %v941 = vmax.f32 %v871, 0.0
      %v942 = vmax.f32 %v873, 0.0
      %v943 = vmax.f32 %v877, 0.0
      %v944 = vmax.f32 %v879, 0.0
      %v945 = vmax.f32 %v881, 0.0
      %v946 = vmax.f32 %v883, 0.0
      %v947 = vmax.f32 %v887, 0.0
      %v948 = vmax.f32 %v889, 0.0
      %v949 = vmax.f32 %v891, 0.0
      %v950 = vmax.f32 %v893, 0.0
      %v951 = vmax.f32 %v897, 0.0
      %v952 = vmax.f32 %v899, 0.0
      %v953 = vmax.f32 %v901, 0.0
      %v954 = vmax.f32 %v903, 0.0
      %v955 = vmax.f32 %v907, 0.0
      %v956 = vmax.f32 %v909, 0.0
      %v957 = vmax.f32 %v911, 0.0
      %v958 = vmax.f32 %v913, 0.0
      %v959 = vmax.f32 %v917, 0.0
      %v960 = vmax.f32 %v919, 0.0
      %v961 = vmax.f32 %v921, 0.0
      %v962 = vmax.f32 %v923, 0.0
      %v963 = vmax.f32 %v927, 0.0
      %v964 = vmax.f32 %v929, 0.0
      %v965 = vmax.f32 %v931, 0.0
      %v966 = vmax.f32 %v933, 0.0
      %v967 = vpack.c.bf16 %v937, %v935
      %v968 = vpack.c.bf16 %v938, %v936
      %v969 = vpack.c.bf16 %v941, %v939
      %v970 = vpack.c.bf16 %v942, %v940
      %v971 = vpack.c.bf16 %v945, %v943
      %v972 = vpack.c.bf16 %v946, %v944
      %v973 = vpack.c.bf16 %v949, %v947
      %v974 = vpack.c.bf16 %v950, %v948
      %v975 = vpack.c.bf16 %v953, %v951
      %v976 = vpack.c.bf16 %v954, %v952
      %v977 = vpack.c.bf16 %v957, %v955
      %v978 = vpack.c.bf16 %v958, %v956
      %v979 = vpack.c.bf16 %v961, %v959
      %v980 = vpack.c.bf16 %v962, %v960
      %v981 = vpack.c.bf16 %v965, %v963
      %v982 = vpack.c.bf16 %v966, %v964
      %v983 = vld [vmem:[%s5] sm:$0xf]
      %v984 = vld [vmem:[%s5 + $0x4] sm:$0xf]
      %v985 = vld [vmem:[%s5 + $0x8] sm:$0xf]
      %v986 = vld [vmem:[%s5 + $0xc] sm:$0xf]
      %v987 = vld [vmem:[%s5 + $0x10] sm:$0xf]
      %v988 = vld [vmem:[%s5 + $0x14] sm:$0xf]
      %v989 = vld [vmem:[%s5 + $0x18] sm:$0xf]
      %v990 = vld [vmem:[%s5 + $0x1c] sm:$0xf]
      %v991 = vld [vmem:[%s5 + $0x20] sm:$0xf]
      %v992 = vld [vmem:[%s5 + $0x24] sm:$0xf]
      %v993 = vld [vmem:[%s5 + $0x28] sm:$0xf]
      %v994 = vld [vmem:[%s5 + $0x2c] sm:$0xf]
      %v995 = vld [vmem:[%s5 + $0x30] sm:$0xf]
      %v996 = vld [vmem:[%s5 + $0x34] sm:$0xf]
      %v997 = vld [vmem:[%s5 + $0x38] sm:$0xf]
      %v998 = vld [vmem:[%s5 + $0x3c] sm:$0xf]
      %v999 = vld [vmem:[%s5 + $0x40] sm:$0xf]
      %v1000 = vld [vmem:[%s5 + $0x44] sm:$0xf]
      %v1001 = vld [vmem:[%s5 + $0x48] sm:$0xf]
      %v1002 = vld [vmem:[%s5 + $0x4c] sm:$0xf]
      %v1003 = vld [vmem:[%s5 + $0x50] sm:$0xf]
      %v1004 = vld [vmem:[%s5 + $0x54] sm:$0xf]
      %v1005 = vld [vmem:[%s5 + $0x58] sm:$0xf]
      %v1006 = vld [vmem:[%s5 + $0x5c] sm:$0xf]
      %v1007 = vld [vmem:[%s5 + $0x60] sm:$0xf]
      %v1008 = vld [vmem:[%s5 + $0x64] sm:$0xf]
      %v1009 = vld [vmem:[%s5 + $0x68] sm:$0xf]
      %v1010 = vld [vmem:[%s5 + $0x6c] sm:$0xf]
      %v1011 = vld [vmem:[%s5 + $0x70] sm:$0xf]
      %v1012 = vld [vmem:[%s5 + $0x74] sm:$0xf]
      %v1013 = vld [vmem:[%s5 + $0x78] sm:$0xf]
      %v1014 = vld [vmem:[%s5 + $0x7c] sm:$0xf]
      %v1015 = vld [vmem:[%s5 + $0x80] sm:$0xf]
      %v1016 = vld [vmem:[%s5 + $0x84] sm:$0xf]
      %v1017 = vld [vmem:[%s5 + $0x88] sm:$0xf]
      %v1018 = vld [vmem:[%s5 + $0x8c] sm:$0xf]
      %v1019 = vld [vmem:[%s5 + $0x90] sm:$0xf]
      %v1020 = vld [vmem:[%s5 + $0x94] sm:$0xf]
      %v1021 = vld [vmem:[%s5 + $0x98] sm:$0xf]
      %v1022 = vld [vmem:[%s5 + $0x9c] sm:$0xf]
      %v1023 = vld [vmem:[%s5 + $0xa0] sm:$0xf]
      %v1024 = vld [vmem:[%s5 + $0xa4] sm:$0xf]
      %v1025 = vld [vmem:[%s5 + $0xa8] sm:$0xf]
      %v1026 = vld [vmem:[%s5 + $0xac] sm:$0xf]
      %v1027 = vld [vmem:[%s5 + $0xb0] sm:$0xf]
      %v1028 = vld [vmem:[%s5 + $0xb4] sm:$0xf]
      %v1029 = vld [vmem:[%s5 + $0xb8] sm:$0xf]
      %v1030 = vld [vmem:[%s5 + $0xbc] sm:$0xf]
      %v1031 = vld [vmem:[%s5 + $0xc0] sm:$0xf]
      %v1032 = vld [vmem:[%s5 + $0xc4] sm:$0xf]
      %v1033 = vld [vmem:[%s5 + $0xc8] sm:$0xf]
      %v1034 = vld [vmem:[%s5 + $0xcc] sm:$0xf]
      %v1035 = vld [vmem:[%s5 + $0xd0] sm:$0xf]
      %v1036 = vld [vmem:[%s5 + $0xd4] sm:$0xf]
      %v1037 = vld [vmem:[%s5 + $0xd8] sm:$0xf]
      %v1038 = vld [vmem:[%s5 + $0xdc] sm:$0xf]
      %v1039 = vld [vmem:[%s5 + $0xe0] sm:$0xf]
      %v1040 = vld [vmem:[%s5 + $0xe4] sm:$0xf]
      %v1041 = vld [vmem:[%s5 + $0xe8] sm:$0xf]
      %v1042 = vld [vmem:[%s5 + $0xec] sm:$0xf]
      %v1043 = vld [vmem:[%s5 + $0xf0] sm:$0xf]
      %v1044 = vld [vmem:[%s5 + $0xf4] sm:$0xf]
      %v1045 = vld [vmem:[%s5 + $0xf8] sm:$0xf]
      %v1046 = vld [vmem:[%s5 + $0xfc] sm:$0xf]
      %v1047 = vld [vmem:[%s5 + $0x100] sm:$0xf]
      %v1048 = vld [vmem:[%s5 + $0x104] sm:$0xf]
      %v1049 = vld [vmem:[%s5 + $0x108] sm:$0xf]
      %v1050 = vld [vmem:[%s5 + $0x10c] sm:$0xf]
      %v1051 = vld [vmem:[%s5 + $0x110] sm:$0xf]
      %v1052 = vld [vmem:[%s5 + $0x114] sm:$0xf]
      %v1053 = vld [vmem:[%s5 + $0x118] sm:$0xf]
      %v1054 = vld [vmem:[%s5 + $0x11c] sm:$0xf]
      %v1055 = vld [vmem:[%s5 + $0x120] sm:$0xf]
      %v1056 = vld [vmem:[%s5 + $0x124] sm:$0xf]
      %v1057 = vld [vmem:[%s5 + $0x128] sm:$0xf]
      %v1058 = vld [vmem:[%s5 + $0x12c] sm:$0xf]
      %v1059 = vld [vmem:[%s5 + $0x130] sm:$0xf]
      %v1060 = vld [vmem:[%s5 + $0x134] sm:$0xf]
      %v1061 = vld [vmem:[%s5 + $0x138] sm:$0xf]
      %v1062 = vld [vmem:[%s5 + $0x13c] sm:$0xf]
      %v1063 = vld [vmem:[%s5 + $0x140] sm:$0xf]
      %v1064 = vld [vmem:[%s5 + $0x144] sm:$0xf]
      %v1065 = vld [vmem:[%s5 + $0x148] sm:$0xf]
      %v1066 = vld [vmem:[%s5 + $0x14c] sm:$0xf]
      %v1067 = vld [vmem:[%s5 + $0x150] sm:$0xf]
      %v1068 = vld [vmem:[%s5 + $0x154] sm:$0xf]
      %v1069 = vld [vmem:[%s5 + $0x158] sm:$0xf]
      %v1070 = vld [vmem:[%s5 + $0x15c] sm:$0xf]
      %v1071 = vld [vmem:[%s5 + $0x160] sm:$0xf]
      %v1072 = vld [vmem:[%s5 + $0x164] sm:$0xf]
      %v1073 = vld [vmem:[%s5 + $0x168] sm:$0xf]
      %v1074 = vld [vmem:[%s5 + $0x16c] sm:$0xf]
      %v1075 = vld [vmem:[%s5 + $0x170] sm:$0xf]
      %v1076 = vld [vmem:[%s5 + $0x174] sm:$0xf]
      %v1077 = vld [vmem:[%s5 + $0x178] sm:$0xf]
      %v1078 = vld [vmem:[%s5 + $0x17c] sm:$0xf]
      %v1079 = vld [vmem:[%s5 + $0x180] sm:$0xf]
      %v1080 = vld [vmem:[%s5 + $0x184] sm:$0xf]
      %v1081 = vld [vmem:[%s5 + $0x188] sm:$0xf]
      %v1082 = vld [vmem:[%s5 + $0x18c] sm:$0xf]
      %v1083 = vld [vmem:[%s5 + $0x190] sm:$0xf]
      %v1084 = vld [vmem:[%s5 + $0x194] sm:$0xf]
      %v1085 = vld [vmem:[%s5 + $0x198] sm:$0xf]
      %v1086 = vld [vmem:[%s5 + $0x19c] sm:$0xf]
      %v1087 = vld [vmem:[%s5 + $0x1a0] sm:$0xf]
      %v1088 = vld [vmem:[%s5 + $0x1a4] sm:$0xf]
      %v1089 = vld [vmem:[%s5 + $0x1a8] sm:$0xf]
      %v1090 = vld [vmem:[%s5 + $0x1ac] sm:$0xf]
      %v1091 = vld [vmem:[%s5 + $0x1b0] sm:$0xf]
      %v1092 = vld [vmem:[%s5 + $0x1b4] sm:$0xf]
      %v1093 = vld [vmem:[%s5 + $0x1b8] sm:$0xf]
      %v1094 = vld [vmem:[%s5 + $0x1bc] sm:$0xf]
      %v1095 = vld [vmem:[%s5 + $0x1c0] sm:$0xf]
      %v1096 = vld [vmem:[%s5 + $0x1c4] sm:$0xf]
      %v1097 = vld [vmem:[%s5 + $0x1c8] sm:$0xf]
      %v1098 = vld [vmem:[%s5 + $0x1cc] sm:$0xf]
      %v1099 = vld [vmem:[%s5 + $0x1d0] sm:$0xf]
      %v1100 = vld [vmem:[%s5 + $0x1d4] sm:$0xf]
      %v1101 = vld [vmem:[%s5 + $0x1d8] sm:$0xf]
      %v1102 = vld [vmem:[%s5 + $0x1dc] sm:$0xf]
      %v1103 = vld [vmem:[%s5 + $0x1e0] sm:$0xf]
      %v1104 = vld [vmem:[%s5 + $0x1e4] sm:$0xf]
      %v1105 = vld [vmem:[%s5 + $0x1e8] sm:$0xf]
      %v1106 = vld [vmem:[%s5 + $0x1ec] sm:$0xf]
      %v1107 = vld [vmem:[%s5 + $0x1f0] sm:$0xf]
      %v1108 = vld [vmem:[%s5 + $0x1f4] sm:$0xf]
      %v1109 = vld [vmem:[%s5 + $0x1f8] sm:$0xf]
      %v1110 = vld [vmem:[%s5 + $0x1fc] sm:$0xf]
      %v1111 = vld [vmem:[%s6] sm:$0xff]
      %v1112 = vld [vmem:[%s6 + $0x8] sm:$0xff]
      %v1113 = vld [vmem:[%s6 + $0x10] sm:$0xff]
      %v1114 = vld [vmem:[%s6 + $0x18] sm:$0xff]
      %v1115 = vld [vmem:[%s6 + $0x20] sm:$0xff]
      %v1116 = vld [vmem:[%s6 + $0x28] sm:$0xff]
      %v1117 = vld [vmem:[%s6 + $0x30] sm:$0xff]
      %v1118 = vld [vmem:[%s6 + $0x38] sm:$0xff]
      %v1119 = vld [vmem:[%s6 + $0x40] sm:$0xff]
      %v1120 = vld [vmem:[%s6 + $0x48] sm:$0xff]
      %v1121 = vld [vmem:[%s6 + $0x50] sm:$0xff]
      %v1122 = vld [vmem:[%s6 + $0x58] sm:$0xff]
      %v1123 = vld [vmem:[%s6 + $0x60] sm:$0xff]
      %v1124 = vld [vmem:[%s6 + $0x68] sm:$0xff]
      %v1125 = vld [vmem:[%s6 + $0x70] sm:$0xff]
      %v1126 = vld [vmem:[%s6 + $0x78] sm:$0xff]
      %v1127 = vld [vmem:[%s6 + $0x80] sm:$0xff]
      %v1128 = vld [vmem:[%s6 + $0x88] sm:$0xff]
      %v1129 = vld [vmem:[%s6 + $0x90] sm:$0xff]
      %v1130 = vld [vmem:[%s6 + $0x98] sm:$0xff]
      %v1131 = vld [vmem:[%s6 + $0xa0] sm:$0xff]
      %v1132 = vld [vmem:[%s6 + $0xa8] sm:$0xff]
      %v1133 = vld [vmem:[%s6 + $0xb0] sm:$0xff]
      %v1134 = vld [vmem:[%s6 + $0xb8] sm:$0xff]
      %v1135 = vld [vmem:[%s6 + $0xc0] sm:$0xff]
      %v1136 = vld [vmem:[%s6 + $0xc8] sm:$0xff]
      %v1137 = vld [vmem:[%s6 + $0xd0] sm:$0xff]
      %v1138 = vld [vmem:[%s6 + $0xd8] sm:$0xff]
      %v1139 = vld [vmem:[%s6 + $0xe0] sm:$0xff]
      %v1140 = vld [vmem:[%s6 + $0xe8] sm:$0xff]
      %v1141 = vld [vmem:[%s6 + $0xf0] sm:$0xff]
      %v1142 = vld [vmem:[%s6 + $0xf8] sm:$0xff]
      %v1143 = vld [vmem:[%s6 + $0x100] sm:$0xff]
      %v1144 = vld [vmem:[%s6 + $0x108] sm:$0xff]
      %v1145 = vld [vmem:[%s6 + $0x110] sm:$0xff]
      %v1146 = vld [vmem:[%s6 + $0x118] sm:$0xff]
      %v1147 = vld [vmem:[%s6 + $0x120] sm:$0xff]
      %v1148 = vld [vmem:[%s6 + $0x128] sm:$0xff]
      %v1149 = vld [vmem:[%s6 + $0x130] sm:$0xff]
      %v1150 = vld [vmem:[%s6 + $0x138] sm:$0xff]
      %v1151 = vld [vmem:[%s6 + $0x140] sm:$0xff]
      %v1152 = vld [vmem:[%s6 + $0x148] sm:$0xff]
      %v1153 = vld [vmem:[%s6 + $0x150] sm:$0xff]
      %v1154 = vld [vmem:[%s6 + $0x158] sm:$0xff]
      %v1155 = vld [vmem:[%s6 + $0x160] sm:$0xff]
      %v1156 = vld [vmem:[%s6 + $0x168] sm:$0xff]
      %v1157 = vld [vmem:[%s6 + $0x170] sm:$0xff]
      %v1158 = vld [vmem:[%s6 + $0x178] sm:$0xff]
      %v1159 = vld [vmem:[%s6 + $0x180] sm:$0xff]
      %v1160 = vld [vmem:[%s6 + $0x188] sm:$0xff]
      %v1161 = vld [vmem:[%s6 + $0x190] sm:$0xff]
      %v1162 = vld [vmem:[%s6 + $0x198] sm:$0xff]
      %v1163 = vld [vmem:[%s6 + $0x1a0] sm:$0xff]
      %v1164 = vld [vmem:[%s6 + $0x1a8] sm:$0xff]
      %v1165 = vld [vmem:[%s6 + $0x1b0] sm:$0xff]
      %v1166 = vld [vmem:[%s6 + $0x1b8] sm:$0xff]
      %v1167 = vld [vmem:[%s6 + $0x1c0] sm:$0xff]
      %v1168 = vld [vmem:[%s6 + $0x1c8] sm:$0xff]
      %v1169 = vld [vmem:[%s6 + $0x1d0] sm:$0xff]
      %v1170 = vld [vmem:[%s6 + $0x1d8] sm:$0xff]
      %v1171 = vld [vmem:[%s6 + $0x1e0] sm:$0xff]
      %v1172 = vld [vmem:[%s6 + $0x1e8] sm:$0xff]
      %v1173 = vld [vmem:[%s6 + $0x1f0] sm:$0xff]
      %v1174 = vld [vmem:[%s6 + $0x1f8] sm:$0xff]
      %v1175 = vld [vmem:[%s6 + $0x200] sm:$0xff]
      %v1176 = vld [vmem:[%s6 + $0x208] sm:$0xff]
      %v1177 = vld [vmem:[%s6 + $0x210] sm:$0xff]
      %v1178 = vld [vmem:[%s6 + $0x218] sm:$0xff]
      %v1179 = vld [vmem:[%s6 + $0x220] sm:$0xff]
      %v1180 = vld [vmem:[%s6 + $0x228] sm:$0xff]
      %v1181 = vld [vmem:[%s6 + $0x230] sm:$0xff]
      %v1182 = vld [vmem:[%s6 + $0x238] sm:$0xff]
      %v1183 = vld [vmem:[%s6 + $0x240] sm:$0xff]
      %v1184 = vld [vmem:[%s6 + $0x248] sm:$0xff]
      %v1185 = vld [vmem:[%s6 + $0x250] sm:$0xff]
      %v1186 = vld [vmem:[%s6 + $0x258] sm:$0xff]
      %v1187 = vld [vmem:[%s6 + $0x260] sm:$0xff]
      %v1188 = vld [vmem:[%s6 + $0x268] sm:$0xff]
      %v1189 = vld [vmem:[%s6 + $0x270] sm:$0xff]
      %v1190 = vld [vmem:[%s6 + $0x278] sm:$0xff]
      %v1191 = vld [vmem:[%s6 + $0x280] sm:$0xff]
      %v1192 = vld [vmem:[%s6 + $0x288] sm:$0xff]
      %v1193 = vld [vmem:[%s6 + $0x290] sm:$0xff]
      %v1194 = vld [vmem:[%s6 + $0x298] sm:$0xff]
      %v1195 = vld [vmem:[%s6 + $0x2a0] sm:$0xff]
      %v1196 = vld [vmem:[%s6 + $0x2a8] sm:$0xff]
      %v1197 = vld [vmem:[%s6 + $0x2b0] sm:$0xff]
      %v1198 = vld [vmem:[%s6 + $0x2b8] sm:$0xff]
      %v1199 = vld [vmem:[%s6 + $0x2c0] sm:$0xff]
      %v1200 = vld [vmem:[%s6 + $0x2c8] sm:$0xff]
      %v1201 = vld [vmem:[%s6 + $0x2d0] sm:$0xff]
      %v1202 = vld [vmem:[%s6 + $0x2d8] sm:$0xff]
      %v1203 = vld [vmem:[%s6 + $0x2e0] sm:$0xff]
      %v1204 = vld [vmem:[%s6 + $0x2e8] sm:$0xff]
      %v1205 = vld [vmem:[%s6 + $0x2f0] sm:$0xff]
      %v1206 = vld [vmem:[%s6 + $0x2f8] sm:$0xff]
      %v1207 = vld [vmem:[%s6 + $0x300] sm:$0xff]
      %v1208 = vld [vmem:[%s6 + $0x308] sm:$0xff]
      %v1209 = vld [vmem:[%s6 + $0x310] sm:$0xff]
      %v1210 = vld [vmem:[%s6 + $0x318] sm:$0xff]
      %v1211 = vld [vmem:[%s6 + $0x320] sm:$0xff]
      %v1212 = vld [vmem:[%s6 + $0x328] sm:$0xff]
      %v1213 = vld [vmem:[%s6 + $0x330] sm:$0xff]
      %v1214 = vld [vmem:[%s6 + $0x338] sm:$0xff]
      %v1215 = vld [vmem:[%s6 + $0x340] sm:$0xff]
      %v1216 = vld [vmem:[%s6 + $0x348] sm:$0xff]
      %v1217 = vld [vmem:[%s6 + $0x350] sm:$0xff]
      %v1218 = vld [vmem:[%s6 + $0x358] sm:$0xff]
      %v1219 = vld [vmem:[%s6 + $0x360] sm:$0xff]
      %v1220 = vld [vmem:[%s6 + $0x368] sm:$0xff]
      %v1221 = vld [vmem:[%s6 + $0x370] sm:$0xff]
      %v1222 = vld [vmem:[%s6 + $0x378] sm:$0xff]
      %v1223 = vld [vmem:[%s6 + $0x380] sm:$0xff]
      %v1224 = vld [vmem:[%s6 + $0x388] sm:$0xff]
      %v1225 = vld [vmem:[%s6 + $0x390] sm:$0xff]
      %v1226 = vld [vmem:[%s6 + $0x398] sm:$0xff]
      %v1227 = vld [vmem:[%s6 + $0x3a0] sm:$0xff]
      %v1228 = vld [vmem:[%s6 + $0x3a8] sm:$0xff]
      %v1229 = vld [vmem:[%s6 + $0x3b0] sm:$0xff]
      %v1230 = vld [vmem:[%s6 + $0x3b8] sm:$0xff]
      %v1231 = vld [vmem:[%s6 + $0x3c0] sm:$0xff]
      %v1232 = vld [vmem:[%s6 + $0x3c8] sm:$0xff]
      %v1233 = vld [vmem:[%s6 + $0x3d0] sm:$0xff]
      %v1234 = vld [vmem:[%s6 + $0x3d8] sm:$0xff]
      %v1235 = vld [vmem:[%s6 + $0x3e0] sm:$0xff]
      %v1236 = vld [vmem:[%s6 + $0x3e8] sm:$0xff]
      %v1237 = vld [vmem:[%s6 + $0x3f0] sm:$0xff]
      %v1238 = vld [vmem:[%s6 + $0x3f8] sm:$0xff]
      %1240 = vset.pattern.permute.xlu0 0
      %1241 = vperm.xlu0 %1240, %v1111
      %v1242 = vpop.permute.xlu0 %1241
      %1245 = vset.pattern.permute.xlu0 0
      %1246 = vperm.xlu0 %1245, %v1112
      %v1247 = vpop.permute.xlu0 %1246
      %1250 = vset.pattern.permute.xlu0 0
      %1251 = vperm.xlu0 %1250, %v1113
      %v1252 = vpop.permute.xlu0 %1251
      %1255 = vset.pattern.permute.xlu0 0
      %1256 = vperm.xlu0 %1255, %v1114
      %v1257 = vpop.permute.xlu0 %1256
      %1260 = vset.pattern.permute.xlu0 0
      %1261 = vperm.xlu0 %1260, %v1115
      %v1262 = vpop.permute.xlu0 %1261
      %1265 = vset.pattern.permute.xlu0 0
      %1266 = vperm.xlu0 %1265, %v1116
      %v1267 = vpop.permute.xlu0 %1266
      %1270 = vset.pattern.permute.xlu0 0
      %1271 = vperm.xlu0 %1270, %v1117
      %v1272 = vpop.permute.xlu0 %1271
      %1275 = vset.pattern.permute.xlu0 0
      %1276 = vperm.xlu0 %1275, %v1118
      %v1277 = vpop.permute.xlu0 %1276
      %1280 = vset.pattern.permute.xlu0 0
      %1281 = vperm.xlu0 %1280, %v1119
      %v1282 = vpop.permute.xlu0 %1281
      %1285 = vset.pattern.permute.xlu0 0
      %1286 = vperm.xlu0 %1285, %v1120
      %v1287 = vpop.permute.xlu0 %1286
      %1290 = vset.pattern.permute.xlu0 0
      %1291 = vperm.xlu0 %1290, %v1121
      %v1292 = vpop.permute.xlu0 %1291
      %1295 = vset.pattern.permute.xlu0 0
      %1296 = vperm.xlu0 %1295, %v1122
      %v1297 = vpop.permute.xlu0 %1296
      %1300 = vset.pattern.permute.xlu0 0
      %1301 = vperm.xlu0 %1300, %v1123
      %v1302 = vpop.permute.xlu0 %1301
      %1305 = vset.pattern.permute.xlu0 0
      %1306 = vperm.xlu0 %1305, %v1124
      %v1307 = vpop.permute.xlu0 %1306
      %1310 = vset.pattern.permute.xlu0 0
      %1311 = vperm.xlu0 %1310, %v1125
      %v1312 = vpop.permute.xlu0 %1311
      %1315 = vset.pattern.permute.xlu0 0
      %1316 = vperm.xlu0 %1315, %v1126
      %v1317 = vpop.permute.xlu0 %1316
      %1320 = vset.pattern.permute.xlu0 0
      %1321 = vperm.xlu0 %1320, %v1127
      %v1322 = vpop.permute.xlu0 %1321
      %1325 = vset.pattern.permute.xlu0 0
      %1326 = vperm.xlu0 %1325, %v1128
      %v1327 = vpop.permute.xlu0 %1326
      %1330 = vset.pattern.permute.xlu0 0
      %1331 = vperm.xlu0 %1330, %v1129
      %v1332 = vpop.permute.xlu0 %1331
      %1335 = vset.pattern.permute.xlu0 0
      %1336 = vperm.xlu0 %1335, %v1130
      %v1337 = vpop.permute.xlu0 %1336
      %1340 = vset.pattern.permute.xlu0 0
      %1341 = vperm.xlu0 %1340, %v1131
      %v1342 = vpop.permute.xlu0 %1341
      %1345 = vset.pattern.permute.xlu0 0
      %1346 = vperm.xlu0 %1345, %v1132
      %v1347 = vpop.permute.xlu0 %1346
      %1350 = vset.pattern.permute.xlu0 0
      %1351 = vperm.xlu0 %1350, %v1133
      %v1352 = vpop.permute.xlu0 %1351
      %1355 = vset.pattern.permute.xlu0 0
      %1356 = vperm.xlu0 %1355, %v1134
      %v1357 = vpop.permute.xlu0 %1356
      %1360 = vset.pattern.permute.xlu0 0
      %1361 = vperm.xlu0 %1360, %v1135
      %v1362 = vpop.permute.xlu0 %1361
      %1365 = vset.pattern.permute.xlu0 0
      %1366 = vperm.xlu0 %1365, %v1136
      %v1367 = vpop.permute.xlu0 %1366
      %1370 = vset.pattern.permute.xlu0 0
      %1371 = vperm.xlu0 %1370, %v1137
      %v1372 = vpop.permute.xlu0 %1371
      %1375 = vset.pattern.permute.xlu0 0
      %1376 = vperm.xlu0 %1375, %v1138
      %v1377 = vpop.permute.xlu0 %1376
      %1380 = vset.pattern.permute.xlu0 0
      %1381 = vperm.xlu0 %1380, %v1139
      %v1382 = vpop.permute.xlu0 %1381
      %1385 = vset.pattern.permute.xlu0 0
      %1386 = vperm.xlu0 %1385, %v1140
      %v1387 = vpop.permute.xlu0 %1386
      %1390 = vset.pattern.permute.xlu0 0
      %1391 = vperm.xlu0 %1390, %v1141
      %v1392 = vpop.permute.xlu0 %1391
      %1395 = vset.pattern.permute.xlu0 0
      %1396 = vperm.xlu0 %1395, %v1142
      %v1397 = vpop.permute.xlu0 %1396
      %1400 = vset.pattern.permute.xlu0 0
      %1401 = vperm.xlu0 %1400, %v1143
      %v1402 = vpop.permute.xlu0 %1401
      %1405 = vset.pattern.permute.xlu0 0
      %1406 = vperm.xlu0 %1405, %v1144
      %v1407 = vpop.permute.xlu0 %1406
      %1410 = vset.pattern.permute.xlu0 0
      %1411 = vperm.xlu0 %1410, %v1145
      %v1412 = vpop.permute.xlu0 %1411
      %1415 = vset.pattern.permute.xlu0 0
      %1416 = vperm.xlu0 %1415, %v1146
      %v1417 = vpop.permute.xlu0 %1416
      %1420 = vset.pattern.permute.xlu0 0
      %1421 = vperm.xlu0 %1420, %v1147
      %v1422 = vpop.permute.xlu0 %1421
      %1425 = vset.pattern.permute.xlu0 0
      %1426 = vperm.xlu0 %1425, %v1148
      %v1427 = vpop.permute.xlu0 %1426
      %1430 = vset.pattern.permute.xlu0 0
      %1431 = vperm.xlu0 %1430, %v1149
      %v1432 = vpop.permute.xlu0 %1431
      %1435 = vset.pattern.permute.xlu0 0
      %1436 = vperm.xlu0 %1435, %v1150
      %v1437 = vpop.permute.xlu0 %1436
      %1440 = vset.pattern.permute.xlu0 0
      %1441 = vperm.xlu0 %1440, %v1151
      %v1442 = vpop.permute.xlu0 %1441
      %1445 = vset.pattern.permute.xlu0 0
      %1446 = vperm.xlu0 %1445, %v1152
      %v1447 = vpop.permute.xlu0 %1446
      %1450 = vset.pattern.permute.xlu0 0
      %1451 = vperm.xlu0 %1450, %v1153
      %v1452 = vpop.permute.xlu0 %1451
      %1455 = vset.pattern.permute.xlu0 0
      %1456 = vperm.xlu0 %1455, %v1154
      %v1457 = vpop.permute.xlu0 %1456
      %1460 = vset.pattern.permute.xlu0 0
      %1461 = vperm.xlu0 %1460, %v1155
      %v1462 = vpop.permute.xlu0 %1461
      %1465 = vset.pattern.permute.xlu0 0
      %1466 = vperm.xlu0 %1465, %v1156
      %v1467 = vpop.permute.xlu0 %1466
      %1470 = vset.pattern.permute.xlu0 0
      %1471 = vperm.xlu0 %1470, %v1157
      %v1472 = vpop.permute.xlu0 %1471
      %1475 = vset.pattern.permute.xlu0 0
      %1476 = vperm.xlu0 %1475, %v1158
      %v1477 = vpop.permute.xlu0 %1476
      %1480 = vset.pattern.permute.xlu0 0
      %1481 = vperm.xlu0 %1480, %v1159
      %v1482 = vpop.permute.xlu0 %1481
      %1485 = vset.pattern.permute.xlu0 0
      %1486 = vperm.xlu0 %1485, %v1160
      %v1487 = vpop.permute.xlu0 %1486
      %1490 = vset.pattern.permute.xlu0 0
      %1491 = vperm.xlu0 %1490, %v1161
      %v1492 = vpop.permute.xlu0 %1491
      %1495 = vset.pattern.permute.xlu0 0
      %1496 = vperm.xlu0 %1495, %v1162
      %v1497 = vpop.permute.xlu0 %1496
      %1500 = vset.pattern.permute.xlu0 0
      %1501 = vperm.xlu0 %1500, %v1163
      %v1502 = vpop.permute.xlu0 %1501
      %1505 = vset.pattern.permute.xlu0 0
      %1506 = vperm.xlu0 %1505, %v1164
      %v1507 = vpop.permute.xlu0 %1506
      %1510 = vset.pattern.permute.xlu0 0
      %1511 = vperm.xlu0 %1510, %v1165
      %v1512 = vpop.permute.xlu0 %1511
      %1515 = vset.pattern.permute.xlu0 0
      %1516 = vperm.xlu0 %1515, %v1166
      %v1517 = vpop.permute.xlu0 %1516
      %1520 = vset.pattern.permute.xlu0 0
      %1521 = vperm.xlu0 %1520, %v1167
      %v1522 = vpop.permute.xlu0 %1521
      %1525 = vset.pattern.permute.xlu0 0
      %1526 = vperm.xlu0 %1525, %v1168
      %v1527 = vpop.permute.xlu0 %1526
      %1530 = vset.pattern.permute.xlu0 0
      %1531 = vperm.xlu0 %1530, %v1169
      %v1532 = vpop.permute.xlu0 %1531
      %1535 = vset.pattern.permute.xlu0 0
      %1536 = vperm.xlu0 %1535, %v1170
      %v1537 = vpop.permute.xlu0 %1536
      %1540 = vset.pattern.permute.xlu0 0
      %1541 = vperm.xlu0 %1540, %v1171
      %v1542 = vpop.permute.xlu0 %1541
      %1545 = vset.pattern.permute.xlu0 0
      %1546 = vperm.xlu0 %1545, %v1172
      %v1547 = vpop.permute.xlu0 %1546
      %1550 = vset.pattern.permute.xlu0 0
      %1551 = vperm.xlu0 %1550, %v1173
      %v1552 = vpop.permute.xlu0 %1551
      %1555 = vset.pattern.permute.xlu0 0
      %1556 = vperm.xlu0 %1555, %v1174
      %v1557 = vpop.permute.xlu0 %1556
      %1560 = vset.pattern.permute.xlu0 0
      %1561 = vperm.xlu0 %1560, %v1175
      %v1562 = vpop.permute.xlu0 %1561
      %1565 = vset.pattern.permute.xlu0 0
      %1566 = vperm.xlu0 %1565, %v1176
      %v1567 = vpop.permute.xlu0 %1566
      %1570 = vset.pattern.permute.xlu0 0
      %1571 = vperm.xlu0 %1570, %v1177
      %v1572 = vpop.permute.xlu0 %1571
      %1575 = vset.pattern.permute.xlu0 0
      %1576 = vperm.xlu0 %1575, %v1178
      %v1577 = vpop.permute.xlu0 %1576
      %1580 = vset.pattern.permute.xlu0 0
      %1581 = vperm.xlu0 %1580, %v1179
      %v1582 = vpop.permute.xlu0 %1581
      %1585 = vset.pattern.permute.xlu0 0
      %1586 = vperm.xlu0 %1585, %v1180
      %v1587 = vpop.permute.xlu0 %1586
      %1590 = vset.pattern.permute.xlu0 0
      %1591 = vperm.xlu0 %1590, %v1181
      %v1592 = vpop.permute.xlu0 %1591
      %1595 = vset.pattern.permute.xlu0 0
      %1596 = vperm.xlu0 %1595, %v1182
      %v1597 = vpop.permute.xlu0 %1596
      %1600 = vset.pattern.permute.xlu0 0
      %1601 = vperm.xlu0 %1600, %v1183
      %v1602 = vpop.permute.xlu0 %1601
      %1605 = vset.pattern.permute.xlu0 0
      %1606 = vperm.xlu0 %1605, %v1184
      %v1607 = vpop.permute.xlu0 %1606
      %1610 = vset.pattern.permute.xlu0 0
      %1611 = vperm.xlu0 %1610, %v1185
      %v1612 = vpop.permute.xlu0 %1611
      %1615 = vset.pattern.permute.xlu0 0
      %1616 = vperm.xlu0 %1615, %v1186
      %v1617 = vpop.permute.xlu0 %1616
      %1620 = vset.pattern.permute.xlu0 0
      %1621 = vperm.xlu0 %1620, %v1187
      %v1622 = vpop.permute.xlu0 %1621
      %1625 = vset.pattern.permute.xlu0 0
      %1626 = vperm.xlu0 %1625, %v1188
      %v1627 = vpop.permute.xlu0 %1626
      %1630 = vset.pattern.permute.xlu0 0
      %1631 = vperm.xlu0 %1630, %v1189
      %v1632 = vpop.permute.xlu0 %1631
      %1635 = vset.pattern.permute.xlu0 0
      %1636 = vperm.xlu0 %1635, %v1190
      %v1637 = vpop.permute.xlu0 %1636
      %1640 = vset.pattern.permute.xlu0 0
      %1641 = vperm.xlu0 %1640, %v1191
      %v1642 = vpop.permute.xlu0 %1641
      %1645 = vset.pattern.permute.xlu0 0
      %1646 = vperm.xlu0 %1645, %v1192
      %v1647 = vpop.permute.xlu0 %1646
      %1650 = vset.pattern.permute.xlu0 0
      %1651 = vperm.xlu0 %1650, %v1193
      %v1652 = vpop.permute.xlu0 %1651
      %1655 = vset.pattern.permute.xlu0 0
      %1656 = vperm.xlu0 %1655, %v1194
      %v1657 = vpop.permute.xlu0 %1656
      %1660 = vset.pattern.permute.xlu0 0
      %1661 = vperm.xlu0 %1660, %v1195
      %v1662 = vpop.permute.xlu0 %1661
      %1665 = vset.pattern.permute.xlu0 0
      %1666 = vperm.xlu0 %1665, %v1196
      %v1667 = vpop.permute.xlu0 %1666
      %1670 = vset.pattern.permute.xlu0 0
      %1671 = vperm.xlu0 %1670, %v1197
      %v1672 = vpop.permute.xlu0 %1671
      %1675 = vset.pattern.permute.xlu0 0
      %1676 = vperm.xlu0 %1675, %v1198
      %v1677 = vpop.permute.xlu0 %1676
      %1680 = vset.pattern.permute.xlu0 0
      %1681 = vperm.xlu0 %1680, %v1199
      %v1682 = vpop.permute.xlu0 %1681
      %1685 = vset.pattern.permute.xlu0 0
      %1686 = vperm.xlu0 %1685, %v1200
      %v1687 = vpop.permute.xlu0 %1686
      %1690 = vset.pattern.permute.xlu0 0
      %1691 = vperm.xlu0 %1690, %v1201
      %v1692 = vpop.permute.xlu0 %1691
      %1695 = vset.pattern.permute.xlu0 0
      %1696 = vperm.xlu0 %1695, %v1202
      %v1697 = vpop.permute.xlu0 %1696
      %1700 = vset.pattern.permute.xlu0 0
      %1701 = vperm.xlu0 %1700, %v1203
      %v1702 = vpop.permute.xlu0 %1701
      %1705 = vset.pattern.permute.xlu0 0
      %1706 = vperm.xlu0 %1705, %v1204
      %v1707 = vpop.permute.xlu0 %1706
      %1710 = vset.pattern.permute.xlu0 0
      %1711 = vperm.xlu0 %1710, %v1205
      %v1712 = vpop.permute.xlu0 %1711
      %1715 = vset.pattern.permute.xlu0 0
      %1716 = vperm.xlu0 %1715, %v1206
      %v1717 = vpop.permute.xlu0 %1716
      %1720 = vset.pattern.permute.xlu0 0
      %1721 = vperm.xlu0 %1720, %v1207
      %v1722 = vpop.permute.xlu0 %1721
      %1725 = vset.pattern.permute.xlu0 0
      %1726 = vperm.xlu0 %1725, %v1208
      %v1727 = vpop.permute.xlu0 %1726
      %1730 = vset.pattern.permute.xlu0 0
      %1731 = vperm.xlu0 %1730, %v1209
      %v1732 = vpop.permute.xlu0 %1731
      %1735 = vset.pattern.permute.xlu0 0
      %1736 = vperm.xlu0 %1735, %v1210
      %v1737 = vpop.permute.xlu0 %1736
      %1740 = vset.pattern.permute.xlu0 0
      %1741 = vperm.xlu0 %1740, %v1211
      %v1742 = vpop.permute.xlu0 %1741
      %1745 = vset.pattern.permute.xlu0 0
      %1746 = vperm.xlu0 %1745, %v1212
      %v1747 = vpop.permute.xlu0 %1746
      %1750 = vset.pattern.permute.xlu0 0
      %1751 = vperm.xlu0 %1750, %v1213
      %v1752 = vpop.permute.xlu0 %1751
      %1755 = vset.pattern.permute.xlu0 0
      %1756 = vperm.xlu0 %1755, %v1214
      %v1757 = vpop.permute.xlu0 %1756
      %1760 = vset.pattern.permute.xlu0 0
      %1761 = vperm.xlu0 %1760, %v1215
      %v1762 = vpop.permute.xlu0 %1761
      %1765 = vset.pattern.permute.xlu0 0
      %1766 = vperm.xlu0 %1765, %v1216
      %v1767 = vpop.permute.xlu0 %1766
      %1770 = vset.pattern.permute.xlu0 0
      %1771 = vperm.xlu0 %1770, %v1217
      %v1772 = vpop.permute.xlu0 %1771
      %1775 = vset.pattern.permute.xlu0 0
      %1776 = vperm.xlu0 %1775, %v1218
      %v1777 = vpop.permute.xlu0 %1776
      %1780 = vset.pattern.permute.xlu0 0
      %1781 = vperm.xlu0 %1780, %v1219
      %v1782 = vpop.permute.xlu0 %1781
      %1785 = vset.pattern.permute.xlu0 0
      %1786 = vperm.xlu0 %1785, %v1220
      %v1787 = vpop.permute.xlu0 %1786
      %1790 = vset.pattern.permute.xlu0 0
      %1791 = vperm.xlu0 %1790, %v1221
      %v1792 = vpop.permute.xlu0 %1791
      %1795 = vset.pattern.permute.xlu0 0
      %1796 = vperm.xlu0 %1795, %v1222
      %v1797 = vpop.permute.xlu0 %1796
      %1800 = vset.pattern.permute.xlu0 0
      %1801 = vperm.xlu0 %1800, %v1223
      %v1802 = vpop.permute.xlu0 %1801
      %1805 = vset.pattern.permute.xlu0 0
      %1806 = vperm.xlu0 %1805, %v1224
      %v1807 = vpop.permute.xlu0 %1806
      %1810 = vset.pattern.permute.xlu0 0
      %1811 = vperm.xlu0 %1810, %v1225
      %v1812 = vpop.permute.xlu0 %1811
      %1815 = vset.pattern.permute.xlu0 0
      %1816 = vperm.xlu0 %1815, %v1226
      %v1817 = vpop.permute.xlu0 %1816
      %1820 = vset.pattern.permute.xlu0 0
      %1821 = vperm.xlu0 %1820, %v1227
      %v1822 = vpop.permute.xlu0 %1821
      %1825 = vset.pattern.permute.xlu0 0
      %1826 = vperm.xlu0 %1825, %v1228
      %v1827 = vpop.permute.xlu0 %1826
      %1830 = vset.pattern.permute.xlu0 0
      %1831 = vperm.xlu0 %1830, %v1229
      %v1832 = vpop.permute.xlu0 %1831
      %1835 = vset.pattern.permute.xlu0 0
      %1836 = vperm.xlu0 %1835, %v1230
      %v1837 = vpop.permute.xlu0 %1836
      %1840 = vset.pattern.permute.xlu0 0
      %1841 = vperm.xlu0 %1840, %v1231
      %v1842 = vpop.permute.xlu0 %1841
      %1845 = vset.pattern.permute.xlu0 0
      %1846 = vperm.xlu0 %1845, %v1232
      %v1847 = vpop.permute.xlu0 %1846
      %1850 = vset.pattern.permute.xlu0 0
      %1851 = vperm.xlu0 %1850, %v1233
      %v1852 = vpop.permute.xlu0 %1851
      %1855 = vset.pattern.permute.xlu0 0
      %1856 = vperm.xlu0 %1855, %v1234
      %v1857 = vpop.permute.xlu0 %1856
      %1860 = vset.pattern.permute.xlu0 0
      %1861 = vperm.xlu0 %1860, %v1235
      %v1862 = vpop.permute.xlu0 %1861
      %1865 = vset.pattern.permute.xlu0 0
      %1866 = vperm.xlu0 %1865, %v1236
      %v1867 = vpop.permute.xlu0 %1866
      %1870 = vset.pattern.permute.xlu0 0
      %1871 = vperm.xlu0 %1870, %v1237
      %v1872 = vpop.permute.xlu0 %1871
      %1875 = vset.pattern.permute.xlu0 0
      %1876 = vperm.xlu0 %1875, %v1238
      %v1877 = vpop.permute.xlu0 %1876
      %v2007 = vunpack.c.l.b16 %v983
      %v2008 = vunpack.c.l.b16 %v984
      %v2009 = vunpack.c.l.b16 %v985
      %v2010 = vunpack.c.l.b16 %v986
      %v2011 = vunpack.c.l.b16 %v987
      %v2012 = vunpack.c.l.b16 %v988
      %v2013 = vunpack.c.l.b16 %v989
      %v2014 = vunpack.c.l.b16 %v990
      %v2015 = vunpack.c.l.b16 %v991
      %v2016 = vunpack.c.l.b16 %v992
      %v2017 = vunpack.c.l.b16 %v993
      %v2018 = vunpack.c.l.b16 %v994
      %v2019 = vunpack.c.l.b16 %v995
      %v2020 = vunpack.c.l.b16 %v996
      %v2021 = vunpack.c.l.b16 %v997
      %v2022 = vunpack.c.l.b16 %v998
      %v2023 = vunpack.c.l.b16 %v999
      %v2024 = vunpack.c.l.b16 %v1000
      %v2025 = vunpack.c.l.b16 %v1001
      %v2026 = vunpack.c.l.b16 %v1002
      %v2027 = vunpack.c.l.b16 %v1003
      %v2028 = vunpack.c.l.b16 %v1004
      %v2029 = vunpack.c.l.b16 %v1005
      %v2030 = vunpack.c.l.b16 %v1006
      %v2031 = vunpack.c.l.b16 %v1007
      %v2032 = vunpack.c.l.b16 %v1008
      %v2033 = vunpack.c.l.b16 %v1009
      %v2034 = vunpack.c.l.b16 %v1010
      %v2035 = vunpack.c.l.b16 %v1011
      %v2036 = vunpack.c.l.b16 %v1012
      %v2037 = vunpack.c.l.b16 %v1013
      %v2038 = vunpack.c.l.b16 %v1014
      %v2039 = vunpack.c.l.b16 %v1015
      %v2040 = vunpack.c.l.b16 %v1016
      %v2041 = vunpack.c.l.b16 %v1017
      %v2042 = vunpack.c.l.b16 %v1018
      %v2043 = vunpack.c.l.b16 %v1019
      %v2044 = vunpack.c.l.b16 %v1020
      %v2045 = vunpack.c.l.b16 %v1021
      %v2046 = vunpack.c.l.b16 %v1022
      %v2047 = vunpack.c.l.b16 %v1023
      %v2048 = vunpack.c.l.b16 %v1024
      %v2049 = vunpack.c.l.b16 %v1025
      %v2050 = vunpack.c.l.b16 %v1026
      %v2051 = vunpack.c.l.b16 %v1027
      %v2052 = vunpack.c.l.b16 %v1028
      %v2053 = vunpack.c.l.b16 %v1029
      %v2054 = vunpack.c.l.b16 %v1030
      %v2055 = vunpack.c.l.b16 %v1031
      %v2056 = vunpack.c.l.b16 %v1032
      %v2057 = vunpack.c.l.b16 %v1033
      %v2058 = vunpack.c.l.b16 %v1034
      %v2059 = vunpack.c.l.b16 %v1035
      %v2060 = vunpack.c.l.b16 %v1036
      %v2061 = vunpack.c.l.b16 %v1037
      %v2062 = vunpack.c.l.b16 %v1038
      %v2063 = vunpack.c.l.b16 %v1039
      %v2064 = vunpack.c.l.b16 %v1040
      %v2065 = vunpack.c.l.b16 %v1041
      %v2066 = vunpack.c.l.b16 %v1042
      %v2067 = vunpack.c.l.b16 %v1043
      %v2068 = vunpack.c.l.b16 %v1044
      %v2069 = vunpack.c.l.b16 %v1045
      %v2070 = vunpack.c.l.b16 %v1046
      %v2071 = vunpack.c.l.b16 %v1047
      %v2072 = vunpack.c.l.b16 %v1048
      %v2073 = vunpack.c.l.b16 %v1049
      %v2074 = vunpack.c.l.b16 %v1050
      %v2075 = vunpack.c.l.b16 %v1051
      %v2076 = vunpack.c.l.b16 %v1052
      %v2077 = vunpack.c.l.b16 %v1053
      %v2078 = vunpack.c.l.b16 %v1054
      %v2079 = vunpack.c.l.b16 %v1055
      %v2080 = vunpack.c.l.b16 %v1056
      %v2081 = vunpack.c.l.b16 %v1057
      %v2082 = vunpack.c.l.b16 %v1058
      %v2083 = vunpack.c.l.b16 %v1059
      %v2084 = vunpack.c.l.b16 %v1060
      %v2085 = vunpack.c.l.b16 %v1061
      %v2086 = vunpack.c.l.b16 %v1062
      %v2087 = vunpack.c.l.b16 %v1063
      %v2088 = vunpack.c.l.b16 %v1064
      %v2089 = vunpack.c.l.b16 %v1065
      %v2090 = vunpack.c.l.b16 %v1066
      %v2091 = vunpack.c.l.b16 %v1067
      %v2092 = vunpack.c.l.b16 %v1068
      %v2093 = vunpack.c.l.b16 %v1069
      %v2094 = vunpack.c.l.b16 %v1070
      %v2095 = vunpack.c.l.b16 %v1071
      %v2096 = vunpack.c.l.b16 %v1072
      %v2097 = vunpack.c.l.b16 %v1073
      %v2098 = vunpack.c.l.b16 %v1074
      %v2099 = vunpack.c.l.b16 %v1075
      %v2100 = vunpack.c.l.b16 %v1076
      %v2101 = vunpack.c.l.b16 %v1077
      %v2102 = vunpack.c.l.b16 %v1078
      %v2103 = vunpack.c.l.b16 %v1079
      %v2104 = vunpack.c.l.b16 %v1080
      %v2105 = vunpack.c.l.b16 %v1081
      %v2106 = vunpack.c.l.b16 %v1082
      %v2107 = vunpack.c.l.b16 %v1083
      %v2108 = vunpack.c.l.b16 %v1084
      %v2109 = vunpack.c.l.b16 %v1085
      %v2110 = vunpack.c.l.b16 %v1086
      %v2111 = vunpack.c.l.b16 %v1087
      %v2112 = vunpack.c.l.b16 %v1088
      %v2113 = vunpack.c.l.b16 %v1089
      %v2114 = vunpack.c.l.b16 %v1090
      %v2115 = vunpack.c.l.b16 %v1091
      %v2116 = vunpack.c.l.b16 %v1092
      %v2117 = vunpack.c.l.b16 %v1093
      %v2118 = vunpack.c.l.b16 %v1094
      %v2119 = vunpack.c.l.b16 %v1095
      %v2120 = vunpack.c.l.b16 %v1096
      %v2121 = vunpack.c.l.b16 %v1097
      %v2122 = vunpack.c.l.b16 %v1098
      %v2123 = vunpack.c.l.b16 %v1099
      %v2124 = vunpack.c.l.b16 %v1100
      %v2125 = vunpack.c.l.b16 %v1101
      %v2126 = vunpack.c.l.b16 %v1102
      %v2127 = vunpack.c.l.b16 %v1103
      %v2128 = vunpack.c.l.b16 %v1104
      %v2129 = vunpack.c.l.b16 %v1105
      %v2130 = vunpack.c.l.b16 %v1106
      %v2131 = vunpack.c.l.b16 %v1107
      %v2132 = vunpack.c.l.b16 %v1108
      %v2133 = vunpack.c.l.b16 %v1109
      %v2134 = vunpack.c.l.b16 %v1110
      %v2135 = vpack.c.b16 %v2008, %v2007
      %v2136 = vpack.c.b16 %v2010, %v2009
      %v2137 = vpack.c.b16 %v2012, %v2011
      %v2138 = vpack.c.b16 %v2014, %v2013
      %v2139 = vpack.c.b16 %v2016, %v2015
      %v2140 = vpack.c.b16 %v2018, %v2017
      %v2141 = vpack.c.b16 %v2020, %v2019
      %v2142 = vpack.c.b16 %v2022, %v2021
      %v2143 = vpack.c.b16 %v2024, %v2023
      %v2144 = vpack.c.b16 %v2026, %v2025
      %v2145 = vpack.c.b16 %v2028, %v2027
      %v2146 = vpack.c.b16 %v2030, %v2029
      %v2147 = vpack.c.b16 %v2032, %v2031
      %v2148 = vpack.c.b16 %v2034, %v2033
      %v2149 = vpack.c.b16 %v2036, %v2035
      %v2150 = vpack.c.b16 %v2038, %v2037
      %v2151 = vpack.c.b16 %v2040, %v2039
      %v2152 = vpack.c.b16 %v2042, %v2041
      %v2153 = vpack.c.b16 %v2044, %v2043
      %v2154 = vpack.c.b16 %v2046, %v2045
      %v2155 = vpack.c.b16 %v2048, %v2047
      %v2156 = vpack.c.b16 %v2050, %v2049
      %v2157 = vpack.c.b16 %v2052, %v2051
      %v2158 = vpack.c.b16 %v2054, %v2053
      %v2159 = vpack.c.b16 %v2056, %v2055
      %v2160 = vpack.c.b16 %v2058, %v2057
      %v2161 = vpack.c.b16 %v2060, %v2059
      %v2162 = vpack.c.b16 %v2062, %v2061
      %v2163 = vpack.c.b16 %v2064, %v2063
      %v2164 = vpack.c.b16 %v2066, %v2065
      %v2165 = vpack.c.b16 %v2068, %v2067
      %v2166 = vpack.c.b16 %v2070, %v2069
      %v2167 = vpack.c.b16 %v2072, %v2071
      %v2168 = vpack.c.b16 %v2074, %v2073
      %v2169 = vpack.c.b16 %v2076, %v2075
      %v2170 = vpack.c.b16 %v2078, %v2077
      %v2171 = vpack.c.b16 %v2080, %v2079
      %v2172 = vpack.c.b16 %v2082, %v2081
      %v2173 = vpack.c.b16 %v2084, %v2083
      %v2174 = vpack.c.b16 %v2086, %v2085
      %v2175 = vpack.c.b16 %v2088, %v2087
      %v2176 = vpack.c.b16 %v2090, %v2089
      %v2177 = vpack.c.b16 %v2092, %v2091
      %v2178 = vpack.c.b16 %v2094, %v2093
      %v2179 = vpack.c.b16 %v2096, %v2095
      %v2180 = vpack.c.b16 %v2098, %v2097
      %v2181 = vpack.c.b16 %v2100, %v2099
      %v2182 = vpack.c.b16 %v2102, %v2101
      %v2183 = vpack.c.b16 %v2104, %v2103
      %v2184 = vpack.c.b16 %v2106, %v2105
      %v2185 = vpack.c.b16 %v2108, %v2107
      %v2186 = vpack.c.b16 %v2110, %v2109
      %v2187 = vpack.c.b16 %v2112, %v2111
      %v2188 = vpack.c.b16 %v2114, %v2113
      %v2189 = vpack.c.b16 %v2116, %v2115
      %v2190 = vpack.c.b16 %v2118, %v2117
      %v2191 = vpack.c.b16 %v2120, %v2119
      %v2192 = vpack.c.b16 %v2122, %v2121
      %v2193 = vpack.c.b16 %v2124, %v2123
      %v2194 = vpack.c.b16 %v2126, %v2125
      %v2195 = vpack.c.b16 %v2128, %v2127
      %v2196 = vpack.c.b16 %v2130, %v2129
      %v2197 = vpack.c.b16 %v2132, %v2131
      %v2198 = vpack.c.b16 %v2134, %v2133
      %2263 = vmatprep.subr.bf16.mxu0 %v982
      %2264 = vmatpush1.bf16.msra.mxu0 %v981
      %2265 = vmatprep.subr.bf16.mxu0 %v980
      %2266 = vmatpush1.bf16.msra.mxu0 %v979
      %2267 = vmatprep.subr.bf16.mxu0 %v978
      %2268 = vmatpush1.bf16.msra.mxu0 %v977
      %2269 = vmatprep.subr.bf16.mxu0 %v976
      %2270 = vmatpush1.bf16.msra.mxu0 %v975
      %2271 = vmatprep.subr.bf16.mxu0 %v974
      %2272 = vmatpush1.bf16.msra.mxu0 %v973
      %2273 = vmatprep.subr.bf16.mxu0 %v972
      %2274 = vmatpush1.bf16.msra.mxu0 %v971
      %2275 = vmatprep.subr.bf16.mxu0 %v970
      %2276 = vmatpush1.bf16.msra.mxu0 %v969
      %2277 = vmatprep.subr.bf16.mxu0 %v968
      %2278 = vmatpush1.bf16.msra.mxu0 %v967
      %2279 = vmatprep.subr.bf16.mxu0 0
      %2280 = vmatpush2.bf16.msra.mxu0 0
      %2281 = vmatprep.subr.bf16.mxu0 0
      %2282 = vmatpush2.bf16.msra.mxu0 0
      %2283 = vmatprep.subr.bf16.mxu0 0
      %2284 = vmatpush2.bf16.msra.mxu0 0
      %2285 = vmatprep.subr.bf16.mxu0 0
      %2286 = vmatpush2.bf16.msra.mxu0 0
      %2287 = vmatprep.subr.bf16.mxu0 0
      %2288 = vmatpush2.bf16.msra.mxu0 0
      %2289 = vmatprep.subr.bf16.mxu0 0
      %2290 = vmatpush2.bf16.msra.mxu0 0
      %2291 = vmatprep.subr.bf16.mxu0 0
      %2292 = vmatpush2.bf16.msra.mxu0 0
      %2293 = vmatprep.subr.bf16.mxu0 0
      %2294 = vmatpush2.bf16.msra.mxu0 0
      %2295 = vmatprep.mubr.bf16.mxu0 0
      %2296 = vmatmul.mubr.bf16.gmra.mxu0 %v2135
      %v2297 = vpop.f32.mrf.mxu0
      %v2298 = vadd.f32 %v1242, %v2297
      %v2299 = vpop.f32.mrf.mxu0
      %v2300 = vadd.f32 %v1242, %v2299
      %v2301 = vpop.f32.mrf.mxu0
      %v2302 = vadd.f32 %v1247, %v2301
      %v2303 = vpop.f32.mrf.mxu0
      %v2304 = vadd.f32 %v1247, %v2303
      %2305 = vmatprep.mubr.bf16.mxu0 0
      %2306 = vmatmul.mubr.bf16.gmra.mxu0 %v2136
      %v2307 = vpop.f32.mrf.mxu0
      %v2308 = vadd.f32 %v1252, %v2307
      %v2309 = vpop.f32.mrf.mxu0
      %v2310 = vadd.f32 %v1252, %v2309
      %v2311 = vpop.f32.mrf.mxu0
      %v2312 = vadd.f32 %v1257, %v2311
      %v2313 = vpop.f32.mrf.mxu0
      %v2314 = vadd.f32 %v1257, %v2313
      %2315 = vmatprep.mubr.bf16.mxu0 0
      %2316 = vmatmul.mubr.bf16.gmra.mxu0 %v2137
      %v2317 = vpop.f32.mrf.mxu0
      %v2318 = vadd.f32 %v1262, %v2317
      %v2319 = vpop.f32.mrf.mxu0
      %v2320 = vadd.f32 %v1262, %v2319
      %v2321 = vpop.f32.mrf.mxu0
      %v2322 = vadd.f32 %v1267, %v2321
      %v2323 = vpop.f32.mrf.mxu0
      %v2324 = vadd.f32 %v1267, %v2323
      %2325 = vmatprep.mubr.bf16.mxu0 0
      %2326 = vmatmul.mubr.bf16.gmra.mxu0 %v2138
      %v2327 = vpop.f32.mrf.mxu0
      %v2328 = vadd.f32 %v1272, %v2327
      %v2329 = vpop.f32.mrf.mxu0
      %v2330 = vadd.f32 %v1272, %v2329
      %v2331 = vpop.f32.mrf.mxu0
      %v2332 = vadd.f32 %v1277, %v2331
      %v2333 = vpop.f32.mrf.mxu0
      %v2334 = vadd.f32 %v1277, %v2333
      %2335 = vmatprep.mubr.bf16.mxu0 0
      %2336 = vmatmul.mubr.bf16.gmra.mxu0 %v2139
      %v2337 = vpop.f32.mrf.mxu0
      %v2338 = vadd.f32 %v1282, %v2337
      %v2339 = vpop.f32.mrf.mxu0
      %v2340 = vadd.f32 %v1282, %v2339
      %v2341 = vpop.f32.mrf.mxu0
      %v2342 = vadd.f32 %v1287, %v2341
      %v2343 = vpop.f32.mrf.mxu0
      %v2344 = vadd.f32 %v1287, %v2343
      %2345 = vmatprep.mubr.bf16.mxu0 0
      %2346 = vmatmul.mubr.bf16.gmra.mxu0 %v2140
      %v2347 = vpop.f32.mrf.mxu0
      %v2348 = vadd.f32 %v1292, %v2347
      %v2349 = vpop.f32.mrf.mxu0
      %v2350 = vadd.f32 %v1292, %v2349
      %v2351 = vpop.f32.mrf.mxu0
      %v2352 = vadd.f32 %v1297, %v2351
      %v2353 = vpop.f32.mrf.mxu0
      %v2354 = vadd.f32 %v1297, %v2353
      %2355 = vmatprep.mubr.bf16.mxu0 0
      %2356 = vmatmul.mubr.bf16.gmra.mxu0 %v2141
      %v2357 = vpop.f32.mrf.mxu0
      %v2358 = vadd.f32 %v1302, %v2357
      %v2359 = vpop.f32.mrf.mxu0
      %v2360 = vadd.f32 %v1302, %v2359
      %v2361 = vpop.f32.mrf.mxu0
      %v2362 = vadd.f32 %v1307, %v2361
      %v2363 = vpop.f32.mrf.mxu0
      %v2364 = vadd.f32 %v1307, %v2363
      %2365 = vmatprep.mubr.bf16.mxu0 0
      %2366 = vmatmul.mubr.bf16.gmra.mxu0 %v2142
      %v2367 = vpop.f32.mrf.mxu0
      %v2368 = vadd.f32 %v1312, %v2367
      %v2369 = vpop.f32.mrf.mxu0
      %v2370 = vadd.f32 %v1312, %v2369
      %v2371 = vpop.f32.mrf.mxu0
      %v2372 = vadd.f32 %v1317, %v2371
      %v2373 = vpop.f32.mrf.mxu0
      %v2374 = vadd.f32 %v1317, %v2373
      %2375 = vmatprep.mubr.bf16.mxu0 0
      %2376 = vmatmul.mubr.bf16.gmra.mxu0 %v2143
      %v2377 = vpop.f32.mrf.mxu0
      %v2378 = vadd.f32 %v1322, %v2377
      %v2379 = vpop.f32.mrf.mxu0
      %v2380 = vadd.f32 %v1322, %v2379
      %v2381 = vpop.f32.mrf.mxu0
      %v2382 = vadd.f32 %v1327, %v2381
      %v2383 = vpop.f32.mrf.mxu0
      %v2384 = vadd.f32 %v1327, %v2383
      %2385 = vmatprep.mubr.bf16.mxu0 0
      %2386 = vmatmul.mubr.bf16.gmra.mxu0 %v2144
      %v2387 = vpop.f32.mrf.mxu0
      %v2388 = vadd.f32 %v1332, %v2387
      %v2389 = vpop.f32.mrf.mxu0
      %v2390 = vadd.f32 %v1332, %v2389
      %v2391 = vpop.f32.mrf.mxu0
      %v2392 = vadd.f32 %v1337, %v2391
      %v2393 = vpop.f32.mrf.mxu0
      %v2394 = vadd.f32 %v1337, %v2393
      %2395 = vmatprep.mubr.bf16.mxu0 0
      %2396 = vmatmul.mubr.bf16.gmra.mxu0 %v2145
      %v2397 = vpop.f32.mrf.mxu0
      %v2398 = vadd.f32 %v1342, %v2397
      %v2399 = vpop.f32.mrf.mxu0
      %v2400 = vadd.f32 %v1342, %v2399
      %v2401 = vpop.f32.mrf.mxu0
      %v2402 = vadd.f32 %v1347, %v2401
      %v2403 = vpop.f32.mrf.mxu0
      %v2404 = vadd.f32 %v1347, %v2403
      %2405 = vmatprep.mubr.bf16.mxu0 0
      %2406 = vmatmul.mubr.bf16.gmra.mxu0 %v2146
      %v2407 = vpop.f32.mrf.mxu0
      %v2408 = vadd.f32 %v1352, %v2407
      %v2409 = vpop.f32.mrf.mxu0
      %v2410 = vadd.f32 %v1352, %v2409
      %v2411 = vpop.f32.mrf.mxu0
      %v2412 = vadd.f32 %v1357, %v2411
      %v2413 = vpop.f32.mrf.mxu0
      %v2414 = vadd.f32 %v1357, %v2413
      %2415 = vmatprep.mubr.bf16.mxu0 0
      %2416 = vmatmul.mubr.bf16.gmra.mxu0 %v2147
      %v2417 = vpop.f32.mrf.mxu0
      %v2418 = vadd.f32 %v1362, %v2417
      %v2419 = vpop.f32.mrf.mxu0
      %v2420 = vadd.f32 %v1362, %v2419
      %v2421 = vpop.f32.mrf.mxu0
      %v2422 = vadd.f32 %v1367, %v2421
      %v2423 = vpop.f32.mrf.mxu0
      %v2424 = vadd.f32 %v1367, %v2423
      %2425 = vmatprep.mubr.bf16.mxu0 0
      %2426 = vmatmul.mubr.bf16.gmra.mxu0 %v2148
      %v2427 = vpop.f32.mrf.mxu0
      %v2428 = vadd.f32 %v1372, %v2427
      %v2429 = vpop.f32.mrf.mxu0
      %v2430 = vadd.f32 %v1372, %v2429
      %v2431 = vpop.f32.mrf.mxu0
      %v2432 = vadd.f32 %v1377, %v2431
      %v2433 = vpop.f32.mrf.mxu0
      %v2434 = vadd.f32 %v1377, %v2433
      %2435 = vmatprep.mubr.bf16.mxu0 0
      %2436 = vmatmul.mubr.bf16.gmra.mxu0 %v2149
      %v2437 = vpop.f32.mrf.mxu0
      %v2438 = vadd.f32 %v1382, %v2437
      %v2439 = vpop.f32.mrf.mxu0
      %v2440 = vadd.f32 %v1382, %v2439
      %v2441 = vpop.f32.mrf.mxu0
      %v2442 = vadd.f32 %v1387, %v2441
      %v2443 = vpop.f32.mrf.mxu0
      %v2444 = vadd.f32 %v1387, %v2443
      %2445 = vmatprep.mubr.bf16.mxu0 0
      %2446 = vmatmul.mubr.bf16.gmra.mxu0 %v2150
      %v2447 = vpop.f32.mrf.mxu0
      %v2448 = vadd.f32 %v1392, %v2447
      %v2449 = vpop.f32.mrf.mxu0
      %v2450 = vadd.f32 %v1392, %v2449
      %v2451 = vpop.f32.mrf.mxu0
      %v2452 = vadd.f32 %v1397, %v2451
      %v2453 = vpop.f32.mrf.mxu0
      %v2454 = vadd.f32 %v1397, %v2453
      %2455 = vmatprep.mubr.bf16.mxu0 0
      %2456 = vmatmul.mubr.bf16.gmra.mxu0 %v2151
      %v2457 = vpop.f32.mrf.mxu0
      %v2458 = vadd.f32 %v1402, %v2457
      %v2459 = vpop.f32.mrf.mxu0
      %v2460 = vadd.f32 %v1402, %v2459
      %v2461 = vpop.f32.mrf.mxu0
      %v2462 = vadd.f32 %v1407, %v2461
      %v2463 = vpop.f32.mrf.mxu0
      %v2464 = vadd.f32 %v1407, %v2463
      %2465 = vmatprep.mubr.bf16.mxu0 0
      %2466 = vmatmul.mubr.bf16.gmra.mxu0 %v2152
      %v2467 = vpop.f32.mrf.mxu0
      %v2468 = vadd.f32 %v1412, %v2467
      %v2469 = vpop.f32.mrf.mxu0
      %v2470 = vadd.f32 %v1412, %v2469
      %v2471 = vpop.f32.mrf.mxu0
      %v2472 = vadd.f32 %v1417, %v2471
      %v2473 = vpop.f32.mrf.mxu0
      %v2474 = vadd.f32 %v1417, %v2473
      %2475 = vmatprep.mubr.bf16.mxu0 0
      %2476 = vmatmul.mubr.bf16.gmra.mxu0 %v2153
      %v2477 = vpop.f32.mrf.mxu0
      %v2478 = vadd.f32 %v1422, %v2477
      %v2479 = vpop.f32.mrf.mxu0
      %v2480 = vadd.f32 %v1422, %v2479
      %v2481 = vpop.f32.mrf.mxu0
      %v2482 = vadd.f32 %v1427, %v2481
      %v2483 = vpop.f32.mrf.mxu0
      %v2484 = vadd.f32 %v1427, %v2483
      %2485 = vmatprep.mubr.bf16.mxu0 0
      %2486 = vmatmul.mubr.bf16.gmra.mxu0 %v2154
      %v2487 = vpop.f32.mrf.mxu0
      %v2488 = vadd.f32 %v1432, %v2487
      %v2489 = vpop.f32.mrf.mxu0
      %v2490 = vadd.f32 %v1432, %v2489
      %v2491 = vpop.f32.mrf.mxu0
      %v2492 = vadd.f32 %v1437, %v2491
      %v2493 = vpop.f32.mrf.mxu0
      %v2494 = vadd.f32 %v1437, %v2493
      %2495 = vmatprep.mubr.bf16.mxu0 0
      %2496 = vmatmul.mubr.bf16.gmra.mxu0 %v2155
      %v2497 = vpop.f32.mrf.mxu0
      %v2498 = vadd.f32 %v1442, %v2497
      %v2499 = vpop.f32.mrf.mxu0
      %v2500 = vadd.f32 %v1442, %v2499
      %v2501 = vpop.f32.mrf.mxu0
      %v2502 = vadd.f32 %v1447, %v2501
      %v2503 = vpop.f32.mrf.mxu0
      %v2504 = vadd.f32 %v1447, %v2503
      %2505 = vmatprep.mubr.bf16.mxu0 0
      %2506 = vmatmul.mubr.bf16.gmra.mxu0 %v2156
      %v2507 = vpop.f32.mrf.mxu0
      %v2508 = vadd.f32 %v1452, %v2507
      %v2509 = vpop.f32.mrf.mxu0
      %v2510 = vadd.f32 %v1452, %v2509
      %v2511 = vpop.f32.mrf.mxu0
      %v2512 = vadd.f32 %v1457, %v2511
      %v2513 = vpop.f32.mrf.mxu0
      %v2514 = vadd.f32 %v1457, %v2513
      %2515 = vmatprep.mubr.bf16.mxu0 0
      %2516 = vmatmul.mubr.bf16.gmra.mxu0 %v2157
      %v2517 = vpop.f32.mrf.mxu0
      %v2518 = vadd.f32 %v1462, %v2517
      %v2519 = vpop.f32.mrf.mxu0
      %v2520 = vadd.f32 %v1462, %v2519
      %v2521 = vpop.f32.mrf.mxu0
      %v2522 = vadd.f32 %v1467, %v2521
      %v2523 = vpop.f32.mrf.mxu0
      %v2524 = vadd.f32 %v1467, %v2523
      %2525 = vmatprep.mubr.bf16.mxu0 0
      %2526 = vmatmul.mubr.bf16.gmra.mxu0 %v2158
      %v2527 = vpop.f32.mrf.mxu0
      %v2528 = vadd.f32 %v1472, %v2527
      %v2529 = vpop.f32.mrf.mxu0
      %v2530 = vadd.f32 %v1472, %v2529
      %v2531 = vpop.f32.mrf.mxu0
      %v2532 = vadd.f32 %v1477, %v2531
      %v2533 = vpop.f32.mrf.mxu0
      %v2534 = vadd.f32 %v1477, %v2533
      %2535 = vmatprep.mubr.bf16.mxu0 0
      %2536 = vmatmul.mubr.bf16.gmra.mxu0 %v2159
      %v2537 = vpop.f32.mrf.mxu0
      %v2538 = vadd.f32 %v1482, %v2537
      %v2539 = vpop.f32.mrf.mxu0
      %v2540 = vadd.f32 %v1482, %v2539
      %v2541 = vpop.f32.mrf.mxu0
      %v2542 = vadd.f32 %v1487, %v2541
      %v2543 = vpop.f32.mrf.mxu0
      %v2544 = vadd.f32 %v1487, %v2543
      %2545 = vmatprep.mubr.bf16.mxu0 0
      %2546 = vmatmul.mubr.bf16.gmra.mxu0 %v2160
      %v2547 = vpop.f32.mrf.mxu0
      %v2548 = vadd.f32 %v1492, %v2547
      %v2549 = vpop.f32.mrf.mxu0
      %v2550 = vadd.f32 %v1492, %v2549
      %v2551 = vpop.f32.mrf.mxu0
      %v2552 = vadd.f32 %v1497, %v2551
      %v2553 = vpop.f32.mrf.mxu0
      %v2554 = vadd.f32 %v1497, %v2553
      %2555 = vmatprep.mubr.bf16.mxu0 0
      %2556 = vmatmul.mubr.bf16.gmra.mxu0 %v2161
      %v2557 = vpop.f32.mrf.mxu0
      %v2558 = vadd.f32 %v1502, %v2557
      %v2559 = vpop.f32.mrf.mxu0
      %v2560 = vadd.f32 %v1502, %v2559
      %v2561 = vpop.f32.mrf.mxu0
      %v2562 = vadd.f32 %v1507, %v2561
      %v2563 = vpop.f32.mrf.mxu0
      %v2564 = vadd.f32 %v1507, %v2563
      %2565 = vmatprep.mubr.bf16.mxu0 0
      %2566 = vmatmul.mubr.bf16.gmra.mxu0 %v2162
      %v2567 = vpop.f32.mrf.mxu0
      %v2568 = vadd.f32 %v1512, %v2567
      %v2569 = vpop.f32.mrf.mxu0
      %v2570 = vadd.f32 %v1512, %v2569
      %v2571 = vpop.f32.mrf.mxu0
      %v2572 = vadd.f32 %v1517, %v2571
      %v2573 = vpop.f32.mrf.mxu0
      %v2574 = vadd.f32 %v1517, %v2573
      %2575 = vmatprep.mubr.bf16.mxu0 0
      %2576 = vmatmul.mubr.bf16.gmra.mxu0 %v2163
      %v2577 = vpop.f32.mrf.mxu0
      %v2578 = vadd.f32 %v1522, %v2577
      %v2579 = vpop.f32.mrf.mxu0
      %v2580 = vadd.f32 %v1522, %v2579
      %v2581 = vpop.f32.mrf.mxu0
      %v2582 = vadd.f32 %v1527, %v2581
      %v2583 = vpop.f32.mrf.mxu0
      %v2584 = vadd.f32 %v1527, %v2583
      %2585 = vmatprep.mubr.bf16.mxu0 0
      %2586 = vmatmul.mubr.bf16.gmra.mxu0 %v2164
      %v2587 = vpop.f32.mrf.mxu0
      %v2588 = vadd.f32 %v1532, %v2587
      %v2589 = vpop.f32.mrf.mxu0
      %v2590 = vadd.f32 %v1532, %v2589
      %v2591 = vpop.f32.mrf.mxu0
      %v2592 = vadd.f32 %v1537, %v2591
      %v2593 = vpop.f32.mrf.mxu0
      %v2594 = vadd.f32 %v1537, %v2593
      %2595 = vmatprep.mubr.bf16.mxu0 0
      %2596 = vmatmul.mubr.bf16.gmra.mxu0 %v2165
      %v2597 = vpop.f32.mrf.mxu0
      %v2598 = vadd.f32 %v1542, %v2597
      %v2599 = vpop.f32.mrf.mxu0
      %v2600 = vadd.f32 %v1542, %v2599
      %v2601 = vpop.f32.mrf.mxu0
      %v2602 = vadd.f32 %v1547, %v2601
      %v2603 = vpop.f32.mrf.mxu0
      %v2604 = vadd.f32 %v1547, %v2603
      %2605 = vmatprep.mubr.bf16.mxu0 0
      %2606 = vmatmul.mubr.bf16.gmra.mxu0 %v2166
      %v2607 = vpop.f32.mrf.mxu0
      %v2608 = vadd.f32 %v1552, %v2607
      %v2609 = vpop.f32.mrf.mxu0
      %v2610 = vadd.f32 %v1552, %v2609
      %v2611 = vpop.f32.mrf.mxu0
      %v2612 = vadd.f32 %v1557, %v2611
      %v2613 = vpop.f32.mrf.mxu0
      %v2614 = vadd.f32 %v1557, %v2613
      %2615 = vmatprep.mubr.bf16.mxu0 0
      %2616 = vmatmul.mubr.bf16.gmra.mxu0 %v2167
      %v2617 = vpop.f32.mrf.mxu0
      %v2618 = vadd.f32 %v1562, %v2617
      %v2619 = vpop.f32.mrf.mxu0
      %v2620 = vadd.f32 %v1562, %v2619
      %v2621 = vpop.f32.mrf.mxu0
      %v2622 = vadd.f32 %v1567, %v2621
      %v2623 = vpop.f32.mrf.mxu0
      %v2624 = vadd.f32 %v1567, %v2623
      %2625 = vmatprep.mubr.bf16.mxu0 0
      %2626 = vmatmul.mubr.bf16.gmra.mxu0 %v2168
      %v2627 = vpop.f32.mrf.mxu0
      %v2628 = vadd.f32 %v1572, %v2627
      %v2629 = vpop.f32.mrf.mxu0
      %v2630 = vadd.f32 %v1572, %v2629
      %v2631 = vpop.f32.mrf.mxu0
      %v2632 = vadd.f32 %v1577, %v2631
      %v2633 = vpop.f32.mrf.mxu0
      %v2634 = vadd.f32 %v1577, %v2633
      %2635 = vmatprep.mubr.bf16.mxu0 0
      %2636 = vmatmul.mubr.bf16.gmra.mxu0 %v2169
      %v2637 = vpop.f32.mrf.mxu0
      %v2638 = vadd.f32 %v1582, %v2637
      %v2639 = vpop.f32.mrf.mxu0
      %v2640 = vadd.f32 %v1582, %v2639
      %v2641 = vpop.f32.mrf.mxu0
      %v2642 = vadd.f32 %v1587, %v2641
      %v2643 = vpop.f32.mrf.mxu0
      %v2644 = vadd.f32 %v1587, %v2643
      %2645 = vmatprep.mubr.bf16.mxu0 0
      %2646 = vmatmul.mubr.bf16.gmra.mxu0 %v2170
      %v2647 = vpop.f32.mrf.mxu0
      %v2648 = vadd.f32 %v1592, %v2647
      %v2649 = vpop.f32.mrf.mxu0
      %v2650 = vadd.f32 %v1592, %v2649
      %v2651 = vpop.f32.mrf.mxu0
      %v2652 = vadd.f32 %v1597, %v2651
      %v2653 = vpop.f32.mrf.mxu0
      %v2654 = vadd.f32 %v1597, %v2653
      %2655 = vmatprep.mubr.bf16.mxu0 0
      %2656 = vmatmul.mubr.bf16.gmra.mxu0 %v2171
      %v2657 = vpop.f32.mrf.mxu0
      %v2658 = vadd.f32 %v1602, %v2657
      %v2659 = vpop.f32.mrf.mxu0
      %v2660 = vadd.f32 %v1602, %v2659
      %v2661 = vpop.f32.mrf.mxu0
      %v2662 = vadd.f32 %v1607, %v2661
      %v2663 = vpop.f32.mrf.mxu0
      %v2664 = vadd.f32 %v1607, %v2663
      %2665 = vmatprep.mubr.bf16.mxu0 0
      %2666 = vmatmul.mubr.bf16.gmra.mxu0 %v2172
      %v2667 = vpop.f32.mrf.mxu0
      %v2668 = vadd.f32 %v1612, %v2667
      %v2669 = vpop.f32.mrf.mxu0
      %v2670 = vadd.f32 %v1612, %v2669
      %v2671 = vpop.f32.mrf.mxu0
      %v2672 = vadd.f32 %v1617, %v2671
      %v2673 = vpop.f32.mrf.mxu0
      %v2674 = vadd.f32 %v1617, %v2673
      %2675 = vmatprep.mubr.bf16.mxu0 0
      %2676 = vmatmul.mubr.bf16.gmra.mxu0 %v2173
      %v2677 = vpop.f32.mrf.mxu0
      %v2678 = vadd.f32 %v1622, %v2677
      %v2679 = vpop.f32.mrf.mxu0
      %v2680 = vadd.f32 %v1622, %v2679
      %v2681 = vpop.f32.mrf.mxu0
      %v2682 = vadd.f32 %v1627, %v2681
      %v2683 = vpop.f32.mrf.mxu0
      %v2684 = vadd.f32 %v1627, %v2683
      %2685 = vmatprep.mubr.bf16.mxu0 0
      %2686 = vmatmul.mubr.bf16.gmra.mxu0 %v2174
      %v2687 = vpop.f32.mrf.mxu0
      %v2688 = vadd.f32 %v1632, %v2687
      %v2689 = vpop.f32.mrf.mxu0
      %v2690 = vadd.f32 %v1632, %v2689
      %v2691 = vpop.f32.mrf.mxu0
      %v2692 = vadd.f32 %v1637, %v2691
      %v2693 = vpop.f32.mrf.mxu0
      %v2694 = vadd.f32 %v1637, %v2693
      %2695 = vmatprep.mubr.bf16.mxu0 0
      %2696 = vmatmul.mubr.bf16.gmra.mxu0 %v2175
      %v2697 = vpop.f32.mrf.mxu0
      %v2698 = vadd.f32 %v1642, %v2697
      %v2699 = vpop.f32.mrf.mxu0
      %v2700 = vadd.f32 %v1642, %v2699
      %v2701 = vpop.f32.mrf.mxu0
      %v2702 = vadd.f32 %v1647, %v2701
      %v2703 = vpop.f32.mrf.mxu0
      %v2704 = vadd.f32 %v1647, %v2703
      %2705 = vmatprep.mubr.bf16.mxu0 0
      %2706 = vmatmul.mubr.bf16.gmra.mxu0 %v2176
      %v2707 = vpop.f32.mrf.mxu0
      %v2708 = vadd.f32 %v1652, %v2707
      %v2709 = vpop.f32.mrf.mxu0
      %v2710 = vadd.f32 %v1652, %v2709
      %v2711 = vpop.f32.mrf.mxu0
      %v2712 = vadd.f32 %v1657, %v2711
      %v2713 = vpop.f32.mrf.mxu0
      %v2714 = vadd.f32 %v1657, %v2713
      %2715 = vmatprep.mubr.bf16.mxu0 0
      %2716 = vmatmul.mubr.bf16.gmra.mxu0 %v2177
      %v2717 = vpop.f32.mrf.mxu0
      %v2718 = vadd.f32 %v1662, %v2717
      %v2719 = vpop.f32.mrf.mxu0
      %v2720 = vadd.f32 %v1662, %v2719
      %v2721 = vpop.f32.mrf.mxu0
      %v2722 = vadd.f32 %v1667, %v2721
      %v2723 = vpop.f32.mrf.mxu0
      %v2724 = vadd.f32 %v1667, %v2723
      %2725 = vmatprep.mubr.bf16.mxu0 0
      %2726 = vmatmul.mubr.bf16.gmra.mxu0 %v2178
      %v2727 = vpop.f32.mrf.mxu0
      %v2728 = vadd.f32 %v1672, %v2727
      %v2729 = vpop.f32.mrf.mxu0
      %v2730 = vadd.f32 %v1672, %v2729
      %v2731 = vpop.f32.mrf.mxu0
      %v2732 = vadd.f32 %v1677, %v2731
      %v2733 = vpop.f32.mrf.mxu0
      %v2734 = vadd.f32 %v1677, %v2733
      %2735 = vmatprep.mubr.bf16.mxu0 0
      %2736 = vmatmul.mubr.bf16.gmra.mxu0 %v2179
      %v2737 = vpop.f32.mrf.mxu0
      %v2738 = vadd.f32 %v1682, %v2737
      %v2739 = vpop.f32.mrf.mxu0
      %v2740 = vadd.f32 %v1682, %v2739
      %v2741 = vpop.f32.mrf.mxu0
      %v2742 = vadd.f32 %v1687, %v2741
      %v2743 = vpop.f32.mrf.mxu0
      %v2744 = vadd.f32 %v1687, %v2743
      %2745 = vmatprep.mubr.bf16.mxu0 0
      %2746 = vmatmul.mubr.bf16.gmra.mxu0 %v2180
      %v2747 = vpop.f32.mrf.mxu0
      %v2748 = vadd.f32 %v1692, %v2747
      %v2749 = vpop.f32.mrf.mxu0
      %v2750 = vadd.f32 %v1692, %v2749
      %v2751 = vpop.f32.mrf.mxu0
      %v2752 = vadd.f32 %v1697, %v2751
      %v2753 = vpop.f32.mrf.mxu0
      %v2754 = vadd.f32 %v1697, %v2753
      %2755 = vmatprep.mubr.bf16.mxu0 0
      %2756 = vmatmul.mubr.bf16.gmra.mxu0 %v2181
      %v2757 = vpop.f32.mrf.mxu0
      %v2758 = vadd.f32 %v1702, %v2757
      %v2759 = vpop.f32.mrf.mxu0
      %v2760 = vadd.f32 %v1702, %v2759
      %v2761 = vpop.f32.mrf.mxu0
      %v2762 = vadd.f32 %v1707, %v2761
      %v2763 = vpop.f32.mrf.mxu0
      %v2764 = vadd.f32 %v1707, %v2763
      %2765 = vmatprep.mubr.bf16.mxu0 0
      %2766 = vmatmul.mubr.bf16.gmra.mxu0 %v2182
      %v2767 = vpop.f32.mrf.mxu0
      %v2768 = vadd.f32 %v1712, %v2767
      %v2769 = vpop.f32.mrf.mxu0
      %v2770 = vadd.f32 %v1712, %v2769
      %v2771 = vpop.f32.mrf.mxu0
      %v2772 = vadd.f32 %v1717, %v2771
      %v2773 = vpop.f32.mrf.mxu0
      %v2774 = vadd.f32 %v1717, %v2773
      %2775 = vmatprep.mubr.bf16.mxu0 0
      %2776 = vmatmul.mubr.bf16.gmra.mxu0 %v2183
      %v2777 = vpop.f32.mrf.mxu0
      %v2778 = vadd.f32 %v1722, %v2777
      %v2779 = vpop.f32.mrf.mxu0
      %v2780 = vadd.f32 %v1722, %v2779
      %v2781 = vpop.f32.mrf.mxu0
      %v2782 = vadd.f32 %v1727, %v2781
      %v2783 = vpop.f32.mrf.mxu0
      %v2784 = vadd.f32 %v1727, %v2783
      %2785 = vmatprep.mubr.bf16.mxu0 0
      %2786 = vmatmul.mubr.bf16.gmra.mxu0 %v2184
      %v2787 = vpop.f32.mrf.mxu0
      %v2788 = vadd.f32 %v1732, %v2787
      %v2789 = vpop.f32.mrf.mxu0
      %v2790 = vadd.f32 %v1732, %v2789
      %v2791 = vpop.f32.mrf.mxu0
      %v2792 = vadd.f32 %v1737, %v2791
      %v2793 = vpop.f32.mrf.mxu0
      %v2794 = vadd.f32 %v1737, %v2793
      %2795 = vmatprep.mubr.bf16.mxu0 0
      %2796 = vmatmul.mubr.bf16.gmra.mxu0 %v2185
      %v2797 = vpop.f32.mrf.mxu0
      %v2798 = vadd.f32 %v1742, %v2797
      %v2799 = vpop.f32.mrf.mxu0
      %v2800 = vadd.f32 %v1742, %v2799
      %v2801 = vpop.f32.mrf.mxu0
      %v2802 = vadd.f32 %v1747, %v2801
      %v2803 = vpop.f32.mrf.mxu0
      %v2804 = vadd.f32 %v1747, %v2803
      %2805 = vmatprep.mubr.bf16.mxu0 0
      %2806 = vmatmul.mubr.bf16.gmra.mxu0 %v2186
      %v2807 = vpop.f32.mrf.mxu0
      %v2808 = vadd.f32 %v1752, %v2807
      %v2809 = vpop.f32.mrf.mxu0
      %v2810 = vadd.f32 %v1752, %v2809
      %v2811 = vpop.f32.mrf.mxu0
      %v2812 = vadd.f32 %v1757, %v2811
      %v2813 = vpop.f32.mrf.mxu0
      %v2814 = vadd.f32 %v1757, %v2813
      %2815 = vmatprep.mubr.bf16.mxu0 0
      %2816 = vmatmul.mubr.bf16.gmra.mxu0 %v2187
      %v2817 = vpop.f32.mrf.mxu0
      %v2818 = vadd.f32 %v1762, %v2817
      %v2819 = vpop.f32.mrf.mxu0
      %v2820 = vadd.f32 %v1762, %v2819
      %v2821 = vpop.f32.mrf.mxu0
      %v2822 = vadd.f32 %v1767, %v2821
      %v2823 = vpop.f32.mrf.mxu0
      %v2824 = vadd.f32 %v1767, %v2823
      %2825 = vmatprep.mubr.bf16.mxu0 0
      %2826 = vmatmul.mubr.bf16.gmra.mxu0 %v2188
      %v2827 = vpop.f32.mrf.mxu0
      %v2828 = vadd.f32 %v1772, %v2827
      %v2829 = vpop.f32.mrf.mxu0
      %v2830 = vadd.f32 %v1772, %v2829
      %v2831 = vpop.f32.mrf.mxu0
      %v2832 = vadd.f32 %v1777, %v2831
      %v2833 = vpop.f32.mrf.mxu0
      %v2834 = vadd.f32 %v1777, %v2833
      %2835 = vmatprep.mubr.bf16.mxu0 0
      %2836 = vmatmul.mubr.bf16.gmra.mxu0 %v2189
      %v2837 = vpop.f32.mrf.mxu0
      %v2838 = vadd.f32 %v1782, %v2837
      %v2839 = vpop.f32.mrf.mxu0
      %v2840 = vadd.f32 %v1782, %v2839
      %v2841 = vpop.f32.mrf.mxu0
      %v2842 = vadd.f32 %v1787, %v2841
      %v2843 = vpop.f32.mrf.mxu0
      %v2844 = vadd.f32 %v1787, %v2843
      %2845 = vmatprep.mubr.bf16.mxu0 0
      %2846 = vmatmul.mubr.bf16.gmra.mxu0 %v2190
      %v2847 = vpop.f32.mrf.mxu0
      %v2848 = vadd.f32 %v1792, %v2847
      %v2849 = vpop.f32.mrf.mxu0
      %v2850 = vadd.f32 %v1792, %v2849
      %v2851 = vpop.f32.mrf.mxu0
      %v2852 = vadd.f32 %v1797, %v2851
      %v2853 = vpop.f32.mrf.mxu0
      %v2854 = vadd.f32 %v1797, %v2853
      %2855 = vmatprep.mubr.bf16.mxu0 0
      %2856 = vmatmul.mubr.bf16.gmra.mxu0 %v2191
      %v2857 = vpop.f32.mrf.mxu0
      %v2858 = vadd.f32 %v1802, %v2857
      %v2859 = vpop.f32.mrf.mxu0
      %v2860 = vadd.f32 %v1802, %v2859
      %v2861 = vpop.f32.mrf.mxu0
      %v2862 = vadd.f32 %v1807, %v2861
      %v2863 = vpop.f32.mrf.mxu0
      %v2864 = vadd.f32 %v1807, %v2863
      %2865 = vmatprep.mubr.bf16.mxu0 0
      %2866 = vmatmul.mubr.bf16.gmra.mxu0 %v2192
      %v2867 = vpop.f32.mrf.mxu0
      %v2868 = vadd.f32 %v1812, %v2867
      %v2869 = vpop.f32.mrf.mxu0
      %v2870 = vadd.f32 %v1812, %v2869
      %v2871 = vpop.f32.mrf.mxu0
      %v2872 = vadd.f32 %v1817, %v2871
      %v2873 = vpop.f32.mrf.mxu0
      %v2874 = vadd.f32 %v1817, %v2873
      %2875 = vmatprep.mubr.bf16.mxu0 0
      %2876 = vmatmul.mubr.bf16.gmra.mxu0 %v2193
      %v2877 = vpop.f32.mrf.mxu0
      %v2878 = vadd.f32 %v1822, %v2877
      %v2879 = vpop.f32.mrf.mxu0
      %v2880 = vadd.f32 %v1822, %v2879
      %v2881 = vpop.f32.mrf.mxu0
      %v2882 = vadd.f32 %v1827, %v2881
      %v2883 = vpop.f32.mrf.mxu0
      %v2884 = vadd.f32 %v1827, %v2883
      %2885 = vmatprep.mubr.bf16.mxu0 0
      %2886 = vmatmul.mubr.bf16.gmra.mxu0 %v2194
      %v2887 = vpop.f32.mrf.mxu0
      %v2888 = vadd.f32 %v1832, %v2887
      %v2889 = vpop.f32.mrf.mxu0
      %v2890 = vadd.f32 %v1832, %v2889
      %v2891 = vpop.f32.mrf.mxu0
      %v2892 = vadd.f32 %v1837, %v2891
      %v2893 = vpop.f32.mrf.mxu0
      %v2894 = vadd.f32 %v1837, %v2893
      %2895 = vmatprep.mubr.bf16.mxu0 0
      %2896 = vmatmul.mubr.bf16.gmra.mxu0 %v2195
      %v2897 = vpop.f32.mrf.mxu0
      %v2898 = vadd.f32 %v1842, %v2897
      %v2899 = vpop.f32.mrf.mxu0
      %v2900 = vadd.f32 %v1842, %v2899
      %v2901 = vpop.f32.mrf.mxu0
      %v2902 = vadd.f32 %v1847, %v2901
      %v2903 = vpop.f32.mrf.mxu0
      %v2904 = vadd.f32 %v1847, %v2903
      %2905 = vmatprep.mubr.bf16.mxu0 0
      %2906 = vmatmul.mubr.bf16.gmra.mxu0 %v2196
      %v2907 = vpop.f32.mrf.mxu0
      %v2908 = vadd.f32 %v1852, %v2907
      %v2909 = vpop.f32.mrf.mxu0
      %v2910 = vadd.f32 %v1852, %v2909
      %v2911 = vpop.f32.mrf.mxu0
      %v2912 = vadd.f32 %v1857, %v2911
      %v2913 = vpop.f32.mrf.mxu0
      %v2914 = vadd.f32 %v1857, %v2913
      %2915 = vmatprep.mubr.bf16.mxu0 0
      %2916 = vmatmul.mubr.bf16.gmra.mxu0 %v2197
      %v2917 = vpop.f32.mrf.mxu0
      %v2918 = vadd.f32 %v1862, %v2917
      %v2919 = vpop.f32.mrf.mxu0
      %v2920 = vadd.f32 %v1862, %v2919
      %v2921 = vpop.f32.mrf.mxu0
      %v2922 = vadd.f32 %v1867, %v2921
      %v2923 = vpop.f32.mrf.mxu0
      %v2924 = vadd.f32 %v1867, %v2923
      %2925 = vmatprep.mubr.bf16.mxu0 0
      %2926 = vmatmul.mubr.bf16.gmra.mxu0 %v2198
      %v2927 = vpop.f32.mrf.mxu0
      %v2928 = vadd.f32 %v1872, %v2927
      %v2929 = vpop.f32.mrf.mxu0
      %v2930 = vadd.f32 %v1872, %v2929
      %v2931 = vpop.f32.mrf.mxu0
      %v2932 = vadd.f32 %v1877, %v2931
      %v2933 = vpop.f32.mrf.mxu0
      %v2934 = vadd.f32 %v1877, %v2933
      %2935 = vdwg.mxu0
      %v2936 = vld [vmem:[#allocation2] sm:$0xff]
      %v2937 = vld [vmem:[#allocation2 + $0x8] sm:$0xff]
      %v2938 = vld [vmem:[#allocation2 + $0x10] sm:$0xff]
      %v2939 = vld [vmem:[#allocation2 + $0x18] sm:$0xff]
      %v2940 = vld [vmem:[#allocation2 + $0x20] sm:$0xff]
      %v2941 = vld [vmem:[#allocation2 + $0x28] sm:$0xff]
      %v2942 = vld [vmem:[#allocation2 + $0x30] sm:$0xff]
      %v2943 = vld [vmem:[#allocation2 + $0x38] sm:$0xff]
      %v2944 = vld [vmem:[#allocation2 + $0x40] sm:$0xff]
      %v2945 = vld [vmem:[#allocation2 + $0x48] sm:$0xff]
      %v2946 = vld [vmem:[#allocation2 + $0x50] sm:$0xff]
      %v2947 = vld [vmem:[#allocation2 + $0x58] sm:$0xff]
      %v2948 = vld [vmem:[#allocation2 + $0x60] sm:$0xff]
      %v2949 = vld [vmem:[#allocation2 + $0x68] sm:$0xff]
      %v2950 = vld [vmem:[#allocation2 + $0x70] sm:$0xff]
      %v2951 = vld [vmem:[#allocation2 + $0x78] sm:$0xff]
      %v2952 = vld [vmem:[#allocation2 + $0x80] sm:$0xff]
      %v2953 = vld [vmem:[#allocation2 + $0x88] sm:$0xff]
      %v2954 = vld [vmem:[#allocation2 + $0x90] sm:$0xff]
      %v2955 = vld [vmem:[#allocation2 + $0x98] sm:$0xff]
      %v2956 = vld [vmem:[#allocation2 + $0xa0] sm:$0xff]
      %v2957 = vld [vmem:[#allocation2 + $0xa8] sm:$0xff]
      %v2958 = vld [vmem:[#allocation2 + $0xb0] sm:$0xff]
      %v2959 = vld [vmem:[#allocation2 + $0xb8] sm:$0xff]
      %v2960 = vld [vmem:[#allocation2 + $0xc0] sm:$0xff]
      %v2961 = vld [vmem:[#allocation2 + $0xc8] sm:$0xff]
      %v2962 = vld [vmem:[#allocation2 + $0xd0] sm:$0xff]
      %v2963 = vld [vmem:[#allocation2 + $0xd8] sm:$0xff]
      %v2964 = vld [vmem:[#allocation2 + $0xe0] sm:$0xff]
      %v2965 = vld [vmem:[#allocation2 + $0xe8] sm:$0xff]
      %v2966 = vld [vmem:[#allocation2 + $0xf0] sm:$0xff]
      %v2967 = vld [vmem:[#allocation2 + $0xf8] sm:$0xff]
      %v2968 = vld [vmem:[#allocation2 + $0x100] sm:$0xff]
      %v2969 = vld [vmem:[#allocation2 + $0x108] sm:$0xff]
      %v2970 = vld [vmem:[#allocation2 + $0x110] sm:$0xff]
      %v2971 = vld [vmem:[#allocation2 + $0x118] sm:$0xff]
      %v2972 = vld [vmem:[#allocation2 + $0x120] sm:$0xff]
      %v2973 = vld [vmem:[#allocation2 + $0x128] sm:$0xff]
      %v2974 = vld [vmem:[#allocation2 + $0x130] sm:$0xff]
      %v2975 = vld [vmem:[#allocation2 + $0x138] sm:$0xff]
      %v2976 = vld [vmem:[#allocation2 + $0x140] sm:$0xff]
      %v2977 = vld [vmem:[#allocation2 + $0x148] sm:$0xff]
      %v2978 = vld [vmem:[#allocation2 + $0x150] sm:$0xff]
      %v2979 = vld [vmem:[#allocation2 + $0x158] sm:$0xff]
      %v2980 = vld [vmem:[#allocation2 + $0x160] sm:$0xff]
      %v2981 = vld [vmem:[#allocation2 + $0x168] sm:$0xff]
      %v2982 = vld [vmem:[#allocation2 + $0x170] sm:$0xff]
      %v2983 = vld [vmem:[#allocation2 + $0x178] sm:$0xff]
      %v2984 = vld [vmem:[#allocation2 + $0x180] sm:$0xff]
      %v2985 = vld [vmem:[#allocation2 + $0x188] sm:$0xff]
      %v2986 = vld [vmem:[#allocation2 + $0x190] sm:$0xff]
      %v2987 = vld [vmem:[#allocation2 + $0x198] sm:$0xff]
      %v2988 = vld [vmem:[#allocation2 + $0x1a0] sm:$0xff]
      %v2989 = vld [vmem:[#allocation2 + $0x1a8] sm:$0xff]
      %v2990 = vld [vmem:[#allocation2 + $0x1b0] sm:$0xff]
      %v2991 = vld [vmem:[#allocation2 + $0x1b8] sm:$0xff]
      %v2992 = vld [vmem:[#allocation2 + $0x1c0] sm:$0xff]
      %v2993 = vld [vmem:[#allocation2 + $0x1c8] sm:$0xff]
      %v2994 = vld [vmem:[#allocation2 + $0x1d0] sm:$0xff]
      %v2995 = vld [vmem:[#allocation2 + $0x1d8] sm:$0xff]
      %v2996 = vld [vmem:[#allocation2 + $0x1e0] sm:$0xff]
      %v2997 = vld [vmem:[#allocation2 + $0x1e8] sm:$0xff]
      %v2998 = vld [vmem:[#allocation2 + $0x1f0] sm:$0xff]
      %v2999 = vld [vmem:[#allocation2 + $0x1f8] sm:$0xff]
      %v3000 = vld [vmem:[#allocation2 + $0x200] sm:$0xff]
      %v3001 = vld [vmem:[#allocation2 + $0x208] sm:$0xff]
      %v3002 = vld [vmem:[#allocation2 + $0x210] sm:$0xff]
      %v3003 = vld [vmem:[#allocation2 + $0x218] sm:$0xff]
      %v3004 = vld [vmem:[#allocation2 + $0x220] sm:$0xff]
      %v3005 = vld [vmem:[#allocation2 + $0x228] sm:$0xff]
      %v3006 = vld [vmem:[#allocation2 + $0x230] sm:$0xff]
      %v3007 = vld [vmem:[#allocation2 + $0x238] sm:$0xff]
      %v3008 = vld [vmem:[#allocation2 + $0x240] sm:$0xff]
      %v3009 = vld [vmem:[#allocation2 + $0x248] sm:$0xff]
      %v3010 = vld [vmem:[#allocation2 + $0x250] sm:$0xff]
      %v3011 = vld [vmem:[#allocation2 + $0x258] sm:$0xff]
      %v3012 = vld [vmem:[#allocation2 + $0x260] sm:$0xff]
      %v3013 = vld [vmem:[#allocation2 + $0x268] sm:$0xff]
      %v3014 = vld [vmem:[#allocation2 + $0x270] sm:$0xff]
      %v3015 = vld [vmem:[#allocation2 + $0x278] sm:$0xff]
      %v3016 = vld [vmem:[#allocation2 + $0x280] sm:$0xff]
      %v3017 = vld [vmem:[#allocation2 + $0x288] sm:$0xff]
      %v3018 = vld [vmem:[#allocation2 + $0x290] sm:$0xff]
      %v3019 = vld [vmem:[#allocation2 + $0x298] sm:$0xff]
      %v3020 = vld [vmem:[#allocation2 + $0x2a0] sm:$0xff]
      %v3021 = vld [vmem:[#allocation2 + $0x2a8] sm:$0xff]
      %v3022 = vld [vmem:[#allocation2 + $0x2b0] sm:$0xff]
      %v3023 = vld [vmem:[#allocation2 + $0x2b8] sm:$0xff]
      %v3024 = vld [vmem:[#allocation2 + $0x2c0] sm:$0xff]
      %v3025 = vld [vmem:[#allocation2 + $0x2c8] sm:$0xff]
      %v3026 = vld [vmem:[#allocation2 + $0x2d0] sm:$0xff]
      %v3027 = vld [vmem:[#allocation2 + $0x2d8] sm:$0xff]
      %v3028 = vld [vmem:[#allocation2 + $0x2e0] sm:$0xff]
      %v3029 = vld [vmem:[#allocation2 + $0x2e8] sm:$0xff]
      %v3030 = vld [vmem:[#allocation2 + $0x2f0] sm:$0xff]
      %v3031 = vld [vmem:[#allocation2 + $0x2f8] sm:$0xff]
      %v3032 = vld [vmem:[#allocation2 + $0x300] sm:$0xff]
      %v3033 = vld [vmem:[#allocation2 + $0x308] sm:$0xff]
      %v3034 = vld [vmem:[#allocation2 + $0x310] sm:$0xff]
      %v3035 = vld [vmem:[#allocation2 + $0x318] sm:$0xff]
      %v3036 = vld [vmem:[#allocation2 + $0x320] sm:$0xff]
      %v3037 = vld [vmem:[#allocation2 + $0x328] sm:$0xff]
      %v3038 = vld [vmem:[#allocation2 + $0x330] sm:$0xff]
      %v3039 = vld [vmem:[#allocation2 + $0x338] sm:$0xff]
      %v3040 = vld [vmem:[#allocation2 + $0x340] sm:$0xff]
      %v3041 = vld [vmem:[#allocation2 + $0x348] sm:$0xff]
      %v3042 = vld [vmem:[#allocation2 + $0x350] sm:$0xff]
      %v3043 = vld [vmem:[#allocation2 + $0x358] sm:$0xff]
      %v3044 = vld [vmem:[#allocation2 + $0x360] sm:$0xff]
      %v3045 = vld [vmem:[#allocation2 + $0x368] sm:$0xff]
      %v3046 = vld [vmem:[#allocation2 + $0x370] sm:$0xff]
      %v3047 = vld [vmem:[#allocation2 + $0x378] sm:$0xff]
      %v3048 = vld [vmem:[#allocation2 + $0x380] sm:$0xff]
      %v3049 = vld [vmem:[#allocation2 + $0x388] sm:$0xff]
      %v3050 = vld [vmem:[#allocation2 + $0x390] sm:$0xff]
      %v3051 = vld [vmem:[#allocation2 + $0x398] sm:$0xff]
      %v3052 = vld [vmem:[#allocation2 + $0x3a0] sm:$0xff]
      %v3053 = vld [vmem:[#allocation2 + $0x3a8] sm:$0xff]
      %v3054 = vld [vmem:[#allocation2 + $0x3b0] sm:$0xff]
      %v3055 = vld [vmem:[#allocation2 + $0x3b8] sm:$0xff]
      %v3056 = vld [vmem:[#allocation2 + $0x3c0] sm:$0xff]
      %v3057 = vld [vmem:[#allocation2 + $0x3c8] sm:$0xff]
      %v3058 = vld [vmem:[#allocation2 + $0x3d0] sm:$0xff]
      %v3059 = vld [vmem:[#allocation2 + $0x3d8] sm:$0xff]
      %v3060 = vld [vmem:[#allocation2 + $0x3e0] sm:$0xff]
      %v3061 = vld [vmem:[#allocation2 + $0x3e8] sm:$0xff]
      %v3062 = vld [vmem:[#allocation2 + $0x3f0] sm:$0xff]
      %v3063 = vld [vmem:[#allocation2 + $0x3f8] sm:$0xff]
      %v3064 = vpack.c.bf16 %v2302, %v2298
      %v3065 = vpack.c.bf16 %v2304, %v2300
      %v3066 = vpack.c.bf16 %v2312, %v2308
      %v3067 = vpack.c.bf16 %v2314, %v2310
      %v3068 = vpack.c.bf16 %v2322, %v2318
      %v3069 = vpack.c.bf16 %v2324, %v2320
      %v3070 = vpack.c.bf16 %v2332, %v2328
      %v3071 = vpack.c.bf16 %v2334, %v2330
      %v3072 = vpack.c.bf16 %v2342, %v2338
      %v3073 = vpack.c.bf16 %v2344, %v2340
      %v3074 = vpack.c.bf16 %v2352, %v2348
      %v3075 = vpack.c.bf16 %v2354, %v2350
      %v3076 = vpack.c.bf16 %v2362, %v2358
      %v3077 = vpack.c.bf16 %v2364, %v2360
      %v3078 = vpack.c.bf16 %v2372, %v2368
      %v3079 = vpack.c.bf16 %v2374, %v2370
      %v3080 = vpack.c.bf16 %v2382, %v2378
      %v3081 = vpack.c.bf16 %v2384, %v2380
      %v3082 = vpack.c.bf16 %v2392, %v2388
      %v3083 = vpack.c.bf16 %v2394, %v2390
      %v3084 = vpack.c.bf16 %v2402, %v2398
      %v3085 = vpack.c.bf16 %v2404, %v2400
      %v3086 = vpack.c.bf16 %v2412, %v2408
      %v3087 = vpack.c.bf16 %v2414, %v2410
      %v3088 = vpack.c.bf16 %v2422, %v2418
      %v3089 = vpack.c.bf16 %v2424, %v2420
      %v3090 = vpack.c.bf16 %v2432, %v2428
      %v3091 = vpack.c.bf16 %v2434, %v2430
      %v3092 = vpack.c.bf16 %v2442, %v2438
      %v3093 = vpack.c.bf16 %v2444, %v2440
      %v3094 = vpack.c.bf16 %v2452, %v2448
      %v3095 = vpack.c.bf16 %v2454, %v2450
      %v3096 = vpack.c.bf16 %v2462, %v2458
      %v3097 = vpack.c.bf16 %v2464, %v2460
      %v3098 = vpack.c.bf16 %v2472, %v2468
      %v3099 = vpack.c.bf16 %v2474, %v2470
      %v3100 = vpack.c.bf16 %v2482, %v2478
      %v3101 = vpack.c.bf16 %v2484, %v2480
      %v3102 = vpack.c.bf16 %v2492, %v2488
      %v3103 = vpack.c.bf16 %v2494, %v2490
      %v3104 = vpack.c.bf16 %v2502, %v2498
      %v3105 = vpack.c.bf16 %v2504, %v2500
      %v3106 = vpack.c.bf16 %v2512, %v2508
      %v3107 = vpack.c.bf16 %v2514, %v2510
      %v3108 = vpack.c.bf16 %v2522, %v2518
      %v3109 = vpack.c.bf16 %v2524, %v2520
      %v3110 = vpack.c.bf16 %v2532, %v2528
      %v3111 = vpack.c.bf16 %v2534, %v2530
      %v3112 = vpack.c.bf16 %v2542, %v2538
      %v3113 = vpack.c.bf16 %v2544, %v2540
      %v3114 = vpack.c.bf16 %v2552, %v2548
      %v3115 = vpack.c.bf16 %v2554, %v2550
      %v3116 = vpack.c.bf16 %v2562, %v2558
      %v3117 = vpack.c.bf16 %v2564, %v2560
      %v3118 = vpack.c.bf16 %v2572, %v2568
      %v3119 = vpack.c.bf16 %v2574, %v2570
      %v3120 = vpack.c.bf16 %v2582, %v2578
      %v3121 = vpack.c.bf16 %v2584, %v2580
      %v3122 = vpack.c.bf16 %v2592, %v2588
      %v3123 = vpack.c.bf16 %v2594, %v2590
      %v3124 = vpack.c.bf16 %v2602, %v2598
      %v3125 = vpack.c.bf16 %v2604, %v2600
      %v3126 = vpack.c.bf16 %v2612, %v2608
      %v3127 = vpack.c.bf16 %v2614, %v2610
      %v3128 = vpack.c.bf16 %v2622, %v2618
      %v3129 = vpack.c.bf16 %v2624, %v2620
      %v3130 = vpack.c.bf16 %v2632, %v2628
      %v3131 = vpack.c.bf16 %v2634, %v2630
      %v3132 = vpack.c.bf16 %v2642, %v2638
      %v3133 = vpack.c.bf16 %v2644, %v2640
      %v3134 = vpack.c.bf16 %v2652, %v2648
      %v3135 = vpack.c.bf16 %v2654, %v2650
      %v3136 = vpack.c.bf16 %v2662, %v2658
      %v3137 = vpack.c.bf16 %v2664, %v2660
      %v3138 = vpack.c.bf16 %v2672, %v2668
      %v3139 = vpack.c.bf16 %v2674, %v2670
      %v3140 = vpack.c.bf16 %v2682, %v2678
      %v3141 = vpack.c.bf16 %v2684, %v2680
      %v3142 = vpack.c.bf16 %v2692, %v2688
      %v3143 = vpack.c.bf16 %v2694, %v2690
      %v3144 = vpack.c.bf16 %v2702, %v2698
      %v3145 = vpack.c.bf16 %v2704, %v2700
      %v3146 = vpack.c.bf16 %v2712, %v2708
      %v3147 = vpack.c.bf16 %v2714, %v2710
      %v3148 = vpack.c.bf16 %v2722, %v2718
      %v3149 = vpack.c.bf16 %v2724, %v2720
      %v3150 = vpack.c.bf16 %v2732, %v2728
      %v3151 = vpack.c.bf16 %v2734, %v2730
      %v3152 = vpack.c.bf16 %v2742, %v2738
      %v3153 = vpack.c.bf16 %v2744, %v2740
      %v3154 = vpack.c.bf16 %v2752, %v2748
      %v3155 = vpack.c.bf16 %v2754, %v2750
      %v3156 = vpack.c.bf16 %v2762, %v2758
      %v3157 = vpack.c.bf16 %v2764, %v2760
      %v3158 = vpack.c.bf16 %v2772, %v2768
      %v3159 = vpack.c.bf16 %v2774, %v2770
      %v3160 = vpack.c.bf16 %v2782, %v2778
      %v3161 = vpack.c.bf16 %v2784, %v2780
      %v3162 = vpack.c.bf16 %v2792, %v2788
      %v3163 = vpack.c.bf16 %v2794, %v2790
      %v3164 = vpack.c.bf16 %v2802, %v2798
      %v3165 = vpack.c.bf16 %v2804, %v2800
      %v3166 = vpack.c.bf16 %v2812, %v2808
      %v3167 = vpack.c.bf16 %v2814, %v2810
      %v3168 = vpack.c.bf16 %v2822, %v2818
      %v3169 = vpack.c.bf16 %v2824, %v2820
      %v3170 = vpack.c.bf16 %v2832, %v2828
      %v3171 = vpack.c.bf16 %v2834, %v2830
      %v3172 = vpack.c.bf16 %v2842, %v2838
      %v3173 = vpack.c.bf16 %v2844, %v2840
      %v3174 = vpack.c.bf16 %v2852, %v2848
      %v3175 = vpack.c.bf16 %v2854, %v2850
      %v3176 = vpack.c.bf16 %v2862, %v2858
      %v3177 = vpack.c.bf16 %v2864, %v2860
      %v3178 = vpack.c.bf16 %v2872, %v2868
      %v3179 = vpack.c.bf16 %v2874, %v2870
      %v3180 = vpack.c.bf16 %v2882, %v2878
      %v3181 = vpack.c.bf16 %v2884, %v2880
      %v3182 = vpack.c.bf16 %v2892, %v2888
      %v3183 = vpack.c.bf16 %v2894, %v2890
      %v3184 = vpack.c.bf16 %v2902, %v2898
      %v3185 = vpack.c.bf16 %v2904, %v2900
      %v3186 = vpack.c.bf16 %v2912, %v2908
      %v3187 = vpack.c.bf16 %v2914, %v2910
      %v3188 = vpack.c.bf16 %v2922, %v2918
      %v3189 = vpack.c.bf16 %v2924, %v2920
      %v3190 = vpack.c.bf16 %v2932, %v2928
      %v3191 = vpack.c.bf16 %v2934, %v2930
      %v3320 = vunpack.c.l.b16 %v3064
      %v3321 = vunpack.c.l.b16 %v3065
      %v3322 = vunpack.c.h.b16 %v3064
      %v3323 = vunpack.c.h.b16 %v3065
      %v3324 = vunpack.c.l.b16 %v3066
      %v3325 = vunpack.c.l.b16 %v3067
      %v3326 = vunpack.c.h.b16 %v3066
      %v3327 = vunpack.c.h.b16 %v3067
      %v3328 = vunpack.c.l.b16 %v3068
      %v3329 = vunpack.c.l.b16 %v3069
      %v3330 = vunpack.c.h.b16 %v3068
      %v3331 = vunpack.c.h.b16 %v3069
      %v3332 = vunpack.c.l.b16 %v3070
      %v3333 = vunpack.c.l.b16 %v3071
      %v3334 = vunpack.c.h.b16 %v3070
      %v3335 = vunpack.c.h.b16 %v3071
      %v3336 = vunpack.c.l.b16 %v3072
      %v3337 = vunpack.c.l.b16 %v3073
      %v3338 = vunpack.c.h.b16 %v3072
      %v3339 = vunpack.c.h.b16 %v3073
      %v3340 = vunpack.c.l.b16 %v3074
      %v3341 = vunpack.c.l.b16 %v3075
      %v3342 = vunpack.c.h.b16 %v3074
      %v3343 = vunpack.c.h.b16 %v3075
      %v3344 = vunpack.c.l.b16 %v3076
      %v3345 = vunpack.c.l.b16 %v3077
      %v3346 = vunpack.c.h.b16 %v3076
      %v3347 = vunpack.c.h.b16 %v3077
      %v3348 = vunpack.c.l.b16 %v3078
      %v3349 = vunpack.c.l.b16 %v3079
      %v3350 = vunpack.c.h.b16 %v3078
      %v3351 = vunpack.c.h.b16 %v3079
      %v3352 = vunpack.c.l.b16 %v3080
      %v3353 = vunpack.c.l.b16 %v3081
      %v3354 = vunpack.c.h.b16 %v3080
      %v3355 = vunpack.c.h.b16 %v3081
      %v3356 = vunpack.c.l.b16 %v3082
      %v3357 = vunpack.c.l.b16 %v3083
      %v3358 = vunpack.c.h.b16 %v3082
      %v3359 = vunpack.c.h.b16 %v3083
      %v3360 = vunpack.c.l.b16 %v3084
      %v3361 = vunpack.c.l.b16 %v3085
      %v3362 = vunpack.c.h.b16 %v3084
      %v3363 = vunpack.c.h.b16 %v3085
      %v3364 = vunpack.c.l.b16 %v3086
      %v3365 = vunpack.c.l.b16 %v3087
      %v3366 = vunpack.c.h.b16 %v3086
      %v3367 = vunpack.c.h.b16 %v3087
      %v3368 = vunpack.c.l.b16 %v3088
      %v3369 = vunpack.c.l.b16 %v3089
      %v3370 = vunpack.c.h.b16 %v3088
      %v3371 = vunpack.c.h.b16 %v3089
      %v3372 = vunpack.c.l.b16 %v3090
      %v3373 = vunpack.c.l.b16 %v3091
      %v3374 = vunpack.c.h.b16 %v3090
      %v3375 = vunpack.c.h.b16 %v3091
      %v3376 = vunpack.c.l.b16 %v3092
      %v3377 = vunpack.c.l.b16 %v3093
      %v3378 = vunpack.c.h.b16 %v3092
      %v3379 = vunpack.c.h.b16 %v3093
      %v3380 = vunpack.c.l.b16 %v3094
      %v3381 = vunpack.c.l.b16 %v3095
      %v3382 = vunpack.c.h.b16 %v3094
      %v3383 = vunpack.c.h.b16 %v3095
      %v3384 = vunpack.c.l.b16 %v3096
      %v3385 = vunpack.c.l.b16 %v3097
      %v3386 = vunpack.c.h.b16 %v3096
      %v3387 = vunpack.c.h.b16 %v3097
      %v3388 = vunpack.c.l.b16 %v3098
      %v3389 = vunpack.c.l.b16 %v3099
      %v3390 = vunpack.c.h.b16 %v3098
      %v3391 = vunpack.c.h.b16 %v3099
      %v3392 = vunpack.c.l.b16 %v3100
      %v3393 = vunpack.c.l.b16 %v3101
      %v3394 = vunpack.c.h.b16 %v3100
      %v3395 = vunpack.c.h.b16 %v3101
      %v3396 = vunpack.c.l.b16 %v3102
      %v3397 = vunpack.c.l.b16 %v3103
      %v3398 = vunpack.c.h.b16 %v3102
      %v3399 = vunpack.c.h.b16 %v3103
      %v3400 = vunpack.c.l.b16 %v3104
      %v3401 = vunpack.c.l.b16 %v3105
      %v3402 = vunpack.c.h.b16 %v3104
      %v3403 = vunpack.c.h.b16 %v3105
      %v3404 = vunpack.c.l.b16 %v3106
      %v3405 = vunpack.c.l.b16 %v3107
      %v3406 = vunpack.c.h.b16 %v3106
      %v3407 = vunpack.c.h.b16 %v3107
      %v3408 = vunpack.c.l.b16 %v3108
      %v3409 = vunpack.c.l.b16 %v3109
      %v3410 = vunpack.c.h.b16 %v3108
      %v3411 = vunpack.c.h.b16 %v3109
      %v3412 = vunpack.c.l.b16 %v3110
      %v3413 = vunpack.c.l.b16 %v3111
      %v3414 = vunpack.c.h.b16 %v3110
      %v3415 = vunpack.c.h.b16 %v3111
      %v3416 = vunpack.c.l.b16 %v3112
      %v3417 = vunpack.c.l.b16 %v3113
      %v3418 = vunpack.c.h.b16 %v3112
      %v3419 = vunpack.c.h.b16 %v3113
      %v3420 = vunpack.c.l.b16 %v3114
      %v3421 = vunpack.c.l.b16 %v3115
      %v3422 = vunpack.c.h.b16 %v3114
      %v3423 = vunpack.c.h.b16 %v3115
      %v3424 = vunpack.c.l.b16 %v3116
      %v3425 = vunpack.c.l.b16 %v3117
      %v3426 = vunpack.c.h.b16 %v3116
      %v3427 = vunpack.c.h.b16 %v3117
      %v3428 = vunpack.c.l.b16 %v3118
      %v3429 = vunpack.c.l.b16 %v3119
      %v3430 = vunpack.c.h.b16 %v3118
      %v3431 = vunpack.c.h.b16 %v3119
      %v3432 = vunpack.c.l.b16 %v3120
      %v3433 = vunpack.c.l.b16 %v3121
      %v3434 = vunpack.c.h.b16 %v3120
      %v3435 = vunpack.c.h.b16 %v3121
      %v3436 = vunpack.c.l.b16 %v3122
      %v3437 = vunpack.c.l.b16 %v3123
      %v3438 = vunpack.c.h.b16 %v3122
      %v3439 = vunpack.c.h.b16 %v3123
      %v3440 = vunpack.c.l.b16 %v3124
      %v3441 = vunpack.c.l.b16 %v3125
      %v3442 = vunpack.c.h.b16 %v3124
      %v3443 = vunpack.c.h.b16 %v3125
      %v3444 = vunpack.c.l.b16 %v3126
      %v3445 = vunpack.c.l.b16 %v3127
      %v3446 = vunpack.c.h.b16 %v3126
      %v3447 = vunpack.c.h.b16 %v3127
      %v3448 = vunpack.c.l.b16 %v3128
      %v3449 = vunpack.c.l.b16 %v3129
      %v3450 = vunpack.c.h.b16 %v3128
      %v3451 = vunpack.c.h.b16 %v3129
      %v3452 = vunpack.c.l.b16 %v3130
      %v3453 = vunpack.c.l.b16 %v3131
      %v3454 = vunpack.c.h.b16 %v3130
      %v3455 = vunpack.c.h.b16 %v3131
      %v3456 = vunpack.c.l.b16 %v3132
      %v3457 = vunpack.c.l.b16 %v3133
      %v3458 = vunpack.c.h.b16 %v3132
      %v3459 = vunpack.c.h.b16 %v3133
      %v3460 = vunpack.c.l.b16 %v3134
      %v3461 = vunpack.c.l.b16 %v3135
      %v3462 = vunpack.c.h.b16 %v3134
      %v3463 = vunpack.c.h.b16 %v3135
      %v3464 = vunpack.c.l.b16 %v3136
      %v3465 = vunpack.c.l.b16 %v3137
      %v3466 = vunpack.c.h.b16 %v3136
      %v3467 = vunpack.c.h.b16 %v3137
      %v3468 = vunpack.c.l.b16 %v3138
      %v3469 = vunpack.c.l.b16 %v3139
      %v3470 = vunpack.c.h.b16 %v3138
      %v3471 = vunpack.c.h.b16 %v3139
      %v3472 = vunpack.c.l.b16 %v3140
      %v3473 = vunpack.c.l.b16 %v3141
      %v3474 = vunpack.c.h.b16 %v3140
      %v3475 = vunpack.c.h.b16 %v3141
      %v3476 = vunpack.c.l.b16 %v3142
      %v3477 = vunpack.c.l.b16 %v3143
      %v3478 = vunpack.c.h.b16 %v3142
      %v3479 = vunpack.c.h.b16 %v3143
      %v3480 = vunpack.c.l.b16 %v3144
      %v3481 = vunpack.c.l.b16 %v3145
      %v3482 = vunpack.c.h.b16 %v3144
      %v3483 = vunpack.c.h.b16 %v3145
      %v3484 = vunpack.c.l.b16 %v3146
      %v3485 = vunpack.c.l.b16 %v3147
      %v3486 = vunpack.c.h.b16 %v3146
      %v3487 = vunpack.c.h.b16 %v3147
      %v3488 = vunpack.c.l.b16 %v3148
      %v3489 = vunpack.c.l.b16 %v3149
      %v3490 = vunpack.c.h.b16 %v3148
      %v3491 = vunpack.c.h.b16 %v3149
      %v3492 = vunpack.c.l.b16 %v3150
      %v3493 = vunpack.c.l.b16 %v3151
      %v3494 = vunpack.c.h.b16 %v3150
      %v3495 = vunpack.c.h.b16 %v3151
      %v3496 = vunpack.c.l.b16 %v3152
      %v3497 = vunpack.c.l.b16 %v3153
      %v3498 = vunpack.c.h.b16 %v3152
      %v3499 = vunpack.c.h.b16 %v3153
      %v3500 = vunpack.c.l.b16 %v3154
      %v3501 = vunpack.c.l.b16 %v3155
      %v3502 = vunpack.c.h.b16 %v3154
      %v3503 = vunpack.c.h.b16 %v3155
      %v3504 = vunpack.c.l.b16 %v3156
      %v3505 = vunpack.c.l.b16 %v3157
      %v3506 = vunpack.c.h.b16 %v3156
      %v3507 = vunpack.c.h.b16 %v3157
      %v3508 = vunpack.c.l.b16 %v3158
      %v3509 = vunpack.c.l.b16 %v3159
      %v3510 = vunpack.c.h.b16 %v3158
      %v3511 = vunpack.c.h.b16 %v3159
      %v3512 = vunpack.c.l.b16 %v3160
      %v3513 = vunpack.c.l.b16 %v3161
      %v3514 = vunpack.c.h.b16 %v3160
      %v3515 = vunpack.c.h.b16 %v3161
      %v3516 = vunpack.c.l.b16 %v3162
      %v3517 = vunpack.c.l.b16 %v3163
      %v3518 = vunpack.c.h.b16 %v3162
      %v3519 = vunpack.c.h.b16 %v3163
      %v3520 = vunpack.c.l.b16 %v3164
      %v3521 = vunpack.c.l.b16 %v3165
      %v3522 = vunpack.c.h.b16 %v3164
      %v3523 = vunpack.c.h.b16 %v3165
      %v3524 = vunpack.c.l.b16 %v3166
      %v3525 = vunpack.c.l.b16 %v3167
      %v3526 = vunpack.c.h.b16 %v3166
      %v3527 = vunpack.c.h.b16 %v3167
      %v3528 = vunpack.c.l.b16 %v3168
      %v3529 = vunpack.c.l.b16 %v3169
      %v3530 = vunpack.c.h.b16 %v3168
      %v3531 = vunpack.c.h.b16 %v3169
      %v3532 = vunpack.c.l.b16 %v3170
      %v3533 = vunpack.c.l.b16 %v3171
      %v3534 = vunpack.c.h.b16 %v3170
      %v3535 = vunpack.c.h.b16 %v3171
      %v3536 = vunpack.c.l.b16 %v3172
      %v3537 = vunpack.c.l.b16 %v3173
      %v3538 = vunpack.c.h.b16 %v3172
      %v3539 = vunpack.c.h.b16 %v3173
      %v3540 = vunpack.c.l.b16 %v3174
      %v3541 = vunpack.c.l.b16 %v3175
      %v3542 = vunpack.c.h.b16 %v3174
      %v3543 = vunpack.c.h.b16 %v3175
      %v3544 = vunpack.c.l.b16 %v3176
      %v3545 = vunpack.c.l.b16 %v3177
      %v3546 = vunpack.c.h.b16 %v3176
      %v3547 = vunpack.c.h.b16 %v3177
      %v3548 = vunpack.c.l.b16 %v3178
      %v3549 = vunpack.c.l.b16 %v3179
      %v3550 = vunpack.c.h.b16 %v3178
      %v3551 = vunpack.c.h.b16 %v3179
      %v3552 = vunpack.c.l.b16 %v3180
      %v3553 = vunpack.c.l.b16 %v3181
      %v3554 = vunpack.c.h.b16 %v3180
      %v3555 = vunpack.c.h.b16 %v3181
      %v3556 = vunpack.c.l.b16 %v3182
      %v3557 = vunpack.c.l.b16 %v3183
      %v3558 = vunpack.c.h.b16 %v3182
      %v3559 = vunpack.c.h.b16 %v3183
      %v3560 = vunpack.c.l.b16 %v3184
      %v3561 = vunpack.c.l.b16 %v3185
      %v3562 = vunpack.c.h.b16 %v3184
      %v3563 = vunpack.c.h.b16 %v3185
      %v3564 = vunpack.c.l.b16 %v3186
      %v3565 = vunpack.c.l.b16 %v3187
      %v3566 = vunpack.c.h.b16 %v3186
      %v3567 = vunpack.c.h.b16 %v3187
      %v3568 = vunpack.c.l.b16 %v3188
      %v3569 = vunpack.c.l.b16 %v3189
      %v3570 = vunpack.c.h.b16 %v3188
      %v3571 = vunpack.c.h.b16 %v3189
      %v3572 = vunpack.c.l.b16 %v3190
      %v3573 = vunpack.c.l.b16 %v3191
      %v3574 = vunpack.c.h.b16 %v3190
      %v3575 = vunpack.c.h.b16 %v3191
      %v3576 = vpack.c.b16 %v3321, %v3320
      %v3577 = vpack.c.b16 %v3323, %v3322
      %v3578 = vpack.c.b16 %v3325, %v3324
      %v3579 = vpack.c.b16 %v3327, %v3326
      %v3580 = vpack.c.b16 %v3329, %v3328
      %v3581 = vpack.c.b16 %v3331, %v3330
      %v3582 = vpack.c.b16 %v3333, %v3332
      %v3583 = vpack.c.b16 %v3335, %v3334
      %v3584 = vpack.c.b16 %v3337, %v3336
      %v3585 = vpack.c.b16 %v3339, %v3338
      %v3586 = vpack.c.b16 %v3341, %v3340
      %v3587 = vpack.c.b16 %v3343, %v3342
      %v3588 = vpack.c.b16 %v3345, %v3344
      %v3589 = vpack.c.b16 %v3347, %v3346
      %v3590 = vpack.c.b16 %v3349, %v3348
      %v3591 = vpack.c.b16 %v3351, %v3350
      %v3592 = vpack.c.b16 %v3353, %v3352
      %v3593 = vpack.c.b16 %v3355, %v3354
      %v3594 = vpack.c.b16 %v3357, %v3356
      %v3595 = vpack.c.b16 %v3359, %v3358
      %v3596 = vpack.c.b16 %v3361, %v3360
      %v3597 = vpack.c.b16 %v3363, %v3362
      %v3598 = vpack.c.b16 %v3365, %v3364
      %v3599 = vpack.c.b16 %v3367, %v3366
      %v3600 = vpack.c.b16 %v3369, %v3368
      %v3601 = vpack.c.b16 %v3371, %v3370
      %v3602 = vpack.c.b16 %v3373, %v3372
      %v3603 = vpack.c.b16 %v3375, %v3374
      %v3604 = vpack.c.b16 %v3377, %v3376
      %v3605 = vpack.c.b16 %v3379, %v3378
      %v3606 = vpack.c.b16 %v3381, %v3380
      %v3607 = vpack.c.b16 %v3383, %v3382
      %v3608 = vpack.c.b16 %v3385, %v3384
      %v3609 = vpack.c.b16 %v3387, %v3386
      %v3610 = vpack.c.b16 %v3389, %v3388
      %v3611 = vpack.c.b16 %v3391, %v3390
      %v3612 = vpack.c.b16 %v3393, %v3392
      %v3613 = vpack.c.b16 %v3395, %v3394
      %v3614 = vpack.c.b16 %v3397, %v3396
      %v3615 = vpack.c.b16 %v3399, %v3398
      %v3616 = vpack.c.b16 %v3401, %v3400
      %v3617 = vpack.c.b16 %v3403, %v3402
      %v3618 = vpack.c.b16 %v3405, %v3404
      %v3619 = vpack.c.b16 %v3407, %v3406
      %v3620 = vpack.c.b16 %v3409, %v3408
      %v3621 = vpack.c.b16 %v3411, %v3410
      %v3622 = vpack.c.b16 %v3413, %v3412
      %v3623 = vpack.c.b16 %v3415, %v3414
      %v3624 = vpack.c.b16 %v3417, %v3416
      %v3625 = vpack.c.b16 %v3419, %v3418
      %v3626 = vpack.c.b16 %v3421, %v3420
      %v3627 = vpack.c.b16 %v3423, %v3422
      %v3628 = vpack.c.b16 %v3425, %v3424
      %v3629 = vpack.c.b16 %v3427, %v3426
      %v3630 = vpack.c.b16 %v3429, %v3428
      %v3631 = vpack.c.b16 %v3431, %v3430
      %v3632 = vpack.c.b16 %v3433, %v3432
      %v3633 = vpack.c.b16 %v3435, %v3434
      %v3634 = vpack.c.b16 %v3437, %v3436
      %v3635 = vpack.c.b16 %v3439, %v3438
      %v3636 = vpack.c.b16 %v3441, %v3440
      %v3637 = vpack.c.b16 %v3443, %v3442
      %v3638 = vpack.c.b16 %v3445, %v3444
      %v3639 = vpack.c.b16 %v3447, %v3446
      %v3640 = vpack.c.b16 %v3449, %v3448
      %v3641 = vpack.c.b16 %v3451, %v3450
      %v3642 = vpack.c.b16 %v3453, %v3452
      %v3643 = vpack.c.b16 %v3455, %v3454
      %v3644 = vpack.c.b16 %v3457, %v3456
      %v3645 = vpack.c.b16 %v3459, %v3458
      %v3646 = vpack.c.b16 %v3461, %v3460
      %v3647 = vpack.c.b16 %v3463, %v3462
      %v3648 = vpack.c.b16 %v3465, %v3464
      %v3649 = vpack.c.b16 %v3467, %v3466
      %v3650 = vpack.c.b16 %v3469, %v3468
      %v3651 = vpack.c.b16 %v3471, %v3470
      %v3652 = vpack.c.b16 %v3473, %v3472
      %v3653 = vpack.c.b16 %v3475, %v3474
      %v3654 = vpack.c.b16 %v3477, %v3476
      %v3655 = vpack.c.b16 %v3479, %v3478
      %v3656 = vpack.c.b16 %v3481, %v3480
      %v3657 = vpack.c.b16 %v3483, %v3482
      %v3658 = vpack.c.b16 %v3485, %v3484
      %v3659 = vpack.c.b16 %v3487, %v3486
      %v3660 = vpack.c.b16 %v3489, %v3488
      %v3661 = vpack.c.b16 %v3491, %v3490
      %v3662 = vpack.c.b16 %v3493, %v3492
      %v3663 = vpack.c.b16 %v3495, %v3494
      %v3664 = vpack.c.b16 %v3497, %v3496
      %v3665 = vpack.c.b16 %v3499, %v3498
      %v3666 = vpack.c.b16 %v3501, %v3500
      %v3667 = vpack.c.b16 %v3503, %v3502
      %v3668 = vpack.c.b16 %v3505, %v3504
      %v3669 = vpack.c.b16 %v3507, %v3506
      %v3670 = vpack.c.b16 %v3509, %v3508
      %v3671 = vpack.c.b16 %v3511, %v3510
      %v3672 = vpack.c.b16 %v3513, %v3512
      %v3673 = vpack.c.b16 %v3515, %v3514
      %v3674 = vpack.c.b16 %v3517, %v3516
      %v3675 = vpack.c.b16 %v3519, %v3518
      %v3676 = vpack.c.b16 %v3521, %v3520
      %v3677 = vpack.c.b16 %v3523, %v3522
      %v3678 = vpack.c.b16 %v3525, %v3524
      %v3679 = vpack.c.b16 %v3527, %v3526
      %v3680 = vpack.c.b16 %v3529, %v3528
      %v3681 = vpack.c.b16 %v3531, %v3530
      %v3682 = vpack.c.b16 %v3533, %v3532
      %v3683 = vpack.c.b16 %v3535, %v3534
      %v3684 = vpack.c.b16 %v3537, %v3536
      %v3685 = vpack.c.b16 %v3539, %v3538
      %v3686 = vpack.c.b16 %v3541, %v3540
      %v3687 = vpack.c.b16 %v3543, %v3542
      %v3688 = vpack.c.b16 %v3545, %v3544
      %v3689 = vpack.c.b16 %v3547, %v3546
      %v3690 = vpack.c.b16 %v3549, %v3548
      %v3691 = vpack.c.b16 %v3551, %v3550
      %v3692 = vpack.c.b16 %v3553, %v3552
      %v3693 = vpack.c.b16 %v3555, %v3554
      %v3694 = vpack.c.b16 %v3557, %v3556
      %v3695 = vpack.c.b16 %v3559, %v3558
      %v3696 = vpack.c.b16 %v3561, %v3560
      %v3697 = vpack.c.b16 %v3563, %v3562
      %v3698 = vpack.c.b16 %v3565, %v3564
      %v3699 = vpack.c.b16 %v3567, %v3566
      %v3700 = vpack.c.b16 %v3569, %v3568
      %v3701 = vpack.c.b16 %v3571, %v3570
      %v3702 = vpack.c.b16 %v3573, %v3572
      %v3703 = vpack.c.b16 %v3575, %v3574
      %v3832 = vmax.bf16 %v2936, %v3576
      %v3833 = vmax.bf16 %v2937, %v3577
      %v3834 = vmax.bf16 %v2938, %v3578
      %v3835 = vmax.bf16 %v2939, %v3579
      %v3836 = vmax.bf16 %v2940, %v3580
      %v3837 = vmax.bf16 %v2941, %v3581
      %v3838 = vmax.bf16 %v2942, %v3582
      %v3839 = vmax.bf16 %v2943, %v3583
      %v3840 = vmax.bf16 %v2944, %v3584
      %v3841 = vmax.bf16 %v2945, %v3585
      %v3842 = vmax.bf16 %v2946, %v3586
      %v3843 = vmax.bf16 %v2947, %v3587
      %v3844 = vmax.bf16 %v2948, %v3588
      %v3845 = vmax.bf16 %v2949, %v3589
      %v3846 = vmax.bf16 %v2950, %v3590
      %v3847 = vmax.bf16 %v2951, %v3591
      %v3848 = vmax.bf16 %v2952, %v3592
      %v3849 = vmax.bf16 %v2953, %v3593
      %v3850 = vmax.bf16 %v2954, %v3594
      %v3851 = vmax.bf16 %v2955, %v3595
      %v3852 = vmax.bf16 %v2956, %v3596
      %v3853 = vmax.bf16 %v2957, %v3597
      %v3854 = vmax.bf16 %v2958, %v3598
      %v3855 = vmax.bf16 %v2959, %v3599
      %v3856 = vmax.bf16 %v2960, %v3600
      %v3857 = vmax.bf16 %v2961, %v3601
      %v3858 = vmax.bf16 %v2962, %v3602
      %v3859 = vmax.bf16 %v2963, %v3603
      %v3860 = vmax.bf16 %v2964, %v3604
      %v3861 = vmax.bf16 %v2965, %v3605
      %v3862 = vmax.bf16 %v2966, %v3606
      %v3863 = vmax.bf16 %v2967, %v3607
      %v3864 = vmax.bf16 %v2968, %v3608
      %v3865 = vmax.bf16 %v2969, %v3609
      %v3866 = vmax.bf16 %v2970, %v3610
      %v3867 = vmax.bf16 %v2971, %v3611
      %v3868 = vmax.bf16 %v2972, %v3612
      %v3869 = vmax.bf16 %v2973, %v3613
      %v3870 = vmax.bf16 %v2974, %v3614
      %v3871 = vmax.bf16 %v2975, %v3615
      %v3872 = vmax.bf16 %v2976, %v3616
      %v3873 = vmax.bf16 %v2977, %v3617
      %v3874 = vmax.bf16 %v2978, %v3618
      %v3875 = vmax.bf16 %v2979, %v3619
      %v3876 = vmax.bf16 %v2980, %v3620
      %v3877 = vmax.bf16 %v2981, %v3621
      %v3878 = vmax.bf16 %v2982, %v3622
      %v3879 = vmax.bf16 %v2983, %v3623
      %v3880 = vmax.bf16 %v2984, %v3624
      %v3881 = vmax.bf16 %v2985, %v3625
      %v3882 = vmax.bf16 %v2986, %v3626
      %v3883 = vmax.bf16 %v2987, %v3627
      %v3884 = vmax.bf16 %v2988, %v3628
      %v3885 = vmax.bf16 %v2989, %v3629
      %v3886 = vmax.bf16 %v2990, %v3630
      %v3887 = vmax.bf16 %v2991, %v3631
      %v3888 = vmax.bf16 %v2992, %v3632
      %v3889 = vmax.bf16 %v2993, %v3633
      %v3890 = vmax.bf16 %v2994, %v3634
      %v3891 = vmax.bf16 %v2995, %v3635
      %v3892 = vmax.bf16 %v2996, %v3636
      %v3893 = vmax.bf16 %v2997, %v3637
      %v3894 = vmax.bf16 %v2998, %v3638
      %v3895 = vmax.bf16 %v2999, %v3639
      %v3896 = vmax.bf16 %v3000, %v3640
      %v3897 = vmax.bf16 %v3001, %v3641
      %v3898 = vmax.bf16 %v3002, %v3642
      %v3899 = vmax.bf16 %v3003, %v3643
      %v3900 = vmax.bf16 %v3004, %v3644
      %v3901 = vmax.bf16 %v3005, %v3645
      %v3902 = vmax.bf16 %v3006, %v3646
      %v3903 = vmax.bf16 %v3007, %v3647
      %v3904 = vmax.bf16 %v3008, %v3648
      %v3905 = vmax.bf16 %v3009, %v3649
      %v3906 = vmax.bf16 %v3010, %v3650
      %v3907 = vmax.bf16 %v3011, %v3651
      %v3908 = vmax.bf16 %v3012, %v3652
      %v3909 = vmax.bf16 %v3013, %v3653
      %v3910 = vmax.bf16 %v3014, %v3654
      %v3911 = vmax.bf16 %v3015, %v3655
      %v3912 = vmax.bf16 %v3016, %v3656
      %v3913 = vmax.bf16 %v3017, %v3657
      %v3914 = vmax.bf16 %v3018, %v3658
      %v3915 = vmax.bf16 %v3019, %v3659
      %v3916 = vmax.bf16 %v3020, %v3660
      %v3917 = vmax.bf16 %v3021, %v3661
      %v3918 = vmax.bf16 %v3022, %v3662
      %v3919 = vmax.bf16 %v3023, %v3663
      %v3920 = vmax.bf16 %v3024, %v3664
      %v3921 = vmax.bf16 %v3025, %v3665
      %v3922 = vmax.bf16 %v3026, %v3666
      %v3923 = vmax.bf16 %v3027, %v3667
      %v3924 = vmax.bf16 %v3028, %v3668
      %v3925 = vmax.bf16 %v3029, %v3669
      %v3926 = vmax.bf16 %v3030, %v3670
      %v3927 = vmax.bf16 %v3031, %v3671
      %v3928 = vmax.bf16 %v3032, %v3672
      %v3929 = vmax.bf16 %v3033, %v3673
      %v3930 = vmax.bf16 %v3034, %v3674
      %v3931 = vmax.bf16 %v3035, %v3675
      %v3932 = vmax.bf16 %v3036, %v3676
      %v3933 = vmax.bf16 %v3037, %v3677
      %v3934 = vmax.bf16 %v3038, %v3678
      %v3935 = vmax.bf16 %v3039, %v3679
      %v3936 = vmax.bf16 %v3040, %v3680
      %v3937 = vmax.bf16 %v3041, %v3681
      %v3938 = vmax.bf16 %v3042, %v3682
      %v3939 = vmax.bf16 %v3043, %v3683
      %v3940 = vmax.bf16 %v3044, %v3684
      %v3941 = vmax.bf16 %v3045, %v3685
      %v3942 = vmax.bf16 %v3046, %v3686
      %v3943 = vmax.bf16 %v3047, %v3687
      %v3944 = vmax.bf16 %v3048, %v3688
      %v3945 = vmax.bf16 %v3049, %v3689
      %v3946 = vmax.bf16 %v3050, %v3690
      %v3947 = vmax.bf16 %v3051, %v3691
      %v3948 = vmax.bf16 %v3052, %v3692
      %v3949 = vmax.bf16 %v3053, %v3693
      %v3950 = vmax.bf16 %v3054, %v3694
      %v3951 = vmax.bf16 %v3055, %v3695
      %v3952 = vmax.bf16 %v3056, %v3696
      %v3953 = vmax.bf16 %v3057, %v3697
      %v3954 = vmax.bf16 %v3058, %v3698
      %v3955 = vmax.bf16 %v3059, %v3699
      %v3956 = vmax.bf16 %v3060, %v3700
      %v3957 = vmax.bf16 %v3061, %v3701
      %v3958 = vmax.bf16 %v3062, %v3702
      %v3959 = vmax.bf16 %v3063, %v3703
      %3960 = vst [vmem:[#allocation2] sm:$0xff] %v3832
      %3961 = vst [vmem:[#allocation2 + $0x8] sm:$0xff] %v3833
      %3962 = vst [vmem:[#allocation2 + $0x10] sm:$0xff] %v3834
      %3963 = vst [vmem:[#allocation2 + $0x18] sm:$0xff] %v3835
      %3964 = vst [vmem:[#allocation2 + $0x20] sm:$0xff] %v3836
      %3965 = vst [vmem:[#allocation2 + $0x28] sm:$0xff] %v3837
      %3966 = vst [vmem:[#allocation2 + $0x30] sm:$0xff] %v3838
      %3967 = vst [vmem:[#allocation2 + $0x38] sm:$0xff] %v3839
      %3968 = vst [vmem:[#allocation2 + $0x40] sm:$0xff] %v3840
      %3969 = vst [vmem:[#allocation2 + $0x48] sm:$0xff] %v3841
      %3970 = vst [vmem:[#allocation2 + $0x50] sm:$0xff] %v3842
      %3971 = vst [vmem:[#allocation2 + $0x58] sm:$0xff] %v3843
      %3972 = vst [vmem:[#allocation2 + $0x60] sm:$0xff] %v3844
      %3973 = vst [vmem:[#allocation2 + $0x68] sm:$0xff] %v3845
      %3974 = vst [vmem:[#allocation2 + $0x70] sm:$0xff] %v3846
      %3975 = vst [vmem:[#allocation2 + $0x78] sm:$0xff] %v3847
      %3976 = vst [vmem:[#allocation2 + $0x80] sm:$0xff] %v3848
      %3977 = vst [vmem:[#allocation2 + $0x88] sm:$0xff] %v3849
      %3978 = vst [vmem:[#allocation2 + $0x90] sm:$0xff] %v3850
      %3979 = vst [vmem:[#allocation2 + $0x98] sm:$0xff] %v3851
      %3980 = vst [vmem:[#allocation2 + $0xa0] sm:$0xff] %v3852
      %3981 = vst [vmem:[#allocation2 + $0xa8] sm:$0xff] %v3853
      %3982 = vst [vmem:[#allocation2 + $0xb0] sm:$0xff] %v3854
      %3983 = vst [vmem:[#allocation2 + $0xb8] sm:$0xff] %v3855
      %3984 = vst [vmem:[#allocation2 + $0xc0] sm:$0xff] %v3856
      %3985 = vst [vmem:[#allocation2 + $0xc8] sm:$0xff] %v3857
      %3986 = vst [vmem:[#allocation2 + $0xd0] sm:$0xff] %v3858
      %3987 = vst [vmem:[#allocation2 + $0xd8] sm:$0xff] %v3859
      %3988 = vst [vmem:[#allocation2 + $0xe0] sm:$0xff] %v3860
      %3989 = vst [vmem:[#allocation2 + $0xe8] sm:$0xff] %v3861
      %3990 = vst [vmem:[#allocation2 + $0xf0] sm:$0xff] %v3862
      %3991 = vst [vmem:[#allocation2 + $0xf8] sm:$0xff] %v3863
      %3992 = vst [vmem:[#allocation2 + $0x100] sm:$0xff] %v3864
      %3993 = vst [vmem:[#allocation2 + $0x108] sm:$0xff] %v3865
      %3994 = vst [vmem:[#allocation2 + $0x110] sm:$0xff] %v3866
      %3995 = vst [vmem:[#allocation2 + $0x118] sm:$0xff] %v3867
      %3996 = vst [vmem:[#allocation2 + $0x120] sm:$0xff] %v3868
      %3997 = vst [vmem:[#allocation2 + $0x128] sm:$0xff] %v3869
      %3998 = vst [vmem:[#allocation2 + $0x130] sm:$0xff] %v3870
      %3999 = vst [vmem:[#allocation2 + $0x138] sm:$0xff] %v3871
      %4000 = vst [vmem:[#allocation2 + $0x140] sm:$0xff] %v3872
      %4001 = vst [vmem:[#allocation2 + $0x148] sm:$0xff] %v3873
      %4002 = vst [vmem:[#allocation2 + $0x150] sm:$0xff] %v3874
      %4003 = vst [vmem:[#allocation2 + $0x158] sm:$0xff] %v3875
      %4004 = vst [vmem:[#allocation2 + $0x160] sm:$0xff] %v3876
      %4005 = vst [vmem:[#allocation2 + $0x168] sm:$0xff] %v3877
      %4006 = vst [vmem:[#allocation2 + $0x170] sm:$0xff] %v3878
      %4007 = vst [vmem:[#allocation2 + $0x178] sm:$0xff] %v3879
      %4008 = vst [vmem:[#allocation2 + $0x180] sm:$0xff] %v3880
      %4009 = vst [vmem:[#allocation2 + $0x188] sm:$0xff] %v3881
      %4010 = vst [vmem:[#allocation2 + $0x190] sm:$0xff] %v3882
      %4011 = vst [vmem:[#allocation2 + $0x198] sm:$0xff] %v3883
      %4012 = vst [vmem:[#allocation2 + $0x1a0] sm:$0xff] %v3884
      %4013 = vst [vmem:[#allocation2 + $0x1a8] sm:$0xff] %v3885
      %4014 = vst [vmem:[#allocation2 + $0x1b0] sm:$0xff] %v3886
      %4015 = vst [vmem:[#allocation2 + $0x1b8] sm:$0xff] %v3887
      %4016 = vst [vmem:[#allocation2 + $0x1c0] sm:$0xff] %v3888
      %4017 = vst [vmem:[#allocation2 + $0x1c8] sm:$0xff] %v3889
      %4018 = vst [vmem:[#allocation2 + $0x1d0] sm:$0xff] %v3890
      %4019 = vst [vmem:[#allocation2 + $0x1d8] sm:$0xff] %v3891
      %4020 = vst [vmem:[#allocation2 + $0x1e0] sm:$0xff] %v3892
      %4021 = vst [vmem:[#allocation2 + $0x1e8] sm:$0xff] %v3893
      %4022 = vst [vmem:[#allocation2 + $0x1f0] sm:$0xff] %v3894
      %4023 = vst [vmem:[#allocation2 + $0x1f8] sm:$0xff] %v3895
      %4024 = vst [vmem:[#allocation2 + $0x200] sm:$0xff] %v3896
      %4025 = vst [vmem:[#allocation2 + $0x208] sm:$0xff] %v3897
      %4026 = vst [vmem:[#allocation2 + $0x210] sm:$0xff] %v3898
      %4027 = vst [vmem:[#allocation2 + $0x218] sm:$0xff] %v3899
      %4028 = vst [vmem:[#allocation2 + $0x220] sm:$0xff] %v3900
      %4029 = vst [vmem:[#allocation2 + $0x228] sm:$0xff] %v3901
      %4030 = vst [vmem:[#allocation2 + $0x230] sm:$0xff] %v3902
      %4031 = vst [vmem:[#allocation2 + $0x238] sm:$0xff] %v3903
      %4032 = vst [vmem:[#allocation2 + $0x240] sm:$0xff] %v3904
      %4033 = vst [vmem:[#allocation2 + $0x248] sm:$0xff] %v3905
      %4034 = vst [vmem:[#allocation2 + $0x250] sm:$0xff] %v3906
      %4035 = vst [vmem:[#allocation2 + $0x258] sm:$0xff] %v3907
      %4036 = vst [vmem:[#allocation2 + $0x260] sm:$0xff] %v3908
      %4037 = vst [vmem:[#allocation2 + $0x268] sm:$0xff] %v3909
      %4038 = vst [vmem:[#allocation2 + $0x270] sm:$0xff] %v3910
      %4039 = vst [vmem:[#allocation2 + $0x278] sm:$0xff] %v3911
      %4040 = vst [vmem:[#allocation2 + $0x280] sm:$0xff] %v3912
      %4041 = vst [vmem:[#allocation2 + $0x288] sm:$0xff] %v3913
      %4042 = vst [vmem:[#allocation2 + $0x290] sm:$0xff] %v3914
      %4043 = vst [vmem:[#allocation2 + $0x298] sm:$0xff] %v3915
      %4044 = vst [vmem:[#allocation2 + $0x2a0] sm:$0xff] %v3916
      %4045 = vst [vmem:[#allocation2 + $0x2a8] sm:$0xff] %v3917
      %4046 = vst [vmem:[#allocation2 + $0x2b0] sm:$0xff] %v3918
      %4047 = vst [vmem:[#allocation2 + $0x2b8] sm:$0xff] %v3919
      %4048 = vst [vmem:[#allocation2 + $0x2c0] sm:$0xff] %v3920
      %4049 = vst [vmem:[#allocation2 + $0x2c8] sm:$0xff] %v3921
      %4050 = vst [vmem:[#allocation2 + $0x2d0] sm:$0xff] %v3922
      %4051 = vst [vmem:[#allocation2 + $0x2d8] sm:$0xff] %v3923
      %4052 = vst [vmem:[#allocation2 + $0x2e0] sm:$0xff] %v3924
      %4053 = vst [vmem:[#allocation2 + $0x2e8] sm:$0xff] %v3925
      %4054 = vst [vmem:[#allocation2 + $0x2f0] sm:$0xff] %v3926
      %4055 = vst [vmem:[#allocation2 + $0x2f8] sm:$0xff] %v3927
      %4056 = vst [vmem:[#allocation2 + $0x300] sm:$0xff] %v3928
      %4057 = vst [vmem:[#allocation2 + $0x308] sm:$0xff] %v3929
      %4058 = vst [vmem:[#allocation2 + $0x310] sm:$0xff] %v3930
      %4059 = vst [vmem:[#allocation2 + $0x318] sm:$0xff] %v3931
      %4060 = vst [vmem:[#allocation2 + $0x320] sm:$0xff] %v3932
      %4061 = vst [vmem:[#allocation2 + $0x328] sm:$0xff] %v3933
      %4062 = vst [vmem:[#allocation2 + $0x330] sm:$0xff] %v3934
      %4063 = vst [vmem:[#allocation2 + $0x338] sm:$0xff] %v3935
      %4064 = vst [vmem:[#allocation2 + $0x340] sm:$0xff] %v3936
      %4065 = vst [vmem:[#allocation2 + $0x348] sm:$0xff] %v3937
      %4066 = vst [vmem:[#allocation2 + $0x350] sm:$0xff] %v3938
      %4067 = vst [vmem:[#allocation2 + $0x358] sm:$0xff] %v3939
      %4068 = vst [vmem:[#allocation2 + $0x360] sm:$0xff] %v3940
      %4069 = vst [vmem:[#allocation2 + $0x368] sm:$0xff] %v3941
      %4070 = vst [vmem:[#allocation2 + $0x370] sm:$0xff] %v3942
      %4071 = vst [vmem:[#allocation2 + $0x378] sm:$0xff] %v3943
      %4072 = vst [vmem:[#allocation2 + $0x380] sm:$0xff] %v3944
      %4073 = vst [vmem:[#allocation2 + $0x388] sm:$0xff] %v3945
      %4074 = vst [vmem:[#allocation2 + $0x390] sm:$0xff] %v3946
      %4075 = vst [vmem:[#allocation2 + $0x398] sm:$0xff] %v3947
      %4076 = vst [vmem:[#allocation2 + $0x3a0] sm:$0xff] %v3948
      %4077 = vst [vmem:[#allocation2 + $0x3a8] sm:$0xff] %v3949
      %4078 = vst [vmem:[#allocation2 + $0x3b0] sm:$0xff] %v3950
      %4079 = vst [vmem:[#allocation2 + $0x3b8] sm:$0xff] %v3951
      %4080 = vst [vmem:[#allocation2 + $0x3c0] sm:$0xff] %v3952
      %4081 = vst [vmem:[#allocation2 + $0x3c8] sm:$0xff] %v3953
      %4082 = vst [vmem:[#allocation2 + $0x3d0] sm:$0xff] %v3954
      %4083 = vst [vmem:[#allocation2 + $0x3d8] sm:$0xff] %v3955
      %4084 = vst [vmem:[#allocation2 + $0x3e0] sm:$0xff] %v3956
      %4085 = vst [vmem:[#allocation2 + $0x3e8] sm:$0xff] %v3957
      %4086 = vst [vmem:[#allocation2 + $0x3f0] sm:$0xff] %v3958
      %4087 = vst [vmem:[#allocation2 + $0x3f8] sm:$0xff] %v3959
      %p4088 = scmp.eq.s32.totalorder %s23, 2
      // Predicated region
      $region53: #{tpu_custom_call.1} parent=47 // pred_check
        %p4089 = pneg %p4088
      $region54: #{tpu_custom_call.1} parent=47 // pred_check_branch
        %4091 = sbr.rel (%p4089) target = $region56
      $region55: #{tpu_custom_call.1} parent=47 // pred_region
        %v4092 = vld [vmem:[#allocation2] sm:$0xff]
        %v4093 = vld [vmem:[#allocation2 + $0x8] sm:$0xff]
        %v4094 = vld [vmem:[#allocation2 + $0x10] sm:$0xff]
        %v4095 = vld [vmem:[#allocation2 + $0x18] sm:$0xff]
        %v4096 = vld [vmem:[#allocation2 + $0x20] sm:$0xff]
        %v4097 = vld [vmem:[#allocation2 + $0x28] sm:$0xff]
        %v4098 = vld [vmem:[#allocation2 + $0x30] sm:$0xff]
        %v4099 = vld [vmem:[#allocation2 + $0x38] sm:$0xff]
        %v4100 = vld [vmem:[#allocation2 + $0x40] sm:$0xff]
        %v4101 = vld [vmem:[#allocation2 + $0x48] sm:$0xff]
        %v4102 = vld [vmem:[#allocation2 + $0x50] sm:$0xff]
        %v4103 = vld [vmem:[#allocation2 + $0x58] sm:$0xff]
        %v4104 = vld [vmem:[#allocation2 + $0x60] sm:$0xff]
        %v4105 = vld [vmem:[#allocation2 + $0x68] sm:$0xff]
        %v4106 = vld [vmem:[#allocation2 + $0x70] sm:$0xff]
        %v4107 = vld [vmem:[#allocation2 + $0x78] sm:$0xff]
        %v4108 = vld [vmem:[#allocation2 + $0x80] sm:$0xff]
        %v4109 = vld [vmem:[#allocation2 + $0x88] sm:$0xff]
        %v4110 = vld [vmem:[#allocation2 + $0x90] sm:$0xff]
        %v4111 = vld [vmem:[#allocation2 + $0x98] sm:$0xff]
        %v4112 = vld [vmem:[#allocation2 + $0xa0] sm:$0xff]
        %v4113 = vld [vmem:[#allocation2 + $0xa8] sm:$0xff]
        %v4114 = vld [vmem:[#allocation2 + $0xb0] sm:$0xff]
        %v4115 = vld [vmem:[#allocation2 + $0xb8] sm:$0xff]
        %v4116 = vld [vmem:[#allocation2 + $0xc0] sm:$0xff]
        %v4117 = vld [vmem:[#allocation2 + $0xc8] sm:$0xff]
        %v4118 = vld [vmem:[#allocation2 + $0xd0] sm:$0xff]
        %v4119 = vld [vmem:[#allocation2 + $0xd8] sm:$0xff]
        %v4120 = vld [vmem:[#allocation2 + $0xe0] sm:$0xff]
        %v4121 = vld [vmem:[#allocation2 + $0xe8] sm:$0xff]
        %v4122 = vld [vmem:[#allocation2 + $0xf0] sm:$0xff]
        %v4123 = vld [vmem:[#allocation2 + $0xf8] sm:$0xff]
        %v4124 = vld [vmem:[#allocation2 + $0x100] sm:$0xff]
        %v4125 = vld [vmem:[#allocation2 + $0x108] sm:$0xff]
        %v4126 = vld [vmem:[#allocation2 + $0x110] sm:$0xff]
        %v4127 = vld [vmem:[#allocation2 + $0x118] sm:$0xff]
        %v4128 = vld [vmem:[#allocation2 + $0x120] sm:$0xff]
        %v4129 = vld [vmem:[#allocation2 + $0x128] sm:$0xff]
        %v4130 = vld [vmem:[#allocation2 + $0x130] sm:$0xff]
        %v4131 = vld [vmem:[#allocation2 + $0x138] sm:$0xff]
        %v4132 = vld [vmem:[#allocation2 + $0x140] sm:$0xff]
        %v4133 = vld [vmem:[#allocation2 + $0x148] sm:$0xff]
        %v4134 = vld [vmem:[#allocation2 + $0x150] sm:$0xff]
        %v4135 = vld [vmem:[#allocation2 + $0x158] sm:$0xff]
        %v4136 = vld [vmem:[#allocation2 + $0x160] sm:$0xff]
        %v4137 = vld [vmem:[#allocation2 + $0x168] sm:$0xff]
        %v4138 = vld [vmem:[#allocation2 + $0x170] sm:$0xff]
        %v4139 = vld [vmem:[#allocation2 + $0x178] sm:$0xff]
        %v4140 = vld [vmem:[#allocation2 + $0x180] sm:$0xff]
        %v4141 = vld [vmem:[#allocation2 + $0x188] sm:$0xff]
        %v4142 = vld [vmem:[#allocation2 + $0x190] sm:$0xff]
        %v4143 = vld [vmem:[#allocation2 + $0x198] sm:$0xff]
        %v4144 = vld [vmem:[#allocation2 + $0x1a0] sm:$0xff]
        %v4145 = vld [vmem:[#allocation2 + $0x1a8] sm:$0xff]
        %v4146 = vld [vmem:[#allocation2 + $0x1b0] sm:$0xff]
        %v4147 = vld [vmem:[#allocation2 + $0x1b8] sm:$0xff]
        %v4148 = vld [vmem:[#allocation2 + $0x1c0] sm:$0xff]
        %v4149 = vld [vmem:[#allocation2 + $0x1c8] sm:$0xff]
        %v4150 = vld [vmem:[#allocation2 + $0x1d0] sm:$0xff]
        %v4151 = vld [vmem:[#allocation2 + $0x1d8] sm:$0xff]
        %v4152 = vld [vmem:[#allocation2 + $0x1e0] sm:$0xff]
        %v4153 = vld [vmem:[#allocation2 + $0x1e8] sm:$0xff]
        %v4154 = vld [vmem:[#allocation2 + $0x1f0] sm:$0xff]
        %v4155 = vld [vmem:[#allocation2 + $0x1f8] sm:$0xff]
        %v4156 = vld [vmem:[#allocation2 + $0x200] sm:$0xff]
        %v4157 = vld [vmem:[#allocation2 + $0x208] sm:$0xff]
        %v4158 = vld [vmem:[#allocation2 + $0x210] sm:$0xff]
        %v4159 = vld [vmem:[#allocation2 + $0x218] sm:$0xff]
        %v4160 = vld [vmem:[#allocation2 + $0x220] sm:$0xff]
        %v4161 = vld [vmem:[#allocation2 + $0x228] sm:$0xff]
        %v4162 = vld [vmem:[#allocation2 + $0x230] sm:$0xff]
        %v4163 = vld [vmem:[#allocation2 + $0x238] sm:$0xff]
        %v4164 = vld [vmem:[#allocation2 + $0x240] sm:$0xff]
        %v4165 = vld [vmem:[#allocation2 + $0x248] sm:$0xff]
        %v4166 = vld [vmem:[#allocation2 + $0x250] sm:$0xff]
        %v4167 = vld [vmem:[#allocation2 + $0x258] sm:$0xff]
        %v4168 = vld [vmem:[#allocation2 + $0x260] sm:$0xff]
        %v4169 = vld [vmem:[#allocation2 + $0x268] sm:$0xff]
        %v4170 = vld [vmem:[#allocation2 + $0x270] sm:$0xff]
        %v4171 = vld [vmem:[#allocation2 + $0x278] sm:$0xff]
        %v4172 = vld [vmem:[#allocation2 + $0x280] sm:$0xff]
        %v4173 = vld [vmem:[#allocation2 + $0x288] sm:$0xff]
        %v4174 = vld [vmem:[#allocation2 + $0x290] sm:$0xff]
        %v4175 = vld [vmem:[#allocation2 + $0x298] sm:$0xff]
        %v4176 = vld [vmem:[#allocation2 + $0x2a0] sm:$0xff]
        %v4177 = vld [vmem:[#allocation2 + $0x2a8] sm:$0xff]
        %v4178 = vld [vmem:[#allocation2 + $0x2b0] sm:$0xff]
        %v4179 = vld [vmem:[#allocation2 + $0x2b8] sm:$0xff]
        %v4180 = vld [vmem:[#allocation2 + $0x2c0] sm:$0xff]
        %v4181 = vld [vmem:[#allocation2 + $0x2c8] sm:$0xff]
        %v4182 = vld [vmem:[#allocation2 + $0x2d0] sm:$0xff]
        %v4183 = vld [vmem:[#allocation2 + $0x2d8] sm:$0xff]
        %v4184 = vld [vmem:[#allocation2 + $0x2e0] sm:$0xff]
        %v4185 = vld [vmem:[#allocation2 + $0x2e8] sm:$0xff]
        %v4186 = vld [vmem:[#allocation2 + $0x2f0] sm:$0xff]
        %v4187 = vld [vmem:[#allocation2 + $0x2f8] sm:$0xff]
        %v4188 = vld [vmem:[#allocation2 + $0x300] sm:$0xff]
        %v4189 = vld [vmem:[#allocation2 + $0x308] sm:$0xff]
        %v4190 = vld [vmem:[#allocation2 + $0x310] sm:$0xff]
        %v4191 = vld [vmem:[#allocation2 + $0x318] sm:$0xff]
        %v4192 = vld [vmem:[#allocation2 + $0x320] sm:$0xff]
        %v4193 = vld [vmem:[#allocation2 + $0x328] sm:$0xff]
        %v4194 = vld [vmem:[#allocation2 + $0x330] sm:$0xff]
        %v4195 = vld [vmem:[#allocation2 + $0x338] sm:$0xff]
        %v4196 = vld [vmem:[#allocation2 + $0x340] sm:$0xff]
        %v4197 = vld [vmem:[#allocation2 + $0x348] sm:$0xff]
        %v4198 = vld [vmem:[#allocation2 + $0x350] sm:$0xff]
        %v4199 = vld [vmem:[#allocation2 + $0x358] sm:$0xff]
        %v4200 = vld [vmem:[#allocation2 + $0x360] sm:$0xff]
        %v4201 = vld [vmem:[#allocation2 + $0x368] sm:$0xff]
        %v4202 = vld [vmem:[#allocation2 + $0x370] sm:$0xff]
        %v4203 = vld [vmem:[#allocation2 + $0x378] sm:$0xff]
        %v4204 = vld [vmem:[#allocation2 + $0x380] sm:$0xff]
        %v4205 = vld [vmem:[#allocation2 + $0x388] sm:$0xff]
        %v4206 = vld [vmem:[#allocation2 + $0x390] sm:$0xff]
        %v4207 = vld [vmem:[#allocation2 + $0x398] sm:$0xff]
        %v4208 = vld [vmem:[#allocation2 + $0x3a0] sm:$0xff]
        %v4209 = vld [vmem:[#allocation2 + $0x3a8] sm:$0xff]
        %v4210 = vld [vmem:[#allocation2 + $0x3b0] sm:$0xff]
        %v4211 = vld [vmem:[#allocation2 + $0x3b8] sm:$0xff]
        %v4212 = vld [vmem:[#allocation2 + $0x3c0] sm:$0xff]
        %v4213 = vld [vmem:[#allocation2 + $0x3c8] sm:$0xff]
        %v4214 = vld [vmem:[#allocation2 + $0x3d0] sm:$0xff]
        %v4215 = vld [vmem:[#allocation2 + $0x3d8] sm:$0xff]
        %v4216 = vld [vmem:[#allocation2 + $0x3e0] sm:$0xff]
        %v4217 = vld [vmem:[#allocation2 + $0x3e8] sm:$0xff]
        %v4218 = vld [vmem:[#allocation2 + $0x3f0] sm:$0xff]
        %v4219 = vld [vmem:[#allocation2 + $0x3f8] sm:$0xff]
        %v4348 = vunpack.c.l.b16 %v4092
        %v4349 = vunpack.c.h.b16 %v4092
        %v4350 = vunpack.c.l.b16 %v4093
        %v4351 = vunpack.c.h.b16 %v4093
        %v4352 = vunpack.c.l.b16 %v4094
        %v4353 = vunpack.c.h.b16 %v4094
        %v4354 = vunpack.c.l.b16 %v4095
        %v4355 = vunpack.c.h.b16 %v4095
        %v4356 = vunpack.c.l.b16 %v4096
        %v4357 = vunpack.c.h.b16 %v4096
        %v4358 = vunpack.c.l.b16 %v4097
        %v4359 = vunpack.c.h.b16 %v4097
        %v4360 = vunpack.c.l.b16 %v4098
        %v4361 = vunpack.c.h.b16 %v4098
        %v4362 = vunpack.c.l.b16 %v4099
        %v4363 = vunpack.c.h.b16 %v4099
        %v4364 = vunpack.c.l.b16 %v4100
        %v4365 = vunpack.c.h.b16 %v4100
        %v4366 = vunpack.c.l.b16 %v4101
        %v4367 = vunpack.c.h.b16 %v4101
        %v4368 = vunpack.c.l.b16 %v4102
        %v4369 = vunpack.c.h.b16 %v4102
        %v4370 = vunpack.c.l.b16 %v4103
        %v4371 = vunpack.c.h.b16 %v4103
        %v4372 = vunpack.c.l.b16 %v4104
        %v4373 = vunpack.c.h.b16 %v4104
        %v4374 = vunpack.c.l.b16 %v4105
        %v4375 = vunpack.c.h.b16 %v4105
        %v4376 = vunpack.c.l.b16 %v4106
        %v4377 = vunpack.c.h.b16 %v4106
        %v4378 = vunpack.c.l.b16 %v4107
        %v4379 = vunpack.c.h.b16 %v4107
        %v4380 = vunpack.c.l.b16 %v4108
        %v4381 = vunpack.c.h.b16 %v4108
        %v4382 = vunpack.c.l.b16 %v4109
        %v4383 = vunpack.c.h.b16 %v4109
        %v4384 = vunpack.c.l.b16 %v4110
        %v4385 = vunpack.c.h.b16 %v4110
        %v4386 = vunpack.c.l.b16 %v4111
        %v4387 = vunpack.c.h.b16 %v4111
        %v4388 = vunpack.c.l.b16 %v4112
        %v4389 = vunpack.c.h.b16 %v4112
        %v4390 = vunpack.c.l.b16 %v4113
        %v4391 = vunpack.c.h.b16 %v4113
        %v4392 = vunpack.c.l.b16 %v4114
        %v4393 = vunpack.c.h.b16 %v4114
        %v4394 = vunpack.c.l.b16 %v4115
        %v4395 = vunpack.c.h.b16 %v4115
        %v4396 = vunpack.c.l.b16 %v4116
        %v4397 = vunpack.c.h.b16 %v4116
        %v4398 = vunpack.c.l.b16 %v4117
        %v4399 = vunpack.c.h.b16 %v4117
        %v4400 = vunpack.c.l.b16 %v4118
        %v4401 = vunpack.c.h.b16 %v4118
        %v4402 = vunpack.c.l.b16 %v4119
        %v4403 = vunpack.c.h.b16 %v4119
        %v4404 = vunpack.c.l.b16 %v4120
        %v4405 = vunpack.c.h.b16 %v4120
        %v4406 = vunpack.c.l.b16 %v4121
        %v4407 = vunpack.c.h.b16 %v4121
        %v4408 = vunpack.c.l.b16 %v4122
        %v4409 = vunpack.c.h.b16 %v4122
        %v4410 = vunpack.c.l.b16 %v4123
        %v4411 = vunpack.c.h.b16 %v4123
        %v4412 = vunpack.c.l.b16 %v4124
        %v4413 = vunpack.c.h.b16 %v4124
        %v4414 = vunpack.c.l.b16 %v4125
        %v4415 = vunpack.c.h.b16 %v4125
        %v4416 = vunpack.c.l.b16 %v4126
        %v4417 = vunpack.c.h.b16 %v4126
        %v4418 = vunpack.c.l.b16 %v4127
        %v4419 = vunpack.c.h.b16 %v4127
        %v4420 = vunpack.c.l.b16 %v4128
        %v4421 = vunpack.c.h.b16 %v4128
        %v4422 = vunpack.c.l.b16 %v4129
        %v4423 = vunpack.c.h.b16 %v4129
        %v4424 = vunpack.c.l.b16 %v4130
        %v4425 = vunpack.c.h.b16 %v4130
        %v4426 = vunpack.c.l.b16 %v4131
        %v4427 = vunpack.c.h.b16 %v4131
        %v4428 = vunpack.c.l.b16 %v4132
        %v4429 = vunpack.c.h.b16 %v4132
        %v4430 = vunpack.c.l.b16 %v4133
        %v4431 = vunpack.c.h.b16 %v4133
        %v4432 = vunpack.c.l.b16 %v4134
        %v4433 = vunpack.c.h.b16 %v4134
        %v4434 = vunpack.c.l.b16 %v4135
        %v4435 = vunpack.c.h.b16 %v4135
        %v4436 = vunpack.c.l.b16 %v4136
        %v4437 = vunpack.c.h.b16 %v4136
        %v4438 = vunpack.c.l.b16 %v4137
        %v4439 = vunpack.c.h.b16 %v4137
        %v4440 = vunpack.c.l.b16 %v4138
        %v4441 = vunpack.c.h.b16 %v4138
        %v4442 = vunpack.c.l.b16 %v4139
        %v4443 = vunpack.c.h.b16 %v4139
        %v4444 = vunpack.c.l.b16 %v4140
        %v4445 = vunpack.c.h.b16 %v4140
        %v4446 = vunpack.c.l.b16 %v4141
        %v4447 = vunpack.c.h.b16 %v4141
        %v4448 = vunpack.c.l.b16 %v4142
        %v4449 = vunpack.c.h.b16 %v4142
        %v4450 = vunpack.c.l.b16 %v4143
        %v4451 = vunpack.c.h.b16 %v4143
        %v4452 = vunpack.c.l.b16 %v4144
        %v4453 = vunpack.c.h.b16 %v4144
        %v4454 = vunpack.c.l.b16 %v4145
        %v4455 = vunpack.c.h.b16 %v4145
        %v4456 = vunpack.c.l.b16 %v4146
        %v4457 = vunpack.c.h.b16 %v4146
        %v4458 = vunpack.c.l.b16 %v4147
        %v4459 = vunpack.c.h.b16 %v4147
        %v4460 = vunpack.c.l.b16 %v4148
        %v4461 = vunpack.c.h.b16 %v4148
        %v4462 = vunpack.c.l.b16 %v4149
        %v4463 = vunpack.c.h.b16 %v4149
        %v4464 = vunpack.c.l.b16 %v4150
        %v4465 = vunpack.c.h.b16 %v4150
        %v4466 = vunpack.c.l.b16 %v4151
        %v4467 = vunpack.c.h.b16 %v4151
        %v4468 = vunpack.c.l.b16 %v4152
        %v4469 = vunpack.c.h.b16 %v4152
        %v4470 = vunpack.c.l.b16 %v4153
        %v4471 = vunpack.c.h.b16 %v4153
        %v4472 = vunpack.c.l.b16 %v4154
        %v4473 = vunpack.c.h.b16 %v4154
        %v4474 = vunpack.c.l.b16 %v4155
        %v4475 = vunpack.c.h.b16 %v4155
        %v4476 = vunpack.c.l.b16 %v4156
        %v4477 = vunpack.c.h.b16 %v4156
        %v4478 = vunpack.c.l.b16 %v4157
        %v4479 = vunpack.c.h.b16 %v4157
        %v4480 = vunpack.c.l.b16 %v4158
        %v4481 = vunpack.c.h.b16 %v4158
        %v4482 = vunpack.c.l.b16 %v4159
        %v4483 = vunpack.c.h.b16 %v4159
        %v4484 = vunpack.c.l.b16 %v4160
        %v4485 = vunpack.c.h.b16 %v4160
        %v4486 = vunpack.c.l.b16 %v4161
        %v4487 = vunpack.c.h.b16 %v4161
        %v4488 = vunpack.c.l.b16 %v4162
        %v4489 = vunpack.c.h.b16 %v4162
        %v4490 = vunpack.c.l.b16 %v4163
        %v4491 = vunpack.c.h.b16 %v4163
        %v4492 = vunpack.c.l.b16 %v4164
        %v4493 = vunpack.c.h.b16 %v4164
        %v4494 = vunpack.c.l.b16 %v4165
        %v4495 = vunpack.c.h.b16 %v4165
        %v4496 = vunpack.c.l.b16 %v4166
        %v4497 = vunpack.c.h.b16 %v4166
        %v4498 = vunpack.c.l.b16 %v4167
        %v4499 = vunpack.c.h.b16 %v4167
        %v4500 = vunpack.c.l.b16 %v4168
        %v4501 = vunpack.c.h.b16 %v4168
        %v4502 = vunpack.c.l.b16 %v4169
        %v4503 = vunpack.c.h.b16 %v4169
        %v4504 = vunpack.c.l.b16 %v4170
        %v4505 = vunpack.c.h.b16 %v4170
        %v4506 = vunpack.c.l.b16 %v4171
        %v4507 = vunpack.c.h.b16 %v4171
        %v4508 = vunpack.c.l.b16 %v4172
        %v4509 = vunpack.c.h.b16 %v4172
        %v4510 = vunpack.c.l.b16 %v4173
        %v4511 = vunpack.c.h.b16 %v4173
        %v4512 = vunpack.c.l.b16 %v4174
        %v4513 = vunpack.c.h.b16 %v4174
        %v4514 = vunpack.c.l.b16 %v4175
        %v4515 = vunpack.c.h.b16 %v4175
        %v4516 = vunpack.c.l.b16 %v4176
        %v4517 = vunpack.c.h.b16 %v4176
        %v4518 = vunpack.c.l.b16 %v4177
        %v4519 = vunpack.c.h.b16 %v4177
        %v4520 = vunpack.c.l.b16 %v4178
        %v4521 = vunpack.c.h.b16 %v4178
        %v4522 = vunpack.c.l.b16 %v4179
        %v4523 = vunpack.c.h.b16 %v4179
        %v4524 = vunpack.c.l.b16 %v4180
        %v4525 = vunpack.c.h.b16 %v4180
        %v4526 = vunpack.c.l.b16 %v4181
        %v4527 = vunpack.c.h.b16 %v4181
        %v4528 = vunpack.c.l.b16 %v4182
        %v4529 = vunpack.c.h.b16 %v4182
        %v4530 = vunpack.c.l.b16 %v4183
        %v4531 = vunpack.c.h.b16 %v4183
        %v4532 = vunpack.c.l.b16 %v4184
        %v4533 = vunpack.c.h.b16 %v4184
        %v4534 = vunpack.c.l.b16 %v4185
        %v4535 = vunpack.c.h.b16 %v4185
        %v4536 = vunpack.c.l.b16 %v4186
        %v4537 = vunpack.c.h.b16 %v4186
        %v4538 = vunpack.c.l.b16 %v4187
        %v4539 = vunpack.c.h.b16 %v4187
        %v4540 = vunpack.c.l.b16 %v4188
        %v4541 = vunpack.c.h.b16 %v4188
        %v4542 = vunpack.c.l.b16 %v4189
        %v4543 = vunpack.c.h.b16 %v4189
        %v4544 = vunpack.c.l.b16 %v4190
        %v4545 = vunpack.c.h.b16 %v4190
        %v4546 = vunpack.c.l.b16 %v4191
        %v4547 = vunpack.c.h.b16 %v4191
        %v4548 = vunpack.c.l.b16 %v4192
        %v4549 = vunpack.c.h.b16 %v4192
        %v4550 = vunpack.c.l.b16 %v4193
        %v4551 = vunpack.c.h.b16 %v4193
        %v4552 = vunpack.c.l.b16 %v4194
        %v4553 = vunpack.c.h.b16 %v4194
        %v4554 = vunpack.c.l.b16 %v4195
        %v4555 = vunpack.c.h.b16 %v4195
        %v4556 = vunpack.c.l.b16 %v4196
        %v4557 = vunpack.c.h.b16 %v4196
        %v4558 = vunpack.c.l.b16 %v4197
        %v4559 = vunpack.c.h.b16 %v4197
        %v4560 = vunpack.c.l.b16 %v4198
        %v4561 = vunpack.c.h.b16 %v4198
        %v4562 = vunpack.c.l.b16 %v4199
        %v4563 = vunpack.c.h.b16 %v4199
        %v4564 = vunpack.c.l.b16 %v4200
        %v4565 = vunpack.c.h.b16 %v4200
        %v4566 = vunpack.c.l.b16 %v4201
        %v4567 = vunpack.c.h.b16 %v4201
        %v4568 = vunpack.c.l.b16 %v4202
        %v4569 = vunpack.c.h.b16 %v4202
        %v4570 = vunpack.c.l.b16 %v4203
        %v4571 = vunpack.c.h.b16 %v4203
        %v4572 = vunpack.c.l.b16 %v4204
        %v4573 = vunpack.c.h.b16 %v4204
        %v4574 = vunpack.c.l.b16 %v4205
        %v4575 = vunpack.c.h.b16 %v4205
        %v4576 = vunpack.c.l.b16 %v4206
        %v4577 = vunpack.c.h.b16 %v4206
        %v4578 = vunpack.c.l.b16 %v4207
        %v4579 = vunpack.c.h.b16 %v4207
        %v4580 = vunpack.c.l.b16 %v4208
        %v4581 = vunpack.c.h.b16 %v4208
        %v4582 = vunpack.c.l.b16 %v4209
        %v4583 = vunpack.c.h.b16 %v4209
        %v4584 = vunpack.c.l.b16 %v4210
        %v4585 = vunpack.c.h.b16 %v4210
        %v4586 = vunpack.c.l.b16 %v4211
        %v4587 = vunpack.c.h.b16 %v4211
        %v4588 = vunpack.c.l.b16 %v4212
        %v4589 = vunpack.c.h.b16 %v4212
        %v4590 = vunpack.c.l.b16 %v4213
        %v4591 = vunpack.c.h.b16 %v4213
        %v4592 = vunpack.c.l.b16 %v4214
        %v4593 = vunpack.c.h.b16 %v4214
        %v4594 = vunpack.c.l.b16 %v4215
        %v4595 = vunpack.c.h.b16 %v4215
        %v4596 = vunpack.c.l.b16 %v4216
        %v4597 = vunpack.c.h.b16 %v4216
        %v4598 = vunpack.c.l.b16 %v4217
        %v4599 = vunpack.c.h.b16 %v4217
        %v4600 = vunpack.c.l.b16 %v4218
        %v4601 = vunpack.c.h.b16 %v4218
        %v4602 = vunpack.c.l.b16 %v4219
        %v4603 = vunpack.c.h.b16 %v4219
        %v4604 = vpack.c.b16 %v4350, %v4348
        %v4605 = vpack.c.b16 %v4351, %v4349
        %v4606 = vpack.c.b16 %v4354, %v4352
        %v4607 = vpack.c.b16 %v4355, %v4353
        %v4608 = vpack.c.b16 %v4358, %v4356
        %v4609 = vpack.c.b16 %v4359, %v4357
        %v4610 = vpack.c.b16 %v4362, %v4360
        %v4611 = vpack.c.b16 %v4363, %v4361
        %v4612 = vpack.c.b16 %v4366, %v4364
        %v4613 = vpack.c.b16 %v4367, %v4365
        %v4614 = vpack.c.b16 %v4370, %v4368
        %v4615 = vpack.c.b16 %v4371, %v4369
        %v4616 = vpack.c.b16 %v4374, %v4372
        %v4617 = vpack.c.b16 %v4375, %v4373
        %v4618 = vpack.c.b16 %v4378, %v4376
        %v4619 = vpack.c.b16 %v4379, %v4377
        %v4620 = vpack.c.b16 %v4382, %v4380
        %v4621 = vpack.c.b16 %v4383, %v4381
        %v4622 = vpack.c.b16 %v4386, %v4384
        %v4623 = vpack.c.b16 %v4387, %v4385
        %v4624 = vpack.c.b16 %v4390, %v4388
        %v4625 = vpack.c.b16 %v4391, %v4389
        %v4626 = vpack.c.b16 %v4394, %v4392
        %v4627 = vpack.c.b16 %v4395, %v4393
        %v4628 = vpack.c.b16 %v4398, %v4396
        %v4629 = vpack.c.b16 %v4399, %v4397
        %v4630 = vpack.c.b16 %v4402, %v4400
        %v4631 = vpack.c.b16 %v4403, %v4401
        %v4632 = vpack.c.b16 %v4406, %v4404
        %v4633 = vpack.c.b16 %v4407, %v4405
        %v4634 = vpack.c.b16 %v4410, %v4408
        %v4635 = vpack.c.b16 %v4411, %v4409
        %v4636 = vpack.c.b16 %v4414, %v4412
        %v4637 = vpack.c.b16 %v4415, %v4413
        %v4638 = vpack.c.b16 %v4418, %v4416
        %v4639 = vpack.c.b16 %v4419, %v4417
        %v4640 = vpack.c.b16 %v4422, %v4420
        %v4641 = vpack.c.b16 %v4423, %v4421
        %v4642 = vpack.c.b16 %v4426, %v4424
        %v4643 = vpack.c.b16 %v4427, %v4425
        %v4644 = vpack.c.b16 %v4430, %v4428
        %v4645 = vpack.c.b16 %v4431, %v4429
        %v4646 = vpack.c.b16 %v4434, %v4432
        %v4647 = vpack.c.b16 %v4435, %v4433
        %v4648 = vpack.c.b16 %v4438, %v4436
        %v4649 = vpack.c.b16 %v4439, %v4437
        %v4650 = vpack.c.b16 %v4442, %v4440
        %v4651 = vpack.c.b16 %v4443, %v4441
        %v4652 = vpack.c.b16 %v4446, %v4444
        %v4653 = vpack.c.b16 %v4447, %v4445
        %v4654 = vpack.c.b16 %v4450, %v4448
        %v4655 = vpack.c.b16 %v4451, %v4449
        %v4656 = vpack.c.b16 %v4454, %v4452
        %v4657 = vpack.c.b16 %v4455, %v4453
        %v4658 = vpack.c.b16 %v4458, %v4456
        %v4659 = vpack.c.b16 %v4459, %v4457
        %v4660 = vpack.c.b16 %v4462, %v4460
        %v4661 = vpack.c.b16 %v4463, %v4461
        %v4662 = vpack.c.b16 %v4466, %v4464
        %v4663 = vpack.c.b16 %v4467, %v4465
        %v4664 = vpack.c.b16 %v4470, %v4468
        %v4665 = vpack.c.b16 %v4471, %v4469
        %v4666 = vpack.c.b16 %v4474, %v4472
        %v4667 = vpack.c.b16 %v4475, %v4473
        %v4668 = vpack.c.b16 %v4478, %v4476
        %v4669 = vpack.c.b16 %v4479, %v4477
        %v4670 = vpack.c.b16 %v4482, %v4480
        %v4671 = vpack.c.b16 %v4483, %v4481
        %v4672 = vpack.c.b16 %v4486, %v4484
        %v4673 = vpack.c.b16 %v4487, %v4485
        %v4674 = vpack.c.b16 %v4490, %v4488
        %v4675 = vpack.c.b16 %v4491, %v4489
        %v4676 = vpack.c.b16 %v4494, %v4492
        %v4677 = vpack.c.b16 %v4495, %v4493
        %v4678 = vpack.c.b16 %v4498, %v4496
        %v4679 = vpack.c.b16 %v4499, %v4497
        %v4680 = vpack.c.b16 %v4502, %v4500
        %v4681 = vpack.c.b16 %v4503, %v4501
        %v4682 = vpack.c.b16 %v4506, %v4504
        %v4683 = vpack.c.b16 %v4507, %v4505
        %v4684 = vpack.c.b16 %v4510, %v4508
        %v4685 = vpack.c.b16 %v4511, %v4509
        %v4686 = vpack.c.b16 %v4514, %v4512
        %v4687 = vpack.c.b16 %v4515, %v4513
        %v4688 = vpack.c.b16 %v4518, %v4516
        %v4689 = vpack.c.b16 %v4519, %v4517
        %v4690 = vpack.c.b16 %v4522, %v4520
        %v4691 = vpack.c.b16 %v4523, %v4521
        %v4692 = vpack.c.b16 %v4526, %v4524
        %v4693 = vpack.c.b16 %v4527, %v4525
        %v4694 = vpack.c.b16 %v4530, %v4528
        %v4695 = vpack.c.b16 %v4531, %v4529
        %v4696 = vpack.c.b16 %v4534, %v4532
        %v4697 = vpack.c.b16 %v4535, %v4533
        %v4698 = vpack.c.b16 %v4538, %v4536
        %v4699 = vpack.c.b16 %v4539, %v4537
        %v4700 = vpack.c.b16 %v4542, %v4540
        %v4701 = vpack.c.b16 %v4543, %v4541
        %v4702 = vpack.c.b16 %v4546, %v4544
        %v4703 = vpack.c.b16 %v4547, %v4545
        %v4704 = vpack.c.b16 %v4550, %v4548
        %v4705 = vpack.c.b16 %v4551, %v4549
        %v4706 = vpack.c.b16 %v4554, %v4552
        %v4707 = vpack.c.b16 %v4555, %v4553
        %v4708 = vpack.c.b16 %v4558, %v4556
        %v4709 = vpack.c.b16 %v4559, %v4557
        %v4710 = vpack.c.b16 %v4562, %v4560
        %v4711 = vpack.c.b16 %v4563, %v4561
        %v4712 = vpack.c.b16 %v4566, %v4564
        %v4713 = vpack.c.b16 %v4567, %v4565
        %v4714 = vpack.c.b16 %v4570, %v4568
        %v4715 = vpack.c.b16 %v4571, %v4569
        %v4716 = vpack.c.b16 %v4574, %v4572
        %v4717 = vpack.c.b16 %v4575, %v4573
        %v4718 = vpack.c.b16 %v4578, %v4576
        %v4719 = vpack.c.b16 %v4579, %v4577
        %v4720 = vpack.c.b16 %v4582, %v4580
        %v4721 = vpack.c.b16 %v4583, %v4581
        %v4722 = vpack.c.b16 %v4586, %v4584
        %v4723 = vpack.c.b16 %v4587, %v4585
        %v4724 = vpack.c.b16 %v4590, %v4588
        %v4725 = vpack.c.b16 %v4591, %v4589
        %v4726 = vpack.c.b16 %v4594, %v4592
        %v4727 = vpack.c.b16 %v4595, %v4593
        %v4728 = vpack.c.b16 %v4598, %v4596
        %v4729 = vpack.c.b16 %v4599, %v4597
        %v4730 = vpack.c.b16 %v4602, %v4600
        %v4731 = vpack.c.b16 %v4603, %v4601
        %v4860 = vmax.bf16 %v4604, %v4605
        %4861 = vmax.xlane.bf16.xlu0 %v4860
        %v4862 = vpop.xlane.xlu0 %4861
        %v4863 = vmax.bf16 %v4606, %v4607
        %4864 = vmax.xlane.bf16.xlu0 %v4863
        %v4865 = vpop.xlane.xlu0 %4864
        %v4866 = vmax.bf16 %v4608, %v4609
        %4867 = vmax.xlane.bf16.xlu0 %v4866
        %v4868 = vpop.xlane.xlu0 %4867
        %v4869 = vmax.bf16 %v4610, %v4611
        %4870 = vmax.xlane.bf16.xlu0 %v4869
        %v4871 = vpop.xlane.xlu0 %4870
        %v4872 = vmax.bf16 %v4612, %v4613
        %4873 = vmax.xlane.bf16.xlu0 %v4872
        %v4874 = vpop.xlane.xlu0 %4873
        %v4875 = vmax.bf16 %v4614, %v4615
        %4876 = vmax.xlane.bf16.xlu0 %v4875
        %v4877 = vpop.xlane.xlu0 %4876
        %v4878 = vmax.bf16 %v4616, %v4617
        %4879 = vmax.xlane.bf16.xlu0 %v4878
        %v4880 = vpop.xlane.xlu0 %4879
        %v4881 = vmax.bf16 %v4618, %v4619
        %4882 = vmax.xlane.bf16.xlu0 %v4881
        %v4883 = vpop.xlane.xlu0 %4882
        %v4884 = vmax.bf16 %v4620, %v4621
        %4885 = vmax.xlane.bf16.xlu0 %v4884
        %v4886 = vpop.xlane.xlu0 %4885
        %v4887 = vmax.bf16 %v4622, %v4623
        %4888 = vmax.xlane.bf16.xlu0 %v4887
        %v4889 = vpop.xlane.xlu0 %4888
        %v4890 = vmax.bf16 %v4624, %v4625
        %4891 = vmax.xlane.bf16.xlu0 %v4890
        %v4892 = vpop.xlane.xlu0 %4891
        %v4893 = vmax.bf16 %v4626, %v4627
        %4894 = vmax.xlane.bf16.xlu0 %v4893
        %v4895 = vpop.xlane.xlu0 %4894
        %v4896 = vmax.bf16 %v4628, %v4629
        %4897 = vmax.xlane.bf16.xlu0 %v4896
        %v4898 = vpop.xlane.xlu0 %4897
        %v4899 = vmax.bf16 %v4630, %v4631
        %4900 = vmax.xlane.bf16.xlu0 %v4899
        %v4901 = vpop.xlane.xlu0 %4900
        %v4902 = vmax.bf16 %v4632, %v4633
        %4903 = vmax.xlane.bf16.xlu0 %v4902
        %v4904 = vpop.xlane.xlu0 %4903
        %v4905 = vmax.bf16 %v4634, %v4635
        %4906 = vmax.xlane.bf16.xlu0 %v4905
        %v4907 = vpop.xlane.xlu0 %4906
        %v4908 = vmax.bf16 %v4636, %v4637
        %4909 = vmax.xlane.bf16.xlu0 %v4908
        %v4910 = vpop.xlane.xlu0 %4909
        %v4911 = vmax.bf16 %v4638, %v4639
        %4912 = vmax.xlane.bf16.xlu0 %v4911
        %v4913 = vpop.xlane.xlu0 %4912
        %v4914 = vmax.bf16 %v4640, %v4641
        %4915 = vmax.xlane.bf16.xlu0 %v4914
        %v4916 = vpop.xlane.xlu0 %4915
        %v4917 = vmax.bf16 %v4642, %v4643
        %4918 = vmax.xlane.bf16.xlu0 %v4917
        %v4919 = vpop.xlane.xlu0 %4918
        %v4920 = vmax.bf16 %v4644, %v4645
        %4921 = vmax.xlane.bf16.xlu0 %v4920
        %v4922 = vpop.xlane.xlu0 %4921
        %v4923 = vmax.bf16 %v4646, %v4647
        %4924 = vmax.xlane.bf16.xlu0 %v4923
        %v4925 = vpop.xlane.xlu0 %4924
        %v4926 = vmax.bf16 %v4648, %v4649
        %4927 = vmax.xlane.bf16.xlu0 %v4926
        %v4928 = vpop.xlane.xlu0 %4927
        %v4929 = vmax.bf16 %v4650, %v4651
        %4930 = vmax.xlane.bf16.xlu0 %v4929
        %v4931 = vpop.xlane.xlu0 %4930
        %v4932 = vmax.bf16 %v4652, %v4653
        %4933 = vmax.xlane.bf16.xlu0 %v4932
        %v4934 = vpop.xlane.xlu0 %4933
        %v4935 = vmax.bf16 %v4654, %v4655
        %4936 = vmax.xlane.bf16.xlu0 %v4935
        %v4937 = vpop.xlane.xlu0 %4936
        %v4938 = vmax.bf16 %v4656, %v4657
        %4939 = vmax.xlane.bf16.xlu0 %v4938
        %v4940 = vpop.xlane.xlu0 %4939
        %v4941 = vmax.bf16 %v4658, %v4659
        %4942 = vmax.xlane.bf16.xlu0 %v4941
        %v4943 = vpop.xlane.xlu0 %4942
        %v4944 = vmax.bf16 %v4660, %v4661
        %4945 = vmax.xlane.bf16.xlu0 %v4944
        %v4946 = vpop.xlane.xlu0 %4945
        %v4947 = vmax.bf16 %v4662, %v4663
        %4948 = vmax.xlane.bf16.xlu0 %v4947
        %v4949 = vpop.xlane.xlu0 %4948
        %v4950 = vmax.bf16 %v4664, %v4665
        %4951 = vmax.xlane.bf16.xlu0 %v4950
        %v4952 = vpop.xlane.xlu0 %4951
        %v4953 = vmax.bf16 %v4666, %v4667
        %4954 = vmax.xlane.bf16.xlu0 %v4953
        %v4955 = vpop.xlane.xlu0 %4954
        %v4956 = vmax.bf16 %v4668, %v4669
        %4957 = vmax.xlane.bf16.xlu0 %v4956
        %v4958 = vpop.xlane.xlu0 %4957
        %v4959 = vmax.bf16 %v4670, %v4671
        %4960 = vmax.xlane.bf16.xlu0 %v4959
        %v4961 = vpop.xlane.xlu0 %4960
        %v4962 = vmax.bf16 %v4672, %v4673
        %4963 = vmax.xlane.bf16.xlu0 %v4962
        %v4964 = vpop.xlane.xlu0 %4963
        %v4965 = vmax.bf16 %v4674, %v4675
        %4966 = vmax.xlane.bf16.xlu0 %v4965
        %v4967 = vpop.xlane.xlu0 %4966
        %v4968 = vmax.bf16 %v4676, %v4677
        %4969 = vmax.xlane.bf16.xlu0 %v4968
        %v4970 = vpop.xlane.xlu0 %4969
        %v4971 = vmax.bf16 %v4678, %v4679
        %4972 = vmax.xlane.bf16.xlu0 %v4971
        %v4973 = vpop.xlane.xlu0 %4972
        %v4974 = vmax.bf16 %v4680, %v4681
        %4975 = vmax.xlane.bf16.xlu0 %v4974
        %v4976 = vpop.xlane.xlu0 %4975
        %v4977 = vmax.bf16 %v4682, %v4683
        %4978 = vmax.xlane.bf16.xlu0 %v4977
        %v4979 = vpop.xlane.xlu0 %4978
        %v4980 = vmax.bf16 %v4684, %v4685
        %4981 = vmax.xlane.bf16.xlu0 %v4980
        %v4982 = vpop.xlane.xlu0 %4981
        %v4983 = vmax.bf16 %v4686, %v4687
        %4984 = vmax.xlane.bf16.xlu0 %v4983
        %v4985 = vpop.xlane.xlu0 %4984
        %v4986 = vmax.bf16 %v4688, %v4689
        %4987 = vmax.xlane.bf16.xlu0 %v4986
        %v4988 = vpop.xlane.xlu0 %4987
        %v4989 = vmax.bf16 %v4690, %v4691
        %4990 = vmax.xlane.bf16.xlu0 %v4989
        %v4991 = vpop.xlane.xlu0 %4990
        %v4992 = vmax.bf16 %v4692, %v4693
        %4993 = vmax.xlane.bf16.xlu0 %v4992
        %v4994 = vpop.xlane.xlu0 %4993
        %v4995 = vmax.bf16 %v4694, %v4695
        %4996 = vmax.xlane.bf16.xlu0 %v4995
        %v4997 = vpop.xlane.xlu0 %4996
        %v4998 = vmax.bf16 %v4696, %v4697
        %4999 = vmax.xlane.bf16.xlu0 %v4998
        %v5000 = vpop.xlane.xlu0 %4999
        %v5001 = vmax.bf16 %v4698, %v4699
        %5002 = vmax.xlane.bf16.xlu0 %v5001
        %v5003 = vpop.xlane.xlu0 %5002
        %v5004 = vmax.bf16 %v4700, %v4701
        %5005 = vmax.xlane.bf16.xlu0 %v5004
        %v5006 = vpop.xlane.xlu0 %5005
        %v5007 = vmax.bf16 %v4702, %v4703
        %5008 = vmax.xlane.bf16.xlu0 %v5007
        %v5009 = vpop.xlane.xlu0 %5008
        %v5010 = vmax.bf16 %v4704, %v4705
        %5011 = vmax.xlane.bf16.xlu0 %v5010
        %v5012 = vpop.xlane.xlu0 %5011
        %v5013 = vmax.bf16 %v4706, %v4707
        %5014 = vmax.xlane.bf16.xlu0 %v5013
        %v5015 = vpop.xlane.xlu0 %5014
        %v5016 = vmax.bf16 %v4708, %v4709
        %5017 = vmax.xlane.bf16.xlu0 %v5016
        %v5018 = vpop.xlane.xlu0 %5017
        %v5019 = vmax.bf16 %v4710, %v4711
        %5020 = vmax.xlane.bf16.xlu0 %v5019
        %v5021 = vpop.xlane.xlu0 %5020
        %v5022 = vmax.bf16 %v4712, %v4713
        %5023 = vmax.xlane.bf16.xlu0 %v5022
        %v5024 = vpop.xlane.xlu0 %5023
        %v5025 = vmax.bf16 %v4714, %v4715
        %5026 = vmax.xlane.bf16.xlu0 %v5025
        %v5027 = vpop.xlane.xlu0 %5026
        %v5028 = vmax.bf16 %v4716, %v4717
        %5029 = vmax.xlane.bf16.xlu0 %v5028
        %v5030 = vpop.xlane.xlu0 %5029
        %v5031 = vmax.bf16 %v4718, %v4719
        %5032 = vmax.xlane.bf16.xlu0 %v5031
        %v5033 = vpop.xlane.xlu0 %5032
        %v5034 = vmax.bf16 %v4720, %v4721
        %5035 = vmax.xlane.bf16.xlu0 %v5034
        %v5036 = vpop.xlane.xlu0 %5035
        %v5037 = vmax.bf16 %v4722, %v4723
        %5038 = vmax.xlane.bf16.xlu0 %v5037
        %v5039 = vpop.xlane.xlu0 %5038
        %v5040 = vmax.bf16 %v4724, %v4725
        %5041 = vmax.xlane.bf16.xlu0 %v5040
        %v5042 = vpop.xlane.xlu0 %5041
        %v5043 = vmax.bf16 %v4726, %v4727
        %5044 = vmax.xlane.bf16.xlu0 %v5043
        %v5045 = vpop.xlane.xlu0 %5044
        %v5046 = vmax.bf16 %v4728, %v4729
        %5047 = vmax.xlane.bf16.xlu0 %v5046
        %v5048 = vpop.xlane.xlu0 %5047
        %v5049 = vmax.bf16 %v4730, %v4731
        %5050 = vmax.xlane.bf16.xlu0 %v5049
        %v5051 = vpop.xlane.xlu0 %5050
        %v5116 = vlaneseq
        %v5117 = vshrl.u32 %v5116, 7
        %v5118 = vsub.s32 0, %v5117
        %v5119 = vrot.slane %v4862, %v5118
        %v5120 = vlaneseq
        %v5121 = vshrl.u32 %v5120, 7
        %v5122 = vsub.s32 1, %v5121
        %v5123 = vrot.slane %v4862, %v5122
        %v5124 = vlaneseq
        %v5125 = vshrl.u32 %v5124, 7
        %v5126 = vsub.s32 2, %v5125
        %v5127 = vrot.slane %v4862, %v5126
        %v5128 = vlaneseq
        %v5129 = vshrl.u32 %v5128, 7
        %v5130 = vsub.s32 3, %v5129
        %v5131 = vrot.slane %v4862, %v5130
        %v5132 = vlaneseq
        %v5133 = vshrl.u32 %v5132, 7
        %v5134 = vsub.s32 4, %v5133
        %v5135 = vrot.slane %v4862, %v5134
        %v5136 = vlaneseq
        %v5137 = vshrl.u32 %v5136, 7
        %v5138 = vsub.s32 5, %v5137
        %v5139 = vrot.slane %v4862, %v5138
        %v5140 = vlaneseq
        %v5141 = vshrl.u32 %v5140, 7
        %v5142 = vsub.s32 6, %v5141
        %v5143 = vrot.slane %v4862, %v5142
        %v5144 = vlaneseq
        %v5145 = vshrl.u32 %v5144, 7
        %v5146 = vsub.s32 7, %v5145
        %v5147 = vrot.slane %v4862, %v5146
        %v5148 = vlaneseq
        %v5149 = vshrl.u32 %v5148, 7
        %v5150 = vsub.s32 0, %v5149
        %v5151 = vrot.slane %v4865, %v5150
        %v5152 = vlaneseq
        %v5153 = vshrl.u32 %v5152, 7
        %v5154 = vsub.s32 1, %v5153
        %v5155 = vrot.slane %v4865, %v5154
        %v5156 = vlaneseq
        %v5157 = vshrl.u32 %v5156, 7
        %v5158 = vsub.s32 2, %v5157
        %v5159 = vrot.slane %v4865, %v5158
        %v5160 = vlaneseq
        %v5161 = vshrl.u32 %v5160, 7
        %v5162 = vsub.s32 3, %v5161
        %v5163 = vrot.slane %v4865, %v5162
        %v5164 = vlaneseq
        %v5165 = vshrl.u32 %v5164, 7
        %v5166 = vsub.s32 4, %v5165
        %v5167 = vrot.slane %v4865, %v5166
        %v5168 = vlaneseq
        %v5169 = vshrl.u32 %v5168, 7
        %v5170 = vsub.s32 5, %v5169
        %v5171 = vrot.slane %v4865, %v5170
        %v5172 = vlaneseq
        %v5173 = vshrl.u32 %v5172, 7
        %v5174 = vsub.s32 6, %v5173
        %v5175 = vrot.slane %v4865, %v5174
        %v5176 = vlaneseq
        %v5177 = vshrl.u32 %v5176, 7
        %v5178 = vsub.s32 7, %v5177
        %v5179 = vrot.slane %v4865, %v5178
        %v5180 = vlaneseq
        %v5181 = vshrl.u32 %v5180, 7
        %v5182 = vsub.s32 0, %v5181
        %v5183 = vrot.slane %v4868, %v5182
        %v5184 = vlaneseq
        %v5185 = vshrl.u32 %v5184, 7
        %v5186 = vsub.s32 1, %v5185
        %v5187 = vrot.slane %v4868, %v5186
        %v5188 = vlaneseq
        %v5189 = vshrl.u32 %v5188, 7
        %v5190 = vsub.s32 2, %v5189
        %v5191 = vrot.slane %v4868, %v5190
        %v5192 = vlaneseq
        %v5193 = vshrl.u32 %v5192, 7
        %v5194 = vsub.s32 3, %v5193
        %v5195 = vrot.slane %v4868, %v5194
        %v5196 = vlaneseq
        %v5197 = vshrl.u32 %v5196, 7
        %v5198 = vsub.s32 4, %v5197
        %v5199 = vrot.slane %v4868, %v5198
        %v5200 = vlaneseq
        %v5201 = vshrl.u32 %v5200, 7
        %v5202 = vsub.s32 5, %v5201
        %v5203 = vrot.slane %v4868, %v5202
        %v5204 = vlaneseq
        %v5205 = vshrl.u32 %v5204, 7
        %v5206 = vsub.s32 6, %v5205
        %v5207 = vrot.slane %v4868, %v5206
        %v5208 = vlaneseq
        %v5209 = vshrl.u32 %v5208, 7
        %v5210 = vsub.s32 7, %v5209
        %v5211 = vrot.slane %v4868, %v5210
        %v5212 = vlaneseq
        %v5213 = vshrl.u32 %v5212, 7
        %v5214 = vsub.s32 0, %v5213
        %v5215 = vrot.slane %v4871, %v5214
        %v5216 = vlaneseq
        %v5217 = vshrl.u32 %v5216, 7
        %v5218 = vsub.s32 1, %v5217
        %v5219 = vrot.slane %v4871, %v5218
        %v5220 = vlaneseq
        %v5221 = vshrl.u32 %v5220, 7
        %v5222 = vsub.s32 2, %v5221
        %v5223 = vrot.slane %v4871, %v5222
        %v5224 = vlaneseq
        %v5225 = vshrl.u32 %v5224, 7
        %v5226 = vsub.s32 3, %v5225
        %v5227 = vrot.slane %v4871, %v5226
        %v5228 = vlaneseq
        %v5229 = vshrl.u32 %v5228, 7
        %v5230 = vsub.s32 4, %v5229
        %v5231 = vrot.slane %v4871, %v5230
        %v5232 = vlaneseq
        %v5233 = vshrl.u32 %v5232, 7
        %v5234 = vsub.s32 5, %v5233
        %v5235 = vrot.slane %v4871, %v5234
        %v5236 = vlaneseq
        %v5237 = vshrl.u32 %v5236, 7
        %v5238 = vsub.s32 6, %v5237
        %v5239 = vrot.slane %v4871, %v5238
        %v5240 = vlaneseq
        %v5241 = vshrl.u32 %v5240, 7
        %v5242 = vsub.s32 7, %v5241
        %v5243 = vrot.slane %v4871, %v5242
        %v5244 = vlaneseq
        %v5245 = vshrl.u32 %v5244, 7
        %v5246 = vsub.s32 0, %v5245
        %v5247 = vrot.slane %v4874, %v5246
        %v5248 = vlaneseq
        %v5249 = vshrl.u32 %v5248, 7
        %v5250 = vsub.s32 1, %v5249
        %v5251 = vrot.slane %v4874, %v5250
        %v5252 = vlaneseq
        %v5253 = vshrl.u32 %v5252, 7
        %v5254 = vsub.s32 2, %v5253
        %v5255 = vrot.slane %v4874, %v5254
        %v5256 = vlaneseq
        %v5257 = vshrl.u32 %v5256, 7
        %v5258 = vsub.s32 3, %v5257
        %v5259 = vrot.slane %v4874, %v5258
        %v5260 = vlaneseq
        %v5261 = vshrl.u32 %v5260, 7
        %v5262 = vsub.s32 4, %v5261
        %v5263 = vrot.slane %v4874, %v5262
        %v5264 = vlaneseq
        %v5265 = vshrl.u32 %v5264, 7
        %v5266 = vsub.s32 5, %v5265
        %v5267 = vrot.slane %v4874, %v5266
        %v5268 = vlaneseq
        %v5269 = vshrl.u32 %v5268, 7
        %v5270 = vsub.s32 6, %v5269
        %v5271 = vrot.slane %v4874, %v5270
        %v5272 = vlaneseq
        %v5273 = vshrl.u32 %v5272, 7
        %v5274 = vsub.s32 7, %v5273
        %v5275 = vrot.slane %v4874, %v5274
        %v5276 = vlaneseq
        %v5277 = vshrl.u32 %v5276, 7
        %v5278 = vsub.s32 0, %v5277
        %v5279 = vrot.slane %v4877, %v5278
        %v5280 = vlaneseq
        %v5281 = vshrl.u32 %v5280, 7
        %v5282 = vsub.s32 1, %v5281
        %v5283 = vrot.slane %v4877, %v5282
        %v5284 = vlaneseq
        %v5285 = vshrl.u32 %v5284, 7
        %v5286 = vsub.s32 2, %v5285
        %v5287 = vrot.slane %v4877, %v5286
        %v5288 = vlaneseq
        %v5289 = vshrl.u32 %v5288, 7
        %v5290 = vsub.s32 3, %v5289
        %v5291 = vrot.slane %v4877, %v5290
        %v5292 = vlaneseq
        %v5293 = vshrl.u32 %v5292, 7
        %v5294 = vsub.s32 4, %v5293
        %v5295 = vrot.slane %v4877, %v5294
        %v5296 = vlaneseq
        %v5297 = vshrl.u32 %v5296, 7
        %v5298 = vsub.s32 5, %v5297
        %v5299 = vrot.slane %v4877, %v5298
        %v5300 = vlaneseq
        %v5301 = vshrl.u32 %v5300, 7
        %v5302 = vsub.s32 6, %v5301
        %v5303 = vrot.slane %v4877, %v5302
        %v5304 = vlaneseq
        %v5305 = vshrl.u32 %v5304, 7
        %v5306 = vsub.s32 7, %v5305
        %v5307 = vrot.slane %v4877, %v5306
        %v5308 = vlaneseq
        %v5309 = vshrl.u32 %v5308, 7
        %v5310 = vsub.s32 0, %v5309
        %v5311 = vrot.slane %v4880, %v5310
        %v5312 = vlaneseq
        %v5313 = vshrl.u32 %v5312, 7
        %v5314 = vsub.s32 1, %v5313
        %v5315 = vrot.slane %v4880, %v5314
        %v5316 = vlaneseq
        %v5317 = vshrl.u32 %v5316, 7
        %v5318 = vsub.s32 2, %v5317
        %v5319 = vrot.slane %v4880, %v5318
        %v5320 = vlaneseq
        %v5321 = vshrl.u32 %v5320, 7
        %v5322 = vsub.s32 3, %v5321
        %v5323 = vrot.slane %v4880, %v5322
        %v5324 = vlaneseq
        %v5325 = vshrl.u32 %v5324, 7
        %v5326 = vsub.s32 4, %v5325
        %v5327 = vrot.slane %v4880, %v5326
        %v5328 = vlaneseq
        %v5329 = vshrl.u32 %v5328, 7
        %v5330 = vsub.s32 5, %v5329
        %v5331 = vrot.slane %v4880, %v5330
        %v5332 = vlaneseq
        %v5333 = vshrl.u32 %v5332, 7
        %v5334 = vsub.s32 6, %v5333
        %v5335 = vrot.slane %v4880, %v5334
        %v5336 = vlaneseq
        %v5337 = vshrl.u32 %v5336, 7
        %v5338 = vsub.s32 7, %v5337
        %v5339 = vrot.slane %v4880, %v5338
        %v5340 = vlaneseq
        %v5341 = vshrl.u32 %v5340, 7
        %v5342 = vsub.s32 0, %v5341
        %v5343 = vrot.slane %v4883, %v5342
        %v5344 = vlaneseq
        %v5345 = vshrl.u32 %v5344, 7
        %v5346 = vsub.s32 1, %v5345
        %v5347 = vrot.slane %v4883, %v5346
        %v5348 = vlaneseq
        %v5349 = vshrl.u32 %v5348, 7
        %v5350 = vsub.s32 2, %v5349
        %v5351 = vrot.slane %v4883, %v5350
        %v5352 = vlaneseq
        %v5353 = vshrl.u32 %v5352, 7
        %v5354 = vsub.s32 3, %v5353
        %v5355 = vrot.slane %v4883, %v5354
        %v5356 = vlaneseq
        %v5357 = vshrl.u32 %v5356, 7
        %v5358 = vsub.s32 4, %v5357
        %v5359 = vrot.slane %v4883, %v5358
        %v5360 = vlaneseq
        %v5361 = vshrl.u32 %v5360, 7
        %v5362 = vsub.s32 5, %v5361
        %v5363 = vrot.slane %v4883, %v5362
        %v5364 = vlaneseq
        %v5365 = vshrl.u32 %v5364, 7
        %v5366 = vsub.s32 6, %v5365
        %v5367 = vrot.slane %v4883, %v5366
        %v5368 = vlaneseq
        %v5369 = vshrl.u32 %v5368, 7
        %v5370 = vsub.s32 7, %v5369
        %v5371 = vrot.slane %v4883, %v5370
        %v5372 = vlaneseq
        %v5373 = vshrl.u32 %v5372, 7
        %v5374 = vsub.s32 0, %v5373
        %v5375 = vrot.slane %v4886, %v5374
        %v5376 = vlaneseq
        %v5377 = vshrl.u32 %v5376, 7
        %v5378 = vsub.s32 1, %v5377
        %v5379 = vrot.slane %v4886, %v5378
        %v5380 = vlaneseq
        %v5381 = vshrl.u32 %v5380, 7
        %v5382 = vsub.s32 2, %v5381
        %v5383 = vrot.slane %v4886, %v5382
        %v5384 = vlaneseq
        %v5385 = vshrl.u32 %v5384, 7
        %v5386 = vsub.s32 3, %v5385
        %v5387 = vrot.slane %v4886, %v5386
        %v5388 = vlaneseq
        %v5389 = vshrl.u32 %v5388, 7
        %v5390 = vsub.s32 4, %v5389
        %v5391 = vrot.slane %v4886, %v5390
        %v5392 = vlaneseq
        %v5393 = vshrl.u32 %v5392, 7
        %v5394 = vsub.s32 5, %v5393
        %v5395 = vrot.slane %v4886, %v5394
        %v5396 = vlaneseq
        %v5397 = vshrl.u32 %v5396, 7
        %v5398 = vsub.s32 6, %v5397
        %v5399 = vrot.slane %v4886, %v5398
        %v5400 = vlaneseq
        %v5401 = vshrl.u32 %v5400, 7
        %v5402 = vsub.s32 7, %v5401
        %v5403 = vrot.slane %v4886, %v5402
        %v5404 = vlaneseq
        %v5405 = vshrl.u32 %v5404, 7
        %v5406 = vsub.s32 0, %v5405
        %v5407 = vrot.slane %v4889, %v5406
        %v5408 = vlaneseq
        %v5409 = vshrl.u32 %v5408, 7
        %v5410 = vsub.s32 1, %v5409
        %v5411 = vrot.slane %v4889, %v5410
        %v5412 = vlaneseq
        %v5413 = vshrl.u32 %v5412, 7
        %v5414 = vsub.s32 2, %v5413
        %v5415 = vrot.slane %v4889, %v5414
        %v5416 = vlaneseq
        %v5417 = vshrl.u32 %v5416, 7
        %v5418 = vsub.s32 3, %v5417
        %v5419 = vrot.slane %v4889, %v5418
        %v5420 = vlaneseq
        %v5421 = vshrl.u32 %v5420, 7
        %v5422 = vsub.s32 4, %v5421
        %v5423 = vrot.slane %v4889, %v5422
        %v5424 = vlaneseq
        %v5425 = vshrl.u32 %v5424, 7
        %v5426 = vsub.s32 5, %v5425
        %v5427 = vrot.slane %v4889, %v5426
        %v5428 = vlaneseq
        %v5429 = vshrl.u32 %v5428, 7
        %v5430 = vsub.s32 6, %v5429
        %v5431 = vrot.slane %v4889, %v5430
        %v5432 = vlaneseq
        %v5433 = vshrl.u32 %v5432, 7
        %v5434 = vsub.s32 7, %v5433
        %v5435 = vrot.slane %v4889, %v5434
        %v5436 = vlaneseq
        %v5437 = vshrl.u32 %v5436, 7
        %v5438 = vsub.s32 0, %v5437
        %v5439 = vrot.slane %v4892, %v5438
        %v5440 = vlaneseq
        %v5441 = vshrl.u32 %v5440, 7
        %v5442 = vsub.s32 1, %v5441
        %v5443 = vrot.slane %v4892, %v5442
        %v5444 = vlaneseq
        %v5445 = vshrl.u32 %v5444, 7
        %v5446 = vsub.s32 2, %v5445
        %v5447 = vrot.slane %v4892, %v5446
        %v5448 = vlaneseq
        %v5449 = vshrl.u32 %v5448, 7
        %v5450 = vsub.s32 3, %v5449
        %v5451 = vrot.slane %v4892, %v5450
        %v5452 = vlaneseq
        %v5453 = vshrl.u32 %v5452, 7
        %v5454 = vsub.s32 4, %v5453
        %v5455 = vrot.slane %v4892, %v5454
        %v5456 = vlaneseq
        %v5457 = vshrl.u32 %v5456, 7
        %v5458 = vsub.s32 5, %v5457
        %v5459 = vrot.slane %v4892, %v5458
        %v5460 = vlaneseq
        %v5461 = vshrl.u32 %v5460, 7
        %v5462 = vsub.s32 6, %v5461
        %v5463 = vrot.slane %v4892, %v5462
        %v5464 = vlaneseq
        %v5465 = vshrl.u32 %v5464, 7
        %v5466 = vsub.s32 7, %v5465
        %v5467 = vrot.slane %v4892, %v5466
        %v5468 = vlaneseq
        %v5469 = vshrl.u32 %v5468, 7
        %v5470 = vsub.s32 0, %v5469
        %v5471 = vrot.slane %v4895, %v5470
        %v5472 = vlaneseq
        %v5473 = vshrl.u32 %v5472, 7
        %v5474 = vsub.s32 1, %v5473
        %v5475 = vrot.slane %v4895, %v5474
        %v5476 = vlaneseq
        %v5477 = vshrl.u32 %v5476, 7
        %v5478 = vsub.s32 2, %v5477
        %v5479 = vrot.slane %v4895, %v5478
        %v5480 = vlaneseq
        %v5481 = vshrl.u32 %v5480, 7
        %v5482 = vsub.s32 3, %v5481
        %v5483 = vrot.slane %v4895, %v5482
        %v5484 = vlaneseq
        %v5485 = vshrl.u32 %v5484, 7
        %v5486 = vsub.s32 4, %v5485
        %v5487 = vrot.slane %v4895, %v5486
        %v5488 = vlaneseq
        %v5489 = vshrl.u32 %v5488, 7
        %v5490 = vsub.s32 5, %v5489
        %v5491 = vrot.slane %v4895, %v5490
        %v5492 = vlaneseq
        %v5493 = vshrl.u32 %v5492, 7
        %v5494 = vsub.s32 6, %v5493
        %v5495 = vrot.slane %v4895, %v5494
        %v5496 = vlaneseq
        %v5497 = vshrl.u32 %v5496, 7
        %v5498 = vsub.s32 7, %v5497
        %v5499 = vrot.slane %v4895, %v5498
        %v5500 = vlaneseq
        %v5501 = vshrl.u32 %v5500, 7
        %v5502 = vsub.s32 0, %v5501
        %v5503 = vrot.slane %v4898, %v5502
        %v5504 = vlaneseq
        %v5505 = vshrl.u32 %v5504, 7
        %v5506 = vsub.s32 1, %v5505
        %v5507 = vrot.slane %v4898, %v5506
        %v5508 = vlaneseq
        %v5509 = vshrl.u32 %v5508, 7
        %v5510 = vsub.s32 2, %v5509
        %v5511 = vrot.slane %v4898, %v5510
        %v5512 = vlaneseq
        %v5513 = vshrl.u32 %v5512, 7
        %v5514 = vsub.s32 3, %v5513
        %v5515 = vrot.slane %v4898, %v5514
        %v5516 = vlaneseq
        %v5517 = vshrl.u32 %v5516, 7
        %v5518 = vsub.s32 4, %v5517
        %v5519 = vrot.slane %v4898, %v5518
        %v5520 = vlaneseq
        %v5521 = vshrl.u32 %v5520, 7
        %v5522 = vsub.s32 5, %v5521
        %v5523 = vrot.slane %v4898, %v5522
        %v5524 = vlaneseq
        %v5525 = vshrl.u32 %v5524, 7
        %v5526 = vsub.s32 6, %v5525
        %v5527 = vrot.slane %v4898, %v5526
        %v5528 = vlaneseq
        %v5529 = vshrl.u32 %v5528, 7
        %v5530 = vsub.s32 7, %v5529
        %v5531 = vrot.slane %v4898, %v5530
        %v5532 = vlaneseq
        %v5533 = vshrl.u32 %v5532, 7
        %v5534 = vsub.s32 0, %v5533
        %v5535 = vrot.slane %v4901, %v5534
        %v5536 = vlaneseq
        %v5537 = vshrl.u32 %v5536, 7
        %v5538 = vsub.s32 1, %v5537
        %v5539 = vrot.slane %v4901, %v5538
        %v5540 = vlaneseq
        %v5541 = vshrl.u32 %v5540, 7
        %v5542 = vsub.s32 2, %v5541
        %v5543 = vrot.slane %v4901, %v5542
        %v5544 = vlaneseq
        %v5545 = vshrl.u32 %v5544, 7
        %v5546 = vsub.s32 3, %v5545
        %v5547 = vrot.slane %v4901, %v5546
        %v5548 = vlaneseq
        %v5549 = vshrl.u32 %v5548, 7
        %v5550 = vsub.s32 4, %v5549
        %v5551 = vrot.slane %v4901, %v5550
        %v5552 = vlaneseq
        %v5553 = vshrl.u32 %v5552, 7
        %v5554 = vsub.s32 5, %v5553
        %v5555 = vrot.slane %v4901, %v5554
        %v5556 = vlaneseq
        %v5557 = vshrl.u32 %v5556, 7
        %v5558 = vsub.s32 6, %v5557
        %v5559 = vrot.slane %v4901, %v5558
        %v5560 = vlaneseq
        %v5561 = vshrl.u32 %v5560, 7
        %v5562 = vsub.s32 7, %v5561
        %v5563 = vrot.slane %v4901, %v5562
        %v5564 = vlaneseq
        %v5565 = vshrl.u32 %v5564, 7
        %v5566 = vsub.s32 0, %v5565
        %v5567 = vrot.slane %v4904, %v5566
        %v5568 = vlaneseq
        %v5569 = vshrl.u32 %v5568, 7
        %v5570 = vsub.s32 1, %v5569
        %v5571 = vrot.slane %v4904, %v5570
        %v5572 = vlaneseq
        %v5573 = vshrl.u32 %v5572, 7
        %v5574 = vsub.s32 2, %v5573
        %v5575 = vrot.slane %v4904, %v5574
        %v5576 = vlaneseq
        %v5577 = vshrl.u32 %v5576, 7
        %v5578 = vsub.s32 3, %v5577
        %v5579 = vrot.slane %v4904, %v5578
        %v5580 = vlaneseq
        %v5581 = vshrl.u32 %v5580, 7
        %v5582 = vsub.s32 4, %v5581
        %v5583 = vrot.slane %v4904, %v5582
        %v5584 = vlaneseq
        %v5585 = vshrl.u32 %v5584, 7
        %v5586 = vsub.s32 5, %v5585
        %v5587 = vrot.slane %v4904, %v5586
        %v5588 = vlaneseq
        %v5589 = vshrl.u32 %v5588, 7
        %v5590 = vsub.s32 6, %v5589
        %v5591 = vrot.slane %v4904, %v5590
        %v5592 = vlaneseq
        %v5593 = vshrl.u32 %v5592, 7
        %v5594 = vsub.s32 7, %v5593
        %v5595 = vrot.slane %v4904, %v5594
        %v5596 = vlaneseq
        %v5597 = vshrl.u32 %v5596, 7
        %v5598 = vsub.s32 0, %v5597
        %v5599 = vrot.slane %v4907, %v5598
        %v5600 = vlaneseq
        %v5601 = vshrl.u32 %v5600, 7
        %v5602 = vsub.s32 1, %v5601
        %v5603 = vrot.slane %v4907, %v5602
        %v5604 = vlaneseq
        %v5605 = vshrl.u32 %v5604, 7
        %v5606 = vsub.s32 2, %v5605
        %v5607 = vrot.slane %v4907, %v5606
        %v5608 = vlaneseq
        %v5609 = vshrl.u32 %v5608, 7
        %v5610 = vsub.s32 3, %v5609
        %v5611 = vrot.slane %v4907, %v5610
        %v5612 = vlaneseq
        %v5613 = vshrl.u32 %v5612, 7
        %v5614 = vsub.s32 4, %v5613
        %v5615 = vrot.slane %v4907, %v5614
        %v5616 = vlaneseq
        %v5617 = vshrl.u32 %v5616, 7
        %v5618 = vsub.s32 5, %v5617
        %v5619 = vrot.slane %v4907, %v5618
        %v5620 = vlaneseq
        %v5621 = vshrl.u32 %v5620, 7
        %v5622 = vsub.s32 6, %v5621
        %v5623 = vrot.slane %v4907, %v5622
        %v5624 = vlaneseq
        %v5625 = vshrl.u32 %v5624, 7
        %v5626 = vsub.s32 7, %v5625
        %v5627 = vrot.slane %v4907, %v5626
        %v5628 = vlaneseq
        %v5629 = vshrl.u32 %v5628, 7
        %v5630 = vsub.s32 0, %v5629
        %v5631 = vrot.slane %v4910, %v5630
        %v5632 = vlaneseq
        %v5633 = vshrl.u32 %v5632, 7
        %v5634 = vsub.s32 1, %v5633
        %v5635 = vrot.slane %v4910, %v5634
        %v5636 = vlaneseq
        %v5637 = vshrl.u32 %v5636, 7
        %v5638 = vsub.s32 2, %v5637
        %v5639 = vrot.slane %v4910, %v5638
        %v5640 = vlaneseq
        %v5641 = vshrl.u32 %v5640, 7
        %v5642 = vsub.s32 3, %v5641
        %v5643 = vrot.slane %v4910, %v5642
        %v5644 = vlaneseq
        %v5645 = vshrl.u32 %v5644, 7
        %v5646 = vsub.s32 4, %v5645
        %v5647 = vrot.slane %v4910, %v5646
        %v5648 = vlaneseq
        %v5649 = vshrl.u32 %v5648, 7
        %v5650 = vsub.s32 5, %v5649
        %v5651 = vrot.slane %v4910, %v5650
        %v5652 = vlaneseq
        %v5653 = vshrl.u32 %v5652, 7
        %v5654 = vsub.s32 6, %v5653
        %v5655 = vrot.slane %v4910, %v5654
        %v5656 = vlaneseq
        %v5657 = vshrl.u32 %v5656, 7
        %v5658 = vsub.s32 7, %v5657
        %v5659 = vrot.slane %v4910, %v5658
        %v5660 = vlaneseq
        %v5661 = vshrl.u32 %v5660, 7
        %v5662 = vsub.s32 0, %v5661
        %v5663 = vrot.slane %v4913, %v5662
        %v5664 = vlaneseq
        %v5665 = vshrl.u32 %v5664, 7
        %v5666 = vsub.s32 1, %v5665
        %v5667 = vrot.slane %v4913, %v5666
        %v5668 = vlaneseq
        %v5669 = vshrl.u32 %v5668, 7
        %v5670 = vsub.s32 2, %v5669
        %v5671 = vrot.slane %v4913, %v5670
        %v5672 = vlaneseq
        %v5673 = vshrl.u32 %v5672, 7
        %v5674 = vsub.s32 3, %v5673
        %v5675 = vrot.slane %v4913, %v5674
        %v5676 = vlaneseq
        %v5677 = vshrl.u32 %v5676, 7
        %v5678 = vsub.s32 4, %v5677
        %v5679 = vrot.slane %v4913, %v5678
        %v5680 = vlaneseq
        %v5681 = vshrl.u32 %v5680, 7
        %v5682 = vsub.s32 5, %v5681
        %v5683 = vrot.slane %v4913, %v5682
        %v5684 = vlaneseq
        %v5685 = vshrl.u32 %v5684, 7
        %v5686 = vsub.s32 6, %v5685
        %v5687 = vrot.slane %v4913, %v5686
        %v5688 = vlaneseq
        %v5689 = vshrl.u32 %v5688, 7
        %v5690 = vsub.s32 7, %v5689
        %v5691 = vrot.slane %v4913, %v5690
        %v5692 = vlaneseq
        %v5693 = vshrl.u32 %v5692, 7
        %v5694 = vsub.s32 0, %v5693
        %v5695 = vrot.slane %v4916, %v5694
        %v5696 = vlaneseq
        %v5697 = vshrl.u32 %v5696, 7
        %v5698 = vsub.s32 1, %v5697
        %v5699 = vrot.slane %v4916, %v5698
        %v5700 = vlaneseq
        %v5701 = vshrl.u32 %v5700, 7
        %v5702 = vsub.s32 2, %v5701
        %v5703 = vrot.slane %v4916, %v5702
        %v5704 = vlaneseq
        %v5705 = vshrl.u32 %v5704, 7
        %v5706 = vsub.s32 3, %v5705
        %v5707 = vrot.slane %v4916, %v5706
        %v5708 = vlaneseq
        %v5709 = vshrl.u32 %v5708, 7
        %v5710 = vsub.s32 4, %v5709
        %v5711 = vrot.slane %v4916, %v5710
        %v5712 = vlaneseq
        %v5713 = vshrl.u32 %v5712, 7
        %v5714 = vsub.s32 5, %v5713
        %v5715 = vrot.slane %v4916, %v5714
        %v5716 = vlaneseq
        %v5717 = vshrl.u32 %v5716, 7
        %v5718 = vsub.s32 6, %v5717
        %v5719 = vrot.slane %v4916, %v5718
        %v5720 = vlaneseq
        %v5721 = vshrl.u32 %v5720, 7
        %v5722 = vsub.s32 7, %v5721
        %v5723 = vrot.slane %v4916, %v5722
        %v5724 = vlaneseq
        %v5725 = vshrl.u32 %v5724, 7
        %v5726 = vsub.s32 0, %v5725
        %v5727 = vrot.slane %v4919, %v5726
        %v5728 = vlaneseq
        %v5729 = vshrl.u32 %v5728, 7
        %v5730 = vsub.s32 1, %v5729
        %v5731 = vrot.slane %v4919, %v5730
        %v5732 = vlaneseq
        %v5733 = vshrl.u32 %v5732, 7
        %v5734 = vsub.s32 2, %v5733
        %v5735 = vrot.slane %v4919, %v5734
        %v5736 = vlaneseq
        %v5737 = vshrl.u32 %v5736, 7
        %v5738 = vsub.s32 3, %v5737
        %v5739 = vrot.slane %v4919, %v5738
        %v5740 = vlaneseq
        %v5741 = vshrl.u32 %v5740, 7
        %v5742 = vsub.s32 4, %v5741
        %v5743 = vrot.slane %v4919, %v5742
        %v5744 = vlaneseq
        %v5745 = vshrl.u32 %v5744, 7
        %v5746 = vsub.s32 5, %v5745
        %v5747 = vrot.slane %v4919, %v5746
        %v5748 = vlaneseq
        %v5749 = vshrl.u32 %v5748, 7
        %v5750 = vsub.s32 6, %v5749
        %v5751 = vrot.slane %v4919, %v5750
        %v5752 = vlaneseq
        %v5753 = vshrl.u32 %v5752, 7
        %v5754 = vsub.s32 7, %v5753
        %v5755 = vrot.slane %v4919, %v5754
        %v5756 = vlaneseq
        %v5757 = vshrl.u32 %v5756, 7
        %v5758 = vsub.s32 0, %v5757
        %v5759 = vrot.slane %v4922, %v5758
        %v5760 = vlaneseq
        %v5761 = vshrl.u32 %v5760, 7
        %v5762 = vsub.s32 1, %v5761
        %v5763 = vrot.slane %v4922, %v5762
        %v5764 = vlaneseq
        %v5765 = vshrl.u32 %v5764, 7
        %v5766 = vsub.s32 2, %v5765
        %v5767 = vrot.slane %v4922, %v5766
        %v5768 = vlaneseq
        %v5769 = vshrl.u32 %v5768, 7
        %v5770 = vsub.s32 3, %v5769
        %v5771 = vrot.slane %v4922, %v5770
        %v5772 = vlaneseq
        %v5773 = vshrl.u32 %v5772, 7
        %v5774 = vsub.s32 4, %v5773
        %v5775 = vrot.slane %v4922, %v5774
        %v5776 = vlaneseq
        %v5777 = vshrl.u32 %v5776, 7
        %v5778 = vsub.s32 5, %v5777
        %v5779 = vrot.slane %v4922, %v5778
        %v5780 = vlaneseq
        %v5781 = vshrl.u32 %v5780, 7
        %v5782 = vsub.s32 6, %v5781
        %v5783 = vrot.slane %v4922, %v5782
        %v5784 = vlaneseq
        %v5785 = vshrl.u32 %v5784, 7
        %v5786 = vsub.s32 7, %v5785
        %v5787 = vrot.slane %v4922, %v5786
        %v5788 = vlaneseq
        %v5789 = vshrl.u32 %v5788, 7
        %v5790 = vsub.s32 0, %v5789
        %v5791 = vrot.slane %v4925, %v5790
        %v5792 = vlaneseq
        %v5793 = vshrl.u32 %v5792, 7
        %v5794 = vsub.s32 1, %v5793
        %v5795 = vrot.slane %v4925, %v5794
        %v5796 = vlaneseq
        %v5797 = vshrl.u32 %v5796, 7
        %v5798 = vsub.s32 2, %v5797
        %v5799 = vrot.slane %v4925, %v5798
        %v5800 = vlaneseq
        %v5801 = vshrl.u32 %v5800, 7
        %v5802 = vsub.s32 3, %v5801
        %v5803 = vrot.slane %v4925, %v5802
        %v5804 = vlaneseq
        %v5805 = vshrl.u32 %v5804, 7
        %v5806 = vsub.s32 4, %v5805
        %v5807 = vrot.slane %v4925, %v5806
        %v5808 = vlaneseq
        %v5809 = vshrl.u32 %v5808, 7
        %v5810 = vsub.s32 5, %v5809
        %v5811 = vrot.slane %v4925, %v5810
        %v5812 = vlaneseq
        %v5813 = vshrl.u32 %v5812, 7
        %v5814 = vsub.s32 6, %v5813
        %v5815 = vrot.slane %v4925, %v5814
        %v5816 = vlaneseq
        %v5817 = vshrl.u32 %v5816, 7
        %v5818 = vsub.s32 7, %v5817
        %v5819 = vrot.slane %v4925, %v5818
        %v5820 = vlaneseq
        %v5821 = vshrl.u32 %v5820, 7
        %v5822 = vsub.s32 0, %v5821
        %v5823 = vrot.slane %v4928, %v5822
        %v5824 = vlaneseq
        %v5825 = vshrl.u32 %v5824, 7
        %v5826 = vsub.s32 1, %v5825
        %v5827 = vrot.slane %v4928, %v5826
        %v5828 = vlaneseq
        %v5829 = vshrl.u32 %v5828, 7
        %v5830 = vsub.s32 2, %v5829
        %v5831 = vrot.slane %v4928, %v5830
        %v5832 = vlaneseq
        %v5833 = vshrl.u32 %v5832, 7
        %v5834 = vsub.s32 3, %v5833
        %v5835 = vrot.slane %v4928, %v5834
        %v5836 = vlaneseq
        %v5837 = vshrl.u32 %v5836, 7
        %v5838 = vsub.s32 4, %v5837
        %v5839 = vrot.slane %v4928, %v5838
        %v5840 = vlaneseq
        %v5841 = vshrl.u32 %v5840, 7
        %v5842 = vsub.s32 5, %v5841
        %v5843 = vrot.slane %v4928, %v5842
        %v5844 = vlaneseq
        %v5845 = vshrl.u32 %v5844, 7
        %v5846 = vsub.s32 6, %v5845
        %v5847 = vrot.slane %v4928, %v5846
        %v5848 = vlaneseq
        %v5849 = vshrl.u32 %v5848, 7
        %v5850 = vsub.s32 7, %v5849
        %v5851 = vrot.slane %v4928, %v5850
        %v5852 = vlaneseq
        %v5853 = vshrl.u32 %v5852, 7
        %v5854 = vsub.s32 0, %v5853
        %v5855 = vrot.slane %v4931, %v5854
        %v5856 = vlaneseq
        %v5857 = vshrl.u32 %v5856, 7
        %v5858 = vsub.s32 1, %v5857
        %v5859 = vrot.slane %v4931, %v5858
        %v5860 = vlaneseq
        %v5861 = vshrl.u32 %v5860, 7
        %v5862 = vsub.s32 2, %v5861
        %v5863 = vrot.slane %v4931, %v5862
        %v5864 = vlaneseq
        %v5865 = vshrl.u32 %v5864, 7
        %v5866 = vsub.s32 3, %v5865
        %v5867 = vrot.slane %v4931, %v5866
        %v5868 = vlaneseq
        %v5869 = vshrl.u32 %v5868, 7
        %v5870 = vsub.s32 4, %v5869
        %v5871 = vrot.slane %v4931, %v5870
        %v5872 = vlaneseq
        %v5873 = vshrl.u32 %v5872, 7
        %v5874 = vsub.s32 5, %v5873
        %v5875 = vrot.slane %v4931, %v5874
        %v5876 = vlaneseq
        %v5877 = vshrl.u32 %v5876, 7
        %v5878 = vsub.s32 6, %v5877
        %v5879 = vrot.slane %v4931, %v5878
        %v5880 = vlaneseq
        %v5881 = vshrl.u32 %v5880, 7
        %v5882 = vsub.s32 7, %v5881
        %v5883 = vrot.slane %v4931, %v5882
        %v5884 = vlaneseq
        %v5885 = vshrl.u32 %v5884, 7
        %v5886 = vsub.s32 0, %v5885
        %v5887 = vrot.slane %v4934, %v5886
        %v5888 = vlaneseq
        %v5889 = vshrl.u32 %v5888, 7
        %v5890 = vsub.s32 1, %v5889
        %v5891 = vrot.slane %v4934, %v5890
        %v5892 = vlaneseq
        %v5893 = vshrl.u32 %v5892, 7
        %v5894 = vsub.s32 2, %v5893
        %v5895 = vrot.slane %v4934, %v5894
        %v5896 = vlaneseq
        %v5897 = vshrl.u32 %v5896, 7
        %v5898 = vsub.s32 3, %v5897
        %v5899 = vrot.slane %v4934, %v5898
        %v5900 = vlaneseq
        %v5901 = vshrl.u32 %v5900, 7
        %v5902 = vsub.s32 4, %v5901
        %v5903 = vrot.slane %v4934, %v5902
        %v5904 = vlaneseq
        %v5905 = vshrl.u32 %v5904, 7
        %v5906 = vsub.s32 5, %v5905
        %v5907 = vrot.slane %v4934, %v5906
        %v5908 = vlaneseq
        %v5909 = vshrl.u32 %v5908, 7
        %v5910 = vsub.s32 6, %v5909
        %v5911 = vrot.slane %v4934, %v5910
        %v5912 = vlaneseq
        %v5913 = vshrl.u32 %v5912, 7
        %v5914 = vsub.s32 7, %v5913
        %v5915 = vrot.slane %v4934, %v5914
        %v5916 = vlaneseq
        %v5917 = vshrl.u32 %v5916, 7
        %v5918 = vsub.s32 0, %v5917
        %v5919 = vrot.slane %v4937, %v5918
        %v5920 = vlaneseq
        %v5921 = vshrl.u32 %v5920, 7
        %v5922 = vsub.s32 1, %v5921
        %v5923 = vrot.slane %v4937, %v5922
        %v5924 = vlaneseq
        %v5925 = vshrl.u32 %v5924, 7
        %v5926 = vsub.s32 2, %v5925
        %v5927 = vrot.slane %v4937, %v5926
        %v5928 = vlaneseq
        %v5929 = vshrl.u32 %v5928, 7
        %v5930 = vsub.s32 3, %v5929
        %v5931 = vrot.slane %v4937, %v5930
        %v5932 = vlaneseq
        %v5933 = vshrl.u32 %v5932, 7
        %v5934 = vsub.s32 4, %v5933
        %v5935 = vrot.slane %v4937, %v5934
        %v5936 = vlaneseq
        %v5937 = vshrl.u32 %v5936, 7
        %v5938 = vsub.s32 5, %v5937
        %v5939 = vrot.slane %v4937, %v5938
        %v5940 = vlaneseq
        %v5941 = vshrl.u32 %v5940, 7
        %v5942 = vsub.s32 6, %v5941
        %v5943 = vrot.slane %v4937, %v5942
        %v5944 = vlaneseq
        %v5945 = vshrl.u32 %v5944, 7
        %v5946 = vsub.s32 7, %v5945
        %v5947 = vrot.slane %v4937, %v5946
        %v5948 = vlaneseq
        %v5949 = vshrl.u32 %v5948, 7
        %v5950 = vsub.s32 0, %v5949
        %v5951 = vrot.slane %v4940, %v5950
        %v5952 = vlaneseq
        %v5953 = vshrl.u32 %v5952, 7
        %v5954 = vsub.s32 1, %v5953
        %v5955 = vrot.slane %v4940, %v5954
        %v5956 = vlaneseq
        %v5957 = vshrl.u32 %v5956, 7
        %v5958 = vsub.s32 2, %v5957
        %v5959 = vrot.slane %v4940, %v5958
        %v5960 = vlaneseq
        %v5961 = vshrl.u32 %v5960, 7
        %v5962 = vsub.s32 3, %v5961
        %v5963 = vrot.slane %v4940, %v5962
        %v5964 = vlaneseq
        %v5965 = vshrl.u32 %v5964, 7
        %v5966 = vsub.s32 4, %v5965
        %v5967 = vrot.slane %v4940, %v5966
        %v5968 = vlaneseq
        %v5969 = vshrl.u32 %v5968, 7
        %v5970 = vsub.s32 5, %v5969
        %v5971 = vrot.slane %v4940, %v5970
        %v5972 = vlaneseq
        %v5973 = vshrl.u32 %v5972, 7
        %v5974 = vsub.s32 6, %v5973
        %v5975 = vrot.slane %v4940, %v5974
        %v5976 = vlaneseq
        %v5977 = vshrl.u32 %v5976, 7
        %v5978 = vsub.s32 7, %v5977
        %v5979 = vrot.slane %v4940, %v5978
        %v5980 = vlaneseq
        %v5981 = vshrl.u32 %v5980, 7
        %v5982 = vsub.s32 0, %v5981
        %v5983 = vrot.slane %v4943, %v5982
        %v5984 = vlaneseq
        %v5985 = vshrl.u32 %v5984, 7
        %v5986 = vsub.s32 1, %v5985
        %v5987 = vrot.slane %v4943, %v5986
        %v5988 = vlaneseq
        %v5989 = vshrl.u32 %v5988, 7
        %v5990 = vsub.s32 2, %v5989
        %v5991 = vrot.slane %v4943, %v5990
        %v5992 = vlaneseq
        %v5993 = vshrl.u32 %v5992, 7
        %v5994 = vsub.s32 3, %v5993
        %v5995 = vrot.slane %v4943, %v5994
        %v5996 = vlaneseq
        %v5997 = vshrl.u32 %v5996, 7
        %v5998 = vsub.s32 4, %v5997
        %v5999 = vrot.slane %v4943, %v5998
        %v6000 = vlaneseq
        %v6001 = vshrl.u32 %v6000, 7
        %v6002 = vsub.s32 5, %v6001
        %v6003 = vrot.slane %v4943, %v6002
        %v6004 = vlaneseq
        %v6005 = vshrl.u32 %v6004, 7
        %v6006 = vsub.s32 6, %v6005
        %v6007 = vrot.slane %v4943, %v6006
        %v6008 = vlaneseq
        %v6009 = vshrl.u32 %v6008, 7
        %v6010 = vsub.s32 7, %v6009
        %v6011 = vrot.slane %v4943, %v6010
        %v6012 = vlaneseq
        %v6013 = vshrl.u32 %v6012, 7
        %v6014 = vsub.s32 0, %v6013
        %v6015 = vrot.slane %v4946, %v6014
        %v6016 = vlaneseq
        %v6017 = vshrl.u32 %v6016, 7
        %v6018 = vsub.s32 1, %v6017
        %v6019 = vrot.slane %v4946, %v6018
        %v6020 = vlaneseq
        %v6021 = vshrl.u32 %v6020, 7
        %v6022 = vsub.s32 2, %v6021
        %v6023 = vrot.slane %v4946, %v6022
        %v6024 = vlaneseq
        %v6025 = vshrl.u32 %v6024, 7
        %v6026 = vsub.s32 3, %v6025
        %v6027 = vrot.slane %v4946, %v6026
        %v6028 = vlaneseq
        %v6029 = vshrl.u32 %v6028, 7
        %v6030 = vsub.s32 4, %v6029
        %v6031 = vrot.slane %v4946, %v6030
        %v6032 = vlaneseq
        %v6033 = vshrl.u32 %v6032, 7
        %v6034 = vsub.s32 5, %v6033
        %v6035 = vrot.slane %v4946, %v6034
        %v6036 = vlaneseq
        %v6037 = vshrl.u32 %v6036, 7
        %v6038 = vsub.s32 6, %v6037
        %v6039 = vrot.slane %v4946, %v6038
        %v6040 = vlaneseq
        %v6041 = vshrl.u32 %v6040, 7
        %v6042 = vsub.s32 7, %v6041
        %v6043 = vrot.slane %v4946, %v6042
        %v6044 = vlaneseq
        %v6045 = vshrl.u32 %v6044, 7
        %v6046 = vsub.s32 0, %v6045
        %v6047 = vrot.slane %v4949, %v6046
        %v6048 = vlaneseq
        %v6049 = vshrl.u32 %v6048, 7
        %v6050 = vsub.s32 1, %v6049
        %v6051 = vrot.slane %v4949, %v6050
        %v6052 = vlaneseq
        %v6053 = vshrl.u32 %v6052, 7
        %v6054 = vsub.s32 2, %v6053
        %v6055 = vrot.slane %v4949, %v6054
        %v6056 = vlaneseq
        %v6057 = vshrl.u32 %v6056, 7
        %v6058 = vsub.s32 3, %v6057
        %v6059 = vrot.slane %v4949, %v6058
        %v6060 = vlaneseq
        %v6061 = vshrl.u32 %v6060, 7
        %v6062 = vsub.s32 4, %v6061
        %v6063 = vrot.slane %v4949, %v6062
        %v6064 = vlaneseq
        %v6065 = vshrl.u32 %v6064, 7
        %v6066 = vsub.s32 5, %v6065
        %v6067 = vrot.slane %v4949, %v6066
        %v6068 = vlaneseq
        %v6069 = vshrl.u32 %v6068, 7
        %v6070 = vsub.s32 6, %v6069
        %v6071 = vrot.slane %v4949, %v6070
        %v6072 = vlaneseq
        %v6073 = vshrl.u32 %v6072, 7
        %v6074 = vsub.s32 7, %v6073
        %v6075 = vrot.slane %v4949, %v6074
        %v6076 = vlaneseq
        %v6077 = vshrl.u32 %v6076, 7
        %v6078 = vsub.s32 0, %v6077
        %v6079 = vrot.slane %v4952, %v6078
        %v6080 = vlaneseq
        %v6081 = vshrl.u32 %v6080, 7
        %v6082 = vsub.s32 1, %v6081
        %v6083 = vrot.slane %v4952, %v6082
        %v6084 = vlaneseq
        %v6085 = vshrl.u32 %v6084, 7
        %v6086 = vsub.s32 2, %v6085
        %v6087 = vrot.slane %v4952, %v6086
        %v6088 = vlaneseq
        %v6089 = vshrl.u32 %v6088, 7
        %v6090 = vsub.s32 3, %v6089
        %v6091 = vrot.slane %v4952, %v6090
        %v6092 = vlaneseq
        %v6093 = vshrl.u32 %v6092, 7
        %v6094 = vsub.s32 4, %v6093
        %v6095 = vrot.slane %v4952, %v6094
        %v6096 = vlaneseq
        %v6097 = vshrl.u32 %v6096, 7
        %v6098 = vsub.s32 5, %v6097
        %v6099 = vrot.slane %v4952, %v6098
        %v6100 = vlaneseq
        %v6101 = vshrl.u32 %v6100, 7
        %v6102 = vsub.s32 6, %v6101
        %v6103 = vrot.slane %v4952, %v6102
        %v6104 = vlaneseq
        %v6105 = vshrl.u32 %v6104, 7
        %v6106 = vsub.s32 7, %v6105
        %v6107 = vrot.slane %v4952, %v6106
        %v6108 = vlaneseq
        %v6109 = vshrl.u32 %v6108, 7
        %v6110 = vsub.s32 0, %v6109
        %v6111 = vrot.slane %v4955, %v6110
        %v6112 = vlaneseq
        %v6113 = vshrl.u32 %v6112, 7
        %v6114 = vsub.s32 1, %v6113
        %v6115 = vrot.slane %v4955, %v6114
        %v6116 = vlaneseq
        %v6117 = vshrl.u32 %v6116, 7
        %v6118 = vsub.s32 2, %v6117
        %v6119 = vrot.slane %v4955, %v6118
        %v6120 = vlaneseq
        %v6121 = vshrl.u32 %v6120, 7
        %v6122 = vsub.s32 3, %v6121
        %v6123 = vrot.slane %v4955, %v6122
        %v6124 = vlaneseq
        %v6125 = vshrl.u32 %v6124, 7
        %v6126 = vsub.s32 4, %v6125
        %v6127 = vrot.slane %v4955, %v6126
        %v6128 = vlaneseq
        %v6129 = vshrl.u32 %v6128, 7
        %v6130 = vsub.s32 5, %v6129
        %v6131 = vrot.slane %v4955, %v6130
        %v6132 = vlaneseq
        %v6133 = vshrl.u32 %v6132, 7
        %v6134 = vsub.s32 6, %v6133
        %v6135 = vrot.slane %v4955, %v6134
        %v6136 = vlaneseq
        %v6137 = vshrl.u32 %v6136, 7
        %v6138 = vsub.s32 7, %v6137
        %v6139 = vrot.slane %v4955, %v6138
        %v6140 = vlaneseq
        %v6141 = vshrl.u32 %v6140, 7
        %v6142 = vsub.s32 0, %v6141
        %v6143 = vrot.slane %v4958, %v6142
        %v6144 = vlaneseq
        %v6145 = vshrl.u32 %v6144, 7
        %v6146 = vsub.s32 1, %v6145
        %v6147 = vrot.slane %v4958, %v6146
        %v6148 = vlaneseq
        %v6149 = vshrl.u32 %v6148, 7
        %v6150 = vsub.s32 2, %v6149
        %v6151 = vrot.slane %v4958, %v6150
        %v6152 = vlaneseq
        %v6153 = vshrl.u32 %v6152, 7
        %v6154 = vsub.s32 3, %v6153
        %v6155 = vrot.slane %v4958, %v6154
        %v6156 = vlaneseq
        %v6157 = vshrl.u32 %v6156, 7
        %v6158 = vsub.s32 4, %v6157
        %v6159 = vrot.slane %v4958, %v6158
        %v6160 = vlaneseq
        %v6161 = vshrl.u32 %v6160, 7
        %v6162 = vsub.s32 5, %v6161
        %v6163 = vrot.slane %v4958, %v6162
        %v6164 = vlaneseq
        %v6165 = vshrl.u32 %v6164, 7
        %v6166 = vsub.s32 6, %v6165
        %v6167 = vrot.slane %v4958, %v6166
        %v6168 = vlaneseq
        %v6169 = vshrl.u32 %v6168, 7
        %v6170 = vsub.s32 7, %v6169
        %v6171 = vrot.slane %v4958, %v6170
        %v6172 = vlaneseq
        %v6173 = vshrl.u32 %v6172, 7
        %v6174 = vsub.s32 0, %v6173
        %v6175 = vrot.slane %v4961, %v6174
        %v6176 = vlaneseq
        %v6177 = vshrl.u32 %v6176, 7
        %v6178 = vsub.s32 1, %v6177
        %v6179 = vrot.slane %v4961, %v6178
        %v6180 = vlaneseq
        %v6181 = vshrl.u32 %v6180, 7
        %v6182 = vsub.s32 2, %v6181
        %v6183 = vrot.slane %v4961, %v6182
        %v6184 = vlaneseq
        %v6185 = vshrl.u32 %v6184, 7
        %v6186 = vsub.s32 3, %v6185
        %v6187 = vrot.slane %v4961, %v6186
        %v6188 = vlaneseq
        %v6189 = vshrl.u32 %v6188, 7
        %v6190 = vsub.s32 4, %v6189
        %v6191 = vrot.slane %v4961, %v6190
        %v6192 = vlaneseq
        %v6193 = vshrl.u32 %v6192, 7
        %v6194 = vsub.s32 5, %v6193
        %v6195 = vrot.slane %v4961, %v6194
        %v6196 = vlaneseq
        %v6197 = vshrl.u32 %v6196, 7
        %v6198 = vsub.s32 6, %v6197
        %v6199 = vrot.slane %v4961, %v6198
        %v6200 = vlaneseq
        %v6201 = vshrl.u32 %v6200, 7
        %v6202 = vsub.s32 7, %v6201
        %v6203 = vrot.slane %v4961, %v6202
        %v6204 = vlaneseq
        %v6205 = vshrl.u32 %v6204, 7
        %v6206 = vsub.s32 0, %v6205
        %v6207 = vrot.slane %v4964, %v6206
        %v6208 = vlaneseq
        %v6209 = vshrl.u32 %v6208, 7
        %v6210 = vsub.s32 1, %v6209
        %v6211 = vrot.slane %v4964, %v6210
        %v6212 = vlaneseq
        %v6213 = vshrl.u32 %v6212, 7
        %v6214 = vsub.s32 2, %v6213
        %v6215 = vrot.slane %v4964, %v6214
        %v6216 = vlaneseq
        %v6217 = vshrl.u32 %v6216, 7
        %v6218 = vsub.s32 3, %v6217
        %v6219 = vrot.slane %v4964, %v6218
        %v6220 = vlaneseq
        %v6221 = vshrl.u32 %v6220, 7
        %v6222 = vsub.s32 4, %v6221
        %v6223 = vrot.slane %v4964, %v6222
        %v6224 = vlaneseq
        %v6225 = vshrl.u32 %v6224, 7
        %v6226 = vsub.s32 5, %v6225
        %v6227 = vrot.slane %v4964, %v6226
        %v6228 = vlaneseq
        %v6229 = vshrl.u32 %v6228, 7
        %v6230 = vsub.s32 6, %v6229
        %v6231 = vrot.slane %v4964, %v6230
        %v6232 = vlaneseq
        %v6233 = vshrl.u32 %v6232, 7
        %v6234 = vsub.s32 7, %v6233
        %v6235 = vrot.slane %v4964, %v6234
        %v6236 = vlaneseq
        %v6237 = vshrl.u32 %v6236, 7
        %v6238 = vsub.s32 0, %v6237
        %v6239 = vrot.slane %v4967, %v6238
        %v6240 = vlaneseq
        %v6241 = vshrl.u32 %v6240, 7
        %v6242 = vsub.s32 1, %v6241
        %v6243 = vrot.slane %v4967, %v6242
        %v6244 = vlaneseq
        %v6245 = vshrl.u32 %v6244, 7
        %v6246 = vsub.s32 2, %v6245
        %v6247 = vrot.slane %v4967, %v6246
        %v6248 = vlaneseq
        %v6249 = vshrl.u32 %v6248, 7
        %v6250 = vsub.s32 3, %v6249
        %v6251 = vrot.slane %v4967, %v6250
        %v6252 = vlaneseq
        %v6253 = vshrl.u32 %v6252, 7
        %v6254 = vsub.s32 4, %v6253
        %v6255 = vrot.slane %v4967, %v6254
        %v6256 = vlaneseq
        %v6257 = vshrl.u32 %v6256, 7
        %v6258 = vsub.s32 5, %v6257
        %v6259 = vrot.slane %v4967, %v6258
        %v6260 = vlaneseq
        %v6261 = vshrl.u32 %v6260, 7
        %v6262 = vsub.s32 6, %v6261
        %v6263 = vrot.slane %v4967, %v6262
        %v6264 = vlaneseq
        %v6265 = vshrl.u32 %v6264, 7
        %v6266 = vsub.s32 7, %v6265
        %v6267 = vrot.slane %v4967, %v6266
        %v6268 = vlaneseq
        %v6269 = vshrl.u32 %v6268, 7
        %v6270 = vsub.s32 0, %v6269
        %v6271 = vrot.slane %v4970, %v6270
        %v6272 = vlaneseq
        %v6273 = vshrl.u32 %v6272, 7
        %v6274 = vsub.s32 1, %v6273
        %v6275 = vrot.slane %v4970, %v6274
        %v6276 = vlaneseq
        %v6277 = vshrl.u32 %v6276, 7
        %v6278 = vsub.s32 2, %v6277
        %v6279 = vrot.slane %v4970, %v6278
        %v6280 = vlaneseq
        %v6281 = vshrl.u32 %v6280, 7
        %v6282 = vsub.s32 3, %v6281
        %v6283 = vrot.slane %v4970, %v6282
        %v6284 = vlaneseq
        %v6285 = vshrl.u32 %v6284, 7
        %v6286 = vsub.s32 4, %v6285
        %v6287 = vrot.slane %v4970, %v6286
        %v6288 = vlaneseq
        %v6289 = vshrl.u32 %v6288, 7
        %v6290 = vsub.s32 5, %v6289
        %v6291 = vrot.slane %v4970, %v6290
        %v6292 = vlaneseq
        %v6293 = vshrl.u32 %v6292, 7
        %v6294 = vsub.s32 6, %v6293
        %v6295 = vrot.slane %v4970, %v6294
        %v6296 = vlaneseq
        %v6297 = vshrl.u32 %v6296, 7
        %v6298 = vsub.s32 7, %v6297
        %v6299 = vrot.slane %v4970, %v6298
        %v6300 = vlaneseq
        %v6301 = vshrl.u32 %v6300, 7
        %v6302 = vsub.s32 0, %v6301
        %v6303 = vrot.slane %v4973, %v6302
        %v6304 = vlaneseq
        %v6305 = vshrl.u32 %v6304, 7
        %v6306 = vsub.s32 1, %v6305
        %v6307 = vrot.slane %v4973, %v6306
        %v6308 = vlaneseq
        %v6309 = vshrl.u32 %v6308, 7
        %v6310 = vsub.s32 2, %v6309
        %v6311 = vrot.slane %v4973, %v6310
        %v6312 = vlaneseq
        %v6313 = vshrl.u32 %v6312, 7
        %v6314 = vsub.s32 3, %v6313
        %v6315 = vrot.slane %v4973, %v6314
        %v6316 = vlaneseq
        %v6317 = vshrl.u32 %v6316, 7
        %v6318 = vsub.s32 4, %v6317
        %v6319 = vrot.slane %v4973, %v6318
        %v6320 = vlaneseq
        %v6321 = vshrl.u32 %v6320, 7
        %v6322 = vsub.s32 5, %v6321
        %v6323 = vrot.slane %v4973, %v6322
        %v6324 = vlaneseq
        %v6325 = vshrl.u32 %v6324, 7
        %v6326 = vsub.s32 6, %v6325
        %v6327 = vrot.slane %v4973, %v6326
        %v6328 = vlaneseq
        %v6329 = vshrl.u32 %v6328, 7
        %v6330 = vsub.s32 7, %v6329
        %v6331 = vrot.slane %v4973, %v6330
        %v6332 = vlaneseq
        %v6333 = vshrl.u32 %v6332, 7
        %v6334 = vsub.s32 0, %v6333
        %v6335 = vrot.slane %v4976, %v6334
        %v6336 = vlaneseq
        %v6337 = vshrl.u32 %v6336, 7
        %v6338 = vsub.s32 1, %v6337
        %v6339 = vrot.slane %v4976, %v6338
        %v6340 = vlaneseq
        %v6341 = vshrl.u32 %v6340, 7
        %v6342 = vsub.s32 2, %v6341
        %v6343 = vrot.slane %v4976, %v6342
        %v6344 = vlaneseq
        %v6345 = vshrl.u32 %v6344, 7
        %v6346 = vsub.s32 3, %v6345
        %v6347 = vrot.slane %v4976, %v6346
        %v6348 = vlaneseq
        %v6349 = vshrl.u32 %v6348, 7
        %v6350 = vsub.s32 4, %v6349
        %v6351 = vrot.slane %v4976, %v6350
        %v6352 = vlaneseq
        %v6353 = vshrl.u32 %v6352, 7
        %v6354 = vsub.s32 5, %v6353
        %v6355 = vrot.slane %v4976, %v6354
        %v6356 = vlaneseq
        %v6357 = vshrl.u32 %v6356, 7
        %v6358 = vsub.s32 6, %v6357
        %v6359 = vrot.slane %v4976, %v6358
        %v6360 = vlaneseq
        %v6361 = vshrl.u32 %v6360, 7
        %v6362 = vsub.s32 7, %v6361
        %v6363 = vrot.slane %v4976, %v6362
        %v6364 = vlaneseq
        %v6365 = vshrl.u32 %v6364, 7
        %v6366 = vsub.s32 0, %v6365
        %v6367 = vrot.slane %v4979, %v6366
        %v6368 = vlaneseq
        %v6369 = vshrl.u32 %v6368, 7
        %v6370 = vsub.s32 1, %v6369
        %v6371 = vrot.slane %v4979, %v6370
        %v6372 = vlaneseq
        %v6373 = vshrl.u32 %v6372, 7
        %v6374 = vsub.s32 2, %v6373
        %v6375 = vrot.slane %v4979, %v6374
        %v6376 = vlaneseq
        %v6377 = vshrl.u32 %v6376, 7
        %v6378 = vsub.s32 3, %v6377
        %v6379 = vrot.slane %v4979, %v6378
        %v6380 = vlaneseq
        %v6381 = vshrl.u32 %v6380, 7
        %v6382 = vsub.s32 4, %v6381
        %v6383 = vrot.slane %v4979, %v6382
        %v6384 = vlaneseq
        %v6385 = vshrl.u32 %v6384, 7
        %v6386 = vsub.s32 5, %v6385
        %v6387 = vrot.slane %v4979, %v6386
        %v6388 = vlaneseq
        %v6389 = vshrl.u32 %v6388, 7
        %v6390 = vsub.s32 6, %v6389
        %v6391 = vrot.slane %v4979, %v6390
        %v6392 = vlaneseq
        %v6393 = vshrl.u32 %v6392, 7
        %v6394 = vsub.s32 7, %v6393
        %v6395 = vrot.slane %v4979, %v6394
        %v6396 = vlaneseq
        %v6397 = vshrl.u32 %v6396, 7
        %v6398 = vsub.s32 0, %v6397
        %v6399 = vrot.slane %v4982, %v6398
        %v6400 = vlaneseq
        %v6401 = vshrl.u32 %v6400, 7
        %v6402 = vsub.s32 1, %v6401
        %v6403 = vrot.slane %v4982, %v6402
        %v6404 = vlaneseq
        %v6405 = vshrl.u32 %v6404, 7
        %v6406 = vsub.s32 2, %v6405
        %v6407 = vrot.slane %v4982, %v6406
        %v6408 = vlaneseq
        %v6409 = vshrl.u32 %v6408, 7
        %v6410 = vsub.s32 3, %v6409
        %v6411 = vrot.slane %v4982, %v6410
        %v6412 = vlaneseq
        %v6413 = vshrl.u32 %v6412, 7
        %v6414 = vsub.s32 4, %v6413
        %v6415 = vrot.slane %v4982, %v6414
        %v6416 = vlaneseq
        %v6417 = vshrl.u32 %v6416, 7
        %v6418 = vsub.s32 5, %v6417
        %v6419 = vrot.slane %v4982, %v6418
        %v6420 = vlaneseq
        %v6421 = vshrl.u32 %v6420, 7
        %v6422 = vsub.s32 6, %v6421
        %v6423 = vrot.slane %v4982, %v6422
        %v6424 = vlaneseq
        %v6425 = vshrl.u32 %v6424, 7
        %v6426 = vsub.s32 7, %v6425
        %v6427 = vrot.slane %v4982, %v6426
        %v6428 = vlaneseq
        %v6429 = vshrl.u32 %v6428, 7
        %v6430 = vsub.s32 0, %v6429
        %v6431 = vrot.slane %v4985, %v6430
        %v6432 = vlaneseq
        %v6433 = vshrl.u32 %v6432, 7
        %v6434 = vsub.s32 1, %v6433
        %v6435 = vrot.slane %v4985, %v6434
        %v6436 = vlaneseq
        %v6437 = vshrl.u32 %v6436, 7
        %v6438 = vsub.s32 2, %v6437
        %v6439 = vrot.slane %v4985, %v6438
        %v6440 = vlaneseq
        %v6441 = vshrl.u32 %v6440, 7
        %v6442 = vsub.s32 3, %v6441
        %v6443 = vrot.slane %v4985, %v6442
        %v6444 = vlaneseq
        %v6445 = vshrl.u32 %v6444, 7
        %v6446 = vsub.s32 4, %v6445
        %v6447 = vrot.slane %v4985, %v6446
        %v6448 = vlaneseq
        %v6449 = vshrl.u32 %v6448, 7
        %v6450 = vsub.s32 5, %v6449
        %v6451 = vrot.slane %v4985, %v6450
        %v6452 = vlaneseq
        %v6453 = vshrl.u32 %v6452, 7
        %v6454 = vsub.s32 6, %v6453
        %v6455 = vrot.slane %v4985, %v6454
        %v6456 = vlaneseq
        %v6457 = vshrl.u32 %v6456, 7
        %v6458 = vsub.s32 7, %v6457
        %v6459 = vrot.slane %v4985, %v6458
        %v6460 = vlaneseq
        %v6461 = vshrl.u32 %v6460, 7
        %v6462 = vsub.s32 0, %v6461
        %v6463 = vrot.slane %v4988, %v6462
        %v6464 = vlaneseq
        %v6465 = vshrl.u32 %v6464, 7
        %v6466 = vsub.s32 1, %v6465
        %v6467 = vrot.slane %v4988, %v6466
        %v6468 = vlaneseq
        %v6469 = vshrl.u32 %v6468, 7
        %v6470 = vsub.s32 2, %v6469
        %v6471 = vrot.slane %v4988, %v6470
        %v6472 = vlaneseq
        %v6473 = vshrl.u32 %v6472, 7
        %v6474 = vsub.s32 3, %v6473
        %v6475 = vrot.slane %v4988, %v6474
        %v6476 = vlaneseq
        %v6477 = vshrl.u32 %v6476, 7
        %v6478 = vsub.s32 4, %v6477
        %v6479 = vrot.slane %v4988, %v6478
        %v6480 = vlaneseq
        %v6481 = vshrl.u32 %v6480, 7
        %v6482 = vsub.s32 5, %v6481
        %v6483 = vrot.slane %v4988, %v6482
        %v6484 = vlaneseq
        %v6485 = vshrl.u32 %v6484, 7
        %v6486 = vsub.s32 6, %v6485
        %v6487 = vrot.slane %v4988, %v6486
        %v6488 = vlaneseq
        %v6489 = vshrl.u32 %v6488, 7
        %v6490 = vsub.s32 7, %v6489
        %v6491 = vrot.slane %v4988, %v6490
        %v6492 = vlaneseq
        %v6493 = vshrl.u32 %v6492, 7
        %v6494 = vsub.s32 0, %v6493
        %v6495 = vrot.slane %v4991, %v6494
        %v6496 = vlaneseq
        %v6497 = vshrl.u32 %v6496, 7
        %v6498 = vsub.s32 1, %v6497
        %v6499 = vrot.slane %v4991, %v6498
        %v6500 = vlaneseq
        %v6501 = vshrl.u32 %v6500, 7
        %v6502 = vsub.s32 2, %v6501
        %v6503 = vrot.slane %v4991, %v6502
        %v6504 = vlaneseq
        %v6505 = vshrl.u32 %v6504, 7
        %v6506 = vsub.s32 3, %v6505
        %v6507 = vrot.slane %v4991, %v6506
        %v6508 = vlaneseq
        %v6509 = vshrl.u32 %v6508, 7
        %v6510 = vsub.s32 4, %v6509
        %v6511 = vrot.slane %v4991, %v6510
        %v6512 = vlaneseq
        %v6513 = vshrl.u32 %v6512, 7
        %v6514 = vsub.s32 5, %v6513
        %v6515 = vrot.slane %v4991, %v6514
        %v6516 = vlaneseq
        %v6517 = vshrl.u32 %v6516, 7
        %v6518 = vsub.s32 6, %v6517
        %v6519 = vrot.slane %v4991, %v6518
        %v6520 = vlaneseq
        %v6521 = vshrl.u32 %v6520, 7
        %v6522 = vsub.s32 7, %v6521
        %v6523 = vrot.slane %v4991, %v6522
        %v6524 = vlaneseq
        %v6525 = vshrl.u32 %v6524, 7
        %v6526 = vsub.s32 0, %v6525
        %v6527 = vrot.slane %v4994, %v6526
        %v6528 = vlaneseq
        %v6529 = vshrl.u32 %v6528, 7
        %v6530 = vsub.s32 1, %v6529
        %v6531 = vrot.slane %v4994, %v6530
        %v6532 = vlaneseq
        %v6533 = vshrl.u32 %v6532, 7
        %v6534 = vsub.s32 2, %v6533
        %v6535 = vrot.slane %v4994, %v6534
        %v6536 = vlaneseq
        %v6537 = vshrl.u32 %v6536, 7
        %v6538 = vsub.s32 3, %v6537
        %v6539 = vrot.slane %v4994, %v6538
        %v6540 = vlaneseq
        %v6541 = vshrl.u32 %v6540, 7
        %v6542 = vsub.s32 4, %v6541
        %v6543 = vrot.slane %v4994, %v6542
        %v6544 = vlaneseq
        %v6545 = vshrl.u32 %v6544, 7
        %v6546 = vsub.s32 5, %v6545
        %v6547 = vrot.slane %v4994, %v6546
        %v6548 = vlaneseq
        %v6549 = vshrl.u32 %v6548, 7
        %v6550 = vsub.s32 6, %v6549
        %v6551 = vrot.slane %v4994, %v6550
        %v6552 = vlaneseq
        %v6553 = vshrl.u32 %v6552, 7
        %v6554 = vsub.s32 7, %v6553
        %v6555 = vrot.slane %v4994, %v6554
        %v6556 = vlaneseq
        %v6557 = vshrl.u32 %v6556, 7
        %v6558 = vsub.s32 0, %v6557
        %v6559 = vrot.slane %v4997, %v6558
        %v6560 = vlaneseq
        %v6561 = vshrl.u32 %v6560, 7
        %v6562 = vsub.s32 1, %v6561
        %v6563 = vrot.slane %v4997, %v6562
        %v6564 = vlaneseq
        %v6565 = vshrl.u32 %v6564, 7
        %v6566 = vsub.s32 2, %v6565
        %v6567 = vrot.slane %v4997, %v6566
        %v6568 = vlaneseq
        %v6569 = vshrl.u32 %v6568, 7
        %v6570 = vsub.s32 3, %v6569
        %v6571 = vrot.slane %v4997, %v6570
        %v6572 = vlaneseq
        %v6573 = vshrl.u32 %v6572, 7
        %v6574 = vsub.s32 4, %v6573
        %v6575 = vrot.slane %v4997, %v6574
        %v6576 = vlaneseq
        %v6577 = vshrl.u32 %v6576, 7
        %v6578 = vsub.s32 5, %v6577
        %v6579 = vrot.slane %v4997, %v6578
        %v6580 = vlaneseq
        %v6581 = vshrl.u32 %v6580, 7
        %v6582 = vsub.s32 6, %v6581
        %v6583 = vrot.slane %v4997, %v6582
        %v6584 = vlaneseq
        %v6585 = vshrl.u32 %v6584, 7
        %v6586 = vsub.s32 7, %v6585
        %v6587 = vrot.slane %v4997, %v6586
        %v6588 = vlaneseq
        %v6589 = vshrl.u32 %v6588, 7
        %v6590 = vsub.s32 0, %v6589
        %v6591 = vrot.slane %v5000, %v6590
        %v6592 = vlaneseq
        %v6593 = vshrl.u32 %v6592, 7
        %v6594 = vsub.s32 1, %v6593
        %v6595 = vrot.slane %v5000, %v6594
        %v6596 = vlaneseq
        %v6597 = vshrl.u32 %v6596, 7
        %v6598 = vsub.s32 2, %v6597
        %v6599 = vrot.slane %v5000, %v6598
        %v6600 = vlaneseq
        %v6601 = vshrl.u32 %v6600, 7
        %v6602 = vsub.s32 3, %v6601
        %v6603 = vrot.slane %v5000, %v6602
        %v6604 = vlaneseq
        %v6605 = vshrl.u32 %v6604, 7
        %v6606 = vsub.s32 4, %v6605
        %v6607 = vrot.slane %v5000, %v6606
        %v6608 = vlaneseq
        %v6609 = vshrl.u32 %v6608, 7
        %v6610 = vsub.s32 5, %v6609
        %v6611 = vrot.slane %v5000, %v6610
        %v6612 = vlaneseq
        %v6613 = vshrl.u32 %v6612, 7
        %v6614 = vsub.s32 6, %v6613
        %v6615 = vrot.slane %v5000, %v6614
        %v6616 = vlaneseq
        %v6617 = vshrl.u32 %v6616, 7
        %v6618 = vsub.s32 7, %v6617
        %v6619 = vrot.slane %v5000, %v6618
        %v6620 = vlaneseq
        %v6621 = vshrl.u32 %v6620, 7
        %v6622 = vsub.s32 0, %v6621
        %v6623 = vrot.slane %v5003, %v6622
        %v6624 = vlaneseq
        %v6625 = vshrl.u32 %v6624, 7
        %v6626 = vsub.s32 1, %v6625
        %v6627 = vrot.slane %v5003, %v6626
        %v6628 = vlaneseq
        %v6629 = vshrl.u32 %v6628, 7
        %v6630 = vsub.s32 2, %v6629
        %v6631 = vrot.slane %v5003, %v6630
        %v6632 = vlaneseq
        %v6633 = vshrl.u32 %v6632, 7
        %v6634 = vsub.s32 3, %v6633
        %v6635 = vrot.slane %v5003, %v6634
        %v6636 = vlaneseq
        %v6637 = vshrl.u32 %v6636, 7
        %v6638 = vsub.s32 4, %v6637
        %v6639 = vrot.slane %v5003, %v6638
        %v6640 = vlaneseq
        %v6641 = vshrl.u32 %v6640, 7
        %v6642 = vsub.s32 5, %v6641
        %v6643 = vrot.slane %v5003, %v6642
        %v6644 = vlaneseq
        %v6645 = vshrl.u32 %v6644, 7
        %v6646 = vsub.s32 6, %v6645
        %v6647 = vrot.slane %v5003, %v6646
        %v6648 = vlaneseq
        %v6649 = vshrl.u32 %v6648, 7
        %v6650 = vsub.s32 7, %v6649
        %v6651 = vrot.slane %v5003, %v6650
        %v6652 = vlaneseq
        %v6653 = vshrl.u32 %v6652, 7
        %v6654 = vsub.s32 0, %v6653
        %v6655 = vrot.slane %v5006, %v6654
        %v6656 = vlaneseq
        %v6657 = vshrl.u32 %v6656, 7
        %v6658 = vsub.s32 1, %v6657
        %v6659 = vrot.slane %v5006, %v6658
        %v6660 = vlaneseq
        %v6661 = vshrl.u32 %v6660, 7
        %v6662 = vsub.s32 2, %v6661
        %v6663 = vrot.slane %v5006, %v6662
        %v6664 = vlaneseq
        %v6665 = vshrl.u32 %v6664, 7
        %v6666 = vsub.s32 3, %v6665
        %v6667 = vrot.slane %v5006, %v6666
        %v6668 = vlaneseq
        %v6669 = vshrl.u32 %v6668, 7
        %v6670 = vsub.s32 4, %v6669
        %v6671 = vrot.slane %v5006, %v6670
        %v6672 = vlaneseq
        %v6673 = vshrl.u32 %v6672, 7
        %v6674 = vsub.s32 5, %v6673
        %v6675 = vrot.slane %v5006, %v6674
        %v6676 = vlaneseq
        %v6677 = vshrl.u32 %v6676, 7
        %v6678 = vsub.s32 6, %v6677
        %v6679 = vrot.slane %v5006, %v6678
        %v6680 = vlaneseq
        %v6681 = vshrl.u32 %v6680, 7
        %v6682 = vsub.s32 7, %v6681
        %v6683 = vrot.slane %v5006, %v6682
        %v6684 = vlaneseq
        %v6685 = vshrl.u32 %v6684, 7
        %v6686 = vsub.s32 0, %v6685
        %v6687 = vrot.slane %v5009, %v6686
        %v6688 = vlaneseq
        %v6689 = vshrl.u32 %v6688, 7
        %v6690 = vsub.s32 1, %v6689
        %v6691 = vrot.slane %v5009, %v6690
        %v6692 = vlaneseq
        %v6693 = vshrl.u32 %v6692, 7
        %v6694 = vsub.s32 2, %v6693
        %v6695 = vrot.slane %v5009, %v6694
        %v6696 = vlaneseq
        %v6697 = vshrl.u32 %v6696, 7
        %v6698 = vsub.s32 3, %v6697
        %v6699 = vrot.slane %v5009, %v6698
        %v6700 = vlaneseq
        %v6701 = vshrl.u32 %v6700, 7
        %v6702 = vsub.s32 4, %v6701
        %v6703 = vrot.slane %v5009, %v6702
        %v6704 = vlaneseq
        %v6705 = vshrl.u32 %v6704, 7
        %v6706 = vsub.s32 5, %v6705
        %v6707 = vrot.slane %v5009, %v6706
        %v6708 = vlaneseq
        %v6709 = vshrl.u32 %v6708, 7
        %v6710 = vsub.s32 6, %v6709
        %v6711 = vrot.slane %v5009, %v6710
        %v6712 = vlaneseq
        %v6713 = vshrl.u32 %v6712, 7
        %v6714 = vsub.s32 7, %v6713
        %v6715 = vrot.slane %v5009, %v6714
        %v6716 = vlaneseq
        %v6717 = vshrl.u32 %v6716, 7
        %v6718 = vsub.s32 0, %v6717
        %v6719 = vrot.slane %v5012, %v6718
        %v6720 = vlaneseq
        %v6721 = vshrl.u32 %v6720, 7
        %v6722 = vsub.s32 1, %v6721
        %v6723 = vrot.slane %v5012, %v6722
        %v6724 = vlaneseq
        %v6725 = vshrl.u32 %v6724, 7
        %v6726 = vsub.s32 2, %v6725
        %v6727 = vrot.slane %v5012, %v6726
        %v6728 = vlaneseq
        %v6729 = vshrl.u32 %v6728, 7
        %v6730 = vsub.s32 3, %v6729
        %v6731 = vrot.slane %v5012, %v6730
        %v6732 = vlaneseq
        %v6733 = vshrl.u32 %v6732, 7
        %v6734 = vsub.s32 4, %v6733
        %v6735 = vrot.slane %v5012, %v6734
        %v6736 = vlaneseq
        %v6737 = vshrl.u32 %v6736, 7
        %v6738 = vsub.s32 5, %v6737
        %v6739 = vrot.slane %v5012, %v6738
        %v6740 = vlaneseq
        %v6741 = vshrl.u32 %v6740, 7
        %v6742 = vsub.s32 6, %v6741
        %v6743 = vrot.slane %v5012, %v6742
        %v6744 = vlaneseq
        %v6745 = vshrl.u32 %v6744, 7
        %v6746 = vsub.s32 7, %v6745
        %v6747 = vrot.slane %v5012, %v6746
        %v6748 = vlaneseq
        %v6749 = vshrl.u32 %v6748, 7
        %v6750 = vsub.s32 0, %v6749
        %v6751 = vrot.slane %v5015, %v6750
        %v6752 = vlaneseq
        %v6753 = vshrl.u32 %v6752, 7
        %v6754 = vsub.s32 1, %v6753
        %v6755 = vrot.slane %v5015, %v6754
        %v6756 = vlaneseq
        %v6757 = vshrl.u32 %v6756, 7
        %v6758 = vsub.s32 2, %v6757
        %v6759 = vrot.slane %v5015, %v6758
        %v6760 = vlaneseq
        %v6761 = vshrl.u32 %v6760, 7
        %v6762 = vsub.s32 3, %v6761
        %v6763 = vrot.slane %v5015, %v6762
        %v6764 = vlaneseq
        %v6765 = vshrl.u32 %v6764, 7
        %v6766 = vsub.s32 4, %v6765
        %v6767 = vrot.slane %v5015, %v6766
        %v6768 = vlaneseq
        %v6769 = vshrl.u32 %v6768, 7
        %v6770 = vsub.s32 5, %v6769
        %v6771 = vrot.slane %v5015, %v6770
        %v6772 = vlaneseq
        %v6773 = vshrl.u32 %v6772, 7
        %v6774 = vsub.s32 6, %v6773
        %v6775 = vrot.slane %v5015, %v6774
        %v6776 = vlaneseq
        %v6777 = vshrl.u32 %v6776, 7
        %v6778 = vsub.s32 7, %v6777
        %v6779 = vrot.slane %v5015, %v6778
        %v6780 = vlaneseq
        %v6781 = vshrl.u32 %v6780, 7
        %v6782 = vsub.s32 0, %v6781
        %v6783 = vrot.slane %v5018, %v6782
        %v6784 = vlaneseq
        %v6785 = vshrl.u32 %v6784, 7
        %v6786 = vsub.s32 1, %v6785
        %v6787 = vrot.slane %v5018, %v6786
        %v6788 = vlaneseq
        %v6789 = vshrl.u32 %v6788, 7
        %v6790 = vsub.s32 2, %v6789
        %v6791 = vrot.slane %v5018, %v6790
        %v6792 = vlaneseq
        %v6793 = vshrl.u32 %v6792, 7
        %v6794 = vsub.s32 3, %v6793
        %v6795 = vrot.slane %v5018, %v6794
        %v6796 = vlaneseq
        %v6797 = vshrl.u32 %v6796, 7
        %v6798 = vsub.s32 4, %v6797
        %v6799 = vrot.slane %v5018, %v6798
        %v6800 = vlaneseq
        %v6801 = vshrl.u32 %v6800, 7
        %v6802 = vsub.s32 5, %v6801
        %v6803 = vrot.slane %v5018, %v6802
        %v6804 = vlaneseq
        %v6805 = vshrl.u32 %v6804, 7
        %v6806 = vsub.s32 6, %v6805
        %v6807 = vrot.slane %v5018, %v6806
        %v6808 = vlaneseq
        %v6809 = vshrl.u32 %v6808, 7
        %v6810 = vsub.s32 7, %v6809
        %v6811 = vrot.slane %v5018, %v6810
        %v6812 = vlaneseq
        %v6813 = vshrl.u32 %v6812, 7
        %v6814 = vsub.s32 0, %v6813
        %v6815 = vrot.slane %v5021, %v6814
        %v6816 = vlaneseq
        %v6817 = vshrl.u32 %v6816, 7
        %v6818 = vsub.s32 1, %v6817
        %v6819 = vrot.slane %v5021, %v6818
        %v6820 = vlaneseq
        %v6821 = vshrl.u32 %v6820, 7
        %v6822 = vsub.s32 2, %v6821
        %v6823 = vrot.slane %v5021, %v6822
        %v6824 = vlaneseq
        %v6825 = vshrl.u32 %v6824, 7
        %v6826 = vsub.s32 3, %v6825
        %v6827 = vrot.slane %v5021, %v6826
        %v6828 = vlaneseq
        %v6829 = vshrl.u32 %v6828, 7
        %v6830 = vsub.s32 4, %v6829
        %v6831 = vrot.slane %v5021, %v6830
        %v6832 = vlaneseq
        %v6833 = vshrl.u32 %v6832, 7
        %v6834 = vsub.s32 5, %v6833
        %v6835 = vrot.slane %v5021, %v6834
        %v6836 = vlaneseq
        %v6837 = vshrl.u32 %v6836, 7
        %v6838 = vsub.s32 6, %v6837
        %v6839 = vrot.slane %v5021, %v6838
        %v6840 = vlaneseq
        %v6841 = vshrl.u32 %v6840, 7
        %v6842 = vsub.s32 7, %v6841
        %v6843 = vrot.slane %v5021, %v6842
        %v6844 = vlaneseq
        %v6845 = vshrl.u32 %v6844, 7
        %v6846 = vsub.s32 0, %v6845
        %v6847 = vrot.slane %v5024, %v6846
        %v6848 = vlaneseq
        %v6849 = vshrl.u32 %v6848, 7
        %v6850 = vsub.s32 1, %v6849
        %v6851 = vrot.slane %v5024, %v6850
        %v6852 = vlaneseq
        %v6853 = vshrl.u32 %v6852, 7
        %v6854 = vsub.s32 2, %v6853
        %v6855 = vrot.slane %v5024, %v6854
        %v6856 = vlaneseq
        %v6857 = vshrl.u32 %v6856, 7
        %v6858 = vsub.s32 3, %v6857
        %v6859 = vrot.slane %v5024, %v6858
        %v6860 = vlaneseq
        %v6861 = vshrl.u32 %v6860, 7
        %v6862 = vsub.s32 4, %v6861
        %v6863 = vrot.slane %v5024, %v6862
        %v6864 = vlaneseq
        %v6865 = vshrl.u32 %v6864, 7
        %v6866 = vsub.s32 5, %v6865
        %v6867 = vrot.slane %v5024, %v6866
        %v6868 = vlaneseq
        %v6869 = vshrl.u32 %v6868, 7
        %v6870 = vsub.s32 6, %v6869
        %v6871 = vrot.slane %v5024, %v6870
        %v6872 = vlaneseq
        %v6873 = vshrl.u32 %v6872, 7
        %v6874 = vsub.s32 7, %v6873
        %v6875 = vrot.slane %v5024, %v6874
        %v6876 = vlaneseq
        %v6877 = vshrl.u32 %v6876, 7
        %v6878 = vsub.s32 0, %v6877
        %v6879 = vrot.slane %v5027, %v6878
        %v6880 = vlaneseq
        %v6881 = vshrl.u32 %v6880, 7
        %v6882 = vsub.s32 1, %v6881
        %v6883 = vrot.slane %v5027, %v6882
        %v6884 = vlaneseq
        %v6885 = vshrl.u32 %v6884, 7
        %v6886 = vsub.s32 2, %v6885
        %v6887 = vrot.slane %v5027, %v6886
        %v6888 = vlaneseq
        %v6889 = vshrl.u32 %v6888, 7
        %v6890 = vsub.s32 3, %v6889
        %v6891 = vrot.slane %v5027, %v6890
        %v6892 = vlaneseq
        %v6893 = vshrl.u32 %v6892, 7
        %v6894 = vsub.s32 4, %v6893
        %v6895 = vrot.slane %v5027, %v6894
        %v6896 = vlaneseq
        %v6897 = vshrl.u32 %v6896, 7
        %v6898 = vsub.s32 5, %v6897
        %v6899 = vrot.slane %v5027, %v6898
        %v6900 = vlaneseq
        %v6901 = vshrl.u32 %v6900, 7
        %v6902 = vsub.s32 6, %v6901
        %v6903 = vrot.slane %v5027, %v6902
        %v6904 = vlaneseq
        %v6905 = vshrl.u32 %v6904, 7
        %v6906 = vsub.s32 7, %v6905
        %v6907 = vrot.slane %v5027, %v6906
        %v6908 = vlaneseq
        %v6909 = vshrl.u32 %v6908, 7
        %v6910 = vsub.s32 0, %v6909
        %v6911 = vrot.slane %v5030, %v6910
        %v6912 = vlaneseq
        %v6913 = vshrl.u32 %v6912, 7
        %v6914 = vsub.s32 1, %v6913
        %v6915 = vrot.slane %v5030, %v6914
        %v6916 = vlaneseq
        %v6917 = vshrl.u32 %v6916, 7
        %v6918 = vsub.s32 2, %v6917
        %v6919 = vrot.slane %v5030, %v6918
        %v6920 = vlaneseq
        %v6921 = vshrl.u32 %v6920, 7
        %v6922 = vsub.s32 3, %v6921
        %v6923 = vrot.slane %v5030, %v6922
        %v6924 = vlaneseq
        %v6925 = vshrl.u32 %v6924, 7
        %v6926 = vsub.s32 4, %v6925
        %v6927 = vrot.slane %v5030, %v6926
        %v6928 = vlaneseq
        %v6929 = vshrl.u32 %v6928, 7
        %v6930 = vsub.s32 5, %v6929
        %v6931 = vrot.slane %v5030, %v6930
        %v6932 = vlaneseq
        %v6933 = vshrl.u32 %v6932, 7
        %v6934 = vsub.s32 6, %v6933
        %v6935 = vrot.slane %v5030, %v6934
        %v6936 = vlaneseq
        %v6937 = vshrl.u32 %v6936, 7
        %v6938 = vsub.s32 7, %v6937
        %v6939 = vrot.slane %v5030, %v6938
        %v6940 = vlaneseq
        %v6941 = vshrl.u32 %v6940, 7
        %v6942 = vsub.s32 0, %v6941
        %v6943 = vrot.slane %v5033, %v6942
        %v6944 = vlaneseq
        %v6945 = vshrl.u32 %v6944, 7
        %v6946 = vsub.s32 1, %v6945
        %v6947 = vrot.slane %v5033, %v6946
        %v6948 = vlaneseq
        %v6949 = vshrl.u32 %v6948, 7
        %v6950 = vsub.s32 2, %v6949
        %v6951 = vrot.slane %v5033, %v6950
        %v6952 = vlaneseq
        %v6953 = vshrl.u32 %v6952, 7
        %v6954 = vsub.s32 3, %v6953
        %v6955 = vrot.slane %v5033, %v6954
        %v6956 = vlaneseq
        %v6957 = vshrl.u32 %v6956, 7
        %v6958 = vsub.s32 4, %v6957
        %v6959 = vrot.slane %v5033, %v6958
        %v6960 = vlaneseq
        %v6961 = vshrl.u32 %v6960, 7
        %v6962 = vsub.s32 5, %v6961
        %v6963 = vrot.slane %v5033, %v6962
        %v6964 = vlaneseq
        %v6965 = vshrl.u32 %v6964, 7
        %v6966 = vsub.s32 6, %v6965
        %v6967 = vrot.slane %v5033, %v6966
        %v6968 = vlaneseq
        %v6969 = vshrl.u32 %v6968, 7
        %v6970 = vsub.s32 7, %v6969
        %v6971 = vrot.slane %v5033, %v6970
        %v6972 = vlaneseq
        %v6973 = vshrl.u32 %v6972, 7
        %v6974 = vsub.s32 0, %v6973
        %v6975 = vrot.slane %v5036, %v6974
        %v6976 = vlaneseq
        %v6977 = vshrl.u32 %v6976, 7
        %v6978 = vsub.s32 1, %v6977
        %v6979 = vrot.slane %v5036, %v6978
        %v6980 = vlaneseq
        %v6981 = vshrl.u32 %v6980, 7
        %v6982 = vsub.s32 2, %v6981
        %v6983 = vrot.slane %v5036, %v6982
        %v6984 = vlaneseq
        %v6985 = vshrl.u32 %v6984, 7
        %v6986 = vsub.s32 3, %v6985
        %v6987 = vrot.slane %v5036, %v6986
        %v6988 = vlaneseq
        %v6989 = vshrl.u32 %v6988, 7
        %v6990 = vsub.s32 4, %v6989
        %v6991 = vrot.slane %v5036, %v6990
        %v6992 = vlaneseq
        %v6993 = vshrl.u32 %v6992, 7
        %v6994 = vsub.s32 5, %v6993
        %v6995 = vrot.slane %v5036, %v6994
        %v6996 = vlaneseq
        %v6997 = vshrl.u32 %v6996, 7
        %v6998 = vsub.s32 6, %v6997
        %v6999 = vrot.slane %v5036, %v6998
        %v7000 = vlaneseq
        %v7001 = vshrl.u32 %v7000, 7
        %v7002 = vsub.s32 7, %v7001
        %v7003 = vrot.slane %v5036, %v7002
        %v7004 = vlaneseq
        %v7005 = vshrl.u32 %v7004, 7
        %v7006 = vsub.s32 0, %v7005
        %v7007 = vrot.slane %v5039, %v7006
        %v7008 = vlaneseq
        %v7009 = vshrl.u32 %v7008, 7
        %v7010 = vsub.s32 1, %v7009
        %v7011 = vrot.slane %v5039, %v7010
        %v7012 = vlaneseq
        %v7013 = vshrl.u32 %v7012, 7
        %v7014 = vsub.s32 2, %v7013
        %v7015 = vrot.slane %v5039, %v7014
        %v7016 = vlaneseq
        %v7017 = vshrl.u32 %v7016, 7
        %v7018 = vsub.s32 3, %v7017
        %v7019 = vrot.slane %v5039, %v7018
        %v7020 = vlaneseq
        %v7021 = vshrl.u32 %v7020, 7
        %v7022 = vsub.s32 4, %v7021
        %v7023 = vrot.slane %v5039, %v7022
        %v7024 = vlaneseq
        %v7025 = vshrl.u32 %v7024, 7
        %v7026 = vsub.s32 5, %v7025
        %v7027 = vrot.slane %v5039, %v7026
        %v7028 = vlaneseq
        %v7029 = vshrl.u32 %v7028, 7
        %v7030 = vsub.s32 6, %v7029
        %v7031 = vrot.slane %v5039, %v7030
        %v7032 = vlaneseq
        %v7033 = vshrl.u32 %v7032, 7
        %v7034 = vsub.s32 7, %v7033
        %v7035 = vrot.slane %v5039, %v7034
        %v7036 = vlaneseq
        %v7037 = vshrl.u32 %v7036, 7
        %v7038 = vsub.s32 0, %v7037
        %v7039 = vrot.slane %v5042, %v7038
        %v7040 = vlaneseq
        %v7041 = vshrl.u32 %v7040, 7
        %v7042 = vsub.s32 1, %v7041
        %v7043 = vrot.slane %v5042, %v7042
        %v7044 = vlaneseq
        %v7045 = vshrl.u32 %v7044, 7
        %v7046 = vsub.s32 2, %v7045
        %v7047 = vrot.slane %v5042, %v7046
        %v7048 = vlaneseq
        %v7049 = vshrl.u32 %v7048, 7
        %v7050 = vsub.s32 3, %v7049
        %v7051 = vrot.slane %v5042, %v7050
        %v7052 = vlaneseq
        %v7053 = vshrl.u32 %v7052, 7
        %v7054 = vsub.s32 4, %v7053
        %v7055 = vrot.slane %v5042, %v7054
        %v7056 = vlaneseq
        %v7057 = vshrl.u32 %v7056, 7
        %v7058 = vsub.s32 5, %v7057
        %v7059 = vrot.slane %v5042, %v7058
        %v7060 = vlaneseq
        %v7061 = vshrl.u32 %v7060, 7
        %v7062 = vsub.s32 6, %v7061
        %v7063 = vrot.slane %v5042, %v7062
        %v7064 = vlaneseq
        %v7065 = vshrl.u32 %v7064, 7
        %v7066 = vsub.s32 7, %v7065
        %v7067 = vrot.slane %v5042, %v7066
        %v7068 = vlaneseq
        %v7069 = vshrl.u32 %v7068, 7
        %v7070 = vsub.s32 0, %v7069
        %v7071 = vrot.slane %v5045, %v7070
        %v7072 = vlaneseq
        %v7073 = vshrl.u32 %v7072, 7
        %v7074 = vsub.s32 1, %v7073
        %v7075 = vrot.slane %v5045, %v7074
        %v7076 = vlaneseq
        %v7077 = vshrl.u32 %v7076, 7
        %v7078 = vsub.s32 2, %v7077
        %v7079 = vrot.slane %v5045, %v7078
        %v7080 = vlaneseq
        %v7081 = vshrl.u32 %v7080, 7
        %v7082 = vsub.s32 3, %v7081
        %v7083 = vrot.slane %v5045, %v7082
        %v7084 = vlaneseq
        %v7085 = vshrl.u32 %v7084, 7
        %v7086 = vsub.s32 4, %v7085
        %v7087 = vrot.slane %v5045, %v7086
        %v7088 = vlaneseq
        %v7089 = vshrl.u32 %v7088, 7
        %v7090 = vsub.s32 5, %v7089
        %v7091 = vrot.slane %v5045, %v7090
        %v7092 = vlaneseq
        %v7093 = vshrl.u32 %v7092, 7
        %v7094 = vsub.s32 6, %v7093
        %v7095 = vrot.slane %v5045, %v7094
        %v7096 = vlaneseq
        %v7097 = vshrl.u32 %v7096, 7
        %v7098 = vsub.s32 7, %v7097
        %v7099 = vrot.slane %v5045, %v7098
        %v7100 = vlaneseq
        %v7101 = vshrl.u32 %v7100, 7
        %v7102 = vsub.s32 0, %v7101
        %v7103 = vrot.slane %v5048, %v7102
        %v7104 = vlaneseq
        %v7105 = vshrl.u32 %v7104, 7
        %v7106 = vsub.s32 1, %v7105
        %v7107 = vrot.slane %v5048, %v7106
        %v7108 = vlaneseq
        %v7109 = vshrl.u32 %v7108, 7
        %v7110 = vsub.s32 2, %v7109
        %v7111 = vrot.slane %v5048, %v7110
        %v7112 = vlaneseq
        %v7113 = vshrl.u32 %v7112, 7
        %v7114 = vsub.s32 3, %v7113
        %v7115 = vrot.slane %v5048, %v7114
        %v7116 = vlaneseq
        %v7117 = vshrl.u32 %v7116, 7
        %v7118 = vsub.s32 4, %v7117
        %v7119 = vrot.slane %v5048, %v7118
        %v7120 = vlaneseq
        %v7121 = vshrl.u32 %v7120, 7
        %v7122 = vsub.s32 5, %v7121
        %v7123 = vrot.slane %v5048, %v7122
        %v7124 = vlaneseq
        %v7125 = vshrl.u32 %v7124, 7
        %v7126 = vsub.s32 6, %v7125
        %v7127 = vrot.slane %v5048, %v7126
        %v7128 = vlaneseq
        %v7129 = vshrl.u32 %v7128, 7
        %v7130 = vsub.s32 7, %v7129
        %v7131 = vrot.slane %v5048, %v7130
        %v7132 = vlaneseq
        %v7133 = vshrl.u32 %v7132, 7
        %v7134 = vsub.s32 0, %v7133
        %v7135 = vrot.slane %v5051, %v7134
        %v7136 = vlaneseq
        %v7137 = vshrl.u32 %v7136, 7
        %v7138 = vsub.s32 1, %v7137
        %v7139 = vrot.slane %v5051, %v7138
        %v7140 = vlaneseq
        %v7141 = vshrl.u32 %v7140, 7
        %v7142 = vsub.s32 2, %v7141
        %v7143 = vrot.slane %v5051, %v7142
        %v7144 = vlaneseq
        %v7145 = vshrl.u32 %v7144, 7
        %v7146 = vsub.s32 3, %v7145
        %v7147 = vrot.slane %v5051, %v7146
        %v7148 = vlaneseq
        %v7149 = vshrl.u32 %v7148, 7
        %v7150 = vsub.s32 4, %v7149
        %v7151 = vrot.slane %v5051, %v7150
        %v7152 = vlaneseq
        %v7153 = vshrl.u32 %v7152, 7
        %v7154 = vsub.s32 5, %v7153
        %v7155 = vrot.slane %v5051, %v7154
        %v7156 = vlaneseq
        %v7157 = vshrl.u32 %v7156, 7
        %v7158 = vsub.s32 6, %v7157
        %v7159 = vrot.slane %v5051, %v7158
        %v7160 = vlaneseq
        %v7161 = vshrl.u32 %v7160, 7
        %v7162 = vsub.s32 7, %v7161
        %v7163 = vrot.slane %v5051, %v7162
        %v7164 = vcombine.low %v5119, %v5127
        %v7165 = vcombine.low %v5123, %v5131
        %v7167 = vunpack.c.l.s4 1935823168
        %v7168 = vunpack.c.0.s8 %v7167
        %v7169 = vlaneseq
        %v7170 = vshrl.u32 %v7169, 7
        %v7171 = vsub.s32 %v7168, %v7170
        %v7172 = vrot.slane %v7164, %v7171
        %v7174 = vunpack.c.l.s4 1935823168
        %v7175 = vunpack.c.0.s8 %v7174
        %v7176 = vlaneseq
        %v7177 = vshrl.u32 %v7176, 7
        %v7178 = vsub.s32 %v7175, %v7177
        %v7179 = vrot.slane %v7165, %v7178
        %v7180 = vcombine.low %v7172, %v7179
        %v7182 = vunpack.c.l.s4 1935823168
        %v7183 = vunpack.c.0.s8 %v7182
        %v7184 = vlaneseq
        %v7185 = vshrl.u32 %v7184, 7
        %v7186 = vsub.s32 %v7183, %v7185
        %v7187 = vrot.slane %v7180, %v7186
        %v7188 = vcombine.low %v5135, %v5143
        %v7189 = vcombine.low %v5139, %v5147
        %v7191 = vunpack.c.l.s4 1935823168
        %v7192 = vunpack.c.0.s8 %v7191
        %v7193 = vlaneseq
        %v7194 = vshrl.u32 %v7193, 7
        %v7195 = vsub.s32 %v7192, %v7194
        %v7196 = vrot.slane %v7188, %v7195
        %v7198 = vunpack.c.l.s4 1935823168
        %v7199 = vunpack.c.0.s8 %v7198
        %v7200 = vlaneseq
        %v7201 = vshrl.u32 %v7200, 7
        %v7202 = vsub.s32 %v7199, %v7201
        %v7203 = vrot.slane %v7189, %v7202
        %v7204 = vcombine.low %v7196, %v7203
        %v7206 = vunpack.c.l.s4 1935823168
        %v7207 = vunpack.c.0.s8 %v7206
        %v7208 = vlaneseq
        %v7209 = vshrl.u32 %v7208, 7
        %v7210 = vsub.s32 %v7207, %v7209
        %v7211 = vrot.slane %v7204, %v7210
        %v7212 = vcombine.low %v5151, %v5159
        %v7213 = vcombine.low %v5155, %v5163
        %v7215 = vunpack.c.l.s4 1935823168
        %v7216 = vunpack.c.0.s8 %v7215
        %v7217 = vlaneseq
        %v7218 = vshrl.u32 %v7217, 7
        %v7219 = vsub.s32 %v7216, %v7218
        %v7220 = vrot.slane %v7212, %v7219
        %v7222 = vunpack.c.l.s4 1935823168
        %v7223 = vunpack.c.0.s8 %v7222
        %v7224 = vlaneseq
        %v7225 = vshrl.u32 %v7224, 7
        %v7226 = vsub.s32 %v7223, %v7225
        %v7227 = vrot.slane %v7213, %v7226
        %v7228 = vcombine.low %v7220, %v7227
        %v7230 = vunpack.c.l.s4 1935823168
        %v7231 = vunpack.c.0.s8 %v7230
        %v7232 = vlaneseq
        %v7233 = vshrl.u32 %v7232, 7
        %v7234 = vsub.s32 %v7231, %v7233
        %v7235 = vrot.slane %v7228, %v7234
        %v7236 = vcombine.low %v5167, %v5175
        %v7237 = vcombine.low %v5171, %v5179
        %v7239 = vunpack.c.l.s4 1935823168
        %v7240 = vunpack.c.0.s8 %v7239
        %v7241 = vlaneseq
        %v7242 = vshrl.u32 %v7241, 7
        %v7243 = vsub.s32 %v7240, %v7242
        %v7244 = vrot.slane %v7236, %v7243
        %v7246 = vunpack.c.l.s4 1935823168
        %v7247 = vunpack.c.0.s8 %v7246
        %v7248 = vlaneseq
        %v7249 = vshrl.u32 %v7248, 7
        %v7250 = vsub.s32 %v7247, %v7249
        %v7251 = vrot.slane %v7237, %v7250
        %v7252 = vcombine.low %v7244, %v7251
        %v7254 = vunpack.c.l.s4 1935823168
        %v7255 = vunpack.c.0.s8 %v7254
        %v7256 = vlaneseq
        %v7257 = vshrl.u32 %v7256, 7
        %v7258 = vsub.s32 %v7255, %v7257
        %v7259 = vrot.slane %v7252, %v7258
        %v7260 = vcombine.low %v5183, %v5191
        %v7261 = vcombine.low %v5187, %v5195
        %v7263 = vunpack.c.l.s4 1935823168
        %v7264 = vunpack.c.0.s8 %v7263
        %v7265 = vlaneseq
        %v7266 = vshrl.u32 %v7265, 7
        %v7267 = vsub.s32 %v7264, %v7266
        %v7268 = vrot.slane %v7260, %v7267
        %v7270 = vunpack.c.l.s4 1935823168
        %v7271 = vunpack.c.0.s8 %v7270
        %v7272 = vlaneseq
        %v7273 = vshrl.u32 %v7272, 7
        %v7274 = vsub.s32 %v7271, %v7273
        %v7275 = vrot.slane %v7261, %v7274
        %v7276 = vcombine.low %v7268, %v7275
        %v7278 = vunpack.c.l.s4 1935823168
        %v7279 = vunpack.c.0.s8 %v7278
        %v7280 = vlaneseq
        %v7281 = vshrl.u32 %v7280, 7
        %v7282 = vsub.s32 %v7279, %v7281
        %v7283 = vrot.slane %v7276, %v7282
        %v7284 = vcombine.low %v5199, %v5207
        %v7285 = vcombine.low %v5203, %v5211
        %v7287 = vunpack.c.l.s4 1935823168
        %v7288 = vunpack.c.0.s8 %v7287
        %v7289 = vlaneseq
        %v7290 = vshrl.u32 %v7289, 7
        %v7291 = vsub.s32 %v7288, %v7290
        %v7292 = vrot.slane %v7284, %v7291
        %v7294 = vunpack.c.l.s4 1935823168
        %v7295 = vunpack.c.0.s8 %v7294
        %v7296 = vlaneseq
        %v7297 = vshrl.u32 %v7296, 7
        %v7298 = vsub.s32 %v7295, %v7297
        %v7299 = vrot.slane %v7285, %v7298
        %v7300 = vcombine.low %v7292, %v7299
        %v7302 = vunpack.c.l.s4 1935823168
        %v7303 = vunpack.c.0.s8 %v7302
        %v7304 = vlaneseq
        %v7305 = vshrl.u32 %v7304, 7
        %v7306 = vsub.s32 %v7303, %v7305
        %v7307 = vrot.slane %v7300, %v7306
        %v7308 = vcombine.low %v5215, %v5223
        %v7309 = vcombine.low %v5219, %v5227
        %v7311 = vunpack.c.l.s4 1935823168
        %v7312 = vunpack.c.0.s8 %v7311
        %v7313 = vlaneseq
        %v7314 = vshrl.u32 %v7313, 7
        %v7315 = vsub.s32 %v7312, %v7314
        %v7316 = vrot.slane %v7308, %v7315
        %v7318 = vunpack.c.l.s4 1935823168
        %v7319 = vunpack.c.0.s8 %v7318
        %v7320 = vlaneseq
        %v7321 = vshrl.u32 %v7320, 7
        %v7322 = vsub.s32 %v7319, %v7321
        %v7323 = vrot.slane %v7309, %v7322
        %v7324 = vcombine.low %v7316, %v7323
        %v7326 = vunpack.c.l.s4 1935823168
        %v7327 = vunpack.c.0.s8 %v7326
        %v7328 = vlaneseq
        %v7329 = vshrl.u32 %v7328, 7
        %v7330 = vsub.s32 %v7327, %v7329
        %v7331 = vrot.slane %v7324, %v7330
        %v7332 = vcombine.low %v5231, %v5239
        %v7333 = vcombine.low %v5235, %v5243
        %v7335 = vunpack.c.l.s4 1935823168
        %v7336 = vunpack.c.0.s8 %v7335
        %v7337 = vlaneseq
        %v7338 = vshrl.u32 %v7337, 7
        %v7339 = vsub.s32 %v7336, %v7338
        %v7340 = vrot.slane %v7332, %v7339
        %v7342 = vunpack.c.l.s4 1935823168
        %v7343 = vunpack.c.0.s8 %v7342
        %v7344 = vlaneseq
        %v7345 = vshrl.u32 %v7344, 7
        %v7346 = vsub.s32 %v7343, %v7345
        %v7347 = vrot.slane %v7333, %v7346
        %v7348 = vcombine.low %v7340, %v7347
        %v7350 = vunpack.c.l.s4 1935823168
        %v7351 = vunpack.c.0.s8 %v7350
        %v7352 = vlaneseq
        %v7353 = vshrl.u32 %v7352, 7
        %v7354 = vsub.s32 %v7351, %v7353
        %v7355 = vrot.slane %v7348, %v7354
        %v7356 = vcombine.low %v5247, %v5255
        %v7357 = vcombine.low %v5251, %v5259
        %v7359 = vunpack.c.l.s4 1935823168
        %v7360 = vunpack.c.0.s8 %v7359
        %v7361 = vlaneseq
        %v7362 = vshrl.u32 %v7361, 7
        %v7363 = vsub.s32 %v7360, %v7362
        %v7364 = vrot.slane %v7356, %v7363
        %v7366 = vunpack.c.l.s4 1935823168
        %v7367 = vunpack.c.0.s8 %v7366
        %v7368 = vlaneseq
        %v7369 = vshrl.u32 %v7368, 7
        %v7370 = vsub.s32 %v7367, %v7369
        %v7371 = vrot.slane %v7357, %v7370
        %v7372 = vcombine.low %v7364, %v7371
        %v7374 = vunpack.c.l.s4 1935823168
        %v7375 = vunpack.c.0.s8 %v7374
        %v7376 = vlaneseq
        %v7377 = vshrl.u32 %v7376, 7
        %v7378 = vsub.s32 %v7375, %v7377
        %v7379 = vrot.slane %v7372, %v7378
        %v7380 = vcombine.low %v5263, %v5271
        %v7381 = vcombine.low %v5267, %v5275
        %v7383 = vunpack.c.l.s4 1935823168
        %v7384 = vunpack.c.0.s8 %v7383
        %v7385 = vlaneseq
        %v7386 = vshrl.u32 %v7385, 7
        %v7387 = vsub.s32 %v7384, %v7386
        %v7388 = vrot.slane %v7380, %v7387
        %v7390 = vunpack.c.l.s4 1935823168
        %v7391 = vunpack.c.0.s8 %v7390
        %v7392 = vlaneseq
        %v7393 = vshrl.u32 %v7392, 7
        %v7394 = vsub.s32 %v7391, %v7393
        %v7395 = vrot.slane %v7381, %v7394
        %v7396 = vcombine.low %v7388, %v7395
        %v7398 = vunpack.c.l.s4 1935823168
        %v7399 = vunpack.c.0.s8 %v7398
        %v7400 = vlaneseq
        %v7401 = vshrl.u32 %v7400, 7
        %v7402 = vsub.s32 %v7399, %v7401
        %v7403 = vrot.slane %v7396, %v7402
        %v7404 = vcombine.low %v5279, %v5287
        %v7405 = vcombine.low %v5283, %v5291
        %v7407 = vunpack.c.l.s4 1935823168
        %v7408 = vunpack.c.0.s8 %v7407
        %v7409 = vlaneseq
        %v7410 = vshrl.u32 %v7409, 7
        %v7411 = vsub.s32 %v7408, %v7410
        %v7412 = vrot.slane %v7404, %v7411
        %v7414 = vunpack.c.l.s4 1935823168
        %v7415 = vunpack.c.0.s8 %v7414
        %v7416 = vlaneseq
        %v7417 = vshrl.u32 %v7416, 7
        %v7418 = vsub.s32 %v7415, %v7417
        %v7419 = vrot.slane %v7405, %v7418
        %v7420 = vcombine.low %v7412, %v7419
        %v7422 = vunpack.c.l.s4 1935823168
        %v7423 = vunpack.c.0.s8 %v7422
        %v7424 = vlaneseq
        %v7425 = vshrl.u32 %v7424, 7
        %v7426 = vsub.s32 %v7423, %v7425
        %v7427 = vrot.slane %v7420, %v7426
        %v7428 = vcombine.low %v5295, %v5303
        %v7429 = vcombine.low %v5299, %v5307
        %v7431 = vunpack.c.l.s4 1935823168
        %v7432 = vunpack.c.0.s8 %v7431
        %v7433 = vlaneseq
        %v7434 = vshrl.u32 %v7433, 7
        %v7435 = vsub.s32 %v7432, %v7434
        %v7436 = vrot.slane %v7428, %v7435
        %v7438 = vunpack.c.l.s4 1935823168
        %v7439 = vunpack.c.0.s8 %v7438
        %v7440 = vlaneseq
        %v7441 = vshrl.u32 %v7440, 7
        %v7442 = vsub.s32 %v7439, %v7441
        %v7443 = vrot.slane %v7429, %v7442
        %v7444 = vcombine.low %v7436, %v7443
        %v7446 = vunpack.c.l.s4 1935823168
        %v7447 = vunpack.c.0.s8 %v7446
        %v7448 = vlaneseq
        %v7449 = vshrl.u32 %v7448, 7
        %v7450 = vsub.s32 %v7447, %v7449
        %v7451 = vrot.slane %v7444, %v7450
        %v7452 = vcombine.low %v5311, %v5319
        %v7453 = vcombine.low %v5315, %v5323
        %v7455 = vunpack.c.l.s4 1935823168
        %v7456 = vunpack.c.0.s8 %v7455
        %v7457 = vlaneseq
        %v7458 = vshrl.u32 %v7457, 7
        %v7459 = vsub.s32 %v7456, %v7458
        %v7460 = vrot.slane %v7452, %v7459
        %v7462 = vunpack.c.l.s4 1935823168
        %v7463 = vunpack.c.0.s8 %v7462
        %v7464 = vlaneseq
        %v7465 = vshrl.u32 %v7464, 7
        %v7466 = vsub.s32 %v7463, %v7465
        %v7467 = vrot.slane %v7453, %v7466
        %v7468 = vcombine.low %v7460, %v7467
        %v7470 = vunpack.c.l.s4 1935823168
        %v7471 = vunpack.c.0.s8 %v7470
        %v7472 = vlaneseq
        %v7473 = vshrl.u32 %v7472, 7
        %v7474 = vsub.s32 %v7471, %v7473
        %v7475 = vrot.slane %v7468, %v7474
        %v7476 = vcombine.low %v5327, %v5335
        %v7477 = vcombine.low %v5331, %v5339
        %v7479 = vunpack.c.l.s4 1935823168
        %v7480 = vunpack.c.0.s8 %v7479
        %v7481 = vlaneseq
        %v7482 = vshrl.u32 %v7481, 7
        %v7483 = vsub.s32 %v7480, %v7482
        %v7484 = vrot.slane %v7476, %v7483
        %v7486 = vunpack.c.l.s4 1935823168
        %v7487 = vunpack.c.0.s8 %v7486
        %v7488 = vlaneseq
        %v7489 = vshrl.u32 %v7488, 7
        %v7490 = vsub.s32 %v7487, %v7489
        %v7491 = vrot.slane %v7477, %v7490
        %v7492 = vcombine.low %v7484, %v7491
        %v7494 = vunpack.c.l.s4 1935823168
        %v7495 = vunpack.c.0.s8 %v7494
        %v7496 = vlaneseq
        %v7497 = vshrl.u32 %v7496, 7
        %v7498 = vsub.s32 %v7495, %v7497
        %v7499 = vrot.slane %v7492, %v7498
        %v7500 = vcombine.low %v5343, %v5351
        %v7501 = vcombine.low %v5347, %v5355
        %v7503 = vunpack.c.l.s4 1935823168
        %v7504 = vunpack.c.0.s8 %v7503
        %v7505 = vlaneseq
        %v7506 = vshrl.u32 %v7505, 7
        %v7507 = vsub.s32 %v7504, %v7506
        %v7508 = vrot.slane %v7500, %v7507
        %v7510 = vunpack.c.l.s4 1935823168
        %v7511 = vunpack.c.0.s8 %v7510
        %v7512 = vlaneseq
        %v7513 = vshrl.u32 %v7512, 7
        %v7514 = vsub.s32 %v7511, %v7513
        %v7515 = vrot.slane %v7501, %v7514
        %v7516 = vcombine.low %v7508, %v7515
        %v7518 = vunpack.c.l.s4 1935823168
        %v7519 = vunpack.c.0.s8 %v7518
        %v7520 = vlaneseq
        %v7521 = vshrl.u32 %v7520, 7
        %v7522 = vsub.s32 %v7519, %v7521
        %v7523 = vrot.slane %v7516, %v7522
        %v7524 = vcombine.low %v5359, %v5367
        %v7525 = vcombine.low %v5363, %v5371
        %v7527 = vunpack.c.l.s4 1935823168
        %v7528 = vunpack.c.0.s8 %v7527
        %v7529 = vlaneseq
        %v7530 = vshrl.u32 %v7529, 7
        %v7531 = vsub.s32 %v7528, %v7530
        %v7532 = vrot.slane %v7524, %v7531
        %v7534 = vunpack.c.l.s4 1935823168
        %v7535 = vunpack.c.0.s8 %v7534
        %v7536 = vlaneseq
        %v7537 = vshrl.u32 %v7536, 7
        %v7538 = vsub.s32 %v7535, %v7537
        %v7539 = vrot.slane %v7525, %v7538
        %v7540 = vcombine.low %v7532, %v7539
        %v7542 = vunpack.c.l.s4 1935823168
        %v7543 = vunpack.c.0.s8 %v7542
        %v7544 = vlaneseq
        %v7545 = vshrl.u32 %v7544, 7
        %v7546 = vsub.s32 %v7543, %v7545
        %v7547 = vrot.slane %v7540, %v7546
        %v7548 = vcombine.low %v5375, %v5383
        %v7549 = vcombine.low %v5379, %v5387
        %v7551 = vunpack.c.l.s4 1935823168
        %v7552 = vunpack.c.0.s8 %v7551
        %v7553 = vlaneseq
        %v7554 = vshrl.u32 %v7553, 7
        %v7555 = vsub.s32 %v7552, %v7554
        %v7556 = vrot.slane %v7548, %v7555
        %v7558 = vunpack.c.l.s4 1935823168
        %v7559 = vunpack.c.0.s8 %v7558
        %v7560 = vlaneseq
        %v7561 = vshrl.u32 %v7560, 7
        %v7562 = vsub.s32 %v7559, %v7561
        %v7563 = vrot.slane %v7549, %v7562
        %v7564 = vcombine.low %v7556, %v7563
        %v7566 = vunpack.c.l.s4 1935823168
        %v7567 = vunpack.c.0.s8 %v7566
        %v7568 = vlaneseq
        %v7569 = vshrl.u32 %v7568, 7
        %v7570 = vsub.s32 %v7567, %v7569
        %v7571 = vrot.slane %v7564, %v7570
        %v7572 = vcombine.low %v5391, %v5399
        %v7573 = vcombine.low %v5395, %v5403
        %v7575 = vunpack.c.l.s4 1935823168
        %v7576 = vunpack.c.0.s8 %v7575
        %v7577 = vlaneseq
        %v7578 = vshrl.u32 %v7577, 7
        %v7579 = vsub.s32 %v7576, %v7578
        %v7580 = vrot.slane %v7572, %v7579
        %v7582 = vunpack.c.l.s4 1935823168
        %v7583 = vunpack.c.0.s8 %v7582
        %v7584 = vlaneseq
        %v7585 = vshrl.u32 %v7584, 7
        %v7586 = vsub.s32 %v7583, %v7585
        %v7587 = vrot.slane %v7573, %v7586
        %v7588 = vcombine.low %v7580, %v7587
        %v7590 = vunpack.c.l.s4 1935823168
        %v7591 = vunpack.c.0.s8 %v7590
        %v7592 = vlaneseq
        %v7593 = vshrl.u32 %v7592, 7
        %v7594 = vsub.s32 %v7591, %v7593
        %v7595 = vrot.slane %v7588, %v7594
        %v7596 = vcombine.low %v5407, %v5415
        %v7597 = vcombine.low %v5411, %v5419
        %v7599 = vunpack.c.l.s4 1935823168
        %v7600 = vunpack.c.0.s8 %v7599
        %v7601 = vlaneseq
        %v7602 = vshrl.u32 %v7601, 7
        %v7603 = vsub.s32 %v7600, %v7602
        %v7604 = vrot.slane %v7596, %v7603
        %v7606 = vunpack.c.l.s4 1935823168
        %v7607 = vunpack.c.0.s8 %v7606
        %v7608 = vlaneseq
        %v7609 = vshrl.u32 %v7608, 7
        %v7610 = vsub.s32 %v7607, %v7609
        %v7611 = vrot.slane %v7597, %v7610
        %v7612 = vcombine.low %v7604, %v7611
        %v7614 = vunpack.c.l.s4 1935823168
        %v7615 = vunpack.c.0.s8 %v7614
        %v7616 = vlaneseq
        %v7617 = vshrl.u32 %v7616, 7
        %v7618 = vsub.s32 %v7615, %v7617
        %v7619 = vrot.slane %v7612, %v7618
        %v7620 = vcombine.low %v5423, %v5431
        %v7621 = vcombine.low %v5427, %v5435
        %v7623 = vunpack.c.l.s4 1935823168
        %v7624 = vunpack.c.0.s8 %v7623
        %v7625 = vlaneseq
        %v7626 = vshrl.u32 %v7625, 7
        %v7627 = vsub.s32 %v7624, %v7626
        %v7628 = vrot.slane %v7620, %v7627
        %v7630 = vunpack.c.l.s4 1935823168
        %v7631 = vunpack.c.0.s8 %v7630
        %v7632 = vlaneseq
        %v7633 = vshrl.u32 %v7632, 7
        %v7634 = vsub.s32 %v7631, %v7633
        %v7635 = vrot.slane %v7621, %v7634
        %v7636 = vcombine.low %v7628, %v7635
        %v7638 = vunpack.c.l.s4 1935823168
        %v7639 = vunpack.c.0.s8 %v7638
        %v7640 = vlaneseq
        %v7641 = vshrl.u32 %v7640, 7
        %v7642 = vsub.s32 %v7639, %v7641
        %v7643 = vrot.slane %v7636, %v7642
        %v7644 = vcombine.low %v5439, %v5447
        %v7645 = vcombine.low %v5443, %v5451
        %v7647 = vunpack.c.l.s4 1935823168
        %v7648 = vunpack.c.0.s8 %v7647
        %v7649 = vlaneseq
        %v7650 = vshrl.u32 %v7649, 7
        %v7651 = vsub.s32 %v7648, %v7650
        %v7652 = vrot.slane %v7644, %v7651
        %v7654 = vunpack.c.l.s4 1935823168
        %v7655 = vunpack.c.0.s8 %v7654
        %v7656 = vlaneseq
        %v7657 = vshrl.u32 %v7656, 7
        %v7658 = vsub.s32 %v7655, %v7657
        %v7659 = vrot.slane %v7645, %v7658
        %v7660 = vcombine.low %v7652, %v7659
        %v7662 = vunpack.c.l.s4 1935823168
        %v7663 = vunpack.c.0.s8 %v7662
        %v7664 = vlaneseq
        %v7665 = vshrl.u32 %v7664, 7
        %v7666 = vsub.s32 %v7663, %v7665
        %v7667 = vrot.slane %v7660, %v7666
        %v7668 = vcombine.low %v5455, %v5463
        %v7669 = vcombine.low %v5459, %v5467
        %v7671 = vunpack.c.l.s4 1935823168
        %v7672 = vunpack.c.0.s8 %v7671
        %v7673 = vlaneseq
        %v7674 = vshrl.u32 %v7673, 7
        %v7675 = vsub.s32 %v7672, %v7674
        %v7676 = vrot.slane %v7668, %v7675
        %v7678 = vunpack.c.l.s4 1935823168
        %v7679 = vunpack.c.0.s8 %v7678
        %v7680 = vlaneseq
        %v7681 = vshrl.u32 %v7680, 7
        %v7682 = vsub.s32 %v7679, %v7681
        %v7683 = vrot.slane %v7669, %v7682
        %v7684 = vcombine.low %v7676, %v7683
        %v7686 = vunpack.c.l.s4 1935823168
        %v7687 = vunpack.c.0.s8 %v7686
        %v7688 = vlaneseq
        %v7689 = vshrl.u32 %v7688, 7
        %v7690 = vsub.s32 %v7687, %v7689
        %v7691 = vrot.slane %v7684, %v7690
        %v7692 = vcombine.low %v5471, %v5479
        %v7693 = vcombine.low %v5475, %v5483
        %v7695 = vunpack.c.l.s4 1935823168
        %v7696 = vunpack.c.0.s8 %v7695
        %v7697 = vlaneseq
        %v7698 = vshrl.u32 %v7697, 7
        %v7699 = vsub.s32 %v7696, %v7698
        %v7700 = vrot.slane %v7692, %v7699
        %v7702 = vunpack.c.l.s4 1935823168
        %v7703 = vunpack.c.0.s8 %v7702
        %v7704 = vlaneseq
        %v7705 = vshrl.u32 %v7704, 7
        %v7706 = vsub.s32 %v7703, %v7705
        %v7707 = vrot.slane %v7693, %v7706
        %v7708 = vcombine.low %v7700, %v7707
        %v7710 = vunpack.c.l.s4 1935823168
        %v7711 = vunpack.c.0.s8 %v7710
        %v7712 = vlaneseq
        %v7713 = vshrl.u32 %v7712, 7
        %v7714 = vsub.s32 %v7711, %v7713
        %v7715 = vrot.slane %v7708, %v7714
        %v7716 = vcombine.low %v5487, %v5495
        %v7717 = vcombine.low %v5491, %v5499
        %v7719 = vunpack.c.l.s4 1935823168
        %v7720 = vunpack.c.0.s8 %v7719
        %v7721 = vlaneseq
        %v7722 = vshrl.u32 %v7721, 7
        %v7723 = vsub.s32 %v7720, %v7722
        %v7724 = vrot.slane %v7716, %v7723
        %v7726 = vunpack.c.l.s4 1935823168
        %v7727 = vunpack.c.0.s8 %v7726
        %v7728 = vlaneseq
        %v7729 = vshrl.u32 %v7728, 7
        %v7730 = vsub.s32 %v7727, %v7729
        %v7731 = vrot.slane %v7717, %v7730
        %v7732 = vcombine.low %v7724, %v7731
        %v7734 = vunpack.c.l.s4 1935823168
        %v7735 = vunpack.c.0.s8 %v7734
        %v7736 = vlaneseq
        %v7737 = vshrl.u32 %v7736, 7
        %v7738 = vsub.s32 %v7735, %v7737
        %v7739 = vrot.slane %v7732, %v7738
        %v7740 = vcombine.low %v5503, %v5511
        %v7741 = vcombine.low %v5507, %v5515
        %v7743 = vunpack.c.l.s4 1935823168
        %v7744 = vunpack.c.0.s8 %v7743
        %v7745 = vlaneseq
        %v7746 = vshrl.u32 %v7745, 7
        %v7747 = vsub.s32 %v7744, %v7746
        %v7748 = vrot.slane %v7740, %v7747
        %v7750 = vunpack.c.l.s4 1935823168
        %v7751 = vunpack.c.0.s8 %v7750
        %v7752 = vlaneseq
        %v7753 = vshrl.u32 %v7752, 7
        %v7754 = vsub.s32 %v7751, %v7753
        %v7755 = vrot.slane %v7741, %v7754
        %v7756 = vcombine.low %v7748, %v7755
        %v7758 = vunpack.c.l.s4 1935823168
        %v7759 = vunpack.c.0.s8 %v7758
        %v7760 = vlaneseq
        %v7761 = vshrl.u32 %v7760, 7
        %v7762 = vsub.s32 %v7759, %v7761
        %v7763 = vrot.slane %v7756, %v7762
        %v7764 = vcombine.low %v5519, %v5527
        %v7765 = vcombine.low %v5523, %v5531
        %v7767 = vunpack.c.l.s4 1935823168
        %v7768 = vunpack.c.0.s8 %v7767
        %v7769 = vlaneseq
        %v7770 = vshrl.u32 %v7769, 7
        %v7771 = vsub.s32 %v7768, %v7770
        %v7772 = vrot.slane %v7764, %v7771
        %v7774 = vunpack.c.l.s4 1935823168
        %v7775 = vunpack.c.0.s8 %v7774
        %v7776 = vlaneseq
        %v7777 = vshrl.u32 %v7776, 7
        %v7778 = vsub.s32 %v7775, %v7777
        %v7779 = vrot.slane %v7765, %v7778
        %v7780 = vcombine.low %v7772, %v7779
        %v7782 = vunpack.c.l.s4 1935823168
        %v7783 = vunpack.c.0.s8 %v7782
        %v7784 = vlaneseq
        %v7785 = vshrl.u32 %v7784, 7
        %v7786 = vsub.s32 %v7783, %v7785
        %v7787 = vrot.slane %v7780, %v7786
        %v7788 = vcombine.low %v5535, %v5543
        %v7789 = vcombine.low %v5539, %v5547
        %v7791 = vunpack.c.l.s4 1935823168
        %v7792 = vunpack.c.0.s8 %v7791
        %v7793 = vlaneseq
        %v7794 = vshrl.u32 %v7793, 7
        %v7795 = vsub.s32 %v7792, %v7794
        %v7796 = vrot.slane %v7788, %v7795
        %v7798 = vunpack.c.l.s4 1935823168
        %v7799 = vunpack.c.0.s8 %v7798
        %v7800 = vlaneseq
        %v7801 = vshrl.u32 %v7800, 7
        %v7802 = vsub.s32 %v7799, %v7801
        %v7803 = vrot.slane %v7789, %v7802
        %v7804 = vcombine.low %v7796, %v7803
        %v7806 = vunpack.c.l.s4 1935823168
        %v7807 = vunpack.c.0.s8 %v7806
        %v7808 = vlaneseq
        %v7809 = vshrl.u32 %v7808, 7
        %v7810 = vsub.s32 %v7807, %v7809
        %v7811 = vrot.slane %v7804, %v7810
        %v7812 = vcombine.low %v5551, %v5559
        %v7813 = vcombine.low %v5555, %v5563
        %v7815 = vunpack.c.l.s4 1935823168
        %v7816 = vunpack.c.0.s8 %v7815
        %v7817 = vlaneseq
        %v7818 = vshrl.u32 %v7817, 7
        %v7819 = vsub.s32 %v7816, %v7818
        %v7820 = vrot.slane %v7812, %v7819
        %v7822 = vunpack.c.l.s4 1935823168
        %v7823 = vunpack.c.0.s8 %v7822
        %v7824 = vlaneseq
        %v7825 = vshrl.u32 %v7824, 7
        %v7826 = vsub.s32 %v7823, %v7825
        %v7827 = vrot.slane %v7813, %v7826
        %v7828 = vcombine.low %v7820, %v7827
        %v7830 = vunpack.c.l.s4 1935823168
        %v7831 = vunpack.c.0.s8 %v7830
        %v7832 = vlaneseq
        %v7833 = vshrl.u32 %v7832, 7
        %v7834 = vsub.s32 %v7831, %v7833
        %v7835 = vrot.slane %v7828, %v7834
        %v7836 = vcombine.low %v5567, %v5575
        %v7837 = vcombine.low %v5571, %v5579
        %v7839 = vunpack.c.l.s4 1935823168
        %v7840 = vunpack.c.0.s8 %v7839
        %v7841 = vlaneseq
        %v7842 = vshrl.u32 %v7841, 7
        %v7843 = vsub.s32 %v7840, %v7842
        %v7844 = vrot.slane %v7836, %v7843
        %v7846 = vunpack.c.l.s4 1935823168
        %v7847 = vunpack.c.0.s8 %v7846
        %v7848 = vlaneseq
        %v7849 = vshrl.u32 %v7848, 7
        %v7850 = vsub.s32 %v7847, %v7849
        %v7851 = vrot.slane %v7837, %v7850
        %v7852 = vcombine.low %v7844, %v7851
        %v7854 = vunpack.c.l.s4 1935823168
        %v7855 = vunpack.c.0.s8 %v7854
        %v7856 = vlaneseq
        %v7857 = vshrl.u32 %v7856, 7
        %v7858 = vsub.s32 %v7855, %v7857
        %v7859 = vrot.slane %v7852, %v7858
        %v7860 = vcombine.low %v5583, %v5591
        %v7861 = vcombine.low %v5587, %v5595
        %v7863 = vunpack.c.l.s4 1935823168
        %v7864 = vunpack.c.0.s8 %v7863
        %v7865 = vlaneseq
        %v7866 = vshrl.u32 %v7865, 7
        %v7867 = vsub.s32 %v7864, %v7866
        %v7868 = vrot.slane %v7860, %v7867
        %v7870 = vunpack.c.l.s4 1935823168
        %v7871 = vunpack.c.0.s8 %v7870
        %v7872 = vlaneseq
        %v7873 = vshrl.u32 %v7872, 7
        %v7874 = vsub.s32 %v7871, %v7873
        %v7875 = vrot.slane %v7861, %v7874
        %v7876 = vcombine.low %v7868, %v7875
        %v7878 = vunpack.c.l.s4 1935823168
        %v7879 = vunpack.c.0.s8 %v7878
        %v7880 = vlaneseq
        %v7881 = vshrl.u32 %v7880, 7
        %v7882 = vsub.s32 %v7879, %v7881
        %v7883 = vrot.slane %v7876, %v7882
        %v7884 = vcombine.low %v5599, %v5607
        %v7885 = vcombine.low %v5603, %v5611
        %v7887 = vunpack.c.l.s4 1935823168
        %v7888 = vunpack.c.0.s8 %v7887
        %v7889 = vlaneseq
        %v7890 = vshrl.u32 %v7889, 7
        %v7891 = vsub.s32 %v7888, %v7890
        %v7892 = vrot.slane %v7884, %v7891
        %v7894 = vunpack.c.l.s4 1935823168
        %v7895 = vunpack.c.0.s8 %v7894
        %v7896 = vlaneseq
        %v7897 = vshrl.u32 %v7896, 7
        %v7898 = vsub.s32 %v7895, %v7897
        %v7899 = vrot.slane %v7885, %v7898
        %v7900 = vcombine.low %v7892, %v7899
        %v7902 = vunpack.c.l.s4 1935823168
        %v7903 = vunpack.c.0.s8 %v7902
        %v7904 = vlaneseq
        %v7905 = vshrl.u32 %v7904, 7
        %v7906 = vsub.s32 %v7903, %v7905
        %v7907 = vrot.slane %v7900, %v7906
        %v7908 = vcombine.low %v5615, %v5623
        %v7909 = vcombine.low %v5619, %v5627
        %v7911 = vunpack.c.l.s4 1935823168
        %v7912 = vunpack.c.0.s8 %v7911
        %v7913 = vlaneseq
        %v7914 = vshrl.u32 %v7913, 7
        %v7915 = vsub.s32 %v7912, %v7914
        %v7916 = vrot.slane %v7908, %v7915
        %v7918 = vunpack.c.l.s4 1935823168
        %v7919 = vunpack.c.0.s8 %v7918
        %v7920 = vlaneseq
        %v7921 = vshrl.u32 %v7920, 7
        %v7922 = vsub.s32 %v7919, %v7921
        %v7923 = vrot.slane %v7909, %v7922
        %v7924 = vcombine.low %v7916, %v7923
        %v7926 = vunpack.c.l.s4 1935823168
        %v7927 = vunpack.c.0.s8 %v7926
        %v7928 = vlaneseq
        %v7929 = vshrl.u32 %v7928, 7
        %v7930 = vsub.s32 %v7927, %v7929
        %v7931 = vrot.slane %v7924, %v7930
        %v7932 = vcombine.low %v5631, %v5639
        %v7933 = vcombine.low %v5635, %v5643
        %v7935 = vunpack.c.l.s4 1935823168
        %v7936 = vunpack.c.0.s8 %v7935
        %v7937 = vlaneseq
        %v7938 = vshrl.u32 %v7937, 7
        %v7939 = vsub.s32 %v7936, %v7938
        %v7940 = vrot.slane %v7932, %v7939
        %v7942 = vunpack.c.l.s4 1935823168
        %v7943 = vunpack.c.0.s8 %v7942
        %v7944 = vlaneseq
        %v7945 = vshrl.u32 %v7944, 7
        %v7946 = vsub.s32 %v7943, %v7945
        %v7947 = vrot.slane %v7933, %v7946
        %v7948 = vcombine.low %v7940, %v7947
        %v7950 = vunpack.c.l.s4 1935823168
        %v7951 = vunpack.c.0.s8 %v7950
        %v7952 = vlaneseq
        %v7953 = vshrl.u32 %v7952, 7
        %v7954 = vsub.s32 %v7951, %v7953
        %v7955 = vrot.slane %v7948, %v7954
        %v7956 = vcombine.low %v5647, %v5655
        %v7957 = vcombine.low %v5651, %v5659
        %v7959 = vunpack.c.l.s4 1935823168
        %v7960 = vunpack.c.0.s8 %v7959
        %v7961 = vlaneseq
        %v7962 = vshrl.u32 %v7961, 7
        %v7963 = vsub.s32 %v7960, %v7962
        %v7964 = vrot.slane %v7956, %v7963
        %v7966 = vunpack.c.l.s4 1935823168
        %v7967 = vunpack.c.0.s8 %v7966
        %v7968 = vlaneseq
        %v7969 = vshrl.u32 %v7968, 7
        %v7970 = vsub.s32 %v7967, %v7969
        %v7971 = vrot.slane %v7957, %v7970
        %v7972 = vcombine.low %v7964, %v7971
        %v7974 = vunpack.c.l.s4 1935823168
        %v7975 = vunpack.c.0.s8 %v7974
        %v7976 = vlaneseq
        %v7977 = vshrl.u32 %v7976, 7
        %v7978 = vsub.s32 %v7975, %v7977
        %v7979 = vrot.slane %v7972, %v7978
        %v7980 = vcombine.low %v5663, %v5671
        %v7981 = vcombine.low %v5667, %v5675
        %v7983 = vunpack.c.l.s4 1935823168
        %v7984 = vunpack.c.0.s8 %v7983
        %v7985 = vlaneseq
        %v7986 = vshrl.u32 %v7985, 7
        %v7987 = vsub.s32 %v7984, %v7986
        %v7988 = vrot.slane %v7980, %v7987
        %v7990 = vunpack.c.l.s4 1935823168
        %v7991 = vunpack.c.0.s8 %v7990
        %v7992 = vlaneseq
        %v7993 = vshrl.u32 %v7992, 7
        %v7994 = vsub.s32 %v7991, %v7993
        %v7995 = vrot.slane %v7981, %v7994
        %v7996 = vcombine.low %v7988, %v7995
        %v7998 = vunpack.c.l.s4 1935823168
        %v7999 = vunpack.c.0.s8 %v7998
        %v8000 = vlaneseq
        %v8001 = vshrl.u32 %v8000, 7
        %v8002 = vsub.s32 %v7999, %v8001
        %v8003 = vrot.slane %v7996, %v8002
        %v8004 = vcombine.low %v5679, %v5687
        %v8005 = vcombine.low %v5683, %v5691
        %v8007 = vunpack.c.l.s4 1935823168
        %v8008 = vunpack.c.0.s8 %v8007
        %v8009 = vlaneseq
        %v8010 = vshrl.u32 %v8009, 7
        %v8011 = vsub.s32 %v8008, %v8010
        %v8012 = vrot.slane %v8004, %v8011
        %v8014 = vunpack.c.l.s4 1935823168
        %v8015 = vunpack.c.0.s8 %v8014
        %v8016 = vlaneseq
        %v8017 = vshrl.u32 %v8016, 7
        %v8018 = vsub.s32 %v8015, %v8017
        %v8019 = vrot.slane %v8005, %v8018
        %v8020 = vcombine.low %v8012, %v8019
        %v8022 = vunpack.c.l.s4 1935823168
        %v8023 = vunpack.c.0.s8 %v8022
        %v8024 = vlaneseq
        %v8025 = vshrl.u32 %v8024, 7
        %v8026 = vsub.s32 %v8023, %v8025
        %v8027 = vrot.slane %v8020, %v8026
        %v8028 = vcombine.low %v5695, %v5703
        %v8029 = vcombine.low %v5699, %v5707
        %v8031 = vunpack.c.l.s4 1935823168
        %v8032 = vunpack.c.0.s8 %v8031
        %v8033 = vlaneseq
        %v8034 = vshrl.u32 %v8033, 7
        %v8035 = vsub.s32 %v8032, %v8034
        %v8036 = vrot.slane %v8028, %v8035
        %v8038 = vunpack.c.l.s4 1935823168
        %v8039 = vunpack.c.0.s8 %v8038
        %v8040 = vlaneseq
        %v8041 = vshrl.u32 %v8040, 7
        %v8042 = vsub.s32 %v8039, %v8041
        %v8043 = vrot.slane %v8029, %v8042
        %v8044 = vcombine.low %v8036, %v8043
        %v8046 = vunpack.c.l.s4 1935823168
        %v8047 = vunpack.c.0.s8 %v8046
        %v8048 = vlaneseq
        %v8049 = vshrl.u32 %v8048, 7
        %v8050 = vsub.s32 %v8047, %v8049
        %v8051 = vrot.slane %v8044, %v8050
        %v8052 = vcombine.low %v5711, %v5719
        %v8053 = vcombine.low %v5715, %v5723
        %v8055 = vunpack.c.l.s4 1935823168
        %v8056 = vunpack.c.0.s8 %v8055
        %v8057 = vlaneseq
        %v8058 = vshrl.u32 %v8057, 7
        %v8059 = vsub.s32 %v8056, %v8058
        %v8060 = vrot.slane %v8052, %v8059
        %v8062 = vunpack.c.l.s4 1935823168
        %v8063 = vunpack.c.0.s8 %v8062
        %v8064 = vlaneseq
        %v8065 = vshrl.u32 %v8064, 7
        %v8066 = vsub.s32 %v8063, %v8065
        %v8067 = vrot.slane %v8053, %v8066
        %v8068 = vcombine.low %v8060, %v8067
        %v8070 = vunpack.c.l.s4 1935823168
        %v8071 = vunpack.c.0.s8 %v8070
        %v8072 = vlaneseq
        %v8073 = vshrl.u32 %v8072, 7
        %v8074 = vsub.s32 %v8071, %v8073
        %v8075 = vrot.slane %v8068, %v8074
        %v8076 = vcombine.low %v5727, %v5735
        %v8077 = vcombine.low %v5731, %v5739
        %v8079 = vunpack.c.l.s4 1935823168
        %v8080 = vunpack.c.0.s8 %v8079
        %v8081 = vlaneseq
        %v8082 = vshrl.u32 %v8081, 7
        %v8083 = vsub.s32 %v8080, %v8082
        %v8084 = vrot.slane %v8076, %v8083
        %v8086 = vunpack.c.l.s4 1935823168
        %v8087 = vunpack.c.0.s8 %v8086
        %v8088 = vlaneseq
        %v8089 = vshrl.u32 %v8088, 7
        %v8090 = vsub.s32 %v8087, %v8089
        %v8091 = vrot.slane %v8077, %v8090
        %v8092 = vcombine.low %v8084, %v8091
        %v8094 = vunpack.c.l.s4 1935823168
        %v8095 = vunpack.c.0.s8 %v8094
        %v8096 = vlaneseq
        %v8097 = vshrl.u32 %v8096, 7
        %v8098 = vsub.s32 %v8095, %v8097
        %v8099 = vrot.slane %v8092, %v8098
        %v8100 = vcombine.low %v5743, %v5751
        %v8101 = vcombine.low %v5747, %v5755
        %v8103 = vunpack.c.l.s4 1935823168
        %v8104 = vunpack.c.0.s8 %v8103
        %v8105 = vlaneseq
        %v8106 = vshrl.u32 %v8105, 7
        %v8107 = vsub.s32 %v8104, %v8106
        %v8108 = vrot.slane %v8100, %v8107
        %v8110 = vunpack.c.l.s4 1935823168
        %v8111 = vunpack.c.0.s8 %v8110
        %v8112 = vlaneseq
        %v8113 = vshrl.u32 %v8112, 7
        %v8114 = vsub.s32 %v8111, %v8113
        %v8115 = vrot.slane %v8101, %v8114
        %v8116 = vcombine.low %v8108, %v8115
        %v8118 = vunpack.c.l.s4 1935823168
        %v8119 = vunpack.c.0.s8 %v8118
        %v8120 = vlaneseq
        %v8121 = vshrl.u32 %v8120, 7
        %v8122 = vsub.s32 %v8119, %v8121
        %v8123 = vrot.slane %v8116, %v8122
        %v8124 = vcombine.low %v5759, %v5767
        %v8125 = vcombine.low %v5763, %v5771
        %v8127 = vunpack.c.l.s4 1935823168
        %v8128 = vunpack.c.0.s8 %v8127
        %v8129 = vlaneseq
        %v8130 = vshrl.u32 %v8129, 7
        %v8131 = vsub.s32 %v8128, %v8130
        %v8132 = vrot.slane %v8124, %v8131
        %v8134 = vunpack.c.l.s4 1935823168
        %v8135 = vunpack.c.0.s8 %v8134
        %v8136 = vlaneseq
        %v8137 = vshrl.u32 %v8136, 7
        %v8138 = vsub.s32 %v8135, %v8137
        %v8139 = vrot.slane %v8125, %v8138
        %v8140 = vcombine.low %v8132, %v8139
        %v8142 = vunpack.c.l.s4 1935823168
        %v8143 = vunpack.c.0.s8 %v8142
        %v8144 = vlaneseq
        %v8145 = vshrl.u32 %v8144, 7
        %v8146 = vsub.s32 %v8143, %v8145
        %v8147 = vrot.slane %v8140, %v8146
        %v8148 = vcombine.low %v5775, %v5783
        %v8149 = vcombine.low %v5779, %v5787
        %v8151 = vunpack.c.l.s4 1935823168
        %v8152 = vunpack.c.0.s8 %v8151
        %v8153 = vlaneseq
        %v8154 = vshrl.u32 %v8153, 7
        %v8155 = vsub.s32 %v8152, %v8154
        %v8156 = vrot.slane %v8148, %v8155
        %v8158 = vunpack.c.l.s4 1935823168
        %v8159 = vunpack.c.0.s8 %v8158
        %v8160 = vlaneseq
        %v8161 = vshrl.u32 %v8160, 7
        %v8162 = vsub.s32 %v8159, %v8161
        %v8163 = vrot.slane %v8149, %v8162
        %v8164 = vcombine.low %v8156, %v8163
        %v8166 = vunpack.c.l.s4 1935823168
        %v8167 = vunpack.c.0.s8 %v8166
        %v8168 = vlaneseq
        %v8169 = vshrl.u32 %v8168, 7
        %v8170 = vsub.s32 %v8167, %v8169
        %v8171 = vrot.slane %v8164, %v8170
        %v8172 = vcombine.low %v5791, %v5799
        %v8173 = vcombine.low %v5795, %v5803
        %v8175 = vunpack.c.l.s4 1935823168
        %v8176 = vunpack.c.0.s8 %v8175
        %v8177 = vlaneseq
        %v8178 = vshrl.u32 %v8177, 7
        %v8179 = vsub.s32 %v8176, %v8178
        %v8180 = vrot.slane %v8172, %v8179
        %v8182 = vunpack.c.l.s4 1935823168
        %v8183 = vunpack.c.0.s8 %v8182
        %v8184 = vlaneseq
        %v8185 = vshrl.u32 %v8184, 7
        %v8186 = vsub.s32 %v8183, %v8185
        %v8187 = vrot.slane %v8173, %v8186
        %v8188 = vcombine.low %v8180, %v8187
        %v8190 = vunpack.c.l.s4 1935823168
        %v8191 = vunpack.c.0.s8 %v8190
        %v8192 = vlaneseq
        %v8193 = vshrl.u32 %v8192, 7
        %v8194 = vsub.s32 %v8191, %v8193
        %v8195 = vrot.slane %v8188, %v8194
        %v8196 = vcombine.low %v5807, %v5815
        %v8197 = vcombine.low %v5811, %v5819
        %v8199 = vunpack.c.l.s4 1935823168
        %v8200 = vunpack.c.0.s8 %v8199
        %v8201 = vlaneseq
        %v8202 = vshrl.u32 %v8201, 7
        %v8203 = vsub.s32 %v8200, %v8202
        %v8204 = vrot.slane %v8196, %v8203
        %v8206 = vunpack.c.l.s4 1935823168
        %v8207 = vunpack.c.0.s8 %v8206
        %v8208 = vlaneseq
        %v8209 = vshrl.u32 %v8208, 7
        %v8210 = vsub.s32 %v8207, %v8209
        %v8211 = vrot.slane %v8197, %v8210
        %v8212 = vcombine.low %v8204, %v8211
        %v8214 = vunpack.c.l.s4 1935823168
        %v8215 = vunpack.c.0.s8 %v8214
        %v8216 = vlaneseq
        %v8217 = vshrl.u32 %v8216, 7
        %v8218 = vsub.s32 %v8215, %v8217
        %v8219 = vrot.slane %v8212, %v8218
        %v8220 = vcombine.low %v5823, %v5831
        %v8221 = vcombine.low %v5827, %v5835
        %v8223 = vunpack.c.l.s4 1935823168
        %v8224 = vunpack.c.0.s8 %v8223
        %v8225 = vlaneseq
        %v8226 = vshrl.u32 %v8225, 7
        %v8227 = vsub.s32 %v8224, %v8226
        %v8228 = vrot.slane %v8220, %v8227
        %v8230 = vunpack.c.l.s4 1935823168
        %v8231 = vunpack.c.0.s8 %v8230
        %v8232 = vlaneseq
        %v8233 = vshrl.u32 %v8232, 7
        %v8234 = vsub.s32 %v8231, %v8233
        %v8235 = vrot.slane %v8221, %v8234
        %v8236 = vcombine.low %v8228, %v8235
        %v8238 = vunpack.c.l.s4 1935823168
        %v8239 = vunpack.c.0.s8 %v8238
        %v8240 = vlaneseq
        %v8241 = vshrl.u32 %v8240, 7
        %v8242 = vsub.s32 %v8239, %v8241
        %v8243 = vrot.slane %v8236, %v8242
        %v8244 = vcombine.low %v5839, %v5847
        %v8245 = vcombine.low %v5843, %v5851
        %v8247 = vunpack.c.l.s4 1935823168
        %v8248 = vunpack.c.0.s8 %v8247
        %v8249 = vlaneseq
        %v8250 = vshrl.u32 %v8249, 7
        %v8251 = vsub.s32 %v8248, %v8250
        %v8252 = vrot.slane %v8244, %v8251
        %v8254 = vunpack.c.l.s4 1935823168
        %v8255 = vunpack.c.0.s8 %v8254
        %v8256 = vlaneseq
        %v8257 = vshrl.u32 %v8256, 7
        %v8258 = vsub.s32 %v8255, %v8257
        %v8259 = vrot.slane %v8245, %v8258
        %v8260 = vcombine.low %v8252, %v8259
        %v8262 = vunpack.c.l.s4 1935823168
        %v8263 = vunpack.c.0.s8 %v8262
        %v8264 = vlaneseq
        %v8265 = vshrl.u32 %v8264, 7
        %v8266 = vsub.s32 %v8263, %v8265
        %v8267 = vrot.slane %v8260, %v8266
        %v8268 = vcombine.low %v5855, %v5863
        %v8269 = vcombine.low %v5859, %v5867
        %v8271 = vunpack.c.l.s4 1935823168
        %v8272 = vunpack.c.0.s8 %v8271
        %v8273 = vlaneseq
        %v8274 = vshrl.u32 %v8273, 7
        %v8275 = vsub.s32 %v8272, %v8274
        %v8276 = vrot.slane %v8268, %v8275
        %v8278 = vunpack.c.l.s4 1935823168
        %v8279 = vunpack.c.0.s8 %v8278
        %v8280 = vlaneseq
        %v8281 = vshrl.u32 %v8280, 7
        %v8282 = vsub.s32 %v8279, %v8281
        %v8283 = vrot.slane %v8269, %v8282
        %v8284 = vcombine.low %v8276, %v8283
        %v8286 = vunpack.c.l.s4 1935823168
        %v8287 = vunpack.c.0.s8 %v8286
        %v8288 = vlaneseq
        %v8289 = vshrl.u32 %v8288, 7
        %v8290 = vsub.s32 %v8287, %v8289
        %v8291 = vrot.slane %v8284, %v8290
        %v8292 = vcombine.low %v5871, %v5879
        %v8293 = vcombine.low %v5875, %v5883
        %v8295 = vunpack.c.l.s4 1935823168
        %v8296 = vunpack.c.0.s8 %v8295
        %v8297 = vlaneseq
        %v8298 = vshrl.u32 %v8297, 7
        %v8299 = vsub.s32 %v8296, %v8298
        %v8300 = vrot.slane %v8292, %v8299
        %v8302 = vunpack.c.l.s4 1935823168
        %v8303 = vunpack.c.0.s8 %v8302
        %v8304 = vlaneseq
        %v8305 = vshrl.u32 %v8304, 7
        %v8306 = vsub.s32 %v8303, %v8305
        %v8307 = vrot.slane %v8293, %v8306
        %v8308 = vcombine.low %v8300, %v8307
        %v8310 = vunpack.c.l.s4 1935823168
        %v8311 = vunpack.c.0.s8 %v8310
        %v8312 = vlaneseq
        %v8313 = vshrl.u32 %v8312, 7
        %v8314 = vsub.s32 %v8311, %v8313
        %v8315 = vrot.slane %v8308, %v8314
        %v8316 = vcombine.low %v5887, %v5895
        %v8317 = vcombine.low %v5891, %v5899
        %v8319 = vunpack.c.l.s4 1935823168
        %v8320 = vunpack.c.0.s8 %v8319
        %v8321 = vlaneseq
        %v8322 = vshrl.u32 %v8321, 7
        %v8323 = vsub.s32 %v8320, %v8322
        %v8324 = vrot.slane %v8316, %v8323
        %v8326 = vunpack.c.l.s4 1935823168
        %v8327 = vunpack.c.0.s8 %v8326
        %v8328 = vlaneseq
        %v8329 = vshrl.u32 %v8328, 7
        %v8330 = vsub.s32 %v8327, %v8329
        %v8331 = vrot.slane %v8317, %v8330
        %v8332 = vcombine.low %v8324, %v8331
        %v8334 = vunpack.c.l.s4 1935823168
        %v8335 = vunpack.c.0.s8 %v8334
        %v8336 = vlaneseq
        %v8337 = vshrl.u32 %v8336, 7
        %v8338 = vsub.s32 %v8335, %v8337
        %v8339 = vrot.slane %v8332, %v8338
        %v8340 = vcombine.low %v5903, %v5911
        %v8341 = vcombine.low %v5907, %v5915
        %v8343 = vunpack.c.l.s4 1935823168
        %v8344 = vunpack.c.0.s8 %v8343
        %v8345 = vlaneseq
        %v8346 = vshrl.u32 %v8345, 7
        %v8347 = vsub.s32 %v8344, %v8346
        %v8348 = vrot.slane %v8340, %v8347
        %v8350 = vunpack.c.l.s4 1935823168
        %v8351 = vunpack.c.0.s8 %v8350
        %v8352 = vlaneseq
        %v8353 = vshrl.u32 %v8352, 7
        %v8354 = vsub.s32 %v8351, %v8353
        %v8355 = vrot.slane %v8341, %v8354
        %v8356 = vcombine.low %v8348, %v8355
        %v8358 = vunpack.c.l.s4 1935823168
        %v8359 = vunpack.c.0.s8 %v8358
        %v8360 = vlaneseq
        %v8361 = vshrl.u32 %v8360, 7
        %v8362 = vsub.s32 %v8359, %v8361
        %v8363 = vrot.slane %v8356, %v8362
        %v8364 = vcombine.low %v5919, %v5927
        %v8365 = vcombine.low %v5923, %v5931
        %v8367 = vunpack.c.l.s4 1935823168
        %v8368 = vunpack.c.0.s8 %v8367
        %v8369 = vlaneseq
        %v8370 = vshrl.u32 %v8369, 7
        %v8371 = vsub.s32 %v8368, %v8370
        %v8372 = vrot.slane %v8364, %v8371
        %v8374 = vunpack.c.l.s4 1935823168
        %v8375 = vunpack.c.0.s8 %v8374
        %v8376 = vlaneseq
        %v8377 = vshrl.u32 %v8376, 7
        %v8378 = vsub.s32 %v8375, %v8377
        %v8379 = vrot.slane %v8365, %v8378
        %v8380 = vcombine.low %v8372, %v8379
        %v8382 = vunpack.c.l.s4 1935823168
        %v8383 = vunpack.c.0.s8 %v8382
        %v8384 = vlaneseq
        %v8385 = vshrl.u32 %v8384, 7
        %v8386 = vsub.s32 %v8383, %v8385
        %v8387 = vrot.slane %v8380, %v8386
        %v8388 = vcombine.low %v5935, %v5943
        %v8389 = vcombine.low %v5939, %v5947
        %v8391 = vunpack.c.l.s4 1935823168
        %v8392 = vunpack.c.0.s8 %v8391
        %v8393 = vlaneseq
        %v8394 = vshrl.u32 %v8393, 7
        %v8395 = vsub.s32 %v8392, %v8394
        %v8396 = vrot.slane %v8388, %v8395
        %v8398 = vunpack.c.l.s4 1935823168
        %v8399 = vunpack.c.0.s8 %v8398
        %v8400 = vlaneseq
        %v8401 = vshrl.u32 %v8400, 7
        %v8402 = vsub.s32 %v8399, %v8401
        %v8403 = vrot.slane %v8389, %v8402
        %v8404 = vcombine.low %v8396, %v8403
        %v8406 = vunpack.c.l.s4 1935823168
        %v8407 = vunpack.c.0.s8 %v8406
        %v8408 = vlaneseq
        %v8409 = vshrl.u32 %v8408, 7
        %v8410 = vsub.s32 %v8407, %v8409
        %v8411 = vrot.slane %v8404, %v8410
        %v8412 = vcombine.low %v5951, %v5959
        %v8413 = vcombine.low %v5955, %v5963
        %v8415 = vunpack.c.l.s4 1935823168
        %v8416 = vunpack.c.0.s8 %v8415
        %v8417 = vlaneseq
        %v8418 = vshrl.u32 %v8417, 7
        %v8419 = vsub.s32 %v8416, %v8418
        %v8420 = vrot.slane %v8412, %v8419
        %v8422 = vunpack.c.l.s4 1935823168
        %v8423 = vunpack.c.0.s8 %v8422
        %v8424 = vlaneseq
        %v8425 = vshrl.u32 %v8424, 7
        %v8426 = vsub.s32 %v8423, %v8425
        %v8427 = vrot.slane %v8413, %v8426
        %v8428 = vcombine.low %v8420, %v8427
        %v8430 = vunpack.c.l.s4 1935823168
        %v8431 = vunpack.c.0.s8 %v8430
        %v8432 = vlaneseq
        %v8433 = vshrl.u32 %v8432, 7
        %v8434 = vsub.s32 %v8431, %v8433
        %v8435 = vrot.slane %v8428, %v8434
        %v8436 = vcombine.low %v5967, %v5975
        %v8437 = vcombine.low %v5971, %v5979
        %v8439 = vunpack.c.l.s4 1935823168
        %v8440 = vunpack.c.0.s8 %v8439
        %v8441 = vlaneseq
        %v8442 = vshrl.u32 %v8441, 7
        %v8443 = vsub.s32 %v8440, %v8442
        %v8444 = vrot.slane %v8436, %v8443
        %v8446 = vunpack.c.l.s4 1935823168
        %v8447 = vunpack.c.0.s8 %v8446
        %v8448 = vlaneseq
        %v8449 = vshrl.u32 %v8448, 7
        %v8450 = vsub.s32 %v8447, %v8449
        %v8451 = vrot.slane %v8437, %v8450
        %v8452 = vcombine.low %v8444, %v8451
        %v8454 = vunpack.c.l.s4 1935823168
        %v8455 = vunpack.c.0.s8 %v8454
        %v8456 = vlaneseq
        %v8457 = vshrl.u32 %v8456, 7
        %v8458 = vsub.s32 %v8455, %v8457
        %v8459 = vrot.slane %v8452, %v8458
        %v8460 = vcombine.low %v5983, %v5991
        %v8461 = vcombine.low %v5987, %v5995
        %v8463 = vunpack.c.l.s4 1935823168
        %v8464 = vunpack.c.0.s8 %v8463
        %v8465 = vlaneseq
        %v8466 = vshrl.u32 %v8465, 7
        %v8467 = vsub.s32 %v8464, %v8466
        %v8468 = vrot.slane %v8460, %v8467
        %v8470 = vunpack.c.l.s4 1935823168
        %v8471 = vunpack.c.0.s8 %v8470
        %v8472 = vlaneseq
        %v8473 = vshrl.u32 %v8472, 7
        %v8474 = vsub.s32 %v8471, %v8473
        %v8475 = vrot.slane %v8461, %v8474
        %v8476 = vcombine.low %v8468, %v8475
        %v8478 = vunpack.c.l.s4 1935823168
        %v8479 = vunpack.c.0.s8 %v8478
        %v8480 = vlaneseq
        %v8481 = vshrl.u32 %v8480, 7
        %v8482 = vsub.s32 %v8479, %v8481
        %v8483 = vrot.slane %v8476, %v8482
        %v8484 = vcombine.low %v5999, %v6007
        %v8485 = vcombine.low %v6003, %v6011
        %v8487 = vunpack.c.l.s4 1935823168
        %v8488 = vunpack.c.0.s8 %v8487
        %v8489 = vlaneseq
        %v8490 = vshrl.u32 %v8489, 7
        %v8491 = vsub.s32 %v8488, %v8490
        %v8492 = vrot.slane %v8484, %v8491
        %v8494 = vunpack.c.l.s4 1935823168
        %v8495 = vunpack.c.0.s8 %v8494
        %v8496 = vlaneseq
        %v8497 = vshrl.u32 %v8496, 7
        %v8498 = vsub.s32 %v8495, %v8497
        %v8499 = vrot.slane %v8485, %v8498
        %v8500 = vcombine.low %v8492, %v8499
        %v8502 = vunpack.c.l.s4 1935823168
        %v8503 = vunpack.c.0.s8 %v8502
        %v8504 = vlaneseq
        %v8505 = vshrl.u32 %v8504, 7
        %v8506 = vsub.s32 %v8503, %v8505
        %v8507 = vrot.slane %v8500, %v8506
        %v8508 = vcombine.low %v6015, %v6023
        %v8509 = vcombine.low %v6019, %v6027
        %v8511 = vunpack.c.l.s4 1935823168
        %v8512 = vunpack.c.0.s8 %v8511
        %v8513 = vlaneseq
        %v8514 = vshrl.u32 %v8513, 7
        %v8515 = vsub.s32 %v8512, %v8514
        %v8516 = vrot.slane %v8508, %v8515
        %v8518 = vunpack.c.l.s4 1935823168
        %v8519 = vunpack.c.0.s8 %v8518
        %v8520 = vlaneseq
        %v8521 = vshrl.u32 %v8520, 7
        %v8522 = vsub.s32 %v8519, %v8521
        %v8523 = vrot.slane %v8509, %v8522
        %v8524 = vcombine.low %v8516, %v8523
        %v8526 = vunpack.c.l.s4 1935823168
        %v8527 = vunpack.c.0.s8 %v8526
        %v8528 = vlaneseq
        %v8529 = vshrl.u32 %v8528, 7
        %v8530 = vsub.s32 %v8527, %v8529
        %v8531 = vrot.slane %v8524, %v8530
        %v8532 = vcombine.low %v6031, %v6039
        %v8533 = vcombine.low %v6035, %v6043
        %v8535 = vunpack.c.l.s4 1935823168
        %v8536 = vunpack.c.0.s8 %v8535
        %v8537 = vlaneseq
        %v8538 = vshrl.u32 %v8537, 7
        %v8539 = vsub.s32 %v8536, %v8538
        %v8540 = vrot.slane %v8532, %v8539
        %v8542 = vunpack.c.l.s4 1935823168
        %v8543 = vunpack.c.0.s8 %v8542
        %v8544 = vlaneseq
        %v8545 = vshrl.u32 %v8544, 7
        %v8546 = vsub.s32 %v8543, %v8545
        %v8547 = vrot.slane %v8533, %v8546
        %v8548 = vcombine.low %v8540, %v8547
        %v8550 = vunpack.c.l.s4 1935823168
        %v8551 = vunpack.c.0.s8 %v8550
        %v8552 = vlaneseq
        %v8553 = vshrl.u32 %v8552, 7
        %v8554 = vsub.s32 %v8551, %v8553
        %v8555 = vrot.slane %v8548, %v8554
        %v8556 = vcombine.low %v6047, %v6055
        %v8557 = vcombine.low %v6051, %v6059
        %v8559 = vunpack.c.l.s4 1935823168
        %v8560 = vunpack.c.0.s8 %v8559
        %v8561 = vlaneseq
        %v8562 = vshrl.u32 %v8561, 7
        %v8563 = vsub.s32 %v8560, %v8562
        %v8564 = vrot.slane %v8556, %v8563
        %v8566 = vunpack.c.l.s4 1935823168
        %v8567 = vunpack.c.0.s8 %v8566
        %v8568 = vlaneseq
        %v8569 = vshrl.u32 %v8568, 7
        %v8570 = vsub.s32 %v8567, %v8569
        %v8571 = vrot.slane %v8557, %v8570
        %v8572 = vcombine.low %v8564, %v8571
        %v8574 = vunpack.c.l.s4 1935823168
        %v8575 = vunpack.c.0.s8 %v8574
        %v8576 = vlaneseq
        %v8577 = vshrl.u32 %v8576, 7
        %v8578 = vsub.s32 %v8575, %v8577
        %v8579 = vrot.slane %v8572, %v8578
        %v8580 = vcombine.low %v6063, %v6071
        %v8581 = vcombine.low %v6067, %v6075
        %v8583 = vunpack.c.l.s4 1935823168
        %v8584 = vunpack.c.0.s8 %v8583
        %v8585 = vlaneseq
        %v8586 = vshrl.u32 %v8585, 7
        %v8587 = vsub.s32 %v8584, %v8586
        %v8588 = vrot.slane %v8580, %v8587
        %v8590 = vunpack.c.l.s4 1935823168
        %v8591 = vunpack.c.0.s8 %v8590
        %v8592 = vlaneseq
        %v8593 = vshrl.u32 %v8592, 7
        %v8594 = vsub.s32 %v8591, %v8593
        %v8595 = vrot.slane %v8581, %v8594
        %v8596 = vcombine.low %v8588, %v8595
        %v8598 = vunpack.c.l.s4 1935823168
        %v8599 = vunpack.c.0.s8 %v8598
        %v8600 = vlaneseq
        %v8601 = vshrl.u32 %v8600, 7
        %v8602 = vsub.s32 %v8599, %v8601
        %v8603 = vrot.slane %v8596, %v8602
        %v8604 = vcombine.low %v6079, %v6087
        %v8605 = vcombine.low %v6083, %v6091
        %v8607 = vunpack.c.l.s4 1935823168
        %v8608 = vunpack.c.0.s8 %v8607
        %v8609 = vlaneseq
        %v8610 = vshrl.u32 %v8609, 7
        %v8611 = vsub.s32 %v8608, %v8610
        %v8612 = vrot.slane %v8604, %v8611
        %v8614 = vunpack.c.l.s4 1935823168
        %v8615 = vunpack.c.0.s8 %v8614
        %v8616 = vlaneseq
        %v8617 = vshrl.u32 %v8616, 7
        %v8618 = vsub.s32 %v8615, %v8617
        %v8619 = vrot.slane %v8605, %v8618
        %v8620 = vcombine.low %v8612, %v8619
        %v8622 = vunpack.c.l.s4 1935823168
        %v8623 = vunpack.c.0.s8 %v8622
        %v8624 = vlaneseq
        %v8625 = vshrl.u32 %v8624, 7
        %v8626 = vsub.s32 %v8623, %v8625
        %v8627 = vrot.slane %v8620, %v8626
        %v8628 = vcombine.low %v6095, %v6103
        %v8629 = vcombine.low %v6099, %v6107
        %v8631 = vunpack.c.l.s4 1935823168
        %v8632 = vunpack.c.0.s8 %v8631
        %v8633 = vlaneseq
        %v8634 = vshrl.u32 %v8633, 7
        %v8635 = vsub.s32 %v8632, %v8634
        %v8636 = vrot.slane %v8628, %v8635
        %v8638 = vunpack.c.l.s4 1935823168
        %v8639 = vunpack.c.0.s8 %v8638
        %v8640 = vlaneseq
        %v8641 = vshrl.u32 %v8640, 7
        %v8642 = vsub.s32 %v8639, %v8641
        %v8643 = vrot.slane %v8629, %v8642
        %v8644 = vcombine.low %v8636, %v8643
        %v8646 = vunpack.c.l.s4 1935823168
        %v8647 = vunpack.c.0.s8 %v8646
        %v8648 = vlaneseq
        %v8649 = vshrl.u32 %v8648, 7
        %v8650 = vsub.s32 %v8647, %v8649
        %v8651 = vrot.slane %v8644, %v8650
        %v8652 = vcombine.low %v6111, %v6119
        %v8653 = vcombine.low %v6115, %v6123
        %v8655 = vunpack.c.l.s4 1935823168
        %v8656 = vunpack.c.0.s8 %v8655
        %v8657 = vlaneseq
        %v8658 = vshrl.u32 %v8657, 7
        %v8659 = vsub.s32 %v8656, %v8658
        %v8660 = vrot.slane %v8652, %v8659
        %v8662 = vunpack.c.l.s4 1935823168
        %v8663 = vunpack.c.0.s8 %v8662
        %v8664 = vlaneseq
        %v8665 = vshrl.u32 %v8664, 7
        %v8666 = vsub.s32 %v8663, %v8665
        %v8667 = vrot.slane %v8653, %v8666
        %v8668 = vcombine.low %v8660, %v8667
        %v8670 = vunpack.c.l.s4 1935823168
        %v8671 = vunpack.c.0.s8 %v8670
        %v8672 = vlaneseq
        %v8673 = vshrl.u32 %v8672, 7
        %v8674 = vsub.s32 %v8671, %v8673
        %v8675 = vrot.slane %v8668, %v8674
        %v8676 = vcombine.low %v6127, %v6135
        %v8677 = vcombine.low %v6131, %v6139
        %v8679 = vunpack.c.l.s4 1935823168
        %v8680 = vunpack.c.0.s8 %v8679
        %v8681 = vlaneseq
        %v8682 = vshrl.u32 %v8681, 7
        %v8683 = vsub.s32 %v8680, %v8682
        %v8684 = vrot.slane %v8676, %v8683
        %v8686 = vunpack.c.l.s4 1935823168
        %v8687 = vunpack.c.0.s8 %v8686
        %v8688 = vlaneseq
        %v8689 = vshrl.u32 %v8688, 7
        %v8690 = vsub.s32 %v8687, %v8689
        %v8691 = vrot.slane %v8677, %v8690
        %v8692 = vcombine.low %v8684, %v8691
        %v8694 = vunpack.c.l.s4 1935823168
        %v8695 = vunpack.c.0.s8 %v8694
        %v8696 = vlaneseq
        %v8697 = vshrl.u32 %v8696, 7
        %v8698 = vsub.s32 %v8695, %v8697
        %v8699 = vrot.slane %v8692, %v8698
        %v8700 = vcombine.low %v6143, %v6151
        %v8701 = vcombine.low %v6147, %v6155
        %v8703 = vunpack.c.l.s4 1935823168
        %v8704 = vunpack.c.0.s8 %v8703
        %v8705 = vlaneseq
        %v8706 = vshrl.u32 %v8705, 7
        %v8707 = vsub.s32 %v8704, %v8706
        %v8708 = vrot.slane %v8700, %v8707
        %v8710 = vunpack.c.l.s4 1935823168
        %v8711 = vunpack.c.0.s8 %v8710
        %v8712 = vlaneseq
        %v8713 = vshrl.u32 %v8712, 7
        %v8714 = vsub.s32 %v8711, %v8713
        %v8715 = vrot.slane %v8701, %v8714
        %v8716 = vcombine.low %v8708, %v8715
        %v8718 = vunpack.c.l.s4 1935823168
        %v8719 = vunpack.c.0.s8 %v8718
        %v8720 = vlaneseq
        %v8721 = vshrl.u32 %v8720, 7
        %v8722 = vsub.s32 %v8719, %v8721
        %v8723 = vrot.slane %v8716, %v8722
        %v8724 = vcombine.low %v6159, %v6167
        %v8725 = vcombine.low %v6163, %v6171
        %v8727 = vunpack.c.l.s4 1935823168
        %v8728 = vunpack.c.0.s8 %v8727
        %v8729 = vlaneseq
        %v8730 = vshrl.u32 %v8729, 7
        %v8731 = vsub.s32 %v8728, %v8730
        %v8732 = vrot.slane %v8724, %v8731
        %v8734 = vunpack.c.l.s4 1935823168
        %v8735 = vunpack.c.0.s8 %v8734
        %v8736 = vlaneseq
        %v8737 = vshrl.u32 %v8736, 7
        %v8738 = vsub.s32 %v8735, %v8737
        %v8739 = vrot.slane %v8725, %v8738
        %v8740 = vcombine.low %v8732, %v8739
        %v8742 = vunpack.c.l.s4 1935823168
        %v8743 = vunpack.c.0.s8 %v8742
        %v8744 = vlaneseq
        %v8745 = vshrl.u32 %v8744, 7
        %v8746 = vsub.s32 %v8743, %v8745
        %v8747 = vrot.slane %v8740, %v8746
        %v8748 = vcombine.low %v6175, %v6183
        %v8749 = vcombine.low %v6179, %v6187
        %v8751 = vunpack.c.l.s4 1935823168
        %v8752 = vunpack.c.0.s8 %v8751
        %v8753 = vlaneseq
        %v8754 = vshrl.u32 %v8753, 7
        %v8755 = vsub.s32 %v8752, %v8754
        %v8756 = vrot.slane %v8748, %v8755
        %v8758 = vunpack.c.l.s4 1935823168
        %v8759 = vunpack.c.0.s8 %v8758
        %v8760 = vlaneseq
        %v8761 = vshrl.u32 %v8760, 7
        %v8762 = vsub.s32 %v8759, %v8761
        %v8763 = vrot.slane %v8749, %v8762
        %v8764 = vcombine.low %v8756, %v8763
        %v8766 = vunpack.c.l.s4 1935823168
        %v8767 = vunpack.c.0.s8 %v8766
        %v8768 = vlaneseq
        %v8769 = vshrl.u32 %v8768, 7
        %v8770 = vsub.s32 %v8767, %v8769
        %v8771 = vrot.slane %v8764, %v8770
        %v8772 = vcombine.low %v6191, %v6199
        %v8773 = vcombine.low %v6195, %v6203
        %v8775 = vunpack.c.l.s4 1935823168
        %v8776 = vunpack.c.0.s8 %v8775
        %v8777 = vlaneseq
        %v8778 = vshrl.u32 %v8777, 7
        %v8779 = vsub.s32 %v8776, %v8778
        %v8780 = vrot.slane %v8772, %v8779
        %v8782 = vunpack.c.l.s4 1935823168
        %v8783 = vunpack.c.0.s8 %v8782
        %v8784 = vlaneseq
        %v8785 = vshrl.u32 %v8784, 7
        %v8786 = vsub.s32 %v8783, %v8785
        %v8787 = vrot.slane %v8773, %v8786
        %v8788 = vcombine.low %v8780, %v8787
        %v8790 = vunpack.c.l.s4 1935823168
        %v8791 = vunpack.c.0.s8 %v8790
        %v8792 = vlaneseq
        %v8793 = vshrl.u32 %v8792, 7
        %v8794 = vsub.s32 %v8791, %v8793
        %v8795 = vrot.slane %v8788, %v8794
        %v8796 = vcombine.low %v6207, %v6215
        %v8797 = vcombine.low %v6211, %v6219
        %v8799 = vunpack.c.l.s4 1935823168
        %v8800 = vunpack.c.0.s8 %v8799
        %v8801 = vlaneseq
        %v8802 = vshrl.u32 %v8801, 7
        %v8803 = vsub.s32 %v8800, %v8802
        %v8804 = vrot.slane %v8796, %v8803
        %v8806 = vunpack.c.l.s4 1935823168
        %v8807 = vunpack.c.0.s8 %v8806
        %v8808 = vlaneseq
        %v8809 = vshrl.u32 %v8808, 7
        %v8810 = vsub.s32 %v8807, %v8809
        %v8811 = vrot.slane %v8797, %v8810
        %v8812 = vcombine.low %v8804, %v8811
        %v8814 = vunpack.c.l.s4 1935823168
        %v8815 = vunpack.c.0.s8 %v8814
        %v8816 = vlaneseq
        %v8817 = vshrl.u32 %v8816, 7
        %v8818 = vsub.s32 %v8815, %v8817
        %v8819 = vrot.slane %v8812, %v8818
        %v8820 = vcombine.low %v6223, %v6231
        %v8821 = vcombine.low %v6227, %v6235
        %v8823 = vunpack.c.l.s4 1935823168
        %v8824 = vunpack.c.0.s8 %v8823
        %v8825 = vlaneseq
        %v8826 = vshrl.u32 %v8825, 7
        %v8827 = vsub.s32 %v8824, %v8826
        %v8828 = vrot.slane %v8820, %v8827
        %v8830 = vunpack.c.l.s4 1935823168
        %v8831 = vunpack.c.0.s8 %v8830
        %v8832 = vlaneseq
        %v8833 = vshrl.u32 %v8832, 7
        %v8834 = vsub.s32 %v8831, %v8833
        %v8835 = vrot.slane %v8821, %v8834
        %v8836 = vcombine.low %v8828, %v8835
        %v8838 = vunpack.c.l.s4 1935823168
        %v8839 = vunpack.c.0.s8 %v8838
        %v8840 = vlaneseq
        %v8841 = vshrl.u32 %v8840, 7
        %v8842 = vsub.s32 %v8839, %v8841
        %v8843 = vrot.slane %v8836, %v8842
        %v8844 = vcombine.low %v6239, %v6247
        %v8845 = vcombine.low %v6243, %v6251
        %v8847 = vunpack.c.l.s4 1935823168
        %v8848 = vunpack.c.0.s8 %v8847
        %v8849 = vlaneseq
        %v8850 = vshrl.u32 %v8849, 7
        %v8851 = vsub.s32 %v8848, %v8850
        %v8852 = vrot.slane %v8844, %v8851
        %v8854 = vunpack.c.l.s4 1935823168
        %v8855 = vunpack.c.0.s8 %v8854
        %v8856 = vlaneseq
        %v8857 = vshrl.u32 %v8856, 7
        %v8858 = vsub.s32 %v8855, %v8857
        %v8859 = vrot.slane %v8845, %v8858
        %v8860 = vcombine.low %v8852, %v8859
        %v8862 = vunpack.c.l.s4 1935823168
        %v8863 = vunpack.c.0.s8 %v8862
        %v8864 = vlaneseq
        %v8865 = vshrl.u32 %v8864, 7
        %v8866 = vsub.s32 %v8863, %v8865
        %v8867 = vrot.slane %v8860, %v8866
        %v8868 = vcombine.low %v6255, %v6263
        %v8869 = vcombine.low %v6259, %v6267
        %v8871 = vunpack.c.l.s4 1935823168
        %v8872 = vunpack.c.0.s8 %v8871
        %v8873 = vlaneseq
        %v8874 = vshrl.u32 %v8873, 7
        %v8875 = vsub.s32 %v8872, %v8874
        %v8876 = vrot.slane %v8868, %v8875
        %v8878 = vunpack.c.l.s4 1935823168
        %v8879 = vunpack.c.0.s8 %v8878
        %v8880 = vlaneseq
        %v8881 = vshrl.u32 %v8880, 7
        %v8882 = vsub.s32 %v8879, %v8881
        %v8883 = vrot.slane %v8869, %v8882
        %v8884 = vcombine.low %v8876, %v8883
        %v8886 = vunpack.c.l.s4 1935823168
        %v8887 = vunpack.c.0.s8 %v8886
        %v8888 = vlaneseq
        %v8889 = vshrl.u32 %v8888, 7
        %v8890 = vsub.s32 %v8887, %v8889
        %v8891 = vrot.slane %v8884, %v8890
        %v8892 = vcombine.low %v6271, %v6279
        %v8893 = vcombine.low %v6275, %v6283
        %v8895 = vunpack.c.l.s4 1935823168
        %v8896 = vunpack.c.0.s8 %v8895
        %v8897 = vlaneseq
        %v8898 = vshrl.u32 %v8897, 7
        %v8899 = vsub.s32 %v8896, %v8898
        %v8900 = vrot.slane %v8892, %v8899
        %v8902 = vunpack.c.l.s4 1935823168
        %v8903 = vunpack.c.0.s8 %v8902
        %v8904 = vlaneseq
        %v8905 = vshrl.u32 %v8904, 7
        %v8906 = vsub.s32 %v8903, %v8905
        %v8907 = vrot.slane %v8893, %v8906
        %v8908 = vcombine.low %v8900, %v8907
        %v8910 = vunpack.c.l.s4 1935823168
        %v8911 = vunpack.c.0.s8 %v8910
        %v8912 = vlaneseq
        %v8913 = vshrl.u32 %v8912, 7
        %v8914 = vsub.s32 %v8911, %v8913
        %v8915 = vrot.slane %v8908, %v8914
        %v8916 = vcombine.low %v6287, %v6295
        %v8917 = vcombine.low %v6291, %v6299
        %v8919 = vunpack.c.l.s4 1935823168
        %v8920 = vunpack.c.0.s8 %v8919
        %v8921 = vlaneseq
        %v8922 = vshrl.u32 %v8921, 7
        %v8923 = vsub.s32 %v8920, %v8922
        %v8924 = vrot.slane %v8916, %v8923
        %v8926 = vunpack.c.l.s4 1935823168
        %v8927 = vunpack.c.0.s8 %v8926
        %v8928 = vlaneseq
        %v8929 = vshrl.u32 %v8928, 7
        %v8930 = vsub.s32 %v8927, %v8929
        %v8931 = vrot.slane %v8917, %v8930
        %v8932 = vcombine.low %v8924, %v8931
        %v8934 = vunpack.c.l.s4 1935823168
        %v8935 = vunpack.c.0.s8 %v8934
        %v8936 = vlaneseq
        %v8937 = vshrl.u32 %v8936, 7
        %v8938 = vsub.s32 %v8935, %v8937
        %v8939 = vrot.slane %v8932, %v8938
        %v8940 = vcombine.low %v6303, %v6311
        %v8941 = vcombine.low %v6307, %v6315
        %v8943 = vunpack.c.l.s4 1935823168
        %v8944 = vunpack.c.0.s8 %v8943
        %v8945 = vlaneseq
        %v8946 = vshrl.u32 %v8945, 7
        %v8947 = vsub.s32 %v8944, %v8946
        %v8948 = vrot.slane %v8940, %v8947
        %v8950 = vunpack.c.l.s4 1935823168
        %v8951 = vunpack.c.0.s8 %v8950
        %v8952 = vlaneseq
        %v8953 = vshrl.u32 %v8952, 7
        %v8954 = vsub.s32 %v8951, %v8953
        %v8955 = vrot.slane %v8941, %v8954
        %v8956 = vcombine.low %v8948, %v8955
        %v8958 = vunpack.c.l.s4 1935823168
        %v8959 = vunpack.c.0.s8 %v8958
        %v8960 = vlaneseq
        %v8961 = vshrl.u32 %v8960, 7
        %v8962 = vsub.s32 %v8959, %v8961
        %v8963 = vrot.slane %v8956, %v8962
        %v8964 = vcombine.low %v6319, %v6327
        %v8965 = vcombine.low %v6323, %v6331
        %v8967 = vunpack.c.l.s4 1935823168
        %v8968 = vunpack.c.0.s8 %v8967
        %v8969 = vlaneseq
        %v8970 = vshrl.u32 %v8969, 7
        %v8971 = vsub.s32 %v8968, %v8970
        %v8972 = vrot.slane %v8964, %v8971
        %v8974 = vunpack.c.l.s4 1935823168
        %v8975 = vunpack.c.0.s8 %v8974
        %v8976 = vlaneseq
        %v8977 = vshrl.u32 %v8976, 7
        %v8978 = vsub.s32 %v8975, %v8977
        %v8979 = vrot.slane %v8965, %v8978
        %v8980 = vcombine.low %v8972, %v8979
        %v8982 = vunpack.c.l.s4 1935823168
        %v8983 = vunpack.c.0.s8 %v8982
        %v8984 = vlaneseq
        %v8985 = vshrl.u32 %v8984, 7
        %v8986 = vsub.s32 %v8983, %v8985
        %v8987 = vrot.slane %v8980, %v8986
        %v8988 = vcombine.low %v6335, %v6343
        %v8989 = vcombine.low %v6339, %v6347
        %v8991 = vunpack.c.l.s4 1935823168
        %v8992 = vunpack.c.0.s8 %v8991
        %v8993 = vlaneseq
        %v8994 = vshrl.u32 %v8993, 7
        %v8995 = vsub.s32 %v8992, %v8994
        %v8996 = vrot.slane %v8988, %v8995
        %v8998 = vunpack.c.l.s4 1935823168
        %v8999 = vunpack.c.0.s8 %v8998
        %v9000 = vlaneseq
        %v9001 = vshrl.u32 %v9000, 7
        %v9002 = vsub.s32 %v8999, %v9001
        %v9003 = vrot.slane %v8989, %v9002
        %v9004 = vcombine.low %v8996, %v9003
        %v9006 = vunpack.c.l.s4 1935823168
        %v9007 = vunpack.c.0.s8 %v9006
        %v9008 = vlaneseq
        %v9009 = vshrl.u32 %v9008, 7
        %v9010 = vsub.s32 %v9007, %v9009
        %v9011 = vrot.slane %v9004, %v9010
        %v9012 = vcombine.low %v6351, %v6359
        %v9013 = vcombine.low %v6355, %v6363
        %v9015 = vunpack.c.l.s4 1935823168
        %v9016 = vunpack.c.0.s8 %v9015
        %v9017 = vlaneseq
        %v9018 = vshrl.u32 %v9017, 7
        %v9019 = vsub.s32 %v9016, %v9018
        %v9020 = vrot.slane %v9012, %v9019
        %v9022 = vunpack.c.l.s4 1935823168
        %v9023 = vunpack.c.0.s8 %v9022
        %v9024 = vlaneseq
        %v9025 = vshrl.u32 %v9024, 7
        %v9026 = vsub.s32 %v9023, %v9025
        %v9027 = vrot.slane %v9013, %v9026
        %v9028 = vcombine.low %v9020, %v9027
        %v9030 = vunpack.c.l.s4 1935823168
        %v9031 = vunpack.c.0.s8 %v9030
        %v9032 = vlaneseq
        %v9033 = vshrl.u32 %v9032, 7
        %v9034 = vsub.s32 %v9031, %v9033
        %v9035 = vrot.slane %v9028, %v9034
        %v9036 = vcombine.low %v6367, %v6375
        %v9037 = vcombine.low %v6371, %v6379
        %v9039 = vunpack.c.l.s4 1935823168
        %v9040 = vunpack.c.0.s8 %v9039
        %v9041 = vlaneseq
        %v9042 = vshrl.u32 %v9041, 7
        %v9043 = vsub.s32 %v9040, %v9042
        %v9044 = vrot.slane %v9036, %v9043
        %v9046 = vunpack.c.l.s4 1935823168
        %v9047 = vunpack.c.0.s8 %v9046
        %v9048 = vlaneseq
        %v9049 = vshrl.u32 %v9048, 7
        %v9050 = vsub.s32 %v9047, %v9049
        %v9051 = vrot.slane %v9037, %v9050
        %v9052 = vcombine.low %v9044, %v9051
        %v9054 = vunpack.c.l.s4 1935823168
        %v9055 = vunpack.c.0.s8 %v9054
        %v9056 = vlaneseq
        %v9057 = vshrl.u32 %v9056, 7
        %v9058 = vsub.s32 %v9055, %v9057
        %v9059 = vrot.slane %v9052, %v9058
        %v9060 = vcombine.low %v6383, %v6391
        %v9061 = vcombine.low %v6387, %v6395
        %v9063 = vunpack.c.l.s4 1935823168
        %v9064 = vunpack.c.0.s8 %v9063
        %v9065 = vlaneseq
        %v9066 = vshrl.u32 %v9065, 7
        %v9067 = vsub.s32 %v9064, %v9066
        %v9068 = vrot.slane %v9060, %v9067
        %v9070 = vunpack.c.l.s4 1935823168
        %v9071 = vunpack.c.0.s8 %v9070
        %v9072 = vlaneseq
        %v9073 = vshrl.u32 %v9072, 7
        %v9074 = vsub.s32 %v9071, %v9073
        %v9075 = vrot.slane %v9061, %v9074
        %v9076 = vcombine.low %v9068, %v9075
        %v9078 = vunpack.c.l.s4 1935823168
        %v9079 = vunpack.c.0.s8 %v9078
        %v9080 = vlaneseq
        %v9081 = vshrl.u32 %v9080, 7
        %v9082 = vsub.s32 %v9079, %v9081
        %v9083 = vrot.slane %v9076, %v9082
        %v9084 = vcombine.low %v6399, %v6407
        %v9085 = vcombine.low %v6403, %v6411
        %v9087 = vunpack.c.l.s4 1935823168
        %v9088 = vunpack.c.0.s8 %v9087
        %v9089 = vlaneseq
        %v9090 = vshrl.u32 %v9089, 7
        %v9091 = vsub.s32 %v9088, %v9090
        %v9092 = vrot.slane %v9084, %v9091
        %v9094 = vunpack.c.l.s4 1935823168
        %v9095 = vunpack.c.0.s8 %v9094
        %v9096 = vlaneseq
        %v9097 = vshrl.u32 %v9096, 7
        %v9098 = vsub.s32 %v9095, %v9097
        %v9099 = vrot.slane %v9085, %v9098
        %v9100 = vcombine.low %v9092, %v9099
        %v9102 = vunpack.c.l.s4 1935823168
        %v9103 = vunpack.c.0.s8 %v9102
        %v9104 = vlaneseq
        %v9105 = vshrl.u32 %v9104, 7
        %v9106 = vsub.s32 %v9103, %v9105
        %v9107 = vrot.slane %v9100, %v9106
        %v9108 = vcombine.low %v6415, %v6423
        %v9109 = vcombine.low %v6419, %v6427
        %v9111 = vunpack.c.l.s4 1935823168
        %v9112 = vunpack.c.0.s8 %v9111
        %v9113 = vlaneseq
        %v9114 = vshrl.u32 %v9113, 7
        %v9115 = vsub.s32 %v9112, %v9114
        %v9116 = vrot.slane %v9108, %v9115
        %v9118 = vunpack.c.l.s4 1935823168
        %v9119 = vunpack.c.0.s8 %v9118
        %v9120 = vlaneseq
        %v9121 = vshrl.u32 %v9120, 7
        %v9122 = vsub.s32 %v9119, %v9121
        %v9123 = vrot.slane %v9109, %v9122
        %v9124 = vcombine.low %v9116, %v9123
        %v9126 = vunpack.c.l.s4 1935823168
        %v9127 = vunpack.c.0.s8 %v9126
        %v9128 = vlaneseq
        %v9129 = vshrl.u32 %v9128, 7
        %v9130 = vsub.s32 %v9127, %v9129
        %v9131 = vrot.slane %v9124, %v9130
        %v9132 = vcombine.low %v6431, %v6439
        %v9133 = vcombine.low %v6435, %v6443
        %v9135 = vunpack.c.l.s4 1935823168
        %v9136 = vunpack.c.0.s8 %v9135
        %v9137 = vlaneseq
        %v9138 = vshrl.u32 %v9137, 7
        %v9139 = vsub.s32 %v9136, %v9138
        %v9140 = vrot.slane %v9132, %v9139
        %v9142 = vunpack.c.l.s4 1935823168
        %v9143 = vunpack.c.0.s8 %v9142
        %v9144 = vlaneseq
        %v9145 = vshrl.u32 %v9144, 7
        %v9146 = vsub.s32 %v9143, %v9145
        %v9147 = vrot.slane %v9133, %v9146
        %v9148 = vcombine.low %v9140, %v9147
        %v9150 = vunpack.c.l.s4 1935823168
        %v9151 = vunpack.c.0.s8 %v9150
        %v9152 = vlaneseq
        %v9153 = vshrl.u32 %v9152, 7
        %v9154 = vsub.s32 %v9151, %v9153
        %v9155 = vrot.slane %v9148, %v9154
        %v9156 = vcombine.low %v6447, %v6455
        %v9157 = vcombine.low %v6451, %v6459
        %v9159 = vunpack.c.l.s4 1935823168
        %v9160 = vunpack.c.0.s8 %v9159
        %v9161 = vlaneseq
        %v9162 = vshrl.u32 %v9161, 7
        %v9163 = vsub.s32 %v9160, %v9162
        %v9164 = vrot.slane %v9156, %v9163
        %v9166 = vunpack.c.l.s4 1935823168
        %v9167 = vunpack.c.0.s8 %v9166
        %v9168 = vlaneseq
        %v9169 = vshrl.u32 %v9168, 7
        %v9170 = vsub.s32 %v9167, %v9169
        %v9171 = vrot.slane %v9157, %v9170
        %v9172 = vcombine.low %v9164, %v9171
        %v9174 = vunpack.c.l.s4 1935823168
        %v9175 = vunpack.c.0.s8 %v9174
        %v9176 = vlaneseq
        %v9177 = vshrl.u32 %v9176, 7
        %v9178 = vsub.s32 %v9175, %v9177
        %v9179 = vrot.slane %v9172, %v9178
        %v9180 = vcombine.low %v6463, %v6471
        %v9181 = vcombine.low %v6467, %v6475
        %v9183 = vunpack.c.l.s4 1935823168
        %v9184 = vunpack.c.0.s8 %v9183
        %v9185 = vlaneseq
        %v9186 = vshrl.u32 %v9185, 7
        %v9187 = vsub.s32 %v9184, %v9186
        %v9188 = vrot.slane %v9180, %v9187
        %v9190 = vunpack.c.l.s4 1935823168
        %v9191 = vunpack.c.0.s8 %v9190
        %v9192 = vlaneseq
        %v9193 = vshrl.u32 %v9192, 7
        %v9194 = vsub.s32 %v9191, %v9193
        %v9195 = vrot.slane %v9181, %v9194
        %v9196 = vcombine.low %v9188, %v9195
        %v9198 = vunpack.c.l.s4 1935823168
        %v9199 = vunpack.c.0.s8 %v9198
        %v9200 = vlaneseq
        %v9201 = vshrl.u32 %v9200, 7
        %v9202 = vsub.s32 %v9199, %v9201
        %v9203 = vrot.slane %v9196, %v9202
        %v9204 = vcombine.low %v6479, %v6487
        %v9205 = vcombine.low %v6483, %v6491
        %v9207 = vunpack.c.l.s4 1935823168
        %v9208 = vunpack.c.0.s8 %v9207
        %v9209 = vlaneseq
        %v9210 = vshrl.u32 %v9209, 7
        %v9211 = vsub.s32 %v9208, %v9210
        %v9212 = vrot.slane %v9204, %v9211
        %v9214 = vunpack.c.l.s4 1935823168
        %v9215 = vunpack.c.0.s8 %v9214
        %v9216 = vlaneseq
        %v9217 = vshrl.u32 %v9216, 7
        %v9218 = vsub.s32 %v9215, %v9217
        %v9219 = vrot.slane %v9205, %v9218
        %v9220 = vcombine.low %v9212, %v9219
        %v9222 = vunpack.c.l.s4 1935823168
        %v9223 = vunpack.c.0.s8 %v9222
        %v9224 = vlaneseq
        %v9225 = vshrl.u32 %v9224, 7
        %v9226 = vsub.s32 %v9223, %v9225
        %v9227 = vrot.slane %v9220, %v9226
        %v9228 = vcombine.low %v6495, %v6503
        %v9229 = vcombine.low %v6499, %v6507
        %v9231 = vunpack.c.l.s4 1935823168
        %v9232 = vunpack.c.0.s8 %v9231
        %v9233 = vlaneseq
        %v9234 = vshrl.u32 %v9233, 7
        %v9235 = vsub.s32 %v9232, %v9234
        %v9236 = vrot.slane %v9228, %v9235
        %v9238 = vunpack.c.l.s4 1935823168
        %v9239 = vunpack.c.0.s8 %v9238
        %v9240 = vlaneseq
        %v9241 = vshrl.u32 %v9240, 7
        %v9242 = vsub.s32 %v9239, %v9241
        %v9243 = vrot.slane %v9229, %v9242
        %v9244 = vcombine.low %v9236, %v9243
        %v9246 = vunpack.c.l.s4 1935823168
        %v9247 = vunpack.c.0.s8 %v9246
        %v9248 = vlaneseq
        %v9249 = vshrl.u32 %v9248, 7
        %v9250 = vsub.s32 %v9247, %v9249
        %v9251 = vrot.slane %v9244, %v9250
        %v9252 = vcombine.low %v6511, %v6519
        %v9253 = vcombine.low %v6515, %v6523
        %v9255 = vunpack.c.l.s4 1935823168
        %v9256 = vunpack.c.0.s8 %v9255
        %v9257 = vlaneseq
        %v9258 = vshrl.u32 %v9257, 7
        %v9259 = vsub.s32 %v9256, %v9258
        %v9260 = vrot.slane %v9252, %v9259
        %v9262 = vunpack.c.l.s4 1935823168
        %v9263 = vunpack.c.0.s8 %v9262
        %v9264 = vlaneseq
        %v9265 = vshrl.u32 %v9264, 7
        %v9266 = vsub.s32 %v9263, %v9265
        %v9267 = vrot.slane %v9253, %v9266
        %v9268 = vcombine.low %v9260, %v9267
        %v9270 = vunpack.c.l.s4 1935823168
        %v9271 = vunpack.c.0.s8 %v9270
        %v9272 = vlaneseq
        %v9273 = vshrl.u32 %v9272, 7
        %v9274 = vsub.s32 %v9271, %v9273
        %v9275 = vrot.slane %v9268, %v9274
        %v9276 = vcombine.low %v6527, %v6535
        %v9277 = vcombine.low %v6531, %v6539
        %v9279 = vunpack.c.l.s4 1935823168
        %v9280 = vunpack.c.0.s8 %v9279
        %v9281 = vlaneseq
        %v9282 = vshrl.u32 %v9281, 7
        %v9283 = vsub.s32 %v9280, %v9282
        %v9284 = vrot.slane %v9276, %v9283
        %v9286 = vunpack.c.l.s4 1935823168
        %v9287 = vunpack.c.0.s8 %v9286
        %v9288 = vlaneseq
        %v9289 = vshrl.u32 %v9288, 7
        %v9290 = vsub.s32 %v9287, %v9289
        %v9291 = vrot.slane %v9277, %v9290
        %v9292 = vcombine.low %v9284, %v9291
        %v9294 = vunpack.c.l.s4 1935823168
        %v9295 = vunpack.c.0.s8 %v9294
        %v9296 = vlaneseq
        %v9297 = vshrl.u32 %v9296, 7
        %v9298 = vsub.s32 %v9295, %v9297
        %v9299 = vrot.slane %v9292, %v9298
        %v9300 = vcombine.low %v6543, %v6551
        %v9301 = vcombine.low %v6547, %v6555
        %v9303 = vunpack.c.l.s4 1935823168
        %v9304 = vunpack.c.0.s8 %v9303
        %v9305 = vlaneseq
        %v9306 = vshrl.u32 %v9305, 7
        %v9307 = vsub.s32 %v9304, %v9306
        %v9308 = vrot.slane %v9300, %v9307
        %v9310 = vunpack.c.l.s4 1935823168
        %v9311 = vunpack.c.0.s8 %v9310
        %v9312 = vlaneseq
        %v9313 = vshrl.u32 %v9312, 7
        %v9314 = vsub.s32 %v9311, %v9313
        %v9315 = vrot.slane %v9301, %v9314
        %v9316 = vcombine.low %v9308, %v9315
        %v9318 = vunpack.c.l.s4 1935823168
        %v9319 = vunpack.c.0.s8 %v9318
        %v9320 = vlaneseq
        %v9321 = vshrl.u32 %v9320, 7
        %v9322 = vsub.s32 %v9319, %v9321
        %v9323 = vrot.slane %v9316, %v9322
        %v9324 = vcombine.low %v6559, %v6567
        %v9325 = vcombine.low %v6563, %v6571
        %v9327 = vunpack.c.l.s4 1935823168
        %v9328 = vunpack.c.0.s8 %v9327
        %v9329 = vlaneseq
        %v9330 = vshrl.u32 %v9329, 7
        %v9331 = vsub.s32 %v9328, %v9330
        %v9332 = vrot.slane %v9324, %v9331
        %v9334 = vunpack.c.l.s4 1935823168
        %v9335 = vunpack.c.0.s8 %v9334
        %v9336 = vlaneseq
        %v9337 = vshrl.u32 %v9336, 7
        %v9338 = vsub.s32 %v9335, %v9337
        %v9339 = vrot.slane %v9325, %v9338
        %v9340 = vcombine.low %v9332, %v9339
        %v9342 = vunpack.c.l.s4 1935823168
        %v9343 = vunpack.c.0.s8 %v9342
        %v9344 = vlaneseq
        %v9345 = vshrl.u32 %v9344, 7
        %v9346 = vsub.s32 %v9343, %v9345
        %v9347 = vrot.slane %v9340, %v9346
        %v9348 = vcombine.low %v6575, %v6583
        %v9349 = vcombine.low %v6579, %v6587
        %v9351 = vunpack.c.l.s4 1935823168
        %v9352 = vunpack.c.0.s8 %v9351
        %v9353 = vlaneseq
        %v9354 = vshrl.u32 %v9353, 7
        %v9355 = vsub.s32 %v9352, %v9354
        %v9356 = vrot.slane %v9348, %v9355
        %v9358 = vunpack.c.l.s4 1935823168
        %v9359 = vunpack.c.0.s8 %v9358
        %v9360 = vlaneseq
        %v9361 = vshrl.u32 %v9360, 7
        %v9362 = vsub.s32 %v9359, %v9361
        %v9363 = vrot.slane %v9349, %v9362
        %v9364 = vcombine.low %v9356, %v9363
        %v9366 = vunpack.c.l.s4 1935823168
        %v9367 = vunpack.c.0.s8 %v9366
        %v9368 = vlaneseq
        %v9369 = vshrl.u32 %v9368, 7
        %v9370 = vsub.s32 %v9367, %v9369
        %v9371 = vrot.slane %v9364, %v9370
        %v9372 = vcombine.low %v6591, %v6599
        %v9373 = vcombine.low %v6595, %v6603
        %v9375 = vunpack.c.l.s4 1935823168
        %v9376 = vunpack.c.0.s8 %v9375
        %v9377 = vlaneseq
        %v9378 = vshrl.u32 %v9377, 7
        %v9379 = vsub.s32 %v9376, %v9378
        %v9380 = vrot.slane %v9372, %v9379
        %v9382 = vunpack.c.l.s4 1935823168
        %v9383 = vunpack.c.0.s8 %v9382
        %v9384 = vlaneseq
        %v9385 = vshrl.u32 %v9384, 7
        %v9386 = vsub.s32 %v9383, %v9385
        %v9387 = vrot.slane %v9373, %v9386
        %v9388 = vcombine.low %v9380, %v9387
        %v9390 = vunpack.c.l.s4 1935823168
        %v9391 = vunpack.c.0.s8 %v9390
        %v9392 = vlaneseq
        %v9393 = vshrl.u32 %v9392, 7
        %v9394 = vsub.s32 %v9391, %v9393
        %v9395 = vrot.slane %v9388, %v9394
        %v9396 = vcombine.low %v6607, %v6615
        %v9397 = vcombine.low %v6611, %v6619
        %v9399 = vunpack.c.l.s4 1935823168
        %v9400 = vunpack.c.0.s8 %v9399
        %v9401 = vlaneseq
        %v9402 = vshrl.u32 %v9401, 7
        %v9403 = vsub.s32 %v9400, %v9402
        %v9404 = vrot.slane %v9396, %v9403
        %v9406 = vunpack.c.l.s4 1935823168
        %v9407 = vunpack.c.0.s8 %v9406
        %v9408 = vlaneseq
        %v9409 = vshrl.u32 %v9408, 7
        %v9410 = vsub.s32 %v9407, %v9409
        %v9411 = vrot.slane %v9397, %v9410
        %v9412 = vcombine.low %v9404, %v9411
        %v9414 = vunpack.c.l.s4 1935823168
        %v9415 = vunpack.c.0.s8 %v9414
        %v9416 = vlaneseq
        %v9417 = vshrl.u32 %v9416, 7
        %v9418 = vsub.s32 %v9415, %v9417
        %v9419 = vrot.slane %v9412, %v9418
        %v9420 = vcombine.low %v6623, %v6631
        %v9421 = vcombine.low %v6627, %v6635
        %v9423 = vunpack.c.l.s4 1935823168
        %v9424 = vunpack.c.0.s8 %v9423
        %v9425 = vlaneseq
        %v9426 = vshrl.u32 %v9425, 7
        %v9427 = vsub.s32 %v9424, %v9426
        %v9428 = vrot.slane %v9420, %v9427
        %v9430 = vunpack.c.l.s4 1935823168
        %v9431 = vunpack.c.0.s8 %v9430
        %v9432 = vlaneseq
        %v9433 = vshrl.u32 %v9432, 7
        %v9434 = vsub.s32 %v9431, %v9433
        %v9435 = vrot.slane %v9421, %v9434
        %v9436 = vcombine.low %v9428, %v9435
        %v9438 = vunpack.c.l.s4 1935823168
        %v9439 = vunpack.c.0.s8 %v9438
        %v9440 = vlaneseq
        %v9441 = vshrl.u32 %v9440, 7
        %v9442 = vsub.s32 %v9439, %v9441
        %v9443 = vrot.slane %v9436, %v9442
        %v9444 = vcombine.low %v6639, %v6647
        %v9445 = vcombine.low %v6643, %v6651
        %v9447 = vunpack.c.l.s4 1935823168
        %v9448 = vunpack.c.0.s8 %v9447
        %v9449 = vlaneseq
        %v9450 = vshrl.u32 %v9449, 7
        %v9451 = vsub.s32 %v9448, %v9450
        %v9452 = vrot.slane %v9444, %v9451
        %v9454 = vunpack.c.l.s4 1935823168
        %v9455 = vunpack.c.0.s8 %v9454
        %v9456 = vlaneseq
        %v9457 = vshrl.u32 %v9456, 7
        %v9458 = vsub.s32 %v9455, %v9457
        %v9459 = vrot.slane %v9445, %v9458
        %v9460 = vcombine.low %v9452, %v9459
        %v9462 = vunpack.c.l.s4 1935823168
        %v9463 = vunpack.c.0.s8 %v9462
        %v9464 = vlaneseq
        %v9465 = vshrl.u32 %v9464, 7
        %v9466 = vsub.s32 %v9463, %v9465
        %v9467 = vrot.slane %v9460, %v9466
        %v9468 = vcombine.low %v6655, %v6663
        %v9469 = vcombine.low %v6659, %v6667
        %v9471 = vunpack.c.l.s4 1935823168
        %v9472 = vunpack.c.0.s8 %v9471
        %v9473 = vlaneseq
        %v9474 = vshrl.u32 %v9473, 7
        %v9475 = vsub.s32 %v9472, %v9474
        %v9476 = vrot.slane %v9468, %v9475
        %v9478 = vunpack.c.l.s4 1935823168
        %v9479 = vunpack.c.0.s8 %v9478
        %v9480 = vlaneseq
        %v9481 = vshrl.u32 %v9480, 7
        %v9482 = vsub.s32 %v9479, %v9481
        %v9483 = vrot.slane %v9469, %v9482
        %v9484 = vcombine.low %v9476, %v9483
        %v9486 = vunpack.c.l.s4 1935823168
        %v9487 = vunpack.c.0.s8 %v9486
        %v9488 = vlaneseq
        %v9489 = vshrl.u32 %v9488, 7
        %v9490 = vsub.s32 %v9487, %v9489
        %v9491 = vrot.slane %v9484, %v9490
        %v9492 = vcombine.low %v6671, %v6679
        %v9493 = vcombine.low %v6675, %v6683
        %v9495 = vunpack.c.l.s4 1935823168
        %v9496 = vunpack.c.0.s8 %v9495
        %v9497 = vlaneseq
        %v9498 = vshrl.u32 %v9497, 7
        %v9499 = vsub.s32 %v9496, %v9498
        %v9500 = vrot.slane %v9492, %v9499
        %v9502 = vunpack.c.l.s4 1935823168
        %v9503 = vunpack.c.0.s8 %v9502
        %v9504 = vlaneseq
        %v9505 = vshrl.u32 %v9504, 7
        %v9506 = vsub.s32 %v9503, %v9505
        %v9507 = vrot.slane %v9493, %v9506
        %v9508 = vcombine.low %v9500, %v9507
        %v9510 = vunpack.c.l.s4 1935823168
        %v9511 = vunpack.c.0.s8 %v9510
        %v9512 = vlaneseq
        %v9513 = vshrl.u32 %v9512, 7
        %v9514 = vsub.s32 %v9511, %v9513
        %v9515 = vrot.slane %v9508, %v9514
        %v9516 = vcombine.low %v6687, %v6695
        %v9517 = vcombine.low %v6691, %v6699
        %v9519 = vunpack.c.l.s4 1935823168
        %v9520 = vunpack.c.0.s8 %v9519
        %v9521 = vlaneseq
        %v9522 = vshrl.u32 %v9521, 7
        %v9523 = vsub.s32 %v9520, %v9522
        %v9524 = vrot.slane %v9516, %v9523
        %v9526 = vunpack.c.l.s4 1935823168
        %v9527 = vunpack.c.0.s8 %v9526
        %v9528 = vlaneseq
        %v9529 = vshrl.u32 %v9528, 7
        %v9530 = vsub.s32 %v9527, %v9529
        %v9531 = vrot.slane %v9517, %v9530
        %v9532 = vcombine.low %v9524, %v9531
        %v9534 = vunpack.c.l.s4 1935823168
        %v9535 = vunpack.c.0.s8 %v9534
        %v9536 = vlaneseq
        %v9537 = vshrl.u32 %v9536, 7
        %v9538 = vsub.s32 %v9535, %v9537
        %v9539 = vrot.slane %v9532, %v9538
        %v9540 = vcombine.low %v6703, %v6711
        %v9541 = vcombine.low %v6707, %v6715
        %v9543 = vunpack.c.l.s4 1935823168
        %v9544 = vunpack.c.0.s8 %v9543
        %v9545 = vlaneseq
        %v9546 = vshrl.u32 %v9545, 7
        %v9547 = vsub.s32 %v9544, %v9546
        %v9548 = vrot.slane %v9540, %v9547
        %v9550 = vunpack.c.l.s4 1935823168
        %v9551 = vunpack.c.0.s8 %v9550
        %v9552 = vlaneseq
        %v9553 = vshrl.u32 %v9552, 7
        %v9554 = vsub.s32 %v9551, %v9553
        %v9555 = vrot.slane %v9541, %v9554
        %v9556 = vcombine.low %v9548, %v9555
        %v9558 = vunpack.c.l.s4 1935823168
        %v9559 = vunpack.c.0.s8 %v9558
        %v9560 = vlaneseq
        %v9561 = vshrl.u32 %v9560, 7
        %v9562 = vsub.s32 %v9559, %v9561
        %v9563 = vrot.slane %v9556, %v9562
        %v9564 = vcombine.low %v6719, %v6727
        %v9565 = vcombine.low %v6723, %v6731
        %v9567 = vunpack.c.l.s4 1935823168
        %v9568 = vunpack.c.0.s8 %v9567
        %v9569 = vlaneseq
        %v9570 = vshrl.u32 %v9569, 7
        %v9571 = vsub.s32 %v9568, %v9570
        %v9572 = vrot.slane %v9564, %v9571
        %v9574 = vunpack.c.l.s4 1935823168
        %v9575 = vunpack.c.0.s8 %v9574
        %v9576 = vlaneseq
        %v9577 = vshrl.u32 %v9576, 7
        %v9578 = vsub.s32 %v9575, %v9577
        %v9579 = vrot.slane %v9565, %v9578
        %v9580 = vcombine.low %v9572, %v9579
        %v9582 = vunpack.c.l.s4 1935823168
        %v9583 = vunpack.c.0.s8 %v9582
        %v9584 = vlaneseq
        %v9585 = vshrl.u32 %v9584, 7
        %v9586 = vsub.s32 %v9583, %v9585
        %v9587 = vrot.slane %v9580, %v9586
        %v9588 = vcombine.low %v6735, %v6743
        %v9589 = vcombine.low %v6739, %v6747
        %v9591 = vunpack.c.l.s4 1935823168
        %v9592 = vunpack.c.0.s8 %v9591
        %v9593 = vlaneseq
        %v9594 = vshrl.u32 %v9593, 7
        %v9595 = vsub.s32 %v9592, %v9594
        %v9596 = vrot.slane %v9588, %v9595
        %v9598 = vunpack.c.l.s4 1935823168
        %v9599 = vunpack.c.0.s8 %v9598
        %v9600 = vlaneseq
        %v9601 = vshrl.u32 %v9600, 7
        %v9602 = vsub.s32 %v9599, %v9601
        %v9603 = vrot.slane %v9589, %v9602
        %v9604 = vcombine.low %v9596, %v9603
        %v9606 = vunpack.c.l.s4 1935823168
        %v9607 = vunpack.c.0.s8 %v9606
        %v9608 = vlaneseq
        %v9609 = vshrl.u32 %v9608, 7
        %v9610 = vsub.s32 %v9607, %v9609
        %v9611 = vrot.slane %v9604, %v9610
        %v9612 = vcombine.low %v6751, %v6759
        %v9613 = vcombine.low %v6755, %v6763
        %v9615 = vunpack.c.l.s4 1935823168
        %v9616 = vunpack.c.0.s8 %v9615
        %v9617 = vlaneseq
        %v9618 = vshrl.u32 %v9617, 7
        %v9619 = vsub.s32 %v9616, %v9618
        %v9620 = vrot.slane %v9612, %v9619
        %v9622 = vunpack.c.l.s4 1935823168
        %v9623 = vunpack.c.0.s8 %v9622
        %v9624 = vlaneseq
        %v9625 = vshrl.u32 %v9624, 7
        %v9626 = vsub.s32 %v9623, %v9625
        %v9627 = vrot.slane %v9613, %v9626
        %v9628 = vcombine.low %v9620, %v9627
        %v9630 = vunpack.c.l.s4 1935823168
        %v9631 = vunpack.c.0.s8 %v9630
        %v9632 = vlaneseq
        %v9633 = vshrl.u32 %v9632, 7
        %v9634 = vsub.s32 %v9631, %v9633
        %v9635 = vrot.slane %v9628, %v9634
        %v9636 = vcombine.low %v6767, %v6775
        %v9637 = vcombine.low %v6771, %v6779
        %v9639 = vunpack.c.l.s4 1935823168
        %v9640 = vunpack.c.0.s8 %v9639
        %v9641 = vlaneseq
        %v9642 = vshrl.u32 %v9641, 7
        %v9643 = vsub.s32 %v9640, %v9642
        %v9644 = vrot.slane %v9636, %v9643
        %v9646 = vunpack.c.l.s4 1935823168
        %v9647 = vunpack.c.0.s8 %v9646
        %v9648 = vlaneseq
        %v9649 = vshrl.u32 %v9648, 7
        %v9650 = vsub.s32 %v9647, %v9649
        %v9651 = vrot.slane %v9637, %v9650
        %v9652 = vcombine.low %v9644, %v9651
        %v9654 = vunpack.c.l.s4 1935823168
        %v9655 = vunpack.c.0.s8 %v9654
        %v9656 = vlaneseq
        %v9657 = vshrl.u32 %v9656, 7
        %v9658 = vsub.s32 %v9655, %v9657
        %v9659 = vrot.slane %v9652, %v9658
        %v9660 = vcombine.low %v6783, %v6791
        %v9661 = vcombine.low %v6787, %v6795
        %v9663 = vunpack.c.l.s4 1935823168
        %v9664 = vunpack.c.0.s8 %v9663
        %v9665 = vlaneseq
        %v9666 = vshrl.u32 %v9665, 7
        %v9667 = vsub.s32 %v9664, %v9666
        %v9668 = vrot.slane %v9660, %v9667
        %v9670 = vunpack.c.l.s4 1935823168
        %v9671 = vunpack.c.0.s8 %v9670
        %v9672 = vlaneseq
        %v9673 = vshrl.u32 %v9672, 7
        %v9674 = vsub.s32 %v9671, %v9673
        %v9675 = vrot.slane %v9661, %v9674
        %v9676 = vcombine.low %v9668, %v9675
        %v9678 = vunpack.c.l.s4 1935823168
        %v9679 = vunpack.c.0.s8 %v9678
        %v9680 = vlaneseq
        %v9681 = vshrl.u32 %v9680, 7
        %v9682 = vsub.s32 %v9679, %v9681
        %v9683 = vrot.slane %v9676, %v9682
        %v9684 = vcombine.low %v6799, %v6807
        %v9685 = vcombine.low %v6803, %v6811
        %v9687 = vunpack.c.l.s4 1935823168
        %v9688 = vunpack.c.0.s8 %v9687
        %v9689 = vlaneseq
        %v9690 = vshrl.u32 %v9689, 7
        %v9691 = vsub.s32 %v9688, %v9690
        %v9692 = vrot.slane %v9684, %v9691
        %v9694 = vunpack.c.l.s4 1935823168
        %v9695 = vunpack.c.0.s8 %v9694
        %v9696 = vlaneseq
        %v9697 = vshrl.u32 %v9696, 7
        %v9698 = vsub.s32 %v9695, %v9697
        %v9699 = vrot.slane %v9685, %v9698
        %v9700 = vcombine.low %v9692, %v9699
        %v9702 = vunpack.c.l.s4 1935823168
        %v9703 = vunpack.c.0.s8 %v9702
        %v9704 = vlaneseq
        %v9705 = vshrl.u32 %v9704, 7
        %v9706 = vsub.s32 %v9703, %v9705
        %v9707 = vrot.slane %v9700, %v9706
        %v9708 = vcombine.low %v6815, %v6823
        %v9709 = vcombine.low %v6819, %v6827
        %v9711 = vunpack.c.l.s4 1935823168
        %v9712 = vunpack.c.0.s8 %v9711
        %v9713 = vlaneseq
        %v9714 = vshrl.u32 %v9713, 7
        %v9715 = vsub.s32 %v9712, %v9714
        %v9716 = vrot.slane %v9708, %v9715
        %v9718 = vunpack.c.l.s4 1935823168
        %v9719 = vunpack.c.0.s8 %v9718
        %v9720 = vlaneseq
        %v9721 = vshrl.u32 %v9720, 7
        %v9722 = vsub.s32 %v9719, %v9721
        %v9723 = vrot.slane %v9709, %v9722
        %v9724 = vcombine.low %v9716, %v9723
        %v9726 = vunpack.c.l.s4 1935823168
        %v9727 = vunpack.c.0.s8 %v9726
        %v9728 = vlaneseq
        %v9729 = vshrl.u32 %v9728, 7
        %v9730 = vsub.s32 %v9727, %v9729
        %v9731 = vrot.slane %v9724, %v9730
        %v9732 = vcombine.low %v6831, %v6839
        %v9733 = vcombine.low %v6835, %v6843
        %v9735 = vunpack.c.l.s4 1935823168
        %v9736 = vunpack.c.0.s8 %v9735
        %v9737 = vlaneseq
        %v9738 = vshrl.u32 %v9737, 7
        %v9739 = vsub.s32 %v9736, %v9738
        %v9740 = vrot.slane %v9732, %v9739
        %v9742 = vunpack.c.l.s4 1935823168
        %v9743 = vunpack.c.0.s8 %v9742
        %v9744 = vlaneseq
        %v9745 = vshrl.u32 %v9744, 7
        %v9746 = vsub.s32 %v9743, %v9745
        %v9747 = vrot.slane %v9733, %v9746
        %v9748 = vcombine.low %v9740, %v9747
        %v9750 = vunpack.c.l.s4 1935823168
        %v9751 = vunpack.c.0.s8 %v9750
        %v9752 = vlaneseq
        %v9753 = vshrl.u32 %v9752, 7
        %v9754 = vsub.s32 %v9751, %v9753
        %v9755 = vrot.slane %v9748, %v9754
        %v9756 = vcombine.low %v6847, %v6855
        %v9757 = vcombine.low %v6851, %v6859
        %v9759 = vunpack.c.l.s4 1935823168
        %v9760 = vunpack.c.0.s8 %v9759
        %v9761 = vlaneseq
        %v9762 = vshrl.u32 %v9761, 7
        %v9763 = vsub.s32 %v9760, %v9762
        %v9764 = vrot.slane %v9756, %v9763
        %v9766 = vunpack.c.l.s4 1935823168
        %v9767 = vunpack.c.0.s8 %v9766
        %v9768 = vlaneseq
        %v9769 = vshrl.u32 %v9768, 7
        %v9770 = vsub.s32 %v9767, %v9769
        %v9771 = vrot.slane %v9757, %v9770
        %v9772 = vcombine.low %v9764, %v9771
        %v9774 = vunpack.c.l.s4 1935823168
        %v9775 = vunpack.c.0.s8 %v9774
        %v9776 = vlaneseq
        %v9777 = vshrl.u32 %v9776, 7
        %v9778 = vsub.s32 %v9775, %v9777
        %v9779 = vrot.slane %v9772, %v9778
        %v9780 = vcombine.low %v6863, %v6871
        %v9781 = vcombine.low %v6867, %v6875
        %v9783 = vunpack.c.l.s4 1935823168
        %v9784 = vunpack.c.0.s8 %v9783
        %v9785 = vlaneseq
        %v9786 = vshrl.u32 %v9785, 7
        %v9787 = vsub.s32 %v9784, %v9786
        %v9788 = vrot.slane %v9780, %v9787
        %v9790 = vunpack.c.l.s4 1935823168
        %v9791 = vunpack.c.0.s8 %v9790
        %v9792 = vlaneseq
        %v9793 = vshrl.u32 %v9792, 7
        %v9794 = vsub.s32 %v9791, %v9793
        %v9795 = vrot.slane %v9781, %v9794
        %v9796 = vcombine.low %v9788, %v9795
        %v9798 = vunpack.c.l.s4 1935823168
        %v9799 = vunpack.c.0.s8 %v9798
        %v9800 = vlaneseq
        %v9801 = vshrl.u32 %v9800, 7
        %v9802 = vsub.s32 %v9799, %v9801
        %v9803 = vrot.slane %v9796, %v9802
        %v9804 = vcombine.low %v6879, %v6887
        %v9805 = vcombine.low %v6883, %v6891
        %v9807 = vunpack.c.l.s4 1935823168
        %v9808 = vunpack.c.0.s8 %v9807
        %v9809 = vlaneseq
        %v9810 = vshrl.u32 %v9809, 7
        %v9811 = vsub.s32 %v9808, %v9810
        %v9812 = vrot.slane %v9804, %v9811
        %v9814 = vunpack.c.l.s4 1935823168
        %v9815 = vunpack.c.0.s8 %v9814
        %v9816 = vlaneseq
        %v9817 = vshrl.u32 %v9816, 7
        %v9818 = vsub.s32 %v9815, %v9817
        %v9819 = vrot.slane %v9805, %v9818
        %v9820 = vcombine.low %v9812, %v9819
        %v9822 = vunpack.c.l.s4 1935823168
        %v9823 = vunpack.c.0.s8 %v9822
        %v9824 = vlaneseq
        %v9825 = vshrl.u32 %v9824, 7
        %v9826 = vsub.s32 %v9823, %v9825
        %v9827 = vrot.slane %v9820, %v9826
        %v9828 = vcombine.low %v6895, %v6903
        %v9829 = vcombine.low %v6899, %v6907
        %v9831 = vunpack.c.l.s4 1935823168
        %v9832 = vunpack.c.0.s8 %v9831
        %v9833 = vlaneseq
        %v9834 = vshrl.u32 %v9833, 7
        %v9835 = vsub.s32 %v9832, %v9834
        %v9836 = vrot.slane %v9828, %v9835
        %v9838 = vunpack.c.l.s4 1935823168
        %v9839 = vunpack.c.0.s8 %v9838
        %v9840 = vlaneseq
        %v9841 = vshrl.u32 %v9840, 7
        %v9842 = vsub.s32 %v9839, %v9841
        %v9843 = vrot.slane %v9829, %v9842
        %v9844 = vcombine.low %v9836, %v9843
        %v9846 = vunpack.c.l.s4 1935823168
        %v9847 = vunpack.c.0.s8 %v9846
        %v9848 = vlaneseq
        %v9849 = vshrl.u32 %v9848, 7
        %v9850 = vsub.s32 %v9847, %v9849
        %v9851 = vrot.slane %v9844, %v9850
        %v9852 = vcombine.low %v6911, %v6919
        %v9853 = vcombine.low %v6915, %v6923
        %v9855 = vunpack.c.l.s4 1935823168
        %v9856 = vunpack.c.0.s8 %v9855
        %v9857 = vlaneseq
        %v9858 = vshrl.u32 %v9857, 7
        %v9859 = vsub.s32 %v9856, %v9858
        %v9860 = vrot.slane %v9852, %v9859
        %v9862 = vunpack.c.l.s4 1935823168
        %v9863 = vunpack.c.0.s8 %v9862
        %v9864 = vlaneseq
        %v9865 = vshrl.u32 %v9864, 7
        %v9866 = vsub.s32 %v9863, %v9865
        %v9867 = vrot.slane %v9853, %v9866
        %v9868 = vcombine.low %v9860, %v9867
        %v9870 = vunpack.c.l.s4 1935823168
        %v9871 = vunpack.c.0.s8 %v9870
        %v9872 = vlaneseq
        %v9873 = vshrl.u32 %v9872, 7
        %v9874 = vsub.s32 %v9871, %v9873
        %v9875 = vrot.slane %v9868, %v9874
        %v9876 = vcombine.low %v6927, %v6935
        %v9877 = vcombine.low %v6931, %v6939
        %v9879 = vunpack.c.l.s4 1935823168
        %v9880 = vunpack.c.0.s8 %v9879
        %v9881 = vlaneseq
        %v9882 = vshrl.u32 %v9881, 7
        %v9883 = vsub.s32 %v9880, %v9882
        %v9884 = vrot.slane %v9876, %v9883
        %v9886 = vunpack.c.l.s4 1935823168
        %v9887 = vunpack.c.0.s8 %v9886
        %v9888 = vlaneseq
        %v9889 = vshrl.u32 %v9888, 7
        %v9890 = vsub.s32 %v9887, %v9889
        %v9891 = vrot.slane %v9877, %v9890
        %v9892 = vcombine.low %v9884, %v9891
        %v9894 = vunpack.c.l.s4 1935823168
        %v9895 = vunpack.c.0.s8 %v9894
        %v9896 = vlaneseq
        %v9897 = vshrl.u32 %v9896, 7
        %v9898 = vsub.s32 %v9895, %v9897
        %v9899 = vrot.slane %v9892, %v9898
        %v9900 = vcombine.low %v6943, %v6951
        %v9901 = vcombine.low %v6947, %v6955
        %v9903 = vunpack.c.l.s4 1935823168
        %v9904 = vunpack.c.0.s8 %v9903
        %v9905 = vlaneseq
        %v9906 = vshrl.u32 %v9905, 7
        %v9907 = vsub.s32 %v9904, %v9906
        %v9908 = vrot.slane %v9900, %v9907
        %v9910 = vunpack.c.l.s4 1935823168
        %v9911 = vunpack.c.0.s8 %v9910
        %v9912 = vlaneseq
        %v9913 = vshrl.u32 %v9912, 7
        %v9914 = vsub.s32 %v9911, %v9913
        %v9915 = vrot.slane %v9901, %v9914
        %v9916 = vcombine.low %v9908, %v9915
        %v9918 = vunpack.c.l.s4 1935823168
        %v9919 = vunpack.c.0.s8 %v9918
        %v9920 = vlaneseq
        %v9921 = vshrl.u32 %v9920, 7
        %v9922 = vsub.s32 %v9919, %v9921
        %v9923 = vrot.slane %v9916, %v9922
        %v9924 = vcombine.low %v6959, %v6967
        %v9925 = vcombine.low %v6963, %v6971
        %v9927 = vunpack.c.l.s4 1935823168
        %v9928 = vunpack.c.0.s8 %v9927
        %v9929 = vlaneseq
        %v9930 = vshrl.u32 %v9929, 7
        %v9931 = vsub.s32 %v9928, %v9930
        %v9932 = vrot.slane %v9924, %v9931
        %v9934 = vunpack.c.l.s4 1935823168
        %v9935 = vunpack.c.0.s8 %v9934
        %v9936 = vlaneseq
        %v9937 = vshrl.u32 %v9936, 7
        %v9938 = vsub.s32 %v9935, %v9937
        %v9939 = vrot.slane %v9925, %v9938
        %v9940 = vcombine.low %v9932, %v9939
        %v9942 = vunpack.c.l.s4 1935823168
        %v9943 = vunpack.c.0.s8 %v9942
        %v9944 = vlaneseq
        %v9945 = vshrl.u32 %v9944, 7
        %v9946 = vsub.s32 %v9943, %v9945
        %v9947 = vrot.slane %v9940, %v9946
        %v9948 = vcombine.low %v6975, %v6983
        %v9949 = vcombine.low %v6979, %v6987
        %v9951 = vunpack.c.l.s4 1935823168
        %v9952 = vunpack.c.0.s8 %v9951
        %v9953 = vlaneseq
        %v9954 = vshrl.u32 %v9953, 7
        %v9955 = vsub.s32 %v9952, %v9954
        %v9956 = vrot.slane %v9948, %v9955
        %v9958 = vunpack.c.l.s4 1935823168
        %v9959 = vunpack.c.0.s8 %v9958
        %v9960 = vlaneseq
        %v9961 = vshrl.u32 %v9960, 7
        %v9962 = vsub.s32 %v9959, %v9961
        %v9963 = vrot.slane %v9949, %v9962
        %v9964 = vcombine.low %v9956, %v9963
        %v9966 = vunpack.c.l.s4 1935823168
        %v9967 = vunpack.c.0.s8 %v9966
        %v9968 = vlaneseq
        %v9969 = vshrl.u32 %v9968, 7
        %v9970 = vsub.s32 %v9967, %v9969
        %v9971 = vrot.slane %v9964, %v9970
        %v9972 = vcombine.low %v6991, %v6999
        %v9973 = vcombine.low %v6995, %v7003
        %v9975 = vunpack.c.l.s4 1935823168
        %v9976 = vunpack.c.0.s8 %v9975
        %v9977 = vlaneseq
        %v9978 = vshrl.u32 %v9977, 7
        %v9979 = vsub.s32 %v9976, %v9978
        %v9980 = vrot.slane %v9972, %v9979
        %v9982 = vunpack.c.l.s4 1935823168
        %v9983 = vunpack.c.0.s8 %v9982
        %v9984 = vlaneseq
        %v9985 = vshrl.u32 %v9984, 7
        %v9986 = vsub.s32 %v9983, %v9985
        %v9987 = vrot.slane %v9973, %v9986
        %v9988 = vcombine.low %v9980, %v9987
        %v9990 = vunpack.c.l.s4 1935823168
        %v9991 = vunpack.c.0.s8 %v9990
        %v9992 = vlaneseq
        %v9993 = vshrl.u32 %v9992, 7
        %v9994 = vsub.s32 %v9991, %v9993
        %v9995 = vrot.slane %v9988, %v9994
        %v9996 = vcombine.low %v7007, %v7015
        %v9997 = vcombine.low %v7011, %v7019
        %v9999 = vunpack.c.l.s4 1935823168
        %v10000 = vunpack.c.0.s8 %v9999
        %v10001 = vlaneseq
        %v10002 = vshrl.u32 %v10001, 7
        %v10003 = vsub.s32 %v10000, %v10002
        %v10004 = vrot.slane %v9996, %v10003
        %v10006 = vunpack.c.l.s4 1935823168
        %v10007 = vunpack.c.0.s8 %v10006
        %v10008 = vlaneseq
        %v10009 = vshrl.u32 %v10008, 7
        %v10010 = vsub.s32 %v10007, %v10009
        %v10011 = vrot.slane %v9997, %v10010
        %v10012 = vcombine.low %v10004, %v10011
        %v10014 = vunpack.c.l.s4 1935823168
        %v10015 = vunpack.c.0.s8 %v10014
        %v10016 = vlaneseq
        %v10017 = vshrl.u32 %v10016, 7
        %v10018 = vsub.s32 %v10015, %v10017
        %v10019 = vrot.slane %v10012, %v10018
        %v10020 = vcombine.low %v7023, %v7031
        %v10021 = vcombine.low %v7027, %v7035
        %v10023 = vunpack.c.l.s4 1935823168
        %v10024 = vunpack.c.0.s8 %v10023
        %v10025 = vlaneseq
        %v10026 = vshrl.u32 %v10025, 7
        %v10027 = vsub.s32 %v10024, %v10026
        %v10028 = vrot.slane %v10020, %v10027
        %v10030 = vunpack.c.l.s4 1935823168
        %v10031 = vunpack.c.0.s8 %v10030
        %v10032 = vlaneseq
        %v10033 = vshrl.u32 %v10032, 7
        %v10034 = vsub.s32 %v10031, %v10033
        %v10035 = vrot.slane %v10021, %v10034
        %v10036 = vcombine.low %v10028, %v10035
        %v10038 = vunpack.c.l.s4 1935823168
        %v10039 = vunpack.c.0.s8 %v10038
        %v10040 = vlaneseq
        %v10041 = vshrl.u32 %v10040, 7
        %v10042 = vsub.s32 %v10039, %v10041
        %v10043 = vrot.slane %v10036, %v10042
        %v10044 = vcombine.low %v7039, %v7047
        %v10045 = vcombine.low %v7043, %v7051
        %v10047 = vunpack.c.l.s4 1935823168
        %v10048 = vunpack.c.0.s8 %v10047
        %v10049 = vlaneseq
        %v10050 = vshrl.u32 %v10049, 7
        %v10051 = vsub.s32 %v10048, %v10050
        %v10052 = vrot.slane %v10044, %v10051
        %v10054 = vunpack.c.l.s4 1935823168
        %v10055 = vunpack.c.0.s8 %v10054
        %v10056 = vlaneseq
        %v10057 = vshrl.u32 %v10056, 7
        %v10058 = vsub.s32 %v10055, %v10057
        %v10059 = vrot.slane %v10045, %v10058
        %v10060 = vcombine.low %v10052, %v10059
        %v10062 = vunpack.c.l.s4 1935823168
        %v10063 = vunpack.c.0.s8 %v10062
        %v10064 = vlaneseq
        %v10065 = vshrl.u32 %v10064, 7
        %v10066 = vsub.s32 %v10063, %v10065
        %v10067 = vrot.slane %v10060, %v10066
        %v10068 = vcombine.low %v7055, %v7063
        %v10069 = vcombine.low %v7059, %v7067
        %v10071 = vunpack.c.l.s4 1935823168
        %v10072 = vunpack.c.0.s8 %v10071
        %v10073 = vlaneseq
        %v10074 = vshrl.u32 %v10073, 7
        %v10075 = vsub.s32 %v10072, %v10074
        %v10076 = vrot.slane %v10068, %v10075
        %v10078 = vunpack.c.l.s4 1935823168
        %v10079 = vunpack.c.0.s8 %v10078
        %v10080 = vlaneseq
        %v10081 = vshrl.u32 %v10080, 7
        %v10082 = vsub.s32 %v10079, %v10081
        %v10083 = vrot.slane %v10069, %v10082
        %v10084 = vcombine.low %v10076, %v10083
        %v10086 = vunpack.c.l.s4 1935823168
        %v10087 = vunpack.c.0.s8 %v10086
        %v10088 = vlaneseq
        %v10089 = vshrl.u32 %v10088, 7
        %v10090 = vsub.s32 %v10087, %v10089
        %v10091 = vrot.slane %v10084, %v10090
        %v10092 = vcombine.low %v7071, %v7079
        %v10093 = vcombine.low %v7075, %v7083
        %v10095 = vunpack.c.l.s4 1935823168
        %v10096 = vunpack.c.0.s8 %v10095
        %v10097 = vlaneseq
        %v10098 = vshrl.u32 %v10097, 7
        %v10099 = vsub.s32 %v10096, %v10098
        %v10100 = vrot.slane %v10092, %v10099
        %v10102 = vunpack.c.l.s4 1935823168
        %v10103 = vunpack.c.0.s8 %v10102
        %v10104 = vlaneseq
        %v10105 = vshrl.u32 %v10104, 7
        %v10106 = vsub.s32 %v10103, %v10105
        %v10107 = vrot.slane %v10093, %v10106
        %v10108 = vcombine.low %v10100, %v10107
        %v10110 = vunpack.c.l.s4 1935823168
        %v10111 = vunpack.c.0.s8 %v10110
        %v10112 = vlaneseq
        %v10113 = vshrl.u32 %v10112, 7
        %v10114 = vsub.s32 %v10111, %v10113
        %v10115 = vrot.slane %v10108, %v10114
        %v10116 = vcombine.low %v7087, %v7095
        %v10117 = vcombine.low %v7091, %v7099
        %v10119 = vunpack.c.l.s4 1935823168
        %v10120 = vunpack.c.0.s8 %v10119
        %v10121 = vlaneseq
        %v10122 = vshrl.u32 %v10121, 7
        %v10123 = vsub.s32 %v10120, %v10122
        %v10124 = vrot.slane %v10116, %v10123
        %v10126 = vunpack.c.l.s4 1935823168
        %v10127 = vunpack.c.0.s8 %v10126
        %v10128 = vlaneseq
        %v10129 = vshrl.u32 %v10128, 7
        %v10130 = vsub.s32 %v10127, %v10129
        %v10131 = vrot.slane %v10117, %v10130
        %v10132 = vcombine.low %v10124, %v10131
        %v10134 = vunpack.c.l.s4 1935823168
        %v10135 = vunpack.c.0.s8 %v10134
        %v10136 = vlaneseq
        %v10137 = vshrl.u32 %v10136, 7
        %v10138 = vsub.s32 %v10135, %v10137
        %v10139 = vrot.slane %v10132, %v10138
        %v10140 = vcombine.low %v7103, %v7111
        %v10141 = vcombine.low %v7107, %v7115
        %v10143 = vunpack.c.l.s4 1935823168
        %v10144 = vunpack.c.0.s8 %v10143
        %v10145 = vlaneseq
        %v10146 = vshrl.u32 %v10145, 7
        %v10147 = vsub.s32 %v10144, %v10146
        %v10148 = vrot.slane %v10140, %v10147
        %v10150 = vunpack.c.l.s4 1935823168
        %v10151 = vunpack.c.0.s8 %v10150
        %v10152 = vlaneseq
        %v10153 = vshrl.u32 %v10152, 7
        %v10154 = vsub.s32 %v10151, %v10153
        %v10155 = vrot.slane %v10141, %v10154
        %v10156 = vcombine.low %v10148, %v10155
        %v10158 = vunpack.c.l.s4 1935823168
        %v10159 = vunpack.c.0.s8 %v10158
        %v10160 = vlaneseq
        %v10161 = vshrl.u32 %v10160, 7
        %v10162 = vsub.s32 %v10159, %v10161
        %v10163 = vrot.slane %v10156, %v10162
        %v10164 = vcombine.low %v7119, %v7127
        %v10165 = vcombine.low %v7123, %v7131
        %v10167 = vunpack.c.l.s4 1935823168
        %v10168 = vunpack.c.0.s8 %v10167
        %v10169 = vlaneseq
        %v10170 = vshrl.u32 %v10169, 7
        %v10171 = vsub.s32 %v10168, %v10170
        %v10172 = vrot.slane %v10164, %v10171
        %v10174 = vunpack.c.l.s4 1935823168
        %v10175 = vunpack.c.0.s8 %v10174
        %v10176 = vlaneseq
        %v10177 = vshrl.u32 %v10176, 7
        %v10178 = vsub.s32 %v10175, %v10177
        %v10179 = vrot.slane %v10165, %v10178
        %v10180 = vcombine.low %v10172, %v10179
        %v10182 = vunpack.c.l.s4 1935823168
        %v10183 = vunpack.c.0.s8 %v10182
        %v10184 = vlaneseq
        %v10185 = vshrl.u32 %v10184, 7
        %v10186 = vsub.s32 %v10183, %v10185
        %v10187 = vrot.slane %v10180, %v10186
        %v10188 = vcombine.low %v7135, %v7143
        %v10189 = vcombine.low %v7139, %v7147
        %v10191 = vunpack.c.l.s4 1935823168
        %v10192 = vunpack.c.0.s8 %v10191
        %v10193 = vlaneseq
        %v10194 = vshrl.u32 %v10193, 7
        %v10195 = vsub.s32 %v10192, %v10194
        %v10196 = vrot.slane %v10188, %v10195
        %v10198 = vunpack.c.l.s4 1935823168
        %v10199 = vunpack.c.0.s8 %v10198
        %v10200 = vlaneseq
        %v10201 = vshrl.u32 %v10200, 7
        %v10202 = vsub.s32 %v10199, %v10201
        %v10203 = vrot.slane %v10189, %v10202
        %v10204 = vcombine.low %v10196, %v10203
        %v10206 = vunpack.c.l.s4 1935823168
        %v10207 = vunpack.c.0.s8 %v10206
        %v10208 = vlaneseq
        %v10209 = vshrl.u32 %v10208, 7
        %v10210 = vsub.s32 %v10207, %v10209
        %v10211 = vrot.slane %v10204, %v10210
        %v10212 = vcombine.low %v7151, %v7159
        %v10213 = vcombine.low %v7155, %v7163
        %v10215 = vunpack.c.l.s4 1935823168
        %v10216 = vunpack.c.0.s8 %v10215
        %v10217 = vlaneseq
        %v10218 = vshrl.u32 %v10217, 7
        %v10219 = vsub.s32 %v10216, %v10218
        %v10220 = vrot.slane %v10212, %v10219
        %v10222 = vunpack.c.l.s4 1935823168
        %v10223 = vunpack.c.0.s8 %v10222
        %v10224 = vlaneseq
        %v10225 = vshrl.u32 %v10224, 7
        %v10226 = vsub.s32 %v10223, %v10225
        %v10227 = vrot.slane %v10213, %v10226
        %v10228 = vcombine.low %v10220, %v10227
        %v10230 = vunpack.c.l.s4 1935823168
        %v10231 = vunpack.c.0.s8 %v10230
        %v10232 = vlaneseq
        %v10233 = vshrl.u32 %v10232, 7
        %v10234 = vsub.s32 %v10231, %v10233
        %v10235 = vrot.slane %v10228, %v10234
        %v10236 = vunpack.c.l.b16 %v7187
        %v10237 = vunpack.c.l.b16 %v7211
        %v10238 = vunpack.c.l.b16 %v7235
        %v10239 = vunpack.c.l.b16 %v7259
        %v10240 = vunpack.c.l.b16 %v7283
        %v10241 = vunpack.c.l.b16 %v7307
        %v10242 = vunpack.c.l.b16 %v7331
        %v10243 = vunpack.c.l.b16 %v7355
        %v10244 = vunpack.c.l.b16 %v7379
        %v10245 = vunpack.c.l.b16 %v7403
        %v10246 = vunpack.c.l.b16 %v7427
        %v10247 = vunpack.c.l.b16 %v7451
        %v10248 = vunpack.c.l.b16 %v7475
        %v10249 = vunpack.c.l.b16 %v7499
        %v10250 = vunpack.c.l.b16 %v7523
        %v10251 = vunpack.c.l.b16 %v7547
        %v10252 = vunpack.c.l.b16 %v7571
        %v10253 = vunpack.c.l.b16 %v7595
        %v10254 = vunpack.c.l.b16 %v7619
        %v10255 = vunpack.c.l.b16 %v7643
        %v10256 = vunpack.c.l.b16 %v7667
        %v10257 = vunpack.c.l.b16 %v7691
        %v10258 = vunpack.c.l.b16 %v7715
        %v10259 = vunpack.c.l.b16 %v7739
        %v10260 = vunpack.c.l.b16 %v7763
        %v10261 = vunpack.c.l.b16 %v7787
        %v10262 = vunpack.c.l.b16 %v7811
        %v10263 = vunpack.c.l.b16 %v7835
        %v10264 = vunpack.c.l.b16 %v7859
        %v10265 = vunpack.c.l.b16 %v7883
        %v10266 = vunpack.c.l.b16 %v7907
        %v10267 = vunpack.c.l.b16 %v7931
        %v10268 = vunpack.c.l.b16 %v7955
        %v10269 = vunpack.c.l.b16 %v7979
        %v10270 = vunpack.c.l.b16 %v8003
        %v10271 = vunpack.c.l.b16 %v8027
        %v10272 = vunpack.c.l.b16 %v8051
        %v10273 = vunpack.c.l.b16 %v8075
        %v10274 = vunpack.c.l.b16 %v8099
        %v10275 = vunpack.c.l.b16 %v8123
        %v10276 = vunpack.c.l.b16 %v8147
        %v10277 = vunpack.c.l.b16 %v8171
        %v10278 = vunpack.c.l.b16 %v8195
        %v10279 = vunpack.c.l.b16 %v8219
        %v10280 = vunpack.c.l.b16 %v8243
        %v10281 = vunpack.c.l.b16 %v8267
        %v10282 = vunpack.c.l.b16 %v8291
        %v10283 = vunpack.c.l.b16 %v8315
        %v10284 = vunpack.c.l.b16 %v8339
        %v10285 = vunpack.c.l.b16 %v8363
        %v10286 = vunpack.c.l.b16 %v8387
        %v10287 = vunpack.c.l.b16 %v8411
        %v10288 = vunpack.c.l.b16 %v8435
        %v10289 = vunpack.c.l.b16 %v8459
        %v10290 = vunpack.c.l.b16 %v8483
        %v10291 = vunpack.c.l.b16 %v8507
        %v10292 = vunpack.c.l.b16 %v8531
        %v10293 = vunpack.c.l.b16 %v8555
        %v10294 = vunpack.c.l.b16 %v8579
        %v10295 = vunpack.c.l.b16 %v8603
        %v10296 = vunpack.c.l.b16 %v8627
        %v10297 = vunpack.c.l.b16 %v8651
        %v10298 = vunpack.c.l.b16 %v8675
        %v10299 = vunpack.c.l.b16 %v8699
        %v10300 = vunpack.c.l.b16 %v8723
        %v10301 = vunpack.c.l.b16 %v8747
        %v10302 = vunpack.c.l.b16 %v8771
        %v10303 = vunpack.c.l.b16 %v8795
        %v10304 = vunpack.c.l.b16 %v8819
        %v10305 = vunpack.c.l.b16 %v8843
        %v10306 = vunpack.c.l.b16 %v8867
        %v10307 = vunpack.c.l.b16 %v8891
        %v10308 = vunpack.c.l.b16 %v8915
        %v10309 = vunpack.c.l.b16 %v8939
        %v10310 = vunpack.c.l.b16 %v8963
        %v10311 = vunpack.c.l.b16 %v8987
        %v10312 = vunpack.c.l.b16 %v9011
        %v10313 = vunpack.c.l.b16 %v9035
        %v10314 = vunpack.c.l.b16 %v9059
        %v10315 = vunpack.c.l.b16 %v9083
        %v10316 = vunpack.c.l.b16 %v9107
        %v10317 = vunpack.c.l.b16 %v9131
        %v10318 = vunpack.c.l.b16 %v9155
        %v10319 = vunpack.c.l.b16 %v9179
        %v10320 = vunpack.c.l.b16 %v9203
        %v10321 = vunpack.c.l.b16 %v9227
        %v10322 = vunpack.c.l.b16 %v9251
        %v10323 = vunpack.c.l.b16 %v9275
        %v10324 = vunpack.c.l.b16 %v9299
        %v10325 = vunpack.c.l.b16 %v9323
        %v10326 = vunpack.c.l.b16 %v9347
        %v10327 = vunpack.c.l.b16 %v9371
        %v10328 = vunpack.c.l.b16 %v9395
        %v10329 = vunpack.c.l.b16 %v9419
        %v10330 = vunpack.c.l.b16 %v9443
        %v10331 = vunpack.c.l.b16 %v9467
        %v10332 = vunpack.c.l.b16 %v9491
        %v10333 = vunpack.c.l.b16 %v9515
        %v10334 = vunpack.c.l.b16 %v9539
        %v10335 = vunpack.c.l.b16 %v9563
        %v10336 = vunpack.c.l.b16 %v9587
        %v10337 = vunpack.c.l.b16 %v9611
        %v10338 = vunpack.c.l.b16 %v9635
        %v10339 = vunpack.c.l.b16 %v9659
        %v10340 = vunpack.c.l.b16 %v9683
        %v10341 = vunpack.c.l.b16 %v9707
        %v10342 = vunpack.c.l.b16 %v9731
        %v10343 = vunpack.c.l.b16 %v9755
        %v10344 = vunpack.c.l.b16 %v9779
        %v10345 = vunpack.c.l.b16 %v9803
        %v10346 = vunpack.c.l.b16 %v9827
        %v10347 = vunpack.c.l.b16 %v9851
        %v10348 = vunpack.c.l.b16 %v9875
        %v10349 = vunpack.c.l.b16 %v9899
        %v10350 = vunpack.c.l.b16 %v9923
        %v10351 = vunpack.c.l.b16 %v9947
        %v10352 = vunpack.c.l.b16 %v9971
        %v10353 = vunpack.c.l.b16 %v9995
        %v10354 = vunpack.c.l.b16 %v10019
        %v10355 = vunpack.c.l.b16 %v10043
        %v10356 = vunpack.c.l.b16 %v10067
        %v10357 = vunpack.c.l.b16 %v10091
        %v10358 = vunpack.c.l.b16 %v10115
        %v10359 = vunpack.c.l.b16 %v10139
        %v10360 = vunpack.c.l.b16 %v10163
        %v10361 = vunpack.c.l.b16 %v10187
        %v10362 = vunpack.c.l.b16 %v10211
        %v10363 = vunpack.c.l.b16 %v10235
        %10364 = vset.pattern.permute.xlu0 0
        %10365 = vperm.xlu0 %10364, %v10236
        %v10366 = vpop.permute.xlu0 %10365
        %10367 = vset.pattern.permute.xlu0 0
        %10368 = vperm.xlu0 %10367, %v10237
        %v10369 = vpop.permute.xlu0 %10368
        %10370 = vset.pattern.permute.xlu0 0
        %10371 = vperm.xlu0 %10370, %v10238
        %v10372 = vpop.permute.xlu0 %10371
        %10373 = vset.pattern.permute.xlu0 0
        %10374 = vperm.xlu0 %10373, %v10239
        %v10375 = vpop.permute.xlu0 %10374
        %10376 = vset.pattern.permute.xlu0 0
        %10377 = vperm.xlu0 %10376, %v10240
        %v10378 = vpop.permute.xlu0 %10377
        %10379 = vset.pattern.permute.xlu0 0
        %10380 = vperm.xlu0 %10379, %v10241
        %v10381 = vpop.permute.xlu0 %10380
        %10382 = vset.pattern.permute.xlu0 0
        %10383 = vperm.xlu0 %10382, %v10242
        %v10384 = vpop.permute.xlu0 %10383
        %10385 = vset.pattern.permute.xlu0 0
        %10386 = vperm.xlu0 %10385, %v10243
        %v10387 = vpop.permute.xlu0 %10386
        %10388 = vset.pattern.permute.xlu0 0
        %10389 = vperm.xlu0 %10388, %v10244
        %v10390 = vpop.permute.xlu0 %10389
        %10391 = vset.pattern.permute.xlu0 0
        %10392 = vperm.xlu0 %10391, %v10245
        %v10393 = vpop.permute.xlu0 %10392
        %10394 = vset.pattern.permute.xlu0 0
        %10395 = vperm.xlu0 %10394, %v10246
        %v10396 = vpop.permute.xlu0 %10395
        %10397 = vset.pattern.permute.xlu0 0
        %10398 = vperm.xlu0 %10397, %v10247
        %v10399 = vpop.permute.xlu0 %10398
        %10400 = vset.pattern.permute.xlu0 0
        %10401 = vperm.xlu0 %10400, %v10248
        %v10402 = vpop.permute.xlu0 %10401
        %10403 = vset.pattern.permute.xlu0 0
        %10404 = vperm.xlu0 %10403, %v10249
        %v10405 = vpop.permute.xlu0 %10404
        %10406 = vset.pattern.permute.xlu0 0
        %10407 = vperm.xlu0 %10406, %v10250
        %v10408 = vpop.permute.xlu0 %10407
        %10409 = vset.pattern.permute.xlu0 0
        %10410 = vperm.xlu0 %10409, %v10251
        %v10411 = vpop.permute.xlu0 %10410
        %10412 = vset.pattern.permute.xlu0 0
        %10413 = vperm.xlu0 %10412, %v10252
        %v10414 = vpop.permute.xlu0 %10413
        %10415 = vset.pattern.permute.xlu0 0
        %10416 = vperm.xlu0 %10415, %v10253
        %v10417 = vpop.permute.xlu0 %10416
        %10418 = vset.pattern.permute.xlu0 0
        %10419 = vperm.xlu0 %10418, %v10254
        %v10420 = vpop.permute.xlu0 %10419
        %10421 = vset.pattern.permute.xlu0 0
        %10422 = vperm.xlu0 %10421, %v10255
        %v10423 = vpop.permute.xlu0 %10422
        %10424 = vset.pattern.permute.xlu0 0
        %10425 = vperm.xlu0 %10424, %v10256
        %v10426 = vpop.permute.xlu0 %10425
        %10427 = vset.pattern.permute.xlu0 0
        %10428 = vperm.xlu0 %10427, %v10257
        %v10429 = vpop.permute.xlu0 %10428
        %10430 = vset.pattern.permute.xlu0 0
        %10431 = vperm.xlu0 %10430, %v10258
        %v10432 = vpop.permute.xlu0 %10431
        %10433 = vset.pattern.permute.xlu0 0
        %10434 = vperm.xlu0 %10433, %v10259
        %v10435 = vpop.permute.xlu0 %10434
        %10436 = vset.pattern.permute.xlu0 0
        %10437 = vperm.xlu0 %10436, %v10260
        %v10438 = vpop.permute.xlu0 %10437
        %10439 = vset.pattern.permute.xlu0 0
        %10440 = vperm.xlu0 %10439, %v10261
        %v10441 = vpop.permute.xlu0 %10440
        %10442 = vset.pattern.permute.xlu0 0
        %10443 = vperm.xlu0 %10442, %v10262
        %v10444 = vpop.permute.xlu0 %10443
        %10445 = vset.pattern.permute.xlu0 0
        %10446 = vperm.xlu0 %10445, %v10263
        %v10447 = vpop.permute.xlu0 %10446
        %10448 = vset.pattern.permute.xlu0 0
        %10449 = vperm.xlu0 %10448, %v10264
        %v10450 = vpop.permute.xlu0 %10449
        %10451 = vset.pattern.permute.xlu0 0
        %10452 = vperm.xlu0 %10451, %v10265
        %v10453 = vpop.permute.xlu0 %10452
        %10454 = vset.pattern.permute.xlu0 0
        %10455 = vperm.xlu0 %10454, %v10266
        %v10456 = vpop.permute.xlu0 %10455
        %10457 = vset.pattern.permute.xlu0 0
        %10458 = vperm.xlu0 %10457, %v10267
        %v10459 = vpop.permute.xlu0 %10458
        %10460 = vset.pattern.permute.xlu0 0
        %10461 = vperm.xlu0 %10460, %v10268
        %v10462 = vpop.permute.xlu0 %10461
        %10463 = vset.pattern.permute.xlu0 0
        %10464 = vperm.xlu0 %10463, %v10269
        %v10465 = vpop.permute.xlu0 %10464
        %10466 = vset.pattern.permute.xlu0 0
        %10467 = vperm.xlu0 %10466, %v10270
        %v10468 = vpop.permute.xlu0 %10467
        %10469 = vset.pattern.permute.xlu0 0
        %10470 = vperm.xlu0 %10469, %v10271
        %v10471 = vpop.permute.xlu0 %10470
        %10472 = vset.pattern.permute.xlu0 0
        %10473 = vperm.xlu0 %10472, %v10272
        %v10474 = vpop.permute.xlu0 %10473
        %10475 = vset.pattern.permute.xlu0 0
        %10476 = vperm.xlu0 %10475, %v10273
        %v10477 = vpop.permute.xlu0 %10476
        %10478 = vset.pattern.permute.xlu0 0
        %10479 = vperm.xlu0 %10478, %v10274
        %v10480 = vpop.permute.xlu0 %10479
        %10481 = vset.pattern.permute.xlu0 0
        %10482 = vperm.xlu0 %10481, %v10275
        %v10483 = vpop.permute.xlu0 %10482
        %10484 = vset.pattern.permute.xlu0 0
        %10485 = vperm.xlu0 %10484, %v10276
        %v10486 = vpop.permute.xlu0 %10485
        %10487 = vset.pattern.permute.xlu0 0
        %10488 = vperm.xlu0 %10487, %v10277
        %v10489 = vpop.permute.xlu0 %10488
        %10490 = vset.pattern.permute.xlu0 0
        %10491 = vperm.xlu0 %10490, %v10278
        %v10492 = vpop.permute.xlu0 %10491
        %10493 = vset.pattern.permute.xlu0 0
        %10494 = vperm.xlu0 %10493, %v10279
        %v10495 = vpop.permute.xlu0 %10494
        %10496 = vset.pattern.permute.xlu0 0
        %10497 = vperm.xlu0 %10496, %v10280
        %v10498 = vpop.permute.xlu0 %10497
        %10499 = vset.pattern.permute.xlu0 0
        %10500 = vperm.xlu0 %10499, %v10281
        %v10501 = vpop.permute.xlu0 %10500
        %10502 = vset.pattern.permute.xlu0 0
        %10503 = vperm.xlu0 %10502, %v10282
        %v10504 = vpop.permute.xlu0 %10503
        %10505 = vset.pattern.permute.xlu0 0
        %10506 = vperm.xlu0 %10505, %v10283
        %v10507 = vpop.permute.xlu0 %10506
        %10508 = vset.pattern.permute.xlu0 0
        %10509 = vperm.xlu0 %10508, %v10284
        %v10510 = vpop.permute.xlu0 %10509
        %10511 = vset.pattern.permute.xlu0 0
        %10512 = vperm.xlu0 %10511, %v10285
        %v10513 = vpop.permute.xlu0 %10512
        %10514 = vset.pattern.permute.xlu0 0
        %10515 = vperm.xlu0 %10514, %v10286
        %v10516 = vpop.permute.xlu0 %10515
        %10517 = vset.pattern.permute.xlu0 0
        %10518 = vperm.xlu0 %10517, %v10287
        %v10519 = vpop.permute.xlu0 %10518
        %10520 = vset.pattern.permute.xlu0 0
        %10521 = vperm.xlu0 %10520, %v10288
        %v10522 = vpop.permute.xlu0 %10521
        %10523 = vset.pattern.permute.xlu0 0
        %10524 = vperm.xlu0 %10523, %v10289
        %v10525 = vpop.permute.xlu0 %10524
        %10526 = vset.pattern.permute.xlu0 0
        %10527 = vperm.xlu0 %10526, %v10290
        %v10528 = vpop.permute.xlu0 %10527
        %10529 = vset.pattern.permute.xlu0 0
        %10530 = vperm.xlu0 %10529, %v10291
        %v10531 = vpop.permute.xlu0 %10530
        %10532 = vset.pattern.permute.xlu0 0
        %10533 = vperm.xlu0 %10532, %v10292
        %v10534 = vpop.permute.xlu0 %10533
        %10535 = vset.pattern.permute.xlu0 0
        %10536 = vperm.xlu0 %10535, %v10293
        %v10537 = vpop.permute.xlu0 %10536
        %10538 = vset.pattern.permute.xlu0 0
        %10539 = vperm.xlu0 %10538, %v10294
        %v10540 = vpop.permute.xlu0 %10539
        %10541 = vset.pattern.permute.xlu0 0
        %10542 = vperm.xlu0 %10541, %v10295
        %v10543 = vpop.permute.xlu0 %10542
        %10544 = vset.pattern.permute.xlu0 0
        %10545 = vperm.xlu0 %10544, %v10296
        %v10546 = vpop.permute.xlu0 %10545
        %10547 = vset.pattern.permute.xlu0 0
        %10548 = vperm.xlu0 %10547, %v10297
        %v10549 = vpop.permute.xlu0 %10548
        %10550 = vset.pattern.permute.xlu0 0
        %10551 = vperm.xlu0 %10550, %v10298
        %v10552 = vpop.permute.xlu0 %10551
        %10553 = vset.pattern.permute.xlu0 0
        %10554 = vperm.xlu0 %10553, %v10299
        %v10555 = vpop.permute.xlu0 %10554
        %10556 = vset.pattern.permute.xlu0 0
        %10557 = vperm.xlu0 %10556, %v10300
        %v10558 = vpop.permute.xlu0 %10557
        %10559 = vset.pattern.permute.xlu0 0
        %10560 = vperm.xlu0 %10559, %v10301
        %v10561 = vpop.permute.xlu0 %10560
        %10562 = vset.pattern.permute.xlu0 0
        %10563 = vperm.xlu0 %10562, %v10302
        %v10564 = vpop.permute.xlu0 %10563
        %10565 = vset.pattern.permute.xlu0 0
        %10566 = vperm.xlu0 %10565, %v10303
        %v10567 = vpop.permute.xlu0 %10566
        %10568 = vset.pattern.permute.xlu0 0
        %10569 = vperm.xlu0 %10568, %v10304
        %v10570 = vpop.permute.xlu0 %10569
        %10571 = vset.pattern.permute.xlu0 0
        %10572 = vperm.xlu0 %10571, %v10305
        %v10573 = vpop.permute.xlu0 %10572
        %10574 = vset.pattern.permute.xlu0 0
        %10575 = vperm.xlu0 %10574, %v10306
        %v10576 = vpop.permute.xlu0 %10575
        %10577 = vset.pattern.permute.xlu0 0
        %10578 = vperm.xlu0 %10577, %v10307
        %v10579 = vpop.permute.xlu0 %10578
        %10580 = vset.pattern.permute.xlu0 0
        %10581 = vperm.xlu0 %10580, %v10308
        %v10582 = vpop.permute.xlu0 %10581
        %10583 = vset.pattern.permute.xlu0 0
        %10584 = vperm.xlu0 %10583, %v10309
        %v10585 = vpop.permute.xlu0 %10584
        %10586 = vset.pattern.permute.xlu0 0
        %10587 = vperm.xlu0 %10586, %v10310
        %v10588 = vpop.permute.xlu0 %10587
        %10589 = vset.pattern.permute.xlu0 0
        %10590 = vperm.xlu0 %10589, %v10311
        %v10591 = vpop.permute.xlu0 %10590
        %10592 = vset.pattern.permute.xlu0 0
        %10593 = vperm.xlu0 %10592, %v10312
        %v10594 = vpop.permute.xlu0 %10593
        %10595 = vset.pattern.permute.xlu0 0
        %10596 = vperm.xlu0 %10595, %v10313
        %v10597 = vpop.permute.xlu0 %10596
        %10598 = vset.pattern.permute.xlu0 0
        %10599 = vperm.xlu0 %10598, %v10314
        %v10600 = vpop.permute.xlu0 %10599
        %10601 = vset.pattern.permute.xlu0 0
        %10602 = vperm.xlu0 %10601, %v10315
        %v10603 = vpop.permute.xlu0 %10602
        %10604 = vset.pattern.permute.xlu0 0
        %10605 = vperm.xlu0 %10604, %v10316
        %v10606 = vpop.permute.xlu0 %10605
        %10607 = vset.pattern.permute.xlu0 0
        %10608 = vperm.xlu0 %10607, %v10317
        %v10609 = vpop.permute.xlu0 %10608
        %10610 = vset.pattern.permute.xlu0 0
        %10611 = vperm.xlu0 %10610, %v10318
        %v10612 = vpop.permute.xlu0 %10611
        %10613 = vset.pattern.permute.xlu0 0
        %10614 = vperm.xlu0 %10613, %v10319
        %v10615 = vpop.permute.xlu0 %10614
        %10616 = vset.pattern.permute.xlu0 0
        %10617 = vperm.xlu0 %10616, %v10320
        %v10618 = vpop.permute.xlu0 %10617
        %10619 = vset.pattern.permute.xlu0 0
        %10620 = vperm.xlu0 %10619, %v10321
        %v10621 = vpop.permute.xlu0 %10620
        %10622 = vset.pattern.permute.xlu0 0
        %10623 = vperm.xlu0 %10622, %v10322
        %v10624 = vpop.permute.xlu0 %10623
        %10625 = vset.pattern.permute.xlu0 0
        %10626 = vperm.xlu0 %10625, %v10323
        %v10627 = vpop.permute.xlu0 %10626
        %10628 = vset.pattern.permute.xlu0 0
        %10629 = vperm.xlu0 %10628, %v10324
        %v10630 = vpop.permute.xlu0 %10629
        %10631 = vset.pattern.permute.xlu0 0
        %10632 = vperm.xlu0 %10631, %v10325
        %v10633 = vpop.permute.xlu0 %10632
        %10634 = vset.pattern.permute.xlu0 0
        %10635 = vperm.xlu0 %10634, %v10326
        %v10636 = vpop.permute.xlu0 %10635
        %10637 = vset.pattern.permute.xlu0 0
        %10638 = vperm.xlu0 %10637, %v10327
        %v10639 = vpop.permute.xlu0 %10638
        %10640 = vset.pattern.permute.xlu0 0
        %10641 = vperm.xlu0 %10640, %v10328
        %v10642 = vpop.permute.xlu0 %10641
        %10643 = vset.pattern.permute.xlu0 0
        %10644 = vperm.xlu0 %10643, %v10329
        %v10645 = vpop.permute.xlu0 %10644
        %10646 = vset.pattern.permute.xlu0 0
        %10647 = vperm.xlu0 %10646, %v10330
        %v10648 = vpop.permute.xlu0 %10647
        %10649 = vset.pattern.permute.xlu0 0
        %10650 = vperm.xlu0 %10649, %v10331
        %v10651 = vpop.permute.xlu0 %10650
        %10652 = vset.pattern.permute.xlu0 0
        %10653 = vperm.xlu0 %10652, %v10332
        %v10654 = vpop.permute.xlu0 %10653
        %10655 = vset.pattern.permute.xlu0 0
        %10656 = vperm.xlu0 %10655, %v10333
        %v10657 = vpop.permute.xlu0 %10656
        %10658 = vset.pattern.permute.xlu0 0
        %10659 = vperm.xlu0 %10658, %v10334
        %v10660 = vpop.permute.xlu0 %10659
        %10661 = vset.pattern.permute.xlu0 0
        %10662 = vperm.xlu0 %10661, %v10335
        %v10663 = vpop.permute.xlu0 %10662
        %10664 = vset.pattern.permute.xlu0 0
        %10665 = vperm.xlu0 %10664, %v10336
        %v10666 = vpop.permute.xlu0 %10665
        %10667 = vset.pattern.permute.xlu0 0
        %10668 = vperm.xlu0 %10667, %v10337
        %v10669 = vpop.permute.xlu0 %10668
        %10670 = vset.pattern.permute.xlu0 0
        %10671 = vperm.xlu0 %10670, %v10338
        %v10672 = vpop.permute.xlu0 %10671
        %10673 = vset.pattern.permute.xlu0 0
        %10674 = vperm.xlu0 %10673, %v10339
        %v10675 = vpop.permute.xlu0 %10674
        %10676 = vset.pattern.permute.xlu0 0
        %10677 = vperm.xlu0 %10676, %v10340
        %v10678 = vpop.permute.xlu0 %10677
        %10679 = vset.pattern.permute.xlu0 0
        %10680 = vperm.xlu0 %10679, %v10341
        %v10681 = vpop.permute.xlu0 %10680
        %10682 = vset.pattern.permute.xlu0 0
        %10683 = vperm.xlu0 %10682, %v10342
        %v10684 = vpop.permute.xlu0 %10683
        %10685 = vset.pattern.permute.xlu0 0
        %10686 = vperm.xlu0 %10685, %v10343
        %v10687 = vpop.permute.xlu0 %10686
        %10688 = vset.pattern.permute.xlu0 0
        %10689 = vperm.xlu0 %10688, %v10344
        %v10690 = vpop.permute.xlu0 %10689
        %10691 = vset.pattern.permute.xlu0 0
        %10692 = vperm.xlu0 %10691, %v10345
        %v10693 = vpop.permute.xlu0 %10692
        %10694 = vset.pattern.permute.xlu0 0
        %10695 = vperm.xlu0 %10694, %v10346
        %v10696 = vpop.permute.xlu0 %10695
        %10697 = vset.pattern.permute.xlu0 0
        %10698 = vperm.xlu0 %10697, %v10347
        %v10699 = vpop.permute.xlu0 %10698
        %10700 = vset.pattern.permute.xlu0 0
        %10701 = vperm.xlu0 %10700, %v10348
        %v10702 = vpop.permute.xlu0 %10701
        %10703 = vset.pattern.permute.xlu0 0
        %10704 = vperm.xlu0 %10703, %v10349
        %v10705 = vpop.permute.xlu0 %10704
        %10706 = vset.pattern.permute.xlu0 0
        %10707 = vperm.xlu0 %10706, %v10350
        %v10708 = vpop.permute.xlu0 %10707
        %10709 = vset.pattern.permute.xlu0 0
        %10710 = vperm.xlu0 %10709, %v10351
        %v10711 = vpop.permute.xlu0 %10710
        %10712 = vset.pattern.permute.xlu0 0
        %10713 = vperm.xlu0 %10712, %v10352
        %v10714 = vpop.permute.xlu0 %10713
        %10715 = vset.pattern.permute.xlu0 0
        %10716 = vperm.xlu0 %10715, %v10353
        %v10717 = vpop.permute.xlu0 %10716
        %10718 = vset.pattern.permute.xlu0 0
        %10719 = vperm.xlu0 %10718, %v10354
        %v10720 = vpop.permute.xlu0 %10719
        %10721 = vset.pattern.permute.xlu0 0
        %10722 = vperm.xlu0 %10721, %v10355
        %v10723 = vpop.permute.xlu0 %10722
        %10724 = vset.pattern.permute.xlu0 0
        %10725 = vperm.xlu0 %10724, %v10356
        %v10726 = vpop.permute.xlu0 %10725
        %10727 = vset.pattern.permute.xlu0 0
        %10728 = vperm.xlu0 %10727, %v10357
        %v10729 = vpop.permute.xlu0 %10728
        %10730 = vset.pattern.permute.xlu0 0
        %10731 = vperm.xlu0 %10730, %v10358
        %v10732 = vpop.permute.xlu0 %10731
        %10733 = vset.pattern.permute.xlu0 0
        %10734 = vperm.xlu0 %10733, %v10359
        %v10735 = vpop.permute.xlu0 %10734
        %10736 = vset.pattern.permute.xlu0 0
        %10737 = vperm.xlu0 %10736, %v10360
        %v10738 = vpop.permute.xlu0 %10737
        %10739 = vset.pattern.permute.xlu0 0
        %10740 = vperm.xlu0 %10739, %v10361
        %v10741 = vpop.permute.xlu0 %10740
        %10742 = vset.pattern.permute.xlu0 0
        %10743 = vperm.xlu0 %10742, %v10362
        %v10744 = vpop.permute.xlu0 %10743
        %10745 = vset.pattern.permute.xlu0 0
        %10746 = vperm.xlu0 %10745, %v10363
        %v10747 = vpop.permute.xlu0 %10746
        %v10748 = vlaneseq
        %v10749 = vand.u32 %v10748, 127
        %v10750 = vlaneseq
        %v10751 = vshrl.u32 %v10750, 7
        %v10752 = vsub.s32 %v10749, %v10751
        %v10753 = vrot.slane %v10366, %v10752
        %v10754 = vadd.s32 %v10749, 4294967288
        %v10755 = vlaneseq
        %v10756 = vshrl.u32 %v10755, 7
        %v10757 = vsub.s32 %v10754, %v10756
        %v10758 = vrot.slane %v10369, %v10757
        %vm10759 = vcmask 130112
        %v10760 = vsel %vm10759, %v10758, %v10753
        %v10761 = vadd.s32 %v10749, 4294967280
        %v10762 = vlaneseq
        %v10763 = vshrl.u32 %v10762, 7
        %v10764 = vsub.s32 %v10761, %v10763
        %v10765 = vrot.slane %v10372, %v10764
        %vm10766 = vcmask 195712
        %v10767 = vsel %vm10766, %v10765, %v10760
        %v10768 = vadd.s32 %v10749, 4294967272
        %v10769 = vlaneseq
        %v10770 = vshrl.u32 %v10769, 7
        %v10771 = vsub.s32 %v10768, %v10770
        %v10772 = vrot.slane %v10375, %v10771
        %vm10773 = vcmask 261312
        %v10774 = vsel %vm10773, %v10772, %v10767
        %v10775 = vadd.s32 %v10749, 4294967264
        %v10776 = vlaneseq
        %v10777 = vshrl.u32 %v10776, 7
        %v10778 = vsub.s32 %v10775, %v10777
        %v10779 = vrot.slane %v10378, %v10778
        %vm10780 = vcmask 326912
        %v10781 = vsel %vm10780, %v10779, %v10774
        %v10782 = vadd.s32 %v10749, 4294967256
        %v10783 = vlaneseq
        %v10784 = vshrl.u32 %v10783, 7
        %v10785 = vsub.s32 %v10782, %v10784
        %v10786 = vrot.slane %v10381, %v10785
        %vm10787 = vcmask 392512
        %v10788 = vsel %vm10787, %v10786, %v10781
        %v10789 = vadd.s32 %v10749, 4294967248
        %v10790 = vlaneseq
        %v10791 = vshrl.u32 %v10790, 7
        %v10792 = vsub.s32 %v10789, %v10791
        %v10793 = vrot.slane %v10384, %v10792
        %vm10794 = vcmask 458112
        %v10795 = vsel %vm10794, %v10793, %v10788
        %v10796 = vadd.s32 %v10749, 4294967240
        %v10797 = vlaneseq
        %v10798 = vshrl.u32 %v10797, 7
        %v10799 = vsub.s32 %v10796, %v10798
        %v10800 = vrot.slane %v10387, %v10799
        %vm10801 = vcmask 523712
        %v10802 = vsel %vm10801, %v10800, %v10795
        %v10803 = vadd.s32 %v10749, 4294967232
        %v10804 = vlaneseq
        %v10805 = vshrl.u32 %v10804, 7
        %v10806 = vsub.s32 %v10803, %v10805
        %v10807 = vrot.slane %v10390, %v10806
        %vm10808 = vcmask 589312
        %v10809 = vsel %vm10808, %v10807, %v10802
        %v10810 = vadd.s32 %v10749, 4294967224
        %v10811 = vlaneseq
        %v10812 = vshrl.u32 %v10811, 7
        %v10813 = vsub.s32 %v10810, %v10812
        %v10814 = vrot.slane %v10393, %v10813
        %vm10815 = vcmask 654912
        %v10816 = vsel %vm10815, %v10814, %v10809
        %v10817 = vadd.s32 %v10749, 4294967216
        %v10818 = vlaneseq
        %v10819 = vshrl.u32 %v10818, 7
        %v10820 = vsub.s32 %v10817, %v10819
        %v10821 = vrot.slane %v10396, %v10820
        %vm10822 = vcmask 720512
        %v10823 = vsel %vm10822, %v10821, %v10816
        %v10824 = vadd.s32 %v10749, 4294967208
        %v10825 = vlaneseq
        %v10826 = vshrl.u32 %v10825, 7
        %v10827 = vsub.s32 %v10824, %v10826
        %v10828 = vrot.slane %v10399, %v10827
        %vm10829 = vcmask 786112
        %v10830 = vsel %vm10829, %v10828, %v10823
        %v10831 = vadd.s32 %v10749, 4294967200
        %v10832 = vlaneseq
        %v10833 = vshrl.u32 %v10832, 7
        %v10834 = vsub.s32 %v10831, %v10833
        %v10835 = vrot.slane %v10402, %v10834
        %vm10836 = vcmask 851712
        %v10837 = vsel %vm10836, %v10835, %v10830
        %v10838 = vadd.s32 %v10749, 4294967192
        %v10839 = vlaneseq
        %v10840 = vshrl.u32 %v10839, 7
        %v10841 = vsub.s32 %v10838, %v10840
        %v10842 = vrot.slane %v10405, %v10841
        %vm10843 = vcmask 917312
        %v10844 = vsel %vm10843, %v10842, %v10837
        %v10845 = vadd.s32 %v10749, 4294967184
        %v10846 = vlaneseq
        %v10847 = vshrl.u32 %v10846, 7
        %v10848 = vsub.s32 %v10845, %v10847
        %v10849 = vrot.slane %v10408, %v10848
        %vm10850 = vcmask 982912
        %v10851 = vsel %vm10850, %v10849, %v10844
        %v10852 = vadd.s32 %v10749, 4294967176
        %v10853 = vlaneseq
        %v10854 = vshrl.u32 %v10853, 7
        %v10855 = vsub.s32 %v10852, %v10854
        %v10856 = vrot.slane %v10411, %v10855
        %vm10857 = vcmask 1048512
        %v10858 = vsel %vm10857, %v10856, %v10851
        %v10859 = vlaneseq
        %v10860 = vshrl.u32 %v10859, 7
        %v10861 = vsub.s32 %v10749, %v10860
        %v10862 = vrot.slane %v10414, %v10861
        %v10863 = vlaneseq
        %v10864 = vshrl.u32 %v10863, 7
        %v10865 = vsub.s32 %v10754, %v10864
        %v10866 = vrot.slane %v10417, %v10865
        %v10867 = vsel %vm10759, %v10866, %v10862
        %v10868 = vlaneseq
        %v10869 = vshrl.u32 %v10868, 7
        %v10870 = vsub.s32 %v10761, %v10869
        %v10871 = vrot.slane %v10420, %v10870
        %v10872 = vsel %vm10766, %v10871, %v10867
        %v10873 = vlaneseq
        %v10874 = vshrl.u32 %v10873, 7
        %v10875 = vsub.s32 %v10768, %v10874
        %v10876 = vrot.slane %v10423, %v10875
        %v10877 = vsel %vm10773, %v10876, %v10872
        %v10878 = vlaneseq
        %v10879 = vshrl.u32 %v10878, 7
        %v10880 = vsub.s32 %v10775, %v10879
        %v10881 = vrot.slane %v10426, %v10880
        %v10882 = vsel %vm10780, %v10881, %v10877
        %v10883 = vlaneseq
        %v10884 = vshrl.u32 %v10883, 7
        %v10885 = vsub.s32 %v10782, %v10884
        %v10886 = vrot.slane %v10429, %v10885
        %v10887 = vsel %vm10787, %v10886, %v10882
        %v10888 = vlaneseq
        %v10889 = vshrl.u32 %v10888, 7
        %v10890 = vsub.s32 %v10789, %v10889
        %v10891 = vrot.slane %v10432, %v10890
        %v10892 = vsel %vm10794, %v10891, %v10887
        %v10893 = vlaneseq
        %v10894 = vshrl.u32 %v10893, 7
        %v10895 = vsub.s32 %v10796, %v10894
        %v10896 = vrot.slane %v10435, %v10895
        %v10897 = vsel %vm10801, %v10896, %v10892
        %v10898 = vlaneseq
        %v10899 = vshrl.u32 %v10898, 7
        %v10900 = vsub.s32 %v10803, %v10899
        %v10901 = vrot.slane %v10438, %v10900
        %v10902 = vsel %vm10808, %v10901, %v10897
        %v10903 = vlaneseq
        %v10904 = vshrl.u32 %v10903, 7
        %v10905 = vsub.s32 %v10810, %v10904
        %v10906 = vrot.slane %v10441, %v10905
        %v10907 = vsel %vm10815, %v10906, %v10902
        %v10908 = vlaneseq
        %v10909 = vshrl.u32 %v10908, 7
        %v10910 = vsub.s32 %v10817, %v10909
        %v10911 = vrot.slane %v10444, %v10910
        %v10912 = vsel %vm10822, %v10911, %v10907
        %v10913 = vlaneseq
        %v10914 = vshrl.u32 %v10913, 7
        %v10915 = vsub.s32 %v10824, %v10914
        %v10916 = vrot.slane %v10447, %v10915
        %v10917 = vsel %vm10829, %v10916, %v10912
        %v10918 = vlaneseq
        %v10919 = vshrl.u32 %v10918, 7
        %v10920 = vsub.s32 %v10831, %v10919
        %v10921 = vrot.slane %v10450, %v10920
        %v10922 = vsel %vm10836, %v10921, %v10917
        %v10923 = vlaneseq
        %v10924 = vshrl.u32 %v10923, 7
        %v10925 = vsub.s32 %v10838, %v10924
        %v10926 = vrot.slane %v10453, %v10925
        %v10927 = vsel %vm10843, %v10926, %v10922
        %v10928 = vlaneseq
        %v10929 = vshrl.u32 %v10928, 7
        %v10930 = vsub.s32 %v10845, %v10929
        %v10931 = vrot.slane %v10456, %v10930
        %v10932 = vsel %vm10850, %v10931, %v10927
        %v10933 = vlaneseq
        %v10934 = vshrl.u32 %v10933, 7
        %v10935 = vsub.s32 %v10852, %v10934
        %v10936 = vrot.slane %v10459, %v10935
        %v10937 = vsel %vm10857, %v10936, %v10932
        %v10938 = vlaneseq
        %v10939 = vshrl.u32 %v10938, 7
        %v10940 = vsub.s32 %v10749, %v10939
        %v10941 = vrot.slane %v10462, %v10940
        %v10942 = vlaneseq
        %v10943 = vshrl.u32 %v10942, 7
        %v10944 = vsub.s32 %v10754, %v10943
        %v10945 = vrot.slane %v10465, %v10944
        %v10946 = vsel %vm10759, %v10945, %v10941
        %v10947 = vlaneseq
        %v10948 = vshrl.u32 %v10947, 7
        %v10949 = vsub.s32 %v10761, %v10948
        %v10950 = vrot.slane %v10468, %v10949
        %v10951 = vsel %vm10766, %v10950, %v10946
        %v10952 = vlaneseq
        %v10953 = vshrl.u32 %v10952, 7
        %v10954 = vsub.s32 %v10768, %v10953
        %v10955 = vrot.slane %v10471, %v10954
        %v10956 = vsel %vm10773, %v10955, %v10951
        %v10957 = vlaneseq
        %v10958 = vshrl.u32 %v10957, 7
        %v10959 = vsub.s32 %v10775, %v10958
        %v10960 = vrot.slane %v10474, %v10959
        %v10961 = vsel %vm10780, %v10960, %v10956
        %v10962 = vlaneseq
        %v10963 = vshrl.u32 %v10962, 7
        %v10964 = vsub.s32 %v10782, %v10963
        %v10965 = vrot.slane %v10477, %v10964
        %v10966 = vsel %vm10787, %v10965, %v10961
        %v10967 = vlaneseq
        %v10968 = vshrl.u32 %v10967, 7
        %v10969 = vsub.s32 %v10789, %v10968
        %v10970 = vrot.slane %v10480, %v10969
        %v10971 = vsel %vm10794, %v10970, %v10966
        %v10972 = vlaneseq
        %v10973 = vshrl.u32 %v10972, 7
        %v10974 = vsub.s32 %v10796, %v10973
        %v10975 = vrot.slane %v10483, %v10974
        %v10976 = vsel %vm10801, %v10975, %v10971
        %v10977 = vlaneseq
        %v10978 = vshrl.u32 %v10977, 7
        %v10979 = vsub.s32 %v10803, %v10978
        %v10980 = vrot.slane %v10486, %v10979
        %v10981 = vsel %vm10808, %v10980, %v10976
        %v10982 = vlaneseq
        %v10983 = vshrl.u32 %v10982, 7
        %v10984 = vsub.s32 %v10810, %v10983
        %v10985 = vrot.slane %v10489, %v10984
        %v10986 = vsel %vm10815, %v10985, %v10981
        %v10987 = vlaneseq
        %v10988 = vshrl.u32 %v10987, 7
        %v10989 = vsub.s32 %v10817, %v10988
        %v10990 = vrot.slane %v10492, %v10989
        %v10991 = vsel %vm10822, %v10990, %v10986
        %v10992 = vlaneseq
        %v10993 = vshrl.u32 %v10992, 7
        %v10994 = vsub.s32 %v10824, %v10993
        %v10995 = vrot.slane %v10495, %v10994
        %v10996 = vsel %vm10829, %v10995, %v10991
        %v10997 = vlaneseq
        %v10998 = vshrl.u32 %v10997, 7
        %v10999 = vsub.s32 %v10831, %v10998
        %v11000 = vrot.slane %v10498, %v10999
        %v11001 = vsel %vm10836, %v11000, %v10996
        %v11002 = vlaneseq
        %v11003 = vshrl.u32 %v11002, 7
        %v11004 = vsub.s32 %v10838, %v11003
        %v11005 = vrot.slane %v10501, %v11004
        %v11006 = vsel %vm10843, %v11005, %v11001
        %v11007 = vlaneseq
        %v11008 = vshrl.u32 %v11007, 7
        %v11009 = vsub.s32 %v10845, %v11008
        %v11010 = vrot.slane %v10504, %v11009
        %v11011 = vsel %vm10850, %v11010, %v11006
        %v11012 = vlaneseq
        %v11013 = vshrl.u32 %v11012, 7
        %v11014 = vsub.s32 %v10852, %v11013
        %v11015 = vrot.slane %v10507, %v11014
        %v11016 = vsel %vm10857, %v11015, %v11011
        %v11017 = vlaneseq
        %v11018 = vshrl.u32 %v11017, 7
        %v11019 = vsub.s32 %v10749, %v11018
        %v11020 = vrot.slane %v10510, %v11019
        %v11021 = vlaneseq
        %v11022 = vshrl.u32 %v11021, 7
        %v11023 = vsub.s32 %v10754, %v11022
        %v11024 = vrot.slane %v10513, %v11023
        %v11025 = vsel %vm10759, %v11024, %v11020
        %v11026 = vlaneseq
        %v11027 = vshrl.u32 %v11026, 7
        %v11028 = vsub.s32 %v10761, %v11027
        %v11029 = vrot.slane %v10516, %v11028
        %v11030 = vsel %vm10766, %v11029, %v11025
        %v11031 = vlaneseq
        %v11032 = vshrl.u32 %v11031, 7
        %v11033 = vsub.s32 %v10768, %v11032
        %v11034 = vrot.slane %v10519, %v11033
        %v11035 = vsel %vm10773, %v11034, %v11030
        %v11036 = vlaneseq
        %v11037 = vshrl.u32 %v11036, 7
        %v11038 = vsub.s32 %v10775, %v11037
        %v11039 = vrot.slane %v10522, %v11038
        %v11040 = vsel %vm10780, %v11039, %v11035
        %v11041 = vlaneseq
        %v11042 = vshrl.u32 %v11041, 7
        %v11043 = vsub.s32 %v10782, %v11042
        %v11044 = vrot.slane %v10525, %v11043
        %v11045 = vsel %vm10787, %v11044, %v11040
        %v11046 = vlaneseq
        %v11047 = vshrl.u32 %v11046, 7
        %v11048 = vsub.s32 %v10789, %v11047
        %v11049 = vrot.slane %v10528, %v11048
        %v11050 = vsel %vm10794, %v11049, %v11045
        %v11051 = vlaneseq
        %v11052 = vshrl.u32 %v11051, 7
        %v11053 = vsub.s32 %v10796, %v11052
        %v11054 = vrot.slane %v10531, %v11053
        %v11055 = vsel %vm10801, %v11054, %v11050
        %v11056 = vlaneseq
        %v11057 = vshrl.u32 %v11056, 7
        %v11058 = vsub.s32 %v10803, %v11057
        %v11059 = vrot.slane %v10534, %v11058
        %v11060 = vsel %vm10808, %v11059, %v11055
        %v11061 = vlaneseq
        %v11062 = vshrl.u32 %v11061, 7
        %v11063 = vsub.s32 %v10810, %v11062
        %v11064 = vrot.slane %v10537, %v11063
        %v11065 = vsel %vm10815, %v11064, %v11060
        %v11066 = vlaneseq
        %v11067 = vshrl.u32 %v11066, 7
        %v11068 = vsub.s32 %v10817, %v11067
        %v11069 = vrot.slane %v10540, %v11068
        %v11070 = vsel %vm10822, %v11069, %v11065
        %v11071 = vlaneseq
        %v11072 = vshrl.u32 %v11071, 7
        %v11073 = vsub.s32 %v10824, %v11072
        %v11074 = vrot.slane %v10543, %v11073
        %v11075 = vsel %vm10829, %v11074, %v11070
        %v11076 = vlaneseq
        %v11077 = vshrl.u32 %v11076, 7
        %v11078 = vsub.s32 %v10831, %v11077
        %v11079 = vrot.slane %v10546, %v11078
        %v11080 = vsel %vm10836, %v11079, %v11075
        %v11081 = vlaneseq
        %v11082 = vshrl.u32 %v11081, 7
        %v11083 = vsub.s32 %v10838, %v11082
        %v11084 = vrot.slane %v10549, %v11083
        %v11085 = vsel %vm10843, %v11084, %v11080
        %v11086 = vlaneseq
        %v11087 = vshrl.u32 %v11086, 7
        %v11088 = vsub.s32 %v10845, %v11087
        %v11089 = vrot.slane %v10552, %v11088
        %v11090 = vsel %vm10850, %v11089, %v11085
        %v11091 = vlaneseq
        %v11092 = vshrl.u32 %v11091, 7
        %v11093 = vsub.s32 %v10852, %v11092
        %v11094 = vrot.slane %v10555, %v11093
        %v11095 = vsel %vm10857, %v11094, %v11090
        %v11096 = vlaneseq
        %v11097 = vshrl.u32 %v11096, 7
        %v11098 = vsub.s32 %v10749, %v11097
        %v11099 = vrot.slane %v10558, %v11098
        %v11100 = vlaneseq
        %v11101 = vshrl.u32 %v11100, 7
        %v11102 = vsub.s32 %v10754, %v11101
        %v11103 = vrot.slane %v10561, %v11102
        %v11104 = vsel %vm10759, %v11103, %v11099
        %v11105 = vlaneseq
        %v11106 = vshrl.u32 %v11105, 7
        %v11107 = vsub.s32 %v10761, %v11106
        %v11108 = vrot.slane %v10564, %v11107
        %v11109 = vsel %vm10766, %v11108, %v11104
        %v11110 = vlaneseq
        %v11111 = vshrl.u32 %v11110, 7
        %v11112 = vsub.s32 %v10768, %v11111
        %v11113 = vrot.slane %v10567, %v11112
        %v11114 = vsel %vm10773, %v11113, %v11109
        %v11115 = vlaneseq
        %v11116 = vshrl.u32 %v11115, 7
        %v11117 = vsub.s32 %v10775, %v11116
        %v11118 = vrot.slane %v10570, %v11117
        %v11119 = vsel %vm10780, %v11118, %v11114
        %v11120 = vlaneseq
        %v11121 = vshrl.u32 %v11120, 7
        %v11122 = vsub.s32 %v10782, %v11121
        %v11123 = vrot.slane %v10573, %v11122
        %v11124 = vsel %vm10787, %v11123, %v11119
        %v11125 = vlaneseq
        %v11126 = vshrl.u32 %v11125, 7
        %v11127 = vsub.s32 %v10789, %v11126
        %v11128 = vrot.slane %v10576, %v11127
        %v11129 = vsel %vm10794, %v11128, %v11124
        %v11130 = vlaneseq
        %v11131 = vshrl.u32 %v11130, 7
        %v11132 = vsub.s32 %v10796, %v11131
        %v11133 = vrot.slane %v10579, %v11132
        %v11134 = vsel %vm10801, %v11133, %v11129
        %v11135 = vlaneseq
        %v11136 = vshrl.u32 %v11135, 7
        %v11137 = vsub.s32 %v10803, %v11136
        %v11138 = vrot.slane %v10582, %v11137
        %v11139 = vsel %vm10808, %v11138, %v11134
        %v11140 = vlaneseq
        %v11141 = vshrl.u32 %v11140, 7
        %v11142 = vsub.s32 %v10810, %v11141
        %v11143 = vrot.slane %v10585, %v11142
        %v11144 = vsel %vm10815, %v11143, %v11139
        %v11145 = vlaneseq
        %v11146 = vshrl.u32 %v11145, 7
        %v11147 = vsub.s32 %v10817, %v11146
        %v11148 = vrot.slane %v10588, %v11147
        %v11149 = vsel %vm10822, %v11148, %v11144
        %v11150 = vlaneseq
        %v11151 = vshrl.u32 %v11150, 7
        %v11152 = vsub.s32 %v10824, %v11151
        %v11153 = vrot.slane %v10591, %v11152
        %v11154 = vsel %vm10829, %v11153, %v11149
        %v11155 = vlaneseq
        %v11156 = vshrl.u32 %v11155, 7
        %v11157 = vsub.s32 %v10831, %v11156
        %v11158 = vrot.slane %v10594, %v11157
        %v11159 = vsel %vm10836, %v11158, %v11154
        %v11160 = vlaneseq
        %v11161 = vshrl.u32 %v11160, 7
        %v11162 = vsub.s32 %v10838, %v11161
        %v11163 = vrot.slane %v10597, %v11162
        %v11164 = vsel %vm10843, %v11163, %v11159
        %v11165 = vlaneseq
        %v11166 = vshrl.u32 %v11165, 7
        %v11167 = vsub.s32 %v10845, %v11166
        %v11168 = vrot.slane %v10600, %v11167
        %v11169 = vsel %vm10850, %v11168, %v11164
        %v11170 = vlaneseq
        %v11171 = vshrl.u32 %v11170, 7
        %v11172 = vsub.s32 %v10852, %v11171
        %v11173 = vrot.slane %v10603, %v11172
        %v11174 = vsel %vm10857, %v11173, %v11169
        %v11175 = vlaneseq
        %v11176 = vshrl.u32 %v11175, 7
        %v11177 = vsub.s32 %v10749, %v11176
        %v11178 = vrot.slane %v10606, %v11177
        %v11179 = vlaneseq
        %v11180 = vshrl.u32 %v11179, 7
        %v11181 = vsub.s32 %v10754, %v11180
        %v11182 = vrot.slane %v10609, %v11181
        %v11183 = vsel %vm10759, %v11182, %v11178
        %v11184 = vlaneseq
        %v11185 = vshrl.u32 %v11184, 7
        %v11186 = vsub.s32 %v10761, %v11185
        %v11187 = vrot.slane %v10612, %v11186
        %v11188 = vsel %vm10766, %v11187, %v11183
        %v11189 = vlaneseq
        %v11190 = vshrl.u32 %v11189, 7
        %v11191 = vsub.s32 %v10768, %v11190
        %v11192 = vrot.slane %v10615, %v11191
        %v11193 = vsel %vm10773, %v11192, %v11188
        %v11194 = vlaneseq
        %v11195 = vshrl.u32 %v11194, 7
        %v11196 = vsub.s32 %v10775, %v11195
        %v11197 = vrot.slane %v10618, %v11196
        %v11198 = vsel %vm10780, %v11197, %v11193
        %v11199 = vlaneseq
        %v11200 = vshrl.u32 %v11199, 7
        %v11201 = vsub.s32 %v10782, %v11200
        %v11202 = vrot.slane %v10621, %v11201
        %v11203 = vsel %vm10787, %v11202, %v11198
        %v11204 = vlaneseq
        %v11205 = vshrl.u32 %v11204, 7
        %v11206 = vsub.s32 %v10789, %v11205
        %v11207 = vrot.slane %v10624, %v11206
        %v11208 = vsel %vm10794, %v11207, %v11203
        %v11209 = vlaneseq
        %v11210 = vshrl.u32 %v11209, 7
        %v11211 = vsub.s32 %v10796, %v11210
        %v11212 = vrot.slane %v10627, %v11211
        %v11213 = vsel %vm10801, %v11212, %v11208
        %v11214 = vlaneseq
        %v11215 = vshrl.u32 %v11214, 7
        %v11216 = vsub.s32 %v10803, %v11215
        %v11217 = vrot.slane %v10630, %v11216
        %v11218 = vsel %vm10808, %v11217, %v11213
        %v11219 = vlaneseq
        %v11220 = vshrl.u32 %v11219, 7
        %v11221 = vsub.s32 %v10810, %v11220
        %v11222 = vrot.slane %v10633, %v11221
        %v11223 = vsel %vm10815, %v11222, %v11218
        %v11224 = vlaneseq
        %v11225 = vshrl.u32 %v11224, 7
        %v11226 = vsub.s32 %v10817, %v11225
        %v11227 = vrot.slane %v10636, %v11226
        %v11228 = vsel %vm10822, %v11227, %v11223
        %v11229 = vlaneseq
        %v11230 = vshrl.u32 %v11229, 7
        %v11231 = vsub.s32 %v10824, %v11230
        %v11232 = vrot.slane %v10639, %v11231
        %v11233 = vsel %vm10829, %v11232, %v11228
        %v11234 = vlaneseq
        %v11235 = vshrl.u32 %v11234, 7
        %v11236 = vsub.s32 %v10831, %v11235
        %v11237 = vrot.slane %v10642, %v11236
        %v11238 = vsel %vm10836, %v11237, %v11233
        %v11239 = vlaneseq
        %v11240 = vshrl.u32 %v11239, 7
        %v11241 = vsub.s32 %v10838, %v11240
        %v11242 = vrot.slane %v10645, %v11241
        %v11243 = vsel %vm10843, %v11242, %v11238
        %v11244 = vlaneseq
        %v11245 = vshrl.u32 %v11244, 7
        %v11246 = vsub.s32 %v10845, %v11245
        %v11247 = vrot.slane %v10648, %v11246
        %v11248 = vsel %vm10850, %v11247, %v11243
        %v11249 = vlaneseq
        %v11250 = vshrl.u32 %v11249, 7
        %v11251 = vsub.s32 %v10852, %v11250
        %v11252 = vrot.slane %v10651, %v11251
        %v11253 = vsel %vm10857, %v11252, %v11248
        %v11254 = vlaneseq
        %v11255 = vshrl.u32 %v11254, 7
        %v11256 = vsub.s32 %v10749, %v11255
        %v11257 = vrot.slane %v10654, %v11256
        %v11258 = vlaneseq
        %v11259 = vshrl.u32 %v11258, 7
        %v11260 = vsub.s32 %v10754, %v11259
        %v11261 = vrot.slane %v10657, %v11260
        %v11262 = vsel %vm10759, %v11261, %v11257
        %v11263 = vlaneseq
        %v11264 = vshrl.u32 %v11263, 7
        %v11265 = vsub.s32 %v10761, %v11264
        %v11266 = vrot.slane %v10660, %v11265
        %v11267 = vsel %vm10766, %v11266, %v11262
        %v11268 = vlaneseq
        %v11269 = vshrl.u32 %v11268, 7
        %v11270 = vsub.s32 %v10768, %v11269
        %v11271 = vrot.slane %v10663, %v11270
        %v11272 = vsel %vm10773, %v11271, %v11267
        %v11273 = vlaneseq
        %v11274 = vshrl.u32 %v11273, 7
        %v11275 = vsub.s32 %v10775, %v11274
        %v11276 = vrot.slane %v10666, %v11275
        %v11277 = vsel %vm10780, %v11276, %v11272
        %v11278 = vlaneseq
        %v11279 = vshrl.u32 %v11278, 7
        %v11280 = vsub.s32 %v10782, %v11279
        %v11281 = vrot.slane %v10669, %v11280
        %v11282 = vsel %vm10787, %v11281, %v11277
        %v11283 = vlaneseq
        %v11284 = vshrl.u32 %v11283, 7
        %v11285 = vsub.s32 %v10789, %v11284
        %v11286 = vrot.slane %v10672, %v11285
        %v11287 = vsel %vm10794, %v11286, %v11282
        %v11288 = vlaneseq
        %v11289 = vshrl.u32 %v11288, 7
        %v11290 = vsub.s32 %v10796, %v11289
        %v11291 = vrot.slane %v10675, %v11290
        %v11292 = vsel %vm10801, %v11291, %v11287
        %v11293 = vlaneseq
        %v11294 = vshrl.u32 %v11293, 7
        %v11295 = vsub.s32 %v10803, %v11294
        %v11296 = vrot.slane %v10678, %v11295
        %v11297 = vsel %vm10808, %v11296, %v11292
        %v11298 = vlaneseq
        %v11299 = vshrl.u32 %v11298, 7
        %v11300 = vsub.s32 %v10810, %v11299
        %v11301 = vrot.slane %v10681, %v11300
        %v11302 = vsel %vm10815, %v11301, %v11297
        %v11303 = vlaneseq
        %v11304 = vshrl.u32 %v11303, 7
        %v11305 = vsub.s32 %v10817, %v11304
        %v11306 = vrot.slane %v10684, %v11305
        %v11307 = vsel %vm10822, %v11306, %v11302
        %v11308 = vlaneseq
        %v11309 = vshrl.u32 %v11308, 7
        %v11310 = vsub.s32 %v10824, %v11309
        %v11311 = vrot.slane %v10687, %v11310
        %v11312 = vsel %vm10829, %v11311, %v11307
        %v11313 = vlaneseq
        %v11314 = vshrl.u32 %v11313, 7
        %v11315 = vsub.s32 %v10831, %v11314
        %v11316 = vrot.slane %v10690, %v11315
        %v11317 = vsel %vm10836, %v11316, %v11312
        %v11318 = vlaneseq
        %v11319 = vshrl.u32 %v11318, 7
        %v11320 = vsub.s32 %v10838, %v11319
        %v11321 = vrot.slane %v10693, %v11320
        %v11322 = vsel %vm10843, %v11321, %v11317
        %v11323 = vlaneseq
        %v11324 = vshrl.u32 %v11323, 7
        %v11325 = vsub.s32 %v10845, %v11324
        %v11326 = vrot.slane %v10696, %v11325
        %v11327 = vsel %vm10850, %v11326, %v11322
        %v11328 = vlaneseq
        %v11329 = vshrl.u32 %v11328, 7
        %v11330 = vsub.s32 %v10852, %v11329
        %v11331 = vrot.slane %v10699, %v11330
        %v11332 = vsel %vm10857, %v11331, %v11327
        %v11333 = vlaneseq
        %v11334 = vshrl.u32 %v11333, 7
        %v11335 = vsub.s32 %v10749, %v11334
        %v11336 = vrot.slane %v10702, %v11335
        %v11337 = vlaneseq
        %v11338 = vshrl.u32 %v11337, 7
        %v11339 = vsub.s32 %v10754, %v11338
        %v11340 = vrot.slane %v10705, %v11339
        %v11341 = vsel %vm10759, %v11340, %v11336
        %v11342 = vlaneseq
        %v11343 = vshrl.u32 %v11342, 7
        %v11344 = vsub.s32 %v10761, %v11343
        %v11345 = vrot.slane %v10708, %v11344
        %v11346 = vsel %vm10766, %v11345, %v11341
        %v11347 = vlaneseq
        %v11348 = vshrl.u32 %v11347, 7
        %v11349 = vsub.s32 %v10768, %v11348
        %v11350 = vrot.slane %v10711, %v11349
        %v11351 = vsel %vm10773, %v11350, %v11346
        %v11352 = vlaneseq
        %v11353 = vshrl.u32 %v11352, 7
        %v11354 = vsub.s32 %v10775, %v11353
        %v11355 = vrot.slane %v10714, %v11354
        %v11356 = vsel %vm10780, %v11355, %v11351
        %v11357 = vlaneseq
        %v11358 = vshrl.u32 %v11357, 7
        %v11359 = vsub.s32 %v10782, %v11358
        %v11360 = vrot.slane %v10717, %v11359
        %v11361 = vsel %vm10787, %v11360, %v11356
        %v11362 = vlaneseq
        %v11363 = vshrl.u32 %v11362, 7
        %v11364 = vsub.s32 %v10789, %v11363
        %v11365 = vrot.slane %v10720, %v11364
        %v11366 = vsel %vm10794, %v11365, %v11361
        %v11367 = vlaneseq
        %v11368 = vshrl.u32 %v11367, 7
        %v11369 = vsub.s32 %v10796, %v11368
        %v11370 = vrot.slane %v10723, %v11369
        %v11371 = vsel %vm10801, %v11370, %v11366
        %v11372 = vlaneseq
        %v11373 = vshrl.u32 %v11372, 7
        %v11374 = vsub.s32 %v10803, %v11373
        %v11375 = vrot.slane %v10726, %v11374
        %v11376 = vsel %vm10808, %v11375, %v11371
        %v11377 = vlaneseq
        %v11378 = vshrl.u32 %v11377, 7
        %v11379 = vsub.s32 %v10810, %v11378
        %v11380 = vrot.slane %v10729, %v11379
        %v11381 = vsel %vm10815, %v11380, %v11376
        %v11382 = vlaneseq
        %v11383 = vshrl.u32 %v11382, 7
        %v11384 = vsub.s32 %v10817, %v11383
        %v11385 = vrot.slane %v10732, %v11384
        %v11386 = vsel %vm10822, %v11385, %v11381
        %v11387 = vlaneseq
        %v11388 = vshrl.u32 %v11387, 7
        %v11389 = vsub.s32 %v10824, %v11388
        %v11390 = vrot.slane %v10735, %v11389
        %v11391 = vsel %vm10829, %v11390, %v11386
        %v11392 = vlaneseq
        %v11393 = vshrl.u32 %v11392, 7
        %v11394 = vsub.s32 %v10831, %v11393
        %v11395 = vrot.slane %v10738, %v11394
        %v11396 = vsel %vm10836, %v11395, %v11391
        %v11397 = vlaneseq
        %v11398 = vshrl.u32 %v11397, 7
        %v11399 = vsub.s32 %v10838, %v11398
        %v11400 = vrot.slane %v10741, %v11399
        %v11401 = vsel %vm10843, %v11400, %v11396
        %v11402 = vlaneseq
        %v11403 = vshrl.u32 %v11402, 7
        %v11404 = vsub.s32 %v10845, %v11403
        %v11405 = vrot.slane %v10744, %v11404
        %v11406 = vsel %vm10850, %v11405, %v11401
        %v11407 = vlaneseq
        %v11408 = vshrl.u32 %v11407, 7
        %v11409 = vsub.s32 %v10852, %v11408
        %v11410 = vrot.slane %v10747, %v11409
        %v11411 = vsel %vm10857, %v11410, %v11406
        %v11412 = vpack.c.b16 %v10937, %v10858
        %v11413 = vpack.c.b16 %v11095, %v11016
        %v11414 = vpack.c.b16 %v11253, %v11174
        %v11415 = vpack.c.b16 %v11411, %v11332
        %v11417 = vunpack.c.l.s4 1966171168
        %v11418 = vunpack.c.0.s8 %v11417
        %v11419 = vlaneseq
        %v11420 = vshrl.u32 %v11419, 7
        %v11421 = vsub.s32 %v11418, %v11420
        %v11422 = vrot.slane %v11412, %v11421
        %v11424 = vunpack.c.l.s4 1966171168
        %v11425 = vunpack.c.0.s8 %v11424
        %v11426 = vlaneseq
        %v11427 = vshrl.u32 %v11426, 7
        %v11428 = vsub.s32 %v11425, %v11427
        %v11429 = vrot.slane %v11413, %v11428
        %v11431 = vunpack.c.l.s4 1966171168
        %v11432 = vunpack.c.0.s8 %v11431
        %v11433 = vlaneseq
        %v11434 = vshrl.u32 %v11433, 7
        %v11435 = vsub.s32 %v11432, %v11434
        %v11436 = vrot.slane %v11414, %v11435
        %v11438 = vunpack.c.l.s4 1966171168
        %v11439 = vunpack.c.0.s8 %v11438
        %v11440 = vlaneseq
        %v11441 = vshrl.u32 %v11440, 7
        %v11442 = vsub.s32 %v11439, %v11441
        %v11443 = vrot.slane %v11415, %v11442
        %v11444 = vcombine.low %v11422, %v11429
        %v11445 = vcombine.low %v11436, %v11443
        %v11447 = vunpack.c.l.s4 1966171168
        %v11448 = vunpack.c.0.s8 %v11447
        %v11449 = vlaneseq
        %v11450 = vshrl.u32 %v11449, 7
        %v11451 = vsub.s32 %v11448, %v11450
        %v11452 = vrot.slane %v11444, %v11451
        %v11454 = vunpack.c.l.s4 1966171168
        %v11455 = vunpack.c.0.s8 %v11454
        %v11456 = vlaneseq
        %v11457 = vshrl.u32 %v11456, 7
        %v11458 = vsub.s32 %v11455, %v11457
        %v11459 = vrot.slane %v11445, %v11458
        %v11460 = vcombine.low %v11452, %v11459
        %vm11462 = vcmask 1040384
        %vm11463 = vsmask.f32 256
        %vm11464 = vmand %vm11462, %vm11463
        %vm11465 = vcmask 1041409
        %vm11466 = vsmask.f32 1280
        %vm11467 = vmand %vm11465, %vm11466
        %vm11468 = vmor %vm11467, %vm11464
        %vm11469 = vcmask 1042434
        %vm11470 = vsmask.f32 2304
        %vm11471 = vmand %vm11469, %vm11470
        %vm11472 = vmor %vm11471, %vm11468
        %vm11473 = vcmask 1043459
        %vm11474 = vsmask.f32 3328
        %vm11475 = vmand %vm11473, %vm11474
        %vm11476 = vmor %vm11475, %vm11472
        %vm11477 = vcmask 1044484
        %vm11478 = vsmask.f32 4352
        %vm11479 = vmand %vm11477, %vm11478
        %vm11480 = vmor %vm11479, %vm11476
        %vm11481 = vcmask 1045509
        %vm11482 = vsmask.f32 5376
        %vm11483 = vmand %vm11481, %vm11482
        %vm11484 = vmor %vm11483, %vm11480
        %vm11485 = vcmask 1046534
        %vm11486 = vsmask.f32 6400
        %vm11487 = vmand %vm11485, %vm11486
        %vm11488 = vmor %vm11487, %vm11484
        %vm11489 = vcmask 1047559
        %vm11490 = vsmask.f32 7424
        %vm11491 = vmand %vm11489, %vm11490
        %vm11492 = vmor %vm11491, %vm11488
        %v11493 = vld [vmem:[%s304] sm:$0xff]
        %v11494 = vsel %vm11492, %v11460, %v11493
        %11495 = vst [vmem:[%s304] sm:$0xff] %v11494
      $region56: #{tpu_custom_call.1} parent=47 // pred_fallthru
        _
      %p11496 = scmp.lt.s32.totalorder %s22, 1
      %s11497 = scalar_select %p11496, %s22, 1
      %s11498 = smul.addr %s11497, 8
      %s11499 = scalar_lea.vmem %s7, %s11498
      // Predicated region
      $region57: #{tpu_custom_call.1} parent=47 // pred_check
        %p11500 = pneg %p202
      $region58: #{tpu_custom_call.1} parent=47 // pred_check_branch
        %11502 = sbr.rel (%p11500) target = $region60
      $region59: #{tpu_custom_call.1} parent=47 // pred_region
        _
      $region60: #{tpu_custom_call.1} parent=47 // pred_fallthru
        _
    $region48: #{tpu_custom_call.1} parent=5 // pred_fallthru
      _
    %p11503 = scmp.le.s32.totalorder 2, %s13
    // Predicated region
    $region61: #{tpu_custom_call.1} parent=5 // pred_check
      %p11504 = pneg %p11503
    $region62: #{tpu_custom_call.1} parent=5 // pred_check_branch
      %11506 = sbr.rel (%p11504) target = $region64
    $region63: #{tpu_custom_call.1} parent=5 // pred_region
      %s11507 = ssub.s32 %s13, 2
      // Predicated region
      $region65: #{tpu_custom_call.1} parent=63 // pred_check
        %p11508 = pneg %p208
      $region66: #{tpu_custom_call.1} parent=63 // pred_check_branch
        %11510 = sbr.rel (%p11508) target = $region68
      $region67: #{tpu_custom_call.1} parent=63 // pred_region
        %p11511 = scmp.lt.s32.totalorder %s24, 1
        %s11512 = scalar_select %p11511, %s24, 1
        %s11513 = smul.addr %s11512, 8
        %s11514 = scalar_lea.vmem %s7, %s11513
      $region68: #{tpu_custom_call.1} parent=63 // pred_fallthru
        _
    $region64: #{tpu_custom_call.1} parent=5 // pred_fallthru
      _
  $region6: #{tpu_custom_call.1} parent=0 // loop_footer
    %s17 = sadd.s32 1, %s13
  $region7: #{tpu_custom_call.1} parent=0 // loop_footer_branch
    %12 = sbr.rel target = $region3
  $region8: #{tpu_custom_call.1} parent=0 // loop_exit
    _

</llo_original>
